<compile_context>
chip_gen: v7x
topology: tpu7x:2x2x1
jax: 0.10.0
libtpu: 0.0.40
codegen_flags: <defaults>
</compile_context>

<pallas_src>
import functools

import jax
import jax.numpy as jnp
from jax.experimental import pallas as pl
from jax.experimental.pallas import tpu as pltpu

VMEM_LIMIT = 32 * 1024 * 1024  # explicit scoped-VMEM budget (v5e default is 16 MiB)


# ----------------------------- tiling helpers ------------------------------

def _pick_row_tile(m, unit, cap=1024):
    """Largest multiple of `unit` that divides m and is <= cap, preferring a
    choice that leaves >= 2 grid steps (v7x has two TensorCores).  Avoids any
    M-padding HBM copy of the (already blown-up) im2col patch tensor."""
    cands = [t for t in range(unit, min(cap, m) + 1, unit)
             if m % t == 0 and (t % 8 == 0 or t == m)]
    if not cands:
        return m
    two_step = [t for t in cands if m // t >= 2]
    return max(two_step) if two_step else max(cands)


def _pick_bb(n, e_pad):
    """Batch tile for the conv2/relational kernels: fill ~512 MXU rows
    (bb * e_pad) but keep >= 2 grid steps when the batch allows it (v7x TCs)."""
    bb = max(1, 512 // e_pad)
    if n >= 2:
        bb = min(bb, (n + 1) // 2)
    return max(1, bb)


# ----------------------------- Pallas kernels ------------------------------

def _linear_kernel(x_ref, w_ref, b_ref, o_ref, *, relu, scale):
    # bf16 matmul on the MXU, f32 accumulate, fused scale/bias/ReLU epilogue.
    y = jnp.dot(x_ref[...], w_ref[...], preferred_element_type=jnp.float32)
    if scale != 1.0:
        y = y * scale
    y = y + b_ref[...]
    if relu:
        y = jnp.maximum(y, 0.0)
    o_ref[...] = y.astype(o_ref.dtype)


def linear_tiled(x, w, b, *, relu=False, scale=1.0, out_dtype=jnp.float32, tile_m):
    """x: (M, K) bf16, w: (K, N) bf16, b: (1, N) f32 -> (M, N). tile_m | M."""
    m, k = x.shape
    n_out = w.shape[1]
    assert m % tile_m == 0
    return pl.pallas_call(
        functools.partial(_linear_kernel, relu=relu, scale=scale),
        out_shape=jax.ShapeDtypeStruct((m, n_out), out_dtype),
        grid=(m // tile_m,),
        in_specs=[pl.BlockSpec((tile_m, k), lambda i: (i, 0)),
                  pl.BlockSpec((k, n_out), lambda i: (0, 0)),
                  pl.BlockSpec((1, n_out), lambda i: (0, 0))],
        out_specs=pl.BlockSpec((tile_m, n_out), lambda i: (i, 0)),
        compiler_params=pltpu.CompilerParams(
            dimension_semantics=("parallel",),
            vmem_limit_bytes=VMEM_LIMIT),
    )(x, w, b)


def _conv2_entity_kernel(x_ref, w_ref, b_ref, o_ref, *,
                         bb, e, e_pad, h2, w2, c_feat):
    # conv2 matmul + ReLU; coordinate channels generated in-kernel from iotas
    # (no div/mod: iy via static threshold sums) and written into the last two
    # lanes; padded entity rows (index >= e) are zeroed.
    y = jnp.dot(x_ref[...], w_ref[...], preferred_element_type=jnp.float32)
    y = jnp.maximum(y + b_ref[...], 0.0)
    rows, lanes = y.shape
    y3 = y.reshape(bb, e_pad, lanes)                    # e_pad % 8 == 0 -> free

    r = jax.lax.broadcasted_iota(jnp.int32, (bb, e_pad, 1), 1)   # entity idx in image
    iy = jnp.zeros_like(r)
    for t in range(1, h2):                              # h2 static & small
        iy = iy + (r >= t * w2).astype(jnp.int32)
    ix = r - iy * w2
    sy = (2.0 / (h2 - 1)) if h2 > 1 else 0.0
    sx = (2.0 / (w2 - 1)) if w2 > 1 else 0.0
    cy = iy.astype(jnp.float32) * sy - 1.0
    cx = ix.astype(jnp.float32) * sx - 1.0

    lane = jax.lax.broadcasted_iota(jnp.int32, (bb, e_pad, lanes), 2)
    y3 = jnp.where(lane == c_feat, cy, y3)
    y3 = jnp.where(lane == c_feat + 1, cx, y3)
    y3 = jnp.where(r < e, y3, 0.0)                      # zero padded entity rows
    o_ref[...] = y3.reshape(rows, lanes).astype(o_ref.dtype)


def conv2_entities(cols, w, b, *, bb, e, e_pad, h2, w2, c_feat):
    """cols: (N_pad*E_pad, K2) bf16 -> entities (N_pad*E_pad, 512) bf16."""
    m, k2 = cols.shape
    n_out = w.shape[1]
    rows = bb * e_pad
    return pl.pallas_call(
        functools.partial(_conv2_entity_kernel, bb=bb, e=e, e_pad=e_pad,
                          h2=h2, w2=w2, c_feat=c_feat),
        out_shape=jax.ShapeDtypeStruct((m, n_out), jnp.bfloat16),
        grid=(m // rows,),
        in_specs=[pl.BlockSpec((rows, k2), lambda i: (i, 0)),
                  pl.BlockSpec((k2, n_out), lambda i: (0, 0)),
                  pl.BlockSpec((1, n_out), lambda i: (0, 0))],
        out_specs=pl.BlockSpec((rows, n_out), lambda i: (i, 0)),
        compiler_params=pltpu.CompilerParams(
            dimension_semantics=("parallel",),
            vmem_limit_bytes=VMEM_LIMIT),
    )(cols, w, b)


def _relational_kernel(ent_ref, wqkv_ref, bqkv_ref, wo_ref, bo_ref,
                       wc_ref, bc_ref, val_ref, attn_scr, *,
                       bb, e, e_pad, heads, dh, dh_pad, hidden):
    # Fused relational block for one tile of `bb` images:
    #   qkv projection -> batched per-head attention (bb as batch dim)
    #   -> output projection -> masked maxout over entities -> critic head.
    scale = 1.0 / (dh ** 0.5)                           # real head dim; pad lanes add 0

    ent = ent_ref[...]                                  # (bb*e_pad, hidden) bf16
    qkv = jnp.dot(ent, wqkv_ref[...],
                  preferred_element_type=jnp.float32) + bqkv_ref[...]
    qkv3 = qkv.reshape(bb, e_pad, 3 * heads * dh_pad)   # e_pad % 8 == 0 -> free
    kmask = jax.lax.broadcasted_iota(jnp.int32, (bb, e_pad, e_pad), 2) < e

    for h in range(heads):                              # 4-way; results -> scratch slot
        q = qkv3[:, :, h * dh_pad:(h + 1) * dh_pad].astype(jnp.bfloat16)
        k = qkv3[:, :, (heads + h) * dh_pad:
                       (heads + h + 1) * dh_pad].astype(jnp.bfloat16)
        v = qkv3[:, :, (2 * heads + h) * dh_pad:
                       (2 * heads + h + 1) * dh_pad].astype(jnp.bfloat16)
        s = jnp.einsum('bqd,bkd->bqk', q, k,
                       preferred_element_type=jnp.float32) * scale
        s = jnp.where(kmask, s, -1e30)                  # mask padded keys
        s = s - jnp.max(s, axis=-1, keepdims=True)
        p = jnp.exp(s)
        p = p / jnp.sum(p, axis=-1, keepdims=True)      # exact division (no approx)
        o = jnp.einsum('bqk,bkd->bqd', p.astype(jnp.bfloat16), v,
                       preferred_element_type=jnp.float32)
        attn_scr[:, h * dh_pad:(h + 1) * dh_pad] = (
            o.reshape(bb * e_pad, dh_pad).astype(attn_scr.dtype))

    proj = jnp.dot(attn_scr[...], wo_ref[...],
                   preferred_element_type=jnp.float32) + bo_ref[...]  # (bb*e_pad, hidden)
    proj3 = proj.reshape(bb, e_pad, hidden)
    rmask = jax.lax.broadcasted_iota(jnp.int32, (bb, e_pad, hidden), 1) < e
    pooled = jnp.max(jnp.where(rmask, proj3, -1e30), axis=1)          # (bb, hidden)

    val = jnp.dot(pooled.astype(jnp.bfloat16), wc_ref[...],
                  preferred_element_type=jnp.float32) + bc_ref[...]   # (bb, 1)
    val_ref[...] = val.reshape(1, bb, 1)


def relational_critic(ent, params, *, bb, e, e_pad, heads, dh, dh_pad, hidden):
    """ent: (N_pad*E_pad, hidden) bf16 -> critic value (N_pad, 1) f32."""
    m = ent.shape[0]
    n_pad = m // e_pad
    tiles = n_pad // bb
    full = lambda i: (0, 0)
    out = pl.pallas_call(
        functools.partial(_relational_kernel, bb=bb, e=e, e_pad=e_pad,
                          heads=heads, dh=dh, dh_pad=dh_pad, hidden=hidden),
        out_shape=jax.ShapeDtypeStruct((tiles, bb, 1), jnp.float32),
        grid=(tiles,),
        in_specs=[pl.BlockSpec((bb * e_pad, hidden), lambda i: (i, 0)),
                  pl.BlockSpec(params["wqkv"].shape, full),
                  pl.BlockSpec(params["bqkv"].shape, full),
                  pl.BlockSpec(params["wo"].shape, full),
                  pl.BlockSpec(params["bo"].shape, full),
                  pl.BlockSpec(params["wc"].shape, full),
                  pl.BlockSpec(params["bc"].shape, full)],
        out_specs=pl.BlockSpec((1, bb, 1), lambda i: (i, 0, 0)),
        scratch_shapes=[pltpu.VMEM((bb * e_pad, heads * dh_pad), jnp.bfloat16)],
        compiler_params=pltpu.CompilerParams(
            dimension_semantics=("parallel",),
            vmem_limit_bytes=VMEM_LIMIT),
    )(ent, params["wqkv"], params["bqkv"], params["wo"], params["bo"],
      params["wc"], params["bc"])
    return out.reshape(n_pad, 1)


# ------------------------------- glue (JAX) --------------------------------

def im2col_nhwc(x, k, s):
    """x: (N, H, W, C) -> (N*Ho*Wo, k*k*C); columns ordered (kh, kw, c)."""
    n, h, w, c = x.shape
    ho = (h - k) // s + 1
    wo = (w - k) // s + 1
    patches = [x[:, i:i + s * (ho - 1) + 1:s, j:j + s * (wo - 1) + 1:s, :]
               for i in range(k) for j in range(k)]
    cols = jnp.concatenate(patches, axis=-1)
    return cols.reshape(n * ho * wo, k * k * c), ho, wo


def init_params(key, num_inputs, hidden=512, qk_dim=256, v_dim=256, heads=4):
    ks = jax.random.split(key, 8)
    dh_q, dh_v, dh_pad = qk_dim // heads, v_dim // heads, 128
    c_feat = hidden - 2

    def nrm(k, shape, scale=0.05):
        return scale * jax.random.normal(k, shape, jnp.float32)

    # conv1: Conv2d(num_inputs, 64, 8, stride=4); rows ordered (kh, kw, c_in)
    w1 = nrm(ks[0], (8 * 8 * num_inputs, 64)).astype(jnp.bfloat16)
    b1 = jnp.zeros((1, 64), jnp.float32)

    # conv2: Conv2d(64, 510, 4, stride=2) zero-padded to a lane-dense 512 outputs
    # (lanes 510/511 are overwritten with the coordinate channels in-kernel).
    w2 = jnp.zeros((4 * 4 * 64, hidden), jnp.float32)
    w2 = w2.at[:, :c_feat].set(nrm(ks[1], (4 * 4 * 64, c_feat))).astype(jnp.bfloat16)
    b2 = jnp.zeros((1, hidden), jnp.float32)

    # fused q/k/v projection: per-head slots padded 64 -> 128 lanes so all
    # in-kernel head slices are 128-aligned (zero columns are mathematically inert).
    wq, wk, wv = (nrm(ks[2], (hidden, qk_dim)), nrm(ks[3], (hidden, qk_dim)),
                  nrm(ks[4], (hidden, v_dim)))
    wqkv = jnp.zeros((hidden, 3 * heads * dh_pad), jnp.float32)
    for h in range(heads):
        wqkv = wqkv.at[:, h * dh_pad:h * dh_pad + dh_q].set(
            wq[:, h * dh_q:(h + 1) * dh_q])
        wqkv = wqkv.at[:, (heads + h) * dh_pad:(heads + h) * dh_pad + dh_q].set(
            wk[:, h * dh_q:(h + 1) * dh_q])
        wqkv = wqkv.at[:, (2 * heads + h) * dh_pad:(2 * heads + h) * dh_pad + dh_v].set(
            wv[:, h * dh_v:(h + 1) * dh_v])
    bqkv = jnp.zeros((1, 3 * heads * dh_pad), jnp.float32)

    # output projection back to hidden, rows padded to match the padded head layout
    wo_real = nrm(ks[5], (v_dim, hidden))
    wo = jnp.zeros((heads * dh_pad, hidden), jnp.float32)
    for h in range(heads):
        wo = wo.at[h * dh_pad:h * dh_pad + dh_v, :].set(
            wo_real[h * dh_v:(h + 1) * dh_v, :])
    bo = jnp.zeros((1, hidden), jnp.float32)

    # critic_linear: Linear(hidden, 1)
    wc = nrm(ks[6], (hidden, 1)).astype(jnp.bfloat16)
    bc = jnp.zeros((1, 1), jnp.float32)

    return {"w1": w1, "b1": b1, "w2": w2, "b2": b2,
            "wqkv": wqkv.astype(jnp.bfloat16), "bqkv": bqkv,
            "wo": wo.astype(jnp.bfloat16), "bo": bo, "wc": wc, "bc": bc}


def gnn_base_forward(params, inputs):
    """inputs: (N, C, H, W) uint8-range floats.  Returns critic value (N, 1)."""
    n = inputs.shape[0]
    hidden, heads, qk_dim = 512, 4, 256
    dh, dh_pad = qk_dim // heads, 128
    c_feat = hidden - 2

    # NHWC, bf16 activations (MXU inputs; half the HBM traffic)
    x = jnp.transpose(inputs, (0, 2, 3, 1)).astype(jnp.bfloat16)

    # ---- main: Conv(8, s4) + ReLU (the /255 scaling fused into the epilogue) ----
    cols1, h1, w1 = im2col_nhwc(x, 8, 4)                       # (N*H1*W1, 8*8*C)
    tile_m = _pick_row_tile(cols1.shape[0], h1 * w1)           # divides M: no pad copy
    y1 = linear_tiled(cols1, params["w1"], params["b1"], relu=True,
                      scale=1.0 / 255.0, out_dtype=jnp.bfloat16, tile_m=tile_m)
    x1 = y1.reshape(n, h1, w1, 64)                             # NHWC

    # ---- main: Conv(4, s2) + ReLU + coord channels (lane-dense 512 entities) ----
    cols2, h2, w2 = im2col_nhwc(x1, 4, 2)                      # (N*E, 1024)
    e = h2 * w2
    e_pad = ((e + 7) // 8) * 8                                 # sublane-aligned entities
    bb = _pick_bb(n, e_pad)
    n_pad = ((n + bb - 1) // bb) * bb
    k2 = cols2.shape[1]
    cols2 = cols2.reshape(n, e, k2)
    cols2 = jnp.pad(cols2, ((0, n_pad - n), (0, e_pad - e), (0, 0)))
    cols2 = cols2.reshape(n_pad * e_pad, k2)

    ent = conv2_entities(cols2, params["w2"], params["b2"], bb=bb, e=e,
                         e_pad=e_pad, h2=h2, w2=w2, c_feat=c_feat)

    # ---- fused relational attention + maxout + critic head (single kernel) ----
    value = relational_critic(ent, params, bb=bb, e=e, e_pad=e_pad,
                              heads=heads, dh=dh, dh_pad=dh_pad, hidden=hidden)
    return value[:n]


# ---------------------------------- main ------------------------------------

if __name__ == "__main__":
    key = jax.random.PRNGKey(0)
    pkey, xkey = jax.random.split(key)

    N, C, H, W = 2, 4, 36, 36            # -> conv1: 8x8, conv2: 3x3, E = 9 (padded to 16)
    inputs = jax.random.uniform(xkey, (N, C, H, W), jnp.float32, 0.0, 255.0)
    params = init_params(pkey, num_inputs=C)

    out = jax.jit(gnn_base_forward)(params, inputs)
    out = jax.block_until_ready(out)
    assert out.shape == (N, 1) and out.dtype == jnp.float32
    print("KERNEL_OK")
</pallas_src>

<mosaic_0001>
module attributes {stable_mosaic.version = 11 : i64} {
  func.func @_linear_kernel(%arg0: i32, %arg1: memref<64x256xbf16, #tpu.memory_space<vmem>>, %arg2: memref<256x64xbf16, #tpu.memory_space<vmem>>, %arg3: memref<1x64xf32, #tpu.memory_space<vmem>>, %arg4: memref<64x64xbf16, #tpu.memory_space<vmem>>) attributes {dimension_semantics = [#tpu.dimension_semantics<parallel>], iteration_bounds = array<i64: 2>, scalar_prefetch = 0 : i64, scratch_operands = 0 : i64, tpu.core_type = #tpu.core_type<tc>, window_params = [{transform_indices = @transform_0, window_bounds = array<i64: 64, 256>}, {pipeline_mode = #tpu.pipeline_mode<synchronous>, transform_indices = @transform_1, window_bounds = array<i64: 256, 64>}, {pipeline_mode = #tpu.pipeline_mode<synchronous>, transform_indices = @transform_2, window_bounds = array<i64: 1, 64>}, {transform_indices = @transform_3, window_bounds = array<i64: 64, 64>}]} {
    %c0 = arith.constant 0 : index
    %c0_0 = arith.constant 0 : index
    %0 = vector.load %arg1[%c0, %c0_0] : memref<64x256xbf16, #tpu.memory_space<vmem>>, vector<64x256xbf16>
    %c0_1 = arith.constant 0 : index
    %c0_2 = arith.constant 0 : index
    %1 = vector.load %arg2[%c0_1, %c0_2] : memref<256x64xbf16, #tpu.memory_space<vmem>>, vector<256x64xbf16>
    %cst = arith.constant dense<0.000000e+00> : vector<64x64xf32>
    %2 = tpu.matmul %0, %1, %cst {dimension_numbers = #tpu.dot_dimension_numbers<[1], [0], [0], [1], [0, 0, 1, 1], [], []>} : vector<64x256xbf16>, vector<256x64xbf16>, vector<64x64xf32> -> vector<64x64xf32>
    %cst_3 = arith.constant 0.00392156886 : f32
    %3 = vector.broadcast %cst_3 : f32 to vector<64x64xf32>
    %4 = arith.mulf %2, %3 : vector<64x64xf32>
    %c0_4 = arith.constant 0 : index
    %c0_5 = arith.constant 0 : index
    %5 = vector.load %arg3[%c0_4, %c0_5] : memref<1x64xf32, #tpu.memory_space<vmem>>, vector<1x64xf32>
    %6 = vector.broadcast %5 : vector<1x64xf32> to vector<64x64xf32>
    %7 = arith.addf %4, %6 : vector<64x64xf32>
    %cst_6 = arith.constant 0.000000e+00 : f32
    %8 = vector.broadcast %cst_6 : f32 to vector<64x64xf32>
    %9 = arith.maximumf %7, %8 : vector<64x64xf32>
    %10 = arith.truncf %9 : vector<64x64xf32> to vector<64x64xbf16>
    %c0_7 = arith.constant 0 : index
    %c0_8 = arith.constant 0 : index
    %11 = vector.load %arg4[%c0_7, %c0_8] : memref<64x64xbf16, #tpu.memory_space<vmem>>, vector<64x64xbf16>
    tpu.vector_store %arg4[%c0_7, %c0_8], %10 {strides = array<i32>} : memref<64x64xbf16, #tpu.memory_space<vmem>>, vector<64x64xbf16>,
    return
  }
  func.func @transform_0(%arg0: i32) -> (i32, i32) {
    %c0_i32 = arith.constant 0 : i32
    %c0_i32_0 = arith.constant 0 : i32
    return %arg0, %c0_i32 : i32, i32
  }
  func.func @transform_1(%arg0: i32) -> (i32, i32) {
    %c0_i32 = arith.constant 0 : i32
    %c0_i32_0 = arith.constant 0 : i32
    %c0_i32_1 = arith.constant 0 : i32
    return %c0_i32, %c0_i32_0 : i32, i32
  }
  func.func @transform_2(%arg0: i32) -> (i32, i32) {
    %c0_i32 = arith.constant 0 : i32
    %c0_i32_0 = arith.constant 0 : i32
    %c0_i32_1 = arith.constant 0 : i32
    return %c0_i32, %c0_i32_0 : i32, i32
  }
  func.func @transform_3(%arg0: i32) -> (i32, i32) {
    %c0_i32 = arith.constant 0 : i32
    %c0_i32_0 = arith.constant 0 : i32
    return %arg0, %c0_i32 : i32, i32
  }
}

module attributes {stable_mosaic.version = 11 : i64} {
  func.func @_conv2_entity_kernel(%arg0: i32, %arg1: memref<16x1024xbf16, #tpu.memory_space<vmem>>, %arg2: memref<1024x512xbf16, #tpu.memory_space<vmem>>, %arg3: memref<1x512xf32, #tpu.memory_space<vmem>>, %arg4: memref<16x512xbf16, #tpu.memory_space<vmem>>) attributes {dimension_semantics = [#tpu.dimension_semantics<parallel>], iteration_bounds = array<i64: 2>, scalar_prefetch = 0 : i64, scratch_operands = 0 : i64, tpu.core_type = #tpu.core_type<tc>, window_params = [{transform_indices = @transform_0, window_bounds = array<i64: 16, 1024>}, {pipeline_mode = #tpu.pipeline_mode<synchronous>, transform_indices = @transform_1, window_bounds = array<i64: 1024, 512>}, {pipeline_mode = #tpu.pipeline_mode<synchronous>, transform_indices = @transform_2, window_bounds = array<i64: 1, 512>}, {transform_indices = @transform_3, window_bounds = array<i64: 16, 512>}]} {
    %c0 = arith.constant 0 : index
    %c0_0 = arith.constant 0 : index
    %0 = vector.load %arg1[%c0, %c0_0] : memref<16x1024xbf16, #tpu.memory_space<vmem>>, vector<16x1024xbf16>
    %c0_1 = arith.constant 0 : index
    %c0_2 = arith.constant 0 : index
    %1 = vector.load %arg2[%c0_1, %c0_2] : memref<1024x512xbf16, #tpu.memory_space<vmem>>, vector<1024x512xbf16>
    %cst = arith.constant dense<0.000000e+00> : vector<16x512xf32>
    %2 = tpu.matmul %0, %1, %cst {dimension_numbers = #tpu.dot_dimension_numbers<[1], [0], [0], [1], [0, 0, 1, 1], [], []>} : vector<16x1024xbf16>, vector<1024x512xbf16>, vector<16x512xf32> -> vector<16x512xf32>
    %c0_3 = arith.constant 0 : index
    %c0_4 = arith.constant 0 : index
    %3 = vector.load %arg3[%c0_3, %c0_4] : memref<1x512xf32, #tpu.memory_space<vmem>>, vector<1x512xf32>
    %4 = vector.broadcast %3 : vector<1x512xf32> to vector<16x512xf32>
    %5 = arith.addf %2, %4 : vector<16x512xf32>
    %cst_5 = arith.constant 0.000000e+00 : f32
    %6 = vector.broadcast %cst_5 : f32 to vector<16x512xf32>
    %7 = arith.maximumf %5, %6 : vector<16x512xf32>
    %8 = vector.shape_cast %7 : vector<16x512xf32> to vector<1x16x512xf32>
    %9 = tpu.iota {dimensions = array<i32: 1>} : vector<1x16x1xi32>
    %c0_i32 = arith.constant 0 : i32
    %10 = vector.broadcast %c0_i32 : i32 to vector<1x16x1xi32>
    %c3_i32 = arith.constant 3 : i32
    %11 = vector.broadcast %c3_i32 : i32 to vector<1x16x1xi32>
    %12 = arith.cmpi sge, %9, %11 : vector<1x16x1xi32>
    %13 = arith.extui %12 : vector<1x16x1xi1> to vector<1x16x1xi32>
    %14 = arith.addi %10, %13 : vector<1x16x1xi32>
    %c6_i32 = arith.constant 6 : i32
    %15 = vector.broadcast %c6_i32 : i32 to vector<1x16x1xi32>
    %16 = arith.cmpi sge, %9, %15 : vector<1x16x1xi32>
    %17 = arith.extui %16 : vector<1x16x1xi1> to vector<1x16x1xi32>
    %18 = arith.addi %14, %17 : vector<1x16x1xi32>
    %c3_i32_6 = arith.constant 3 : i32
    %19 = vector.broadcast %c3_i32_6 : i32 to vector<1x16x1xi32>
    %20 = arith.muli %18, %19 : vector<1x16x1xi32>
    %21 = arith.subi %9, %20 : vector<1x16x1xi32>
    %22 = arith.sitofp %18 : vector<1x16x1xi32> to vector<1x16x1xf32>
    %cst_7 = arith.constant 1.000000e+00 : f32
    %23 = vector.broadcast %cst_7 : f32 to vector<1x16x1xf32>
    %24 = arith.mulf %22, %23 : vector<1x16x1xf32>
    %cst_8 = arith.constant 1.000000e+00 : f32
    %25 = vector.broadcast %cst_8 : f32 to vector<1x16x1xf32>
    %26 = arith.subf %24, %25 : vector<1x16x1xf32>
    %27 = arith.sitofp %21 : vector<1x16x1xi32> to vector<1x16x1xf32>
    %cst_9 = arith.constant 1.000000e+00 : f32
    %28 = vector.broadcast %cst_9 : f32 to vector<1x16x1xf32>
    %29 = arith.mulf %27, %28 : vector<1x16x1xf32>
    %cst_10 = arith.constant 1.000000e+00 : f32
    %30 = vector.broadcast %cst_10 : f32 to vector<1x16x1xf32>
    %31 = arith.subf %29, %30 : vector<1x16x1xf32>
    %32 = tpu.iota {dimensions = array<i32: 2>} : vector<1x16x512xi32>
    %c510_i32 = arith.constant 510 : i32
    %33 = vector.broadcast %c510_i32 : i32 to vector<1x16x512xi32>
    %34 = arith.cmpi eq, %32, %33 : vector<1x16x512xi32>
    %35 = vector.shape_cast %26 : vector<1x16x1xf32> to vector<1x16x1xf32>
    %36 = vector.broadcast %35 : vector<1x16x1xf32> to vector<1x16x512xf32>
    %37 = arith.select %34, %36, %8 : vector<1x16x512xi1>, vector<1x16x512xf32>
    %c511_i32 = arith.constant 511 : i32
    %38 = vector.broadcast %c511_i32 : i32 to vector<1x16x512xi32>
    %39 = arith.cmpi eq, %32, %38 : vector<1x16x512xi32>
    %40 = vector.shape_cast %31 : vector<1x16x1xf32> to vector<1x16x1xf32>
    %41 = vector.broadcast %40 : vector<1x16x1xf32> to vector<1x16x512xf32>
    %42 = arith.select %39, %41, %37 : vector<1x16x512xi1>, vector<1x16x512xf32>
    %c9_i32 = arith.constant 9 : i32
    %43 = vector.broadcast %c9_i32 : i32 to vector<1x16x1xi32>
    %44 = arith.cmpi slt, %9, %43 : vector<1x16x1xi32>
    %cst_11 = arith.constant 0.000000e+00 : f32
    %45 = vector.shape_cast %44 : vector<1x16x1xi1> to vector<1x16x1xi1>
    %46 = vector.broadcast %45 : vector<1x16x1xi1> to vector<1x16x512xi1>
    %47 = vector.broadcast %cst_11 : f32 to vector<1x16x512xf32>
    %48 = arith.select %46, %42, %47 : vector<1x16x512xi1>, vector<1x16x512xf32>
    %49 = vector.shape_cast %48 : vector<1x16x512xf32> to vector<16x512xf32>
    %50 = arith.truncf %49 : vector<16x512xf32> to vector<16x512xbf16>
    %c0_12 = arith.constant 0 : index
    %c0_13 = arith.constant 0 : index
    %51 = vector.load %arg4[%c0_12, %c0_13] : memref<16x512xbf16, #tpu.memory_space<vmem>>, vector<16x512xbf16>
    tpu.vector_store %arg4[%c0_12, %c0_13], %50 {strides = array<i32>} : memref<16x512xbf16, #tpu.memory_space<vmem>>, vector<16x512xbf16>,
    return
  }
  func.func @transform_0(%arg0: i32) -> (i32, i32) {
    %c0_i32 = arith.constant 0 : i32
    %c0_i32_0 = arith.constant 0 : i32
    return %arg0, %c0_i32 : i32, i32
  }
  func.func @transform_1(%arg0: i32) -> (i32, i32) {
    %c0_i32 = arith.constant 0 : i32
    %c0_i32_0 = arith.constant 0 : i32
    %c0_i32_1 = arith.constant 0 : i32
    return %c0_i32, %c0_i32_0 : i32, i32
  }
  func.func @transform_2(%arg0: i32) -> (i32, i32) {
    %c0_i32 = arith.constant 0 : i32
    %c0_i32_0 = arith.constant 0 : i32
    %c0_i32_1 = arith.constant 0 : i32
    return %c0_i32, %c0_i32_0 : i32, i32
  }
  func.func @transform_3(%arg0: i32) -> (i32, i32) {
    %c0_i32 = arith.constant 0 : i32
    %c0_i32_0 = arith.constant 0 : i32
    return %arg0, %c0_i32 : i32, i32
  }
}

module attributes {stable_mosaic.version = 11 : i64} {
  func.func @_relational_kernel(%arg0: i32, %arg1: memref<16x512xbf16, #tpu.memory_space<vmem>>, %arg2: memref<512x1536xbf16, #tpu.memory_space<vmem>>, %arg3: memref<1x1536xf32, #tpu.memory_space<vmem>>, %arg4: memref<512x512xbf16, #tpu.memory_space<vmem>>, %arg5: memref<1x512xf32, #tpu.memory_space<vmem>>, %arg6: memref<512x1xbf16, #tpu.memory_space<vmem>>, %arg7: memref<1x1xf32, #tpu.memory_space<vmem>>, %arg8: memref<1x1x1xf32, #tpu.memory_space<vmem>>, %arg9: memref<16x512xbf16, #tpu.memory_space<vmem>>) attributes {dimension_semantics = [#tpu.dimension_semantics<parallel>], iteration_bounds = array<i64: 2>, scalar_prefetch = 0 : i64, scratch_operands = 1 : i64, tpu.core_type = #tpu.core_type<tc>, window_params = [{transform_indices = @transform_0, window_bounds = array<i64: 16, 512>}, {pipeline_mode = #tpu.pipeline_mode<synchronous>, transform_indices = @transform_1, window_bounds = array<i64: 512, 1536>}, {pipeline_mode = #tpu.pipeline_mode<synchronous>, transform_indices = @transform_2, window_bounds = array<i64: 1, 1536>}, {pipeline_mode = #tpu.pipeline_mode<synchronous>, transform_indices = @transform_3, window_bounds = array<i64: 512, 512>}, {pipeline_mode = #tpu.pipeline_mode<synchronous>, transform_indices = @transform_4, window_bounds = array<i64: 1, 512>}, {pipeline_mode = #tpu.pipeline_mode<synchronous>, transform_indices = @transform_5, window_bounds = array<i64: 512, 1>}, {pipeline_mode = #tpu.pipeline_mode<synchronous>, transform_indices = @transform_6, window_bounds = array<i64: 1, 1>}, {transform_indices = @transform_7, window_bounds = array<i64: 1, 1, 1>}]} {
    %c0 = arith.constant 0 : index
    %c0_0 = arith.constant 0 : index
    %0 = vector.load %arg1[%c0, %c0_0] : memref<16x512xbf16, #tpu.memory_space<vmem>>, vector<16x512xbf16>
    %c0_1 = arith.constant 0 : index
    %c0_2 = arith.constant 0 : index
    %1 = vector.load %arg2[%c0_1, %c0_2] : memref<512x1536xbf16, #tpu.memory_space<vmem>>, vector<512x1536xbf16>
    %cst = arith.constant dense<0.000000e+00> : vector<16x1536xf32>
    %2 = tpu.matmul %0, %1, %cst {dimension_numbers = #tpu.dot_dimension_numbers<[1], [0], [0], [1], [0, 0, 1, 1], [], []>} : vector<16x512xbf16>, vector<512x1536xbf16>, vector<16x1536xf32> -> vector<16x1536xf32>
    %c0_3 = arith.constant 0 : index
    %c0_4 = arith.constant 0 : index
    %3 = vector.load %arg3[%c0_3, %c0_4] : memref<1x1536xf32, #tpu.memory_space<vmem>>, vector<1x1536xf32>
    %4 = vector.broadcast %3 : vector<1x1536xf32> to vector<16x1536xf32>
    %5 = arith.addf %2, %4 : vector<16x1536xf32>
    %6 = vector.shape_cast %5 : vector<16x1536xf32> to vector<1x16x1536xf32>
    %7 = tpu.iota {dimensions = array<i32: 2>} : vector<1x16x16xi32>
    %c9_i32 = arith.constant 9 : i32
    %8 = vector.broadcast %c9_i32 : i32 to vector<1x16x16xi32>
    %9 = arith.cmpi slt, %7, %8 : vector<1x16x16xi32>
    %10 = vector.extract_strided_slice %6 {offsets = [0, 0, 0], sizes = [1, 16, 128], strides = [1, 1, 1]} : vector<1x16x1536xf32> to vector<1x16x128xf32>
    %11 = arith.truncf %10 : vector<1x16x128xf32> to vector<1x16x128xbf16>
    %12 = vector.extract_strided_slice %6 {offsets = [0, 0, 512], sizes = [1, 16, 128], strides = [1, 1, 1]} : vector<1x16x1536xf32> to vector<1x16x128xf32>
    %13 = arith.truncf %12 : vector<1x16x128xf32> to vector<1x16x128xbf16>
    %14 = vector.extract_strided_slice %6 {offsets = [0, 0, 1024], sizes = [1, 16, 128], strides = [1, 1, 1]} : vector<1x16x1536xf32> to vector<1x16x128xf32>
    %15 = arith.truncf %14 : vector<1x16x128xf32> to vector<1x16x128xbf16>
    "tpu.trace_start"() <{level = 10 : i32, message = "bqd,bkd->bqk"}> : () -> ()
    %cst_5 = arith.constant dense<0.000000e+00> : vector<1x16x16xf32>
    %16 = tpu.matmul %11, %13, %cst_5 {dimension_numbers = #tpu.dot_dimension_numbers<[2], [2], [1], [1], [0, 0, 0, 1, 1, 1], [0], [0]>} : vector<1x16x128xbf16>, vector<1x16x128xbf16>, vector<1x16x16xf32> -> vector<1x16x16xf32>
    "tpu.trace_stop"() : () -> ()
    %cst_6 = arith.constant 1.250000e-01 : f32
    %17 = vector.broadcast %cst_6 : f32 to vector<1x16x16xf32>
    %18 = arith.mulf %16, %17 : vector<1x16x16xf32>
    %cst_7 = arith.constant -1.000000e+30 : f32
    %19 = vector.broadcast %cst_7 : f32 to vector<1x16x16xf32>
    %20 = arith.select %9, %18, %19 : vector<1x16x16xi1>, vector<1x16x16xf32>
    %cst_8 = arith.constant dense<0xFF800000> : vector<1x16xf32>
    %21 = vector.multi_reduction <maximumf>, %20, %cst_8 [2] : vector<1x16x16xf32> to vector<1x16xf32>
    %22 = vector.shape_cast %21 : vector<1x16xf32> to vector<1x16x1xf32>
    %23 = vector.broadcast %22 : vector<1x16x1xf32> to vector<1x16x16xf32>
    %24 = arith.subf %20, %23 : vector<1x16x16xf32>
    %25 = math.exp %24 : vector<1x16x16xf32>
    %cst_9 = arith.constant dense<0.000000e+00> : vector<1x16xf32>
    %26 = vector.multi_reduction <add>, %25, %cst_9 [2] : vector<1x16x16xf32> to vector<1x16xf32>
    %27 = vector.shape_cast %26 : vector<1x16xf32> to vector<1x16x1xf32>
    %28 = vector.broadcast %27 : vector<1x16x1xf32> to vector<1x16x16xf32>
    %29 = arith.divf %25, %28 : vector<1x16x16xf32>
    %30 = arith.truncf %29 : vector<1x16x16xf32> to vector<1x16x16xbf16>
    "tpu.trace_start"() <{level = 10 : i32, message = "bqk,bkd->bqd"}> : () -> ()
    %cst_10 = arith.constant dense<0.000000e+00> : vector<1x16x128xf32>
    %31 = tpu.matmul %30, %15, %cst_10 {dimension_numbers = #tpu.dot_dimension_numbers<[2], [1], [1], [2], [0, 0, 0, 1, 1, 2], [0], [0]>} : vector<1x16x16xbf16>, vector<1x16x128xbf16>, vector<1x16x128xf32> -> vector<1x16x128xf32>
    "tpu.trace_stop"() : () -> ()
    %32 = vector.shape_cast %31 : vector<1x16x128xf32> to vector<16x128xf32>
    %33 = arith.truncf %32 : vector<16x128xf32> to vector<16x128xbf16>
    %c0_11 = arith.constant 0 : index
    %c0_12 = arith.constant 0 : index
    %34 = vector.load %arg9[%c0_11, %c0_12] : memref<16x512xbf16, #tpu.memory_space<vmem>>, vector<16x128xbf16>
    tpu.vector_store %arg9[%c0_11, %c0_12], %33 {strides = array<i32>} : memref<16x512xbf16, #tpu.memory_space<vmem>>, vector<16x128xbf16>,
    %35 = vector.extract_strided_slice %6 {offsets = [0, 0, 128], sizes = [1, 16, 128], strides = [1, 1, 1]} : vector<1x16x1536xf32> to vector<1x16x128xf32>
    %36 = arith.truncf %35 : vector<1x16x128xf32> to vector<1x16x128xbf16>
    %37 = vector.extract_strided_slice %6 {offsets = [0, 0, 640], sizes = [1, 16, 128], strides = [1, 1, 1]} : vector<1x16x1536xf32> to vector<1x16x128xf32>
    %38 = arith.truncf %37 : vector<1x16x128xf32> to vector<1x16x128xbf16>
    %39 = vector.extract_strided_slice %6 {offsets = [0, 0, 1152], sizes = [1, 16, 128], strides = [1, 1, 1]} : vector<1x16x1536xf32> to vector<1x16x128xf32>
    %40 = arith.truncf %39 : vector<1x16x128xf32> to vector<1x16x128xbf16>
    "tpu.trace_start"() <{level = 10 : i32, message = "bqd,bkd->bqk"}> : () -> ()
    %cst_13 = arith.constant dense<0.000000e+00> : vector<1x16x16xf32>
    %41 = tpu.matmul %36, %38, %cst_13 {dimension_numbers = #tpu.dot_dimension_numbers<[2], [2], [1], [1], [0, 0, 0, 1, 1, 1], [0], [0]>} : vector<1x16x128xbf16>, vector<1x16x128xbf16>, vector<1x16x16xf32> -> vector<1x16x16xf32>
    "tpu.trace_stop"() : () -> ()
    %cst_14 = arith.constant 1.250000e-01 : f32
    %42 = vector.broadcast %cst_14 : f32 to vector<1x16x16xf32>
    %43 = arith.mulf %41, %42 : vector<1x16x16xf32>
    %cst_15 = arith.constant -1.000000e+30 : f32
    %44 = vector.broadcast %cst_15 : f32 to vector<1x16x16xf32>
    %45 = arith.select %9, %43, %44 : vector<1x16x16xi1>, vector<1x16x16xf32>
    %cst_16 = arith.constant dense<0xFF800000> : vector<1x16xf32>
    %46 = vector.multi_reduction <maximumf>, %45, %cst_16 [2] : vector<1x16x16xf32> to vector<1x16xf32>
    %47 = vector.shape_cast %46 : vector<1x16xf32> to vector<1x16x1xf32>
    %48 = vector.broadcast %47 : vector<1x16x1xf32> to vector<1x16x16xf32>
    %49 = arith.subf %45, %48 : vector<1x16x16xf32>
    %50 = math.exp %49 : vector<1x16x16xf32>
    %cst_17 = arith.constant dense<0.000000e+00> : vector<1x16xf32>
    %51 = vector.multi_reduction <add>, %50, %cst_17 [2] : vector<1x16x16xf32> to vector<1x16xf32>
    %52 = vector.shape_cast %51 : vector<1x16xf32> to vector<1x16x1xf32>
    %53 = vector.broadcast %52 : vector<1x16x1xf32> to vector<1x16x16xf32>
    %54 = arith.divf %50, %53 : vector<1x16x16xf32>
    %55 = arith.truncf %54 : vector<1x16x16xf32> to vector<1x16x16xbf16>
    "tpu.trace_start"() <{level = 10 : i32, message = "bqk,bkd->bqd"}> : () -> ()
    %cst_18 = arith.constant dense<0.000000e+00> : vector<1x16x128xf32>
    %56 = tpu.matmul %55, %40, %cst_18 {dimension_numbers = #tpu.dot_dimension_numbers<[2], [1], [1], [2], [0, 0, 0, 1, 1, 2], [0], [0]>} : vector<1x16x16xbf16>, vector<1x16x128xbf16>, vector<1x16x128xf32> -> vector<1x16x128xf32>
    "tpu.trace_stop"() : () -> ()
    %57 = vector.shape_cast %56 : vector<1x16x128xf32> to vector<16x128xf32>
    %58 = arith.truncf %57 : vector<16x128xf32> to vector<16x128xbf16>
    %c0_19 = arith.constant 0 : index
    %c128 = arith.constant 128 : index
    %59 = vector.load %arg9[%c0_19, %c128] : memref<16x512xbf16, #tpu.memory_space<vmem>>, vector<16x128xbf16>
    tpu.vector_store %arg9[%c0_19, %c128], %58 {strides = array<i32>} : memref<16x512xbf16, #tpu.memory_space<vmem>>, vector<16x128xbf16>,
    %60 = vector.extract_strided_slice %6 {offsets = [0, 0, 256], sizes = [1, 16, 128], strides = [1, 1, 1]} : vector<1x16x1536xf32> to vector<1x16x128xf32>
    %61 = arith.truncf %60 : vector<1x16x128xf32> to vector<1x16x128xbf16>
    %62 = vector.extract_strided_slice %6 {offsets = [0, 0, 768], sizes = [1, 16, 128], strides = [1, 1, 1]} : vector<1x16x1536xf32> to vector<1x16x128xf32>
    %63 = arith.truncf %62 : vector<1x16x128xf32> to vector<1x16x128xbf16>
    %64 = vector.extract_strided_slice %6 {offsets = [0, 0, 1280], sizes = [1, 16, 128], strides = [1, 1, 1]} : vector<1x16x1536xf32> to vector<1x16x128xf32>
    %65 = arith.truncf %64 : vector<1x16x128xf32> to vector<1x16x128xbf16>
    "tpu.trace_start"() <{level = 10 : i32, message = "bqd,bkd->bqk"}> : () -> ()
    %cst_20 = arith.constant dense<0.000000e+00> : vector<1x16x16xf32>
    %66 = tpu.matmul %61, %63, %cst_20 {dimension_numbers = #tpu.dot_dimension_numbers<[2], [2], [1], [1], [0, 0, 0, 1, 1, 1], [0], [0]>} : vector<1x16x128xbf16>, vector<1x16x128xbf16>, vector<1x16x16xf32> -> vector<1x16x16xf32>
    "tpu.trace_stop"() : () -> ()
    %cst_21 = arith.constant 1.250000e-01 : f32
    %67 = vector.broadcast %cst_21 : f32 to vector<1x16x16xf32>
    %68 = arith.mulf %66, %67 : vector<1x16x16xf32>
    %cst_22 = arith.constant -1.000000e+30 : f32
    %69 = vector.broadcast %cst_22 : f32 to vector<1x16x16xf32>
    %70 = arith.select %9, %68, %69 : vector<1x16x16xi1>, vector<1x16x16xf32>
    %cst_23 = arith.constant dense<0xFF800000> : vector<1x16xf32>
    %71 = vector.multi_reduction <maximumf>, %70, %cst_23 [2] : vector<1x16x16xf32> to vector<1x16xf32>
    %72 = vector.shape_cast %71 : vector<1x16xf32> to vector<1x16x1xf32>
    %73 = vector.broadcast %72 : vector<1x16x1xf32> to vector<1x16x16xf32>
    %74 = arith.subf %70, %73 : vector<1x16x16xf32>
    %75 = math.exp %74 : vector<1x16x16xf32>
    %cst_24 = arith.constant dense<0.000000e+00> : vector<1x16xf32>
    %76 = vector.multi_reduction <add>, %75, %cst_24 [2] : vector<1x16x16xf32> to vector<1x16xf32>
    %77 = vector.shape_cast %76 : vector<1x16xf32> to vector<1x16x1xf32>
    %78 = vector.broadcast %77 : vector<1x16x1xf32> to vector<1x16x16xf32>
    %79 = arith.divf %75, %78 : vector<1x16x16xf32>
    %80 = arith.truncf %79 : vector<1x16x16xf32> to vector<1x16x16xbf16>
    "tpu.trace_start"() <{level = 10 : i32, message = "bqk,bkd->bqd"}> : () -> ()
    %cst_25 = arith.constant dense<0.000000e+00> : vector<1x16x128xf32>
    %81 = tpu.matmul %80, %65, %cst_25 {dimension_numbers = #tpu.dot_dimension_numbers<[2], [1], [1], [2], [0, 0, 0, 1, 1, 2], [0], [0]>} : vector<1x16x16xbf16>, vector<1x16x128xbf16>, vector<1x16x128xf32> -> vector<1x16x128xf32>
    "tpu.trace_stop"() : () -> ()
    %82 = vector.shape_cast %81 : vector<1x16x128xf32> to vector<16x128xf32>
    %83 = arith.truncf %82 : vector<16x128xf32> to vector<16x128xbf16>
    %c0_26 = arith.constant 0 : index
    %c256 = arith.constant 256 : index
    %84 = vector.load %arg9[%c0_26, %c256] : memref<16x512xbf16, #tpu.memory_space<vmem>>, vector<16x128xbf16>
    tpu.vector_store %arg9[%c0_26, %c256], %83 {strides = array<i32>} : memref<16x512xbf16, #tpu.memory_space<vmem>>, vector<16x128xbf16>,
    %85 = vector.extract_strided_slice %6 {offsets = [0, 0, 384], sizes = [1, 16, 128], strides = [1, 1, 1]} : vector<1x16x1536xf32> to vector<1x16x128xf32>
    %86 = arith.truncf %85 : vector<1x16x128xf32> to vector<1x16x128xbf16>
    %87 = vector.extract_strided_slice %6 {offsets = [0, 0, 896], sizes = [1, 16, 128], strides = [1, 1, 1]} : vector<1x16x1536xf32> to vector<1x16x128xf32>
    %88 = arith.truncf %87 : vector<1x16x128xf32> to vector<1x16x128xbf16>
    %89 = vector.extract_strided_slice %6 {offsets = [0, 0, 1408], sizes = [1, 16, 128], strides = [1, 1, 1]} : vector<1x16x1536xf32> to vector<1x16x128xf32>
    %90 = arith.truncf %89 : vector<1x16x128xf32> to vector<1x16x128xbf16>
    "tpu.trace_start"() <{level = 10 : i32, message = "bqd,bkd->bqk"}> : () -> ()
    %cst_27 = arith.constant dense<0.000000e+00> : vector<1x16x16xf32>
    %91 = tpu.matmul %86, %88, %cst_27 {dimension_numbers = #tpu.dot_dimension_numbers<[2], [2], [1], [1], [0, 0, 0, 1, 1, 1], [0], [0]>} : vector<1x16x128xbf16>, vector<1x16x128xbf16>, vector<1x16x16xf32> -> vector<1x16x16xf32>
    "tpu.trace_stop"() : () -> ()
    %cst_28 = arith.constant 1.250000e-01 : f32
    %92 = vector.broadcast %cst_28 : f32 to vector<1x16x16xf32>
    %93 = arith.mulf %91, %92 : vector<1x16x16xf32>
    %cst_29 = arith.constant -1.000000e+30 : f32
    %94 = vector.broadcast %cst_29 : f32 to vector<1x16x16xf32>
    %95 = arith.select %9, %93, %94 : vector<1x16x16xi1>, vector<1x16x16xf32>
    %cst_30 = arith.constant dense<0xFF800000> : vector<1x16xf32>
    %96 = vector.multi_reduction <maximumf>, %95, %cst_30 [2] : vector<1x16x16xf32> to vector<1x16xf32>
    %97 = vector.shape_cast %96 : vector<1x16xf32> to vector<1x16x1xf32>
    %98 = vector.broadcast %97 : vector<1x16x1xf32> to vector<1x16x16xf32>
    %99 = arith.subf %95, %98 : vector<1x16x16xf32>
    %100 = math.exp %99 : vector<1x16x16xf32>
    %cst_31 = arith.constant dense<0.000000e+00> : vector<1x16xf32>
    %101 = vector.multi_reduction <add>, %100, %cst_31 [2] : vector<1x16x16xf32> to vector<1x16xf32>
    %102 = vector.shape_cast %101 : vector<1x16xf32> to vector<1x16x1xf32>
    %103 = vector.broadcast %102 : vector<1x16x1xf32> to vector<1x16x16xf32>
    %104 = arith.divf %100, %103 : vector<1x16x16xf32>
    %105 = arith.truncf %104 : vector<1x16x16xf32> to vector<1x16x16xbf16>
    "tpu.trace_start"() <{level = 10 : i32, message = "bqk,bkd->bqd"}> : () -> ()
    %cst_32 = arith.constant dense<0.000000e+00> : vector<1x16x128xf32>
    %106 = tpu.matmul %105, %90, %cst_32 {dimension_numbers = #tpu.dot_dimension_numbers<[2], [1], [1], [2], [0, 0, 0, 1, 1, 2], [0], [0]>} : vector<1x16x16xbf16>, vector<1x16x128xbf16>, vector<1x16x128xf32> -> vector<1x16x128xf32>
    "tpu.trace_stop"() : () -> ()
    %107 = vector.shape_cast %106 : vector<1x16x128xf32> to vector<16x128xf32>
    %108 = arith.truncf %107 : vector<16x128xf32> to vector<16x128xbf16>
    %c0_33 = arith.constant 0 : index
    %c384 = arith.constant 384 : index
    %109 = vector.load %arg9[%c0_33, %c384] : memref<16x512xbf16, #tpu.memory_space<vmem>>, vector<16x128xbf16>
    tpu.vector_store %arg9[%c0_33, %c384], %108 {strides = array<i32>} : memref<16x512xbf16, #tpu.memory_space<vmem>>, vector<16x128xbf16>,
    %c0_34 = arith.constant 0 : index
    %c0_35 = arith.constant 0 : index
    %110 = vector.load %arg9[%c0_34, %c0_35] : memref<16x512xbf16, #tpu.memory_space<vmem>>, vector<16x512xbf16>
    %c0_36 = arith.constant 0 : index
    %c0_37 = arith.constant 0 : index
    %111 = vector.load %arg4[%c0_36, %c0_37] : memref<512x512xbf16, #tpu.memory_space<vmem>>, vector<512x512xbf16>
    %cst_38 = arith.constant dense<0.000000e+00> : vector<16x512xf32>
    %112 = tpu.matmul %110, %111, %cst_38 {dimension_numbers = #tpu.dot_dimension_numbers<[1], [0], [0], [1], [0, 0, 1, 1], [], []>} : vector<16x512xbf16>, vector<512x512xbf16>, vector<16x512xf32> -> vector<16x512xf32>
    %c0_39 = arith.constant 0 : index
    %c0_40 = arith.constant 0 : index
    %113 = vector.load %arg5[%c0_39, %c0_40] : memref<1x512xf32, #tpu.memory_space<vmem>>, vector<1x512xf32>
    %114 = vector.broadcast %113 : vector<1x512xf32> to vector<16x512xf32>
    %115 = arith.addf %112, %114 : vector<16x512xf32>
    %116 = vector.shape_cast %115 : vector<16x512xf32> to vector<1x16x512xf32>
    %117 = tpu.iota {dimensions = array<i32: 1>} : vector<1x16x512xi32>
    %c9_i32_41 = arith.constant 9 : i32
    %118 = vector.broadcast %c9_i32_41 : i32 to vector<1x16x512xi32>
    %119 = arith.cmpi slt, %117, %118 : vector<1x16x512xi32>
    %cst_42 = arith.constant -1.000000e+30 : f32
    %120 = vector.broadcast %cst_42 : f32 to vector<1x16x512xf32>
    %121 = arith.select %119, %116, %120 : vector<1x16x512xi1>, vector<1x16x512xf32>
    %cst_43 = arith.constant dense<0xFF800000> : vector<1x512xf32>
    %122 = vector.multi_reduction <maximumf>, %121, %cst_43 [1] : vector<1x16x512xf32> to vector<1x512xf32>
    %123 = arith.truncf %122 : vector<1x512xf32> to vector<1x512xbf16>
    %c0_44 = arith.constant 0 : index
    %c0_45 = arith.constant 0 : index
    %124 = vector.load %arg6[%c0_44, %c0_45] : memref<512x1xbf16, #tpu.memory_space<vmem>>, vector<512x1xbf16>
    %cst_46 = arith.constant dense<0.000000e+00> : vector<1x1xf32>
    %125 = tpu.matmul %123, %124, %cst_46 {dimension_numbers = #tpu.dot_dimension_numbers<[1], [0], [0], [1], [0, 0, 1, 1], [], []>} : vector<1x512xbf16>, vector<512x1xbf16>, vector<1x1xf32> -> vector<1x1xf32>
    %c0_47 = arith.constant 0 : index
    %c0_48 = arith.constant 0 : index
    %126 = vector.load %arg7[%c0_47, %c0_48] : memref<1x1xf32, #tpu.memory_space<vmem>>, vector<1x1xf32>
    %127 = arith.addf %125, %126 : vector<1x1xf32>
    %128 = vector.shape_cast %127 : vector<1x1xf32> to vector<1x1x1xf32>
    %c0_49 = arith.constant 0 : index
    %c0_50 = arith.constant 0 : index
    %c0_51 = arith.constant 0 : index
    %129 = vector.load %arg8[%c0_49, %c0_50, %c0_51] : memref<1x1x1xf32, #tpu.memory_space<vmem>>, vector<1x1x1xf32>
    tpu.vector_store %arg8[%c0_49, %c0_50, %c0_51], %128 {strides = array<i32>} : memref<1x1x1xf32, #tpu.memory_space<vmem>>, vector<1x1x1xf32>,
    return
  }
  func.func @transform_0(%arg0: i32) -> (i32, i32) {
    %c0_i32 = arith.constant 0 : i32
    %c0_i32_0 = arith.constant 0 : i32
    return %arg0, %c0_i32 : i32, i32
  }
  func.func @transform_1(%arg0: i32) -> (i32, i32) {
    %c0_i32 = arith.constant 0 : i32
    %c0_i32_0 = arith.constant 0 : i32
    %c0_i32_1 = arith.constant 0 : i32
    return %c0_i32, %c0_i32_0 : i32, i32
  }
  func.func @transform_2(%arg0: i32) -> (i32, i32) {
    %c0_i32 = arith.constant 0 : i32
    %c0_i32_0 = arith.constant 0 : i32
    %c0_i32_1 = arith.constant 0 : i32
    return %c0_i32, %c0_i32_0 : i32, i32
  }
  func.func @transform_3(%arg0: i32) -> (i32, i32) {
    %c0_i32 = arith.constant 0 : i32
    %c0_i32_0 = arith.constant 0 : i32
    %c0_i32_1 = arith.constant 0 : i32
    return %c0_i32, %c0_i32_0 : i32, i32
  }
  func.func @transform_4(%arg0: i32) -> (i32, i32) {
    %c0_i32 = arith.constant 0 : i32
    %c0_i32_0 = arith.constant 0 : i32
    %c0_i32_1 = arith.constant 0 : i32
    return %c0_i32, %c0_i32_0 : i32, i32
  }
  func.func @transform_5(%arg0: i32) -> (i32, i32) {
    %c0_i32 = arith.constant 0 : i32
    %c0_i32_0 = arith.constant 0 : i32
    %c0_i32_1 = arith.constant 0 : i32
    return %c0_i32, %c0_i32_0 : i32, i32
  }
  func.func @transform_6(%arg0: i32) -> (i32, i32) {
    %c0_i32 = arith.constant 0 : i32
    %c0_i32_0 = arith.constant 0 : i32
    %c0_i32_1 = arith.constant 0 : i32
    return %c0_i32, %c0_i32_0 : i32, i32
  }
  func.func @transform_7(%arg0: i32) -> (i32, i32, i32) {
    %c0_i32 = arith.constant 0 : i32
    %c0_i32_0 = arith.constant 0 : i32
    %c0_i32_1 = arith.constant 0 : i32
    return %arg0, %c0_i32, %c0_i32_0 : i32, i32, i32
  }
}

</mosaic_0001>

<llo_original>
// kernel: gnn_base_forward.3
$region0: #{gnn_base_forward.3}
  #allocation0 [shape = 'u32[]', space=smem, size = 0x4, offset = 0x4, fixed_abs, tag = 'smem constant byte address 0x4 - core index']
  #allocation1 [shape = 'u32[144,128]{1,0:T(1,128)}', space=vmem, size = 0x12000, scoped, tag = 'internal scratch']
  %s0 = inlined_call_operand.vmem [shape: bf16[128,256], index: 0, kind: input, shape index: {}]
  %s1 = inlined_call_operand.vmem [shape: bf16[256,64], index: 1, kind: input, shape index: {}]
  %s2 = inlined_call_operand.vmem [shape: f32[1,64], index: 2, kind: input, shape index: {}]
  %s3 = inlined_call_operand.vmem [shape: bf16[128,64], index: 3, kind: output, shape index: {}]
  %s4 = sld [smem:[#allocation0]]
  $region45: #{gnn_base_forward.3} parent=0
    _
  %s6 = ssub.s32 1, %s4
  %s7 = scalar_select 0, %s6, %s4
  loop: start=0, step=1, limit=4
  $region2: #{gnn_base_forward.3} parent=0 // loop_pre_header
    _
  $region3: #{gnn_base_forward.3} parent=0 // loop_header
    %s9 = sphi 0, %s13
    %p10 = scmp.ge.s32.totalorder %s9, 4
    %s19 = sphi 0, %s21
    %s22 = sphi 0, %s19
    %s23 = sphi 0, %s22
    %s39 = sphi 0, %s23
    %s43 = sphi 0, %s43
    %s45 = sphi 0, %s43
    %s46 = sphi 0, %s45
    %s60 = sphi 0, %s46
    %s64 = sphi 0, %s64
    %s66 = sphi 0, %s64
    %s67 = sphi 0, %s66
    %s81 = sphi 0, %s67
    %s87 = sphi 0, %s89
    %s90 = sphi 0, %s87
    %s91 = sphi 0, %s90
    %s107 = sphi 0, %s91
  $region4: #{gnn_base_forward.3} parent=0 // loop_header_branch
    %12 = sbr.rel (%p10) target = $region8
  $region5: #{gnn_base_forward.3} parent=0 // loop_body
    %s14 = ssub.s32 %s9, 1
    %s15 = ssub.s32 %s9, 2
    %s16 = sadd.s32 %s9, 1
    %s17 = ssub.s32 %s9, %s16
    %p18 = scmp.eq.s32.totalorder %s17, 0
    %s20 = sadd.s32 %s19, 1
    %s21 = scalar_select %p18, %s19, %s20
    %p24 = pneg %p18
    %p25 = scmp.eq.s32.totalorder %s9, 1
    %p26 = por %p24, %p25
    %p27 = scmp.ne.s32.totalorder %s19, %s22
    %p28 = scmp.eq.s32.totalorder %s9, 0
    %p29 = por %p27, %p28
    %p30 = scmp.ne.s32.totalorder %s19, %s22
    %p31 = scmp.eq.s32.totalorder %s14, 1
    %p32 = por %p30, %p31
    %p33 = scmp.ne.s32.totalorder %s22, %s23
    %p34 = scmp.eq.s32.totalorder %s14, 0
    %p35 = por %p33, %p34
    %p36 = scmp.ne.s32.totalorder %s22, %s23
    %p37 = scmp.eq.s32.totalorder %s15, 1
    %p38 = por %p36, %p37
    %p40 = scmp.ne.s32.totalorder %s23, %s39
    %p41 = scmp.eq.s32.totalorder %s15, 0
    %p42 = por %p40, %p41
    %s44 = sadd.s32 %s43, 1
    %p47 = scmp.eq.s32.totalorder %s9, 1
    %p48 = scmp.ne.s32.totalorder %s43, %s45
    %p49 = scmp.eq.s32.totalorder %s9, 0
    %p50 = por %p48, %p49
    %p51 = scmp.ne.s32.totalorder %s43, %s45
    %p52 = scmp.eq.s32.totalorder %s14, 1
    %p53 = por %p51, %p52
    %p54 = scmp.ne.s32.totalorder %s45, %s46
    %p55 = scmp.eq.s32.totalorder %s14, 0
    %p56 = por %p54, %p55
    %p57 = scmp.ne.s32.totalorder %s45, %s46
    %p58 = scmp.eq.s32.totalorder %s15, 1
    %p59 = por %p57, %p58
    %p61 = scmp.ne.s32.totalorder %s46, %s60
    %p62 = scmp.eq.s32.totalorder %s15, 0
    %p63 = por %p61, %p62
    %s65 = sadd.s32 %s64, 1
    %p68 = scmp.eq.s32.totalorder %s9, 1
    %p69 = scmp.ne.s32.totalorder %s64, %s66
    %p70 = scmp.eq.s32.totalorder %s9, 0
    %p71 = por %p69, %p70
    %p72 = scmp.ne.s32.totalorder %s64, %s66
    %p73 = scmp.eq.s32.totalorder %s14, 1
    %p74 = por %p72, %p73
    %p75 = scmp.ne.s32.totalorder %s66, %s67
    %p76 = scmp.eq.s32.totalorder %s14, 0
    %p77 = por %p75, %p76
    %p78 = scmp.ne.s32.totalorder %s66, %s67
    %p79 = scmp.eq.s32.totalorder %s15, 1
    %p80 = por %p78, %p79
    %p82 = scmp.ne.s32.totalorder %s67, %s81
    %p83 = scmp.eq.s32.totalorder %s15, 0
    %p84 = por %p82, %p83
    %s85 = ssub.s32 %s9, %s16
    %p86 = scmp.eq.s32.totalorder %s85, 0
    %s88 = sadd.s32 %s87, 1
    %s89 = scalar_select %p86, %s87, %s88
    %p92 = pneg %p86
    %p93 = scmp.eq.s32.totalorder %s9, 1
    %p94 = por %p92, %p93
    %p95 = scmp.ne.s32.totalorder %s87, %s90
    %p96 = scmp.eq.s32.totalorder %s9, 0
    %p97 = por %p95, %p96
    %p98 = scmp.ne.s32.totalorder %s87, %s90
    %p99 = scmp.eq.s32.totalorder %s14, 1
    %p100 = por %p98, %p99
    %p101 = scmp.ne.s32.totalorder %s90, %s91
    %p102 = scmp.eq.s32.totalorder %s14, 0
    %p103 = por %p101, %p102
    %p104 = scmp.ne.s32.totalorder %s90, %s91
    %p105 = scmp.eq.s32.totalorder %s15, 1
    %p106 = por %p104, %p105
    %p108 = scmp.ne.s32.totalorder %s91, %s107
    %p109 = scmp.eq.s32.totalorder %s15, 0
    %p110 = por %p108, %p109
    %p111 = scmp.le.s32.totalorder 1, %s9
    %p112 = scmp.lt.s32.totalorder %s9, 3
    %p113 = pnand %p111, %p112
    %p114 = pneg %p113
    // Predicated region
    $region9: #{gnn_base_forward.3} parent=5 // pred_check
      _
    $region10: #{gnn_base_forward.3} parent=5 // pred_check_branch
      %116 = sbr.rel (%p113) target = $region12
    $region11: #{gnn_base_forward.3} parent=5 // pred_region
      %s117 = ssub.s32 %s9, 1
      // Predicated region
      $region13: #{gnn_base_forward.3} parent=11 // pred_check
        %p118 = pneg %p56
      $region14: #{gnn_base_forward.3} parent=11 // pred_check_branch
        %120 = sbr.rel (%p118) target = $region16
      $region15: #{gnn_base_forward.3} parent=11 // pred_region
        _
      $region16: #{gnn_base_forward.3} parent=11 // pred_fallthru
        _
      // Predicated region
      $region17: #{gnn_base_forward.3} parent=11 // pred_check
        %p121 = pneg %p77
      $region18: #{gnn_base_forward.3} parent=11 // pred_check_branch
        %123 = sbr.rel (%p121) target = $region20
      $region19: #{gnn_base_forward.3} parent=11 // pred_region
        _
      $region20: #{gnn_base_forward.3} parent=11 // pred_fallthru
        _
    $region12: #{gnn_base_forward.3} parent=5 // pred_fallthru
      _
    %p124 = scmp.lt.s32.totalorder %s9, 2
    // Predicated region
    $region21: #{gnn_base_forward.3} parent=5 // pred_check
      %p125 = pneg %p124
    $region22: #{gnn_base_forward.3} parent=5 // pred_check_branch
      %127 = sbr.rel (%p125) target = $region24
    $region23: #{gnn_base_forward.3} parent=5 // pred_region
      // Predicated region
      $region25: #{gnn_base_forward.3} parent=23 // pred_check
        %p128 = pneg %p29
      $region26: #{gnn_base_forward.3} parent=23 // pred_check_branch
        %130 = sbr.rel (%p128) target = $region28
      $region27: #{gnn_base_forward.3} parent=23 // pred_region
        %s131 = smul.u32 8, %s9
        %p132 = scmp.lt.s32.totalorder %s131, 15
        %s133 = scalar_select %p132, %s131, 15
        %s134 = smul.addr %s133, 2
        %s135 = smul.addr %s134, 4
        %s136 = scalar_lea.vmem %s0, %s135
        %s137 = smul.u32 8, %s9
      $region28: #{gnn_base_forward.3} parent=23 // pred_fallthru
        _
    $region24: #{gnn_base_forward.3} parent=5 // pred_fallthru
      _
    %p138 = scmp.le.s32.totalorder 1, %s9
    %p139 = scmp.lt.s32.totalorder %s9, 3
    %p140 = pnand %p138, %p139
    %p141 = pneg %p140
    // Predicated region
    $region29: #{gnn_base_forward.3} parent=5 // pred_check
      _
    $region30: #{gnn_base_forward.3} parent=5 // pred_check_branch
      %143 = sbr.rel (%p140) target = $region32
    $region31: #{gnn_base_forward.3} parent=5 // pred_region
      %s144 = ssub.s32 %s9, 1
      %s145 = smul.u32 8, %s14
      %p146 = scmp.lt.s32.totalorder %s145, 15
      %s147 = scalar_select %p146, %s145, 15
      %s148 = smul.addr %s147, 2
      %s149 = smul.addr %s148, 4
      %s150 = scalar_lea.vmem %s0, %s149
      %p151 = pneg %p35
      %p152 = pneg %p32
      %p153 = pneg %p56
      %p154 = pneg %p53
      %p155 = pneg %p77
      %p156 = pneg %p74
      %p157 = pneg %p103
      %p158 = pneg %p100
      %s159 = smul.u32 8, %s14
      %p160 = scmp.lt.s32.totalorder %s159, 15
      %s161 = scalar_select %p160, %s159, 15
      %s162 = smul.addr %s161, 4
      %s163 = scalar_lea.vmem %s3, %s162
      %s164 = smul.u32 8, %s14
      %p165 = scmp.lt.s32.totalorder %s164, 15
      %s166 = scalar_select %p165, %s164, 15
      %s167 = smul.addr %s166, 2
      %s168 = smul.addr %s167, 4
      %s169 = scalar_lea.vmem %s0, %s168
      %s170 = smul.u32 8, %s14
      %s171 = smul.u32 8, %s14
      %p172 = scmp.lt.s32.totalorder %s171, 15
      %s173 = scalar_select %p172, %s171, 15
      %s174 = smul.addr %s173, 4
      %s175 = scalar_lea.vmem %s3, %s174
      %s176 = smul.u32 8, %s14
      %v178 = vld [vmem:[%s169] sm:$0xff]
      %v179 = vld [vmem:[%s169 + $0x8] sm:$0xff]
      %v180 = vld [vmem:[%s169 + $0x10] sm:$0xff]
      %v181 = vld [vmem:[%s169 + $0x18] sm:$0xff]
      %v182 = vld [vmem:[%s169 + $0x20] sm:$0xff]
      %v183 = vld [vmem:[%s169 + $0x28] sm:$0xff]
      %v184 = vld [vmem:[%s169 + $0x30] sm:$0xff]
      %v185 = vld [vmem:[%s169 + $0x38] sm:$0xff]
      %v186 = vld [vmem:[%s1] sm:$0xf]
      %v187 = vld [vmem:[%s1 + $0x4] sm:$0xf]
      %v188 = vld [vmem:[%s1 + $0x8] sm:$0xf]
      %v189 = vld [vmem:[%s1 + $0xc] sm:$0xf]
      %v190 = vld [vmem:[%s1 + $0x10] sm:$0xf]
      %v191 = vld [vmem:[%s1 + $0x14] sm:$0xf]
      %v192 = vld [vmem:[%s1 + $0x18] sm:$0xf]
      %v193 = vld [vmem:[%s1 + $0x1c] sm:$0xf]
      %v194 = vld [vmem:[%s1 + $0x20] sm:$0xf]
      %v195 = vld [vmem:[%s1 + $0x24] sm:$0xf]
      %v196 = vld [vmem:[%s1 + $0x28] sm:$0xf]
      %v197 = vld [vmem:[%s1 + $0x2c] sm:$0xf]
      %v198 = vld [vmem:[%s1 + $0x30] sm:$0xf]
      %v199 = vld [vmem:[%s1 + $0x34] sm:$0xf]
      %v200 = vld [vmem:[%s1 + $0x38] sm:$0xf]
      %v201 = vld [vmem:[%s1 + $0x3c] sm:$0xf]
      %v202 = vld [vmem:[%s1 + $0x40] sm:$0xf]
      %v203 = vld [vmem:[%s1 + $0x44] sm:$0xf]
      %v204 = vld [vmem:[%s1 + $0x48] sm:$0xf]
      %v205 = vld [vmem:[%s1 + $0x4c] sm:$0xf]
      %v206 = vld [vmem:[%s1 + $0x50] sm:$0xf]
      %v207 = vld [vmem:[%s1 + $0x54] sm:$0xf]
      %v208 = vld [vmem:[%s1 + $0x58] sm:$0xf]
      %v209 = vld [vmem:[%s1 + $0x5c] sm:$0xf]
      %v210 = vld [vmem:[%s1 + $0x60] sm:$0xf]
      %v211 = vld [vmem:[%s1 + $0x64] sm:$0xf]
      %v212 = vld [vmem:[%s1 + $0x68] sm:$0xf]
      %v213 = vld [vmem:[%s1 + $0x6c] sm:$0xf]
      %v214 = vld [vmem:[%s1 + $0x70] sm:$0xf]
      %v215 = vld [vmem:[%s1 + $0x74] sm:$0xf]
      %v216 = vld [vmem:[%s1 + $0x78] sm:$0xf]
      %v217 = vld [vmem:[%s1 + $0x7c] sm:$0xf]
      %v226 = vunpack.c.l.b16 %v178
      %v227 = vunpack.c.h.b16 %v178
      %v228 = vunpack.c.l.b16 %v179
      %v229 = vunpack.c.h.b16 %v179
      %v230 = vunpack.c.l.b16 %v180
      %v231 = vunpack.c.h.b16 %v180
      %v232 = vunpack.c.l.b16 %v181
      %v233 = vunpack.c.h.b16 %v181
      %v234 = vunpack.c.l.b16 %v182
      %v235 = vunpack.c.h.b16 %v182
      %v236 = vunpack.c.l.b16 %v183
      %v237 = vunpack.c.h.b16 %v183
      %v238 = vunpack.c.l.b16 %v184
      %v239 = vunpack.c.h.b16 %v184
      %v240 = vunpack.c.l.b16 %v185
      %v241 = vunpack.c.h.b16 %v185
      %v242 = vpack.c.b16 %v228, %v226
      %v243 = vpack.c.b16 %v229, %v227
      %v244 = vpack.c.b16 %v232, %v230
      %v245 = vpack.c.b16 %v233, %v231
      %v246 = vpack.c.b16 %v236, %v234
      %v247 = vpack.c.b16 %v237, %v235
      %v248 = vpack.c.b16 %v240, %v238
      %v249 = vpack.c.b16 %v241, %v239
      %v290 = vunpack.c.l.b16 %v186
      %v291 = vunpack.c.l.b16 %v187
      %v292 = vunpack.c.l.b16 %v188
      %v293 = vunpack.c.l.b16 %v189
      %v294 = vunpack.c.l.b16 %v190
      %v295 = vunpack.c.l.b16 %v191
      %v296 = vunpack.c.l.b16 %v192
      %v297 = vunpack.c.l.b16 %v193
      %v298 = vunpack.c.l.b16 %v194
      %v299 = vunpack.c.l.b16 %v195
      %v300 = vunpack.c.l.b16 %v196
      %v301 = vunpack.c.l.b16 %v197
      %v302 = vunpack.c.l.b16 %v198
      %v303 = vunpack.c.l.b16 %v199
      %v304 = vunpack.c.l.b16 %v200
      %v305 = vunpack.c.l.b16 %v201
      %v306 = vunpack.c.l.b16 %v202
      %v307 = vunpack.c.l.b16 %v203
      %v308 = vunpack.c.l.b16 %v204
      %v309 = vunpack.c.l.b16 %v205
      %v310 = vunpack.c.l.b16 %v206
      %v311 = vunpack.c.l.b16 %v207
      %v312 = vunpack.c.l.b16 %v208
      %v313 = vunpack.c.l.b16 %v209
      %v314 = vunpack.c.l.b16 %v210
      %v315 = vunpack.c.l.b16 %v211
      %v316 = vunpack.c.l.b16 %v212
      %v317 = vunpack.c.l.b16 %v213
      %v318 = vunpack.c.l.b16 %v214
      %v319 = vunpack.c.l.b16 %v215
      %v320 = vunpack.c.l.b16 %v216
      %v321 = vunpack.c.l.b16 %v217
      %v322 = vpack.c.b16 %v291, %v290
      %v323 = vpack.c.b16 %v293, %v292
      %v324 = vpack.c.b16 %v295, %v294
      %v325 = vpack.c.b16 %v297, %v296
      %v326 = vpack.c.b16 %v299, %v298
      %v327 = vpack.c.b16 %v301, %v300
      %v328 = vpack.c.b16 %v303, %v302
      %v329 = vpack.c.b16 %v305, %v304
      %v330 = vpack.c.b16 %v307, %v306
      %v331 = vpack.c.b16 %v309, %v308
      %v332 = vpack.c.b16 %v311, %v310
      %v333 = vpack.c.b16 %v313, %v312
      %v334 = vpack.c.b16 %v315, %v314
      %v335 = vpack.c.b16 %v317, %v316
      %v336 = vpack.c.b16 %v319, %v318
      %v337 = vpack.c.b16 %v321, %v320
      %354 = vmatprep.subr.bf16.mxu0 0
      %355 = vmatpush1.bf16.msra.mxu0 %v322
      %356 = vmatprep.subr.bf16.mxu0 0
      %357 = vmatpush1.bf16.msra.mxu0 %v323
      %358 = vmatprep.subr.bf16.mxu0 0
      %359 = vmatpush1.bf16.msra.mxu0 %v324
      %360 = vmatprep.subr.bf16.mxu0 0
      %361 = vmatpush1.bf16.msra.mxu0 %v325
      %362 = vmatprep.subr.bf16.mxu0 0
      %363 = vmatpush1.bf16.msra.mxu0 %v326
      %364 = vmatprep.subr.bf16.mxu0 0
      %365 = vmatpush1.bf16.msra.mxu0 %v327
      %366 = vmatprep.subr.bf16.mxu0 0
      %367 = vmatpush1.bf16.msra.mxu0 %v328
      %368 = vmatprep.subr.bf16.mxu0 0
      %369 = vmatpush1.bf16.msra.mxu0 %v329
      %370 = vmatprep.subr.bf16.mxu0 0
      %371 = vmatpush1.bf16.msra.mxu0 %v330
      %372 = vmatprep.subr.bf16.mxu0 0
      %373 = vmatpush1.bf16.msra.mxu0 %v331
      %374 = vmatprep.subr.bf16.mxu0 0
      %375 = vmatpush1.bf16.msra.mxu0 %v332
      %376 = vmatprep.subr.bf16.mxu0 0
      %377 = vmatpush1.bf16.msra.mxu0 %v333
      %378 = vmatprep.subr.bf16.mxu0 0
      %379 = vmatpush1.bf16.msra.mxu0 %v334
      %380 = vmatprep.subr.bf16.mxu0 0
      %381 = vmatpush1.bf16.msra.mxu0 %v335
      %382 = vmatprep.subr.bf16.mxu0 0
      %383 = vmatpush1.bf16.msra.mxu0 %v336
      %384 = vmatprep.subr.bf16.mxu0 0
      %385 = vmatpush1.bf16.msra.mxu0 %v337
      %386 = vmatprep.mubr.bf16.mxu0 %v243
      %387 = vmatmul.mubr.bf16.gmra.mrb[0].mxu0 %v242
      %v388 = vpop.f32.mrb[0].mxu0
      %v389 = vadd.f32 0.0, %v388
      %v390 = vpop.f32.mrb[0].mxu0
      %v391 = vpop.f32.mrb[0].mxu0
      %v392 = vadd.f32 0.0, %v391
      %v393 = vpop.f32.mrb[0].mxu0
      %394 = vmatprep.mubr.bf16.mxu0 %v245
      %395 = vmatmul.mubr.bf16.gmra.mrb[0].mxu0 %v244
      %v396 = vpop.f32.mrb[0].mxu0
      %v397 = vadd.f32 0.0, %v396
      %v398 = vpop.f32.mrb[0].mxu0
      %v399 = vpop.f32.mrb[0].mxu0
      %v400 = vadd.f32 0.0, %v399
      %v401 = vpop.f32.mrb[0].mxu0
      %402 = vmatprep.mubr.bf16.mxu0 %v247
      %403 = vmatmul.mubr.bf16.gmra.mrb[0].mxu0 %v246
      %v404 = vpop.f32.mrb[0].mxu0
      %v405 = vadd.f32 0.0, %v404
      %v406 = vpop.f32.mrb[0].mxu0
      %v407 = vpop.f32.mrb[0].mxu0
      %v408 = vadd.f32 0.0, %v407
      %v409 = vpop.f32.mrb[0].mxu0
      %410 = vmatprep.mubr.bf16.mxu0 %v249
      %411 = vmatmul.mubr.bf16.gmra.mrb[0].mxu0 %v248
      %v412 = vpop.f32.mrb[0].mxu0
      %v413 = vadd.f32 0.0, %v412
      %v414 = vpop.f32.mrb[0].mxu0
      %v415 = vpop.f32.mrb[0].mxu0
      %v416 = vadd.f32 0.0, %v415
      %v417 = vpop.f32.mrb[0].mxu0
      %418 = vdwg.mxu0
      %v419 = vmul.f32 %v389, 0.003921569
      %v420 = vmul.f32 %v392, 0.003921569
      %v421 = vmul.f32 %v397, 0.003921569
      %v422 = vmul.f32 %v400, 0.003921569
      %v423 = vmul.f32 %v405, 0.003921569
      %v424 = vmul.f32 %v408, 0.003921569
      %v425 = vmul.f32 %v413, 0.003921569
      %v426 = vmul.f32 %v416, 0.003921569
      %v427 = vld [vmem:[%s2] sm:$0x1]
      %v429 = vlaneseq
      %v430 = vshrl.u32 %v429, 7
      %v431 = vsub.s32 0, %v430
      %v432 = vrot.slane %v427, %v431
      %v434 = vadd.f32 %v419, %v432
      %v435 = vadd.f32 %v420, %v432
      %v436 = vadd.f32 %v421, %v432
      %v437 = vadd.f32 %v422, %v432
      %v438 = vadd.f32 %v423, %v432
      %v439 = vadd.f32 %v424, %v432
      %v440 = vadd.f32 %v425, %v432
      %v441 = vadd.f32 %v426, %v432
      %v442 = vmax.f32 %v434, 0.0
      %v443 = vmax.f32 %v435, 0.0
      %v444 = vmax.f32 %v436, 0.0
      %v445 = vmax.f32 %v437, 0.0
      %v446 = vmax.f32 %v438, 0.0
      %v447 = vmax.f32 %v439, 0.0
      %v448 = vmax.f32 %v440, 0.0
      %v449 = vmax.f32 %v441, 0.0
      %v450 = vpack.c.bf16 %v443, %v442
      %v451 = vpack.c.bf16 %v445, %v444
      %v452 = vpack.c.bf16 %v447, %v446
      %v453 = vpack.c.bf16 %v449, %v448
      %v458 = vunpack.c.l.b16 %v450
      %v459 = vunpack.c.h.b16 %v450
      %v460 = vunpack.c.l.b16 %v451
      %v461 = vunpack.c.h.b16 %v451
      %v462 = vunpack.c.l.b16 %v452
      %v463 = vunpack.c.h.b16 %v452
      %v464 = vunpack.c.l.b16 %v453
      %v465 = vunpack.c.h.b16 %v453
      %v466 = vpack.c.b16 %v458, %v458
      %v467 = vpack.c.b16 %v459, %v459
      %v468 = vpack.c.b16 %v460, %v460
      %v469 = vpack.c.b16 %v461, %v461
      %v470 = vpack.c.b16 %v462, %v462
      %v471 = vpack.c.b16 %v463, %v463
      %v472 = vpack.c.b16 %v464, %v464
      %v473 = vpack.c.b16 %v465, %v465
      %vm482 = vcmask 519168
      %483 = vst.msk [vmem:[%s175] sm:$0xf] %vm482, %v466
      %484 = vst.msk [vmem:[%s175 + $0x4] sm:$0xf] %vm482, %v467
      %485 = vst.msk [vmem:[%s175 + $0x8] sm:$0xf] %vm482, %v468
      %486 = vst.msk [vmem:[%s175 + $0xc] sm:$0xf] %vm482, %v469
      %487 = vst.msk [vmem:[%s175 + $0x10] sm:$0xf] %vm482, %v470
      %488 = vst.msk [vmem:[%s175 + $0x14] sm:$0xf] %vm482, %v471
      %489 = vst.msk [vmem:[%s175 + $0x18] sm:$0xf] %vm482, %v472
      %490 = vst.msk [vmem:[%s175 + $0x1c] sm:$0xf] %vm482, %v473
      %s491 = smul.u32 8, %s14
      %p492 = scmp.lt.s32.totalorder %s491, 15
      %s493 = scalar_select %p492, %s491, 15
      %s494 = smul.addr %s493, 4
      %s495 = scalar_lea.vmem %s3, %s494
      // Predicated region
      $region33: #{gnn_base_forward.3} parent=31 // pred_check
        %p496 = pneg %p100
      $region34: #{gnn_base_forward.3} parent=31 // pred_check_branch
        %498 = sbr.rel (%p496) target = $region36
      $region35: #{gnn_base_forward.3} parent=31 // pred_region
        %s499 = smul.u32 8, %s14
      $region36: #{gnn_base_forward.3} parent=31 // pred_fallthru
        _
    $region32: #{gnn_base_forward.3} parent=5 // pred_fallthru
      _
    %p500 = scmp.le.s32.totalorder 2, %s9
    // Predicated region
    $region37: #{gnn_base_forward.3} parent=5 // pred_check
      %p501 = pneg %p500
    $region38: #{gnn_base_forward.3} parent=5 // pred_check_branch
      %503 = sbr.rel (%p501) target = $region40
    $region39: #{gnn_base_forward.3} parent=5 // pred_region
      %s504 = ssub.s32 %s9, 2
      // Predicated region
      $region41: #{gnn_base_forward.3} parent=39 // pred_check
        %p505 = pneg %p106
      $region42: #{gnn_base_forward.3} parent=39 // pred_check_branch
        %507 = sbr.rel (%p505) target = $region44
      $region43: #{gnn_base_forward.3} parent=39 // pred_region
        %s508 = smul.u32 8, %s15
        %p509 = scmp.lt.s32.totalorder %s508, 15
        %s510 = scalar_select %p509, %s508, 15
        %s511 = smul.addr %s510, 4
        %s512 = scalar_lea.vmem %s3, %s511
      $region44: #{gnn_base_forward.3} parent=39 // pred_fallthru
        _
    $region40: #{gnn_base_forward.3} parent=5 // pred_fallthru
      _
  $region6: #{gnn_base_forward.3} parent=0 // loop_footer
    %s13 = sadd.s32 1, %s9
  $region7: #{gnn_base_forward.3} parent=0 // loop_footer_branch
    %8 = sbr.rel target = $region3
  $region8: #{gnn_base_forward.3} parent=0 // loop_exit
    _

// kernel: gnn_base_forward.4
$region0: #{gnn_base_forward.4}
  #allocation0 [shape = 'u32[]', space=smem, size = 0x4, offset = 0x4, fixed_abs, tag = 'smem constant byte address 0x4 - core index']
  #allocation1 [shape = 'u32[144,128]{1,0:T(1,128)}', space=vmem, size = 0x12000, scoped, tag = 'internal scratch']
  %s0 = inlined_call_operand.vmem [shape: bf16[32,1024], index: 0, kind: input, shape index: {}]
  %s1 = inlined_call_operand.vmem [shape: bf16[1024,512], index: 1, kind: input, shape index: {}]
  %s2 = inlined_call_operand.vmem [shape: f32[1,512], index: 2, kind: input, shape index: {}]
  %s3 = inlined_call_operand.vmem [shape: bf16[32,512], index: 3, kind: output, shape index: {}]
  %s4 = sld [smem:[#allocation0]]
  $region45: #{gnn_base_forward.4} parent=0
    _
  %s6 = ssub.s32 1, %s4
  %s7 = scalar_select 0, %s6, %s4
  loop: start=0, step=1, limit=4
  $region2: #{gnn_base_forward.4} parent=0 // loop_pre_header
    _
  $region3: #{gnn_base_forward.4} parent=0 // loop_header
    %s9 = sphi 0, %s13
    %p10 = scmp.ge.s32.totalorder %s9, 4
    %s19 = sphi 0, %s21
    %s22 = sphi 0, %s19
    %s23 = sphi 0, %s22
    %s39 = sphi 0, %s23
    %s43 = sphi 0, %s43
    %s45 = sphi 0, %s43
    %s46 = sphi 0, %s45
    %s60 = sphi 0, %s46
    %s64 = sphi 0, %s64
    %s66 = sphi 0, %s64
    %s67 = sphi 0, %s66
    %s81 = sphi 0, %s67
    %s87 = sphi 0, %s89
    %s90 = sphi 0, %s87
    %s91 = sphi 0, %s90
    %s107 = sphi 0, %s91
  $region4: #{gnn_base_forward.4} parent=0 // loop_header_branch
    %12 = sbr.rel (%p10) target = $region8
  $region5: #{gnn_base_forward.4} parent=0 // loop_body
    %s14 = ssub.s32 %s9, 1
    %s15 = ssub.s32 %s9, 2
    %s16 = sadd.s32 %s9, 1
    %s17 = ssub.s32 %s9, %s16
    %p18 = scmp.eq.s32.totalorder %s17, 0
    %s20 = sadd.s32 %s19, 1
    %s21 = scalar_select %p18, %s19, %s20
    %p24 = pneg %p18
    %p25 = scmp.eq.s32.totalorder %s9, 1
    %p26 = por %p24, %p25
    %p27 = scmp.ne.s32.totalorder %s19, %s22
    %p28 = scmp.eq.s32.totalorder %s9, 0
    %p29 = por %p27, %p28
    %p30 = scmp.ne.s32.totalorder %s19, %s22
    %p31 = scmp.eq.s32.totalorder %s14, 1
    %p32 = por %p30, %p31
    %p33 = scmp.ne.s32.totalorder %s22, %s23
    %p34 = scmp.eq.s32.totalorder %s14, 0
    %p35 = por %p33, %p34
    %p36 = scmp.ne.s32.totalorder %s22, %s23
    %p37 = scmp.eq.s32.totalorder %s15, 1
    %p38 = por %p36, %p37
    %p40 = scmp.ne.s32.totalorder %s23, %s39
    %p41 = scmp.eq.s32.totalorder %s15, 0
    %p42 = por %p40, %p41
    %s44 = sadd.s32 %s43, 1
    %p47 = scmp.eq.s32.totalorder %s9, 1
    %p48 = scmp.ne.s32.totalorder %s43, %s45
    %p49 = scmp.eq.s32.totalorder %s9, 0
    %p50 = por %p48, %p49
    %p51 = scmp.ne.s32.totalorder %s43, %s45
    %p52 = scmp.eq.s32.totalorder %s14, 1
    %p53 = por %p51, %p52
    %p54 = scmp.ne.s32.totalorder %s45, %s46
    %p55 = scmp.eq.s32.totalorder %s14, 0
    %p56 = por %p54, %p55
    %p57 = scmp.ne.s32.totalorder %s45, %s46
    %p58 = scmp.eq.s32.totalorder %s15, 1
    %p59 = por %p57, %p58
    %p61 = scmp.ne.s32.totalorder %s46, %s60
    %p62 = scmp.eq.s32.totalorder %s15, 0
    %p63 = por %p61, %p62
    %s65 = sadd.s32 %s64, 1
    %p68 = scmp.eq.s32.totalorder %s9, 1
    %p69 = scmp.ne.s32.totalorder %s64, %s66
    %p70 = scmp.eq.s32.totalorder %s9, 0
    %p71 = por %p69, %p70
    %p72 = scmp.ne.s32.totalorder %s64, %s66
    %p73 = scmp.eq.s32.totalorder %s14, 1
    %p74 = por %p72, %p73
    %p75 = scmp.ne.s32.totalorder %s66, %s67
    %p76 = scmp.eq.s32.totalorder %s14, 0
    %p77 = por %p75, %p76
    %p78 = scmp.ne.s32.totalorder %s66, %s67
    %p79 = scmp.eq.s32.totalorder %s15, 1
    %p80 = por %p78, %p79
    %p82 = scmp.ne.s32.totalorder %s67, %s81
    %p83 = scmp.eq.s32.totalorder %s15, 0
    %p84 = por %p82, %p83
    %s85 = ssub.s32 %s9, %s16
    %p86 = scmp.eq.s32.totalorder %s85, 0
    %s88 = sadd.s32 %s87, 1
    %s89 = scalar_select %p86, %s87, %s88
    %p92 = pneg %p86
    %p93 = scmp.eq.s32.totalorder %s9, 1
    %p94 = por %p92, %p93
    %p95 = scmp.ne.s32.totalorder %s87, %s90
    %p96 = scmp.eq.s32.totalorder %s9, 0
    %p97 = por %p95, %p96
    %p98 = scmp.ne.s32.totalorder %s87, %s90
    %p99 = scmp.eq.s32.totalorder %s14, 1
    %p100 = por %p98, %p99
    %p101 = scmp.ne.s32.totalorder %s90, %s91
    %p102 = scmp.eq.s32.totalorder %s14, 0
    %p103 = por %p101, %p102
    %p104 = scmp.ne.s32.totalorder %s90, %s91
    %p105 = scmp.eq.s32.totalorder %s15, 1
    %p106 = por %p104, %p105
    %p108 = scmp.ne.s32.totalorder %s91, %s107
    %p109 = scmp.eq.s32.totalorder %s15, 0
    %p110 = por %p108, %p109
    %p111 = scmp.le.s32.totalorder 1, %s9
    %p112 = scmp.lt.s32.totalorder %s9, 3
    %p113 = pnand %p111, %p112
    %p114 = pneg %p113
    // Predicated region
    $region9: #{gnn_base_forward.4} parent=5 // pred_check
      _
    $region10: #{gnn_base_forward.4} parent=5 // pred_check_branch
      %116 = sbr.rel (%p113) target = $region12
    $region11: #{gnn_base_forward.4} parent=5 // pred_region
      %s117 = ssub.s32 %s9, 1
      // Predicated region
      $region13: #{gnn_base_forward.4} parent=11 // pred_check
        %p118 = pneg %p56
      $region14: #{gnn_base_forward.4} parent=11 // pred_check_branch
        %120 = sbr.rel (%p118) target = $region16
      $region15: #{gnn_base_forward.4} parent=11 // pred_region
        _
      $region16: #{gnn_base_forward.4} parent=11 // pred_fallthru
        _
      // Predicated region
      $region17: #{gnn_base_forward.4} parent=11 // pred_check
        %p121 = pneg %p77
      $region18: #{gnn_base_forward.4} parent=11 // pred_check_branch
        %123 = sbr.rel (%p121) target = $region20
      $region19: #{gnn_base_forward.4} parent=11 // pred_region
        _
      $region20: #{gnn_base_forward.4} parent=11 // pred_fallthru
        _
    $region12: #{gnn_base_forward.4} parent=5 // pred_fallthru
      _
    %p124 = scmp.lt.s32.totalorder %s9, 2
    // Predicated region
    $region21: #{gnn_base_forward.4} parent=5 // pred_check
      %p125 = pneg %p124
    $region22: #{gnn_base_forward.4} parent=5 // pred_check_branch
      %127 = sbr.rel (%p125) target = $region24
    $region23: #{gnn_base_forward.4} parent=5 // pred_region
      // Predicated region
      $region25: #{gnn_base_forward.4} parent=23 // pred_check
        %p128 = pneg %p29
      $region26: #{gnn_base_forward.4} parent=23 // pred_check_branch
        %130 = sbr.rel (%p128) target = $region28
      $region27: #{gnn_base_forward.4} parent=23 // pred_region
        %s131 = smul.u32 2, %s9
        %p132 = scmp.lt.s32.totalorder %s131, 3
        %s133 = scalar_select %p132, %s131, 3
        %s134 = smul.addr %s133, 8
        %s135 = smul.addr %s134, 4
        %s136 = scalar_lea.vmem %s0, %s135
        %s137 = smul.u32 2, %s9
      $region28: #{gnn_base_forward.4} parent=23 // pred_fallthru
        _
    $region24: #{gnn_base_forward.4} parent=5 // pred_fallthru
      _
    %p138 = scmp.le.s32.totalorder 1, %s9
    %p139 = scmp.lt.s32.totalorder %s9, 3
    %p140 = pnand %p138, %p139
    %p141 = pneg %p140
    // Predicated region
    $region29: #{gnn_base_forward.4} parent=5 // pred_check
      _
    $region30: #{gnn_base_forward.4} parent=5 // pred_check_branch
      %143 = sbr.rel (%p140) target = $region32
    $region31: #{gnn_base_forward.4} parent=5 // pred_region
      %s144 = ssub.s32 %s9, 1
      %s145 = smul.u32 2, %s14
      %p146 = scmp.lt.s32.totalorder %s145, 3
      %s147 = scalar_select %p146, %s145, 3
      %s148 = smul.addr %s147, 8
      %s149 = smul.addr %s148, 4
      %s150 = scalar_lea.vmem %s0, %s149
      %p151 = pneg %p35
      %p152 = pneg %p32
      %p153 = pneg %p56
      %p154 = pneg %p53
      %p155 = pneg %p77
      %p156 = pneg %p74
      %p157 = pneg %p103
      %p158 = pneg %p100
      %s159 = smul.u32 2, %s14
      %p160 = scmp.lt.s32.totalorder %s159, 3
      %s161 = scalar_select %p160, %s159, 3
      %s162 = smul.addr %s161, 4
      %s163 = smul.addr %s162, 4
      %s164 = scalar_lea.vmem %s3, %s163
      %s165 = smul.u32 2, %s14
      %p166 = scmp.lt.s32.totalorder %s165, 3
      %s167 = scalar_select %p166, %s165, 3
      %s168 = smul.addr %s167, 8
      %s169 = smul.addr %s168, 4
      %s170 = scalar_lea.vmem %s0, %s169
      %s171 = smul.u32 2, %s14
      %s172 = smul.u32 2, %s14
      %p173 = scmp.lt.s32.totalorder %s172, 3
      %s174 = scalar_select %p173, %s172, 3
      %s175 = smul.addr %s174, 4
      %s176 = smul.addr %s175, 4
      %s177 = scalar_lea.vmem %s3, %s176
      %s178 = smul.u32 2, %s14
      %v179 = vld [vmem:[%s170] sm:$0xff]
      %v180 = vld [vmem:[%s170 + $0x8] sm:$0xff]
      %v181 = vld [vmem:[%s170 + $0x10] sm:$0xff]
      %v182 = vld [vmem:[%s170 + $0x18] sm:$0xff]
      %v183 = vld [vmem:[%s170 + $0x20] sm:$0xff]
      %v184 = vld [vmem:[%s170 + $0x28] sm:$0xff]
      %v185 = vld [vmem:[%s170 + $0x30] sm:$0xff]
      %v186 = vld [vmem:[%s170 + $0x38] sm:$0xff]
      %v187 = vld [vmem:[%s1] sm:$0xff]
      %v188 = vld [vmem:[%s1 + $0x8] sm:$0xff]
      %v189 = vld [vmem:[%s1 + $0x10] sm:$0xff]
      %v190 = vld [vmem:[%s1 + $0x18] sm:$0xff]
      %v191 = vld [vmem:[%s1 + $0x20] sm:$0xff]
      %v192 = vld [vmem:[%s1 + $0x28] sm:$0xff]
      %v193 = vld [vmem:[%s1 + $0x30] sm:$0xff]
      %v194 = vld [vmem:[%s1 + $0x38] sm:$0xff]
      %v195 = vld [vmem:[%s1 + $0x40] sm:$0xff]
      %v196 = vld [vmem:[%s1 + $0x48] sm:$0xff]
      %v197 = vld [vmem:[%s1 + $0x50] sm:$0xff]
      %v198 = vld [vmem:[%s1 + $0x58] sm:$0xff]
      %v199 = vld [vmem:[%s1 + $0x60] sm:$0xff]
      %v200 = vld [vmem:[%s1 + $0x68] sm:$0xff]
      %v201 = vld [vmem:[%s1 + $0x70] sm:$0xff]
      %v202 = vld [vmem:[%s1 + $0x78] sm:$0xff]
      %v203 = vld [vmem:[%s1 + $0x80] sm:$0xff]
      %v204 = vld [vmem:[%s1 + $0x88] sm:$0xff]
      %v205 = vld [vmem:[%s1 + $0x90] sm:$0xff]
      %v206 = vld [vmem:[%s1 + $0x98] sm:$0xff]
      %v207 = vld [vmem:[%s1 + $0xa0] sm:$0xff]
      %v208 = vld [vmem:[%s1 + $0xa8] sm:$0xff]
      %v209 = vld [vmem:[%s1 + $0xb0] sm:$0xff]
      %v210 = vld [vmem:[%s1 + $0xb8] sm:$0xff]
      %v211 = vld [vmem:[%s1 + $0xc0] sm:$0xff]
      %v212 = vld [vmem:[%s1 + $0xc8] sm:$0xff]
      %v213 = vld [vmem:[%s1 + $0xd0] sm:$0xff]
      %v214 = vld [vmem:[%s1 + $0xd8] sm:$0xff]
      %v215 = vld [vmem:[%s1 + $0xe0] sm:$0xff]
      %v216 = vld [vmem:[%s1 + $0xe8] sm:$0xff]
      %v217 = vld [vmem:[%s1 + $0xf0] sm:$0xff]
      %v218 = vld [vmem:[%s1 + $0xf8] sm:$0xff]
      %v219 = vld [vmem:[%s1 + $0x100] sm:$0xff]
      %v220 = vld [vmem:[%s1 + $0x108] sm:$0xff]
      %v221 = vld [vmem:[%s1 + $0x110] sm:$0xff]
      %v222 = vld [vmem:[%s1 + $0x118] sm:$0xff]
      %v223 = vld [vmem:[%s1 + $0x120] sm:$0xff]
      %v224 = vld [vmem:[%s1 + $0x128] sm:$0xff]
      %v225 = vld [vmem:[%s1 + $0x130] sm:$0xff]
      %v226 = vld [vmem:[%s1 + $0x138] sm:$0xff]
      %v227 = vld [vmem:[%s1 + $0x140] sm:$0xff]
      %v228 = vld [vmem:[%s1 + $0x148] sm:$0xff]
      %v229 = vld [vmem:[%s1 + $0x150] sm:$0xff]
      %v230 = vld [vmem:[%s1 + $0x158] sm:$0xff]
      %v231 = vld [vmem:[%s1 + $0x160] sm:$0xff]
      %v232 = vld [vmem:[%s1 + $0x168] sm:$0xff]
      %v233 = vld [vmem:[%s1 + $0x170] sm:$0xff]
      %v234 = vld [vmem:[%s1 + $0x178] sm:$0xff]
      %v235 = vld [vmem:[%s1 + $0x180] sm:$0xff]
      %v236 = vld [vmem:[%s1 + $0x188] sm:$0xff]
      %v237 = vld [vmem:[%s1 + $0x190] sm:$0xff]
      %v238 = vld [vmem:[%s1 + $0x198] sm:$0xff]
      %v239 = vld [vmem:[%s1 + $0x1a0] sm:$0xff]
      %v240 = vld [vmem:[%s1 + $0x1a8] sm:$0xff]
      %v241 = vld [vmem:[%s1 + $0x1b0] sm:$0xff]
      %v242 = vld [vmem:[%s1 + $0x1b8] sm:$0xff]
      %v243 = vld [vmem:[%s1 + $0x1c0] sm:$0xff]
      %v244 = vld [vmem:[%s1 + $0x1c8] sm:$0xff]
      %v245 = vld [vmem:[%s1 + $0x1d0] sm:$0xff]
      %v246 = vld [vmem:[%s1 + $0x1d8] sm:$0xff]
      %v247 = vld [vmem:[%s1 + $0x1e0] sm:$0xff]
      %v248 = vld [vmem:[%s1 + $0x1e8] sm:$0xff]
      %v249 = vld [vmem:[%s1 + $0x1f0] sm:$0xff]
      %v250 = vld [vmem:[%s1 + $0x1f8] sm:$0xff]
      %v251 = vld [vmem:[%s1 + $0x200] sm:$0xff]
      %v252 = vld [vmem:[%s1 + $0x208] sm:$0xff]
      %v253 = vld [vmem:[%s1 + $0x210] sm:$0xff]
      %v254 = vld [vmem:[%s1 + $0x218] sm:$0xff]
      %v255 = vld [vmem:[%s1 + $0x220] sm:$0xff]
      %v256 = vld [vmem:[%s1 + $0x228] sm:$0xff]
      %v257 = vld [vmem:[%s1 + $0x230] sm:$0xff]
      %v258 = vld [vmem:[%s1 + $0x238] sm:$0xff]
      %v259 = vld [vmem:[%s1 + $0x240] sm:$0xff]
      %v260 = vld [vmem:[%s1 + $0x248] sm:$0xff]
      %v261 = vld [vmem:[%s1 + $0x250] sm:$0xff]
      %v262 = vld [vmem:[%s1 + $0x258] sm:$0xff]
      %v263 = vld [vmem:[%s1 + $0x260] sm:$0xff]
      %v264 = vld [vmem:[%s1 + $0x268] sm:$0xff]
      %v265 = vld [vmem:[%s1 + $0x270] sm:$0xff]
      %v266 = vld [vmem:[%s1 + $0x278] sm:$0xff]
      %v267 = vld [vmem:[%s1 + $0x280] sm:$0xff]
      %v268 = vld [vmem:[%s1 + $0x288] sm:$0xff]
      %v269 = vld [vmem:[%s1 + $0x290] sm:$0xff]
      %v270 = vld [vmem:[%s1 + $0x298] sm:$0xff]
      %v271 = vld [vmem:[%s1 + $0x2a0] sm:$0xff]
      %v272 = vld [vmem:[%s1 + $0x2a8] sm:$0xff]
      %v273 = vld [vmem:[%s1 + $0x2b0] sm:$0xff]
      %v274 = vld [vmem:[%s1 + $0x2b8] sm:$0xff]
      %v275 = vld [vmem:[%s1 + $0x2c0] sm:$0xff]
      %v276 = vld [vmem:[%s1 + $0x2c8] sm:$0xff]
      %v277 = vld [vmem:[%s1 + $0x2d0] sm:$0xff]
      %v278 = vld [vmem:[%s1 + $0x2d8] sm:$0xff]
      %v279 = vld [vmem:[%s1 + $0x2e0] sm:$0xff]
      %v280 = vld [vmem:[%s1 + $0x2e8] sm:$0xff]
      %v281 = vld [vmem:[%s1 + $0x2f0] sm:$0xff]
      %v282 = vld [vmem:[%s1 + $0x2f8] sm:$0xff]
      %v283 = vld [vmem:[%s1 + $0x300] sm:$0xff]
      %v284 = vld [vmem:[%s1 + $0x308] sm:$0xff]
      %v285 = vld [vmem:[%s1 + $0x310] sm:$0xff]
      %v286 = vld [vmem:[%s1 + $0x318] sm:$0xff]
      %v287 = vld [vmem:[%s1 + $0x320] sm:$0xff]
      %v288 = vld [vmem:[%s1 + $0x328] sm:$0xff]
      %v289 = vld [vmem:[%s1 + $0x330] sm:$0xff]
      %v290 = vld [vmem:[%s1 + $0x338] sm:$0xff]
      %v291 = vld [vmem:[%s1 + $0x340] sm:$0xff]
      %v292 = vld [vmem:[%s1 + $0x348] sm:$0xff]
      %v293 = vld [vmem:[%s1 + $0x350] sm:$0xff]
      %v294 = vld [vmem:[%s1 + $0x358] sm:$0xff]
      %v295 = vld [vmem:[%s1 + $0x360] sm:$0xff]
      %v296 = vld [vmem:[%s1 + $0x368] sm:$0xff]
      %v297 = vld [vmem:[%s1 + $0x370] sm:$0xff]
      %v298 = vld [vmem:[%s1 + $0x378] sm:$0xff]
      %v299 = vld [vmem:[%s1 + $0x380] sm:$0xff]
      %v300 = vld [vmem:[%s1 + $0x388] sm:$0xff]
      %v301 = vld [vmem:[%s1 + $0x390] sm:$0xff]
      %v302 = vld [vmem:[%s1 + $0x398] sm:$0xff]
      %v303 = vld [vmem:[%s1 + $0x3a0] sm:$0xff]
      %v304 = vld [vmem:[%s1 + $0x3a8] sm:$0xff]
      %v305 = vld [vmem:[%s1 + $0x3b0] sm:$0xff]
      %v306 = vld [vmem:[%s1 + $0x3b8] sm:$0xff]
      %v307 = vld [vmem:[%s1 + $0x3c0] sm:$0xff]
      %v308 = vld [vmem:[%s1 + $0x3c8] sm:$0xff]
      %v309 = vld [vmem:[%s1 + $0x3d0] sm:$0xff]
      %v310 = vld [vmem:[%s1 + $0x3d8] sm:$0xff]
      %v311 = vld [vmem:[%s1 + $0x3e0] sm:$0xff]
      %v312 = vld [vmem:[%s1 + $0x3e8] sm:$0xff]
      %v313 = vld [vmem:[%s1 + $0x3f0] sm:$0xff]
      %v314 = vld [vmem:[%s1 + $0x3f8] sm:$0xff]
      %v315 = vld [vmem:[%s1 + $0x400] sm:$0xff]
      %v316 = vld [vmem:[%s1 + $0x408] sm:$0xff]
      %v317 = vld [vmem:[%s1 + $0x410] sm:$0xff]
      %v318 = vld [vmem:[%s1 + $0x418] sm:$0xff]
      %v319 = vld [vmem:[%s1 + $0x420] sm:$0xff]
      %v320 = vld [vmem:[%s1 + $0x428] sm:$0xff]
      %v321 = vld [vmem:[%s1 + $0x430] sm:$0xff]
      %v322 = vld [vmem:[%s1 + $0x438] sm:$0xff]
      %v323 = vld [vmem:[%s1 + $0x440] sm:$0xff]
      %v324 = vld [vmem:[%s1 + $0x448] sm:$0xff]
      %v325 = vld [vmem:[%s1 + $0x450] sm:$0xff]
      %v326 = vld [vmem:[%s1 + $0x458] sm:$0xff]
      %v327 = vld [vmem:[%s1 + $0x460] sm:$0xff]
      %v328 = vld [vmem:[%s1 + $0x468] sm:$0xff]
      %v329 = vld [vmem:[%s1 + $0x470] sm:$0xff]
      %v330 = vld [vmem:[%s1 + $0x478] sm:$0xff]
      %v331 = vld [vmem:[%s1 + $0x480] sm:$0xff]
      %v332 = vld [vmem:[%s1 + $0x488] sm:$0xff]
      %v333 = vld [vmem:[%s1 + $0x490] sm:$0xff]
      %v334 = vld [vmem:[%s1 + $0x498] sm:$0xff]
      %v335 = vld [vmem:[%s1 + $0x4a0] sm:$0xff]
      %v336 = vld [vmem:[%s1 + $0x4a8] sm:$0xff]
      %v337 = vld [vmem:[%s1 + $0x4b0] sm:$0xff]
      %v338 = vld [vmem:[%s1 + $0x4b8] sm:$0xff]
      %v339 = vld [vmem:[%s1 + $0x4c0] sm:$0xff]
      %v340 = vld [vmem:[%s1 + $0x4c8] sm:$0xff]
      %v341 = vld [vmem:[%s1 + $0x4d0] sm:$0xff]
      %v342 = vld [vmem:[%s1 + $0x4d8] sm:$0xff]
      %v343 = vld [vmem:[%s1 + $0x4e0] sm:$0xff]
      %v344 = vld [vmem:[%s1 + $0x4e8] sm:$0xff]
      %v345 = vld [vmem:[%s1 + $0x4f0] sm:$0xff]
      %v346 = vld [vmem:[%s1 + $0x4f8] sm:$0xff]
      %v347 = vld [vmem:[%s1 + $0x500] sm:$0xff]
      %v348 = vld [vmem:[%s1 + $0x508] sm:$0xff]
      %v349 = vld [vmem:[%s1 + $0x510] sm:$0xff]
      %v350 = vld [vmem:[%s1 + $0x518] sm:$0xff]
      %v351 = vld [vmem:[%s1 + $0x520] sm:$0xff]
      %v352 = vld [vmem:[%s1 + $0x528] sm:$0xff]
      %v353 = vld [vmem:[%s1 + $0x530] sm:$0xff]
      %v354 = vld [vmem:[%s1 + $0x538] sm:$0xff]
      %v355 = vld [vmem:[%s1 + $0x540] sm:$0xff]
      %v356 = vld [vmem:[%s1 + $0x548] sm:$0xff]
      %v357 = vld [vmem:[%s1 + $0x550] sm:$0xff]
      %v358 = vld [vmem:[%s1 + $0x558] sm:$0xff]
      %v359 = vld [vmem:[%s1 + $0x560] sm:$0xff]
      %v360 = vld [vmem:[%s1 + $0x568] sm:$0xff]
      %v361 = vld [vmem:[%s1 + $0x570] sm:$0xff]
      %v362 = vld [vmem:[%s1 + $0x578] sm:$0xff]
      %v363 = vld [vmem:[%s1 + $0x580] sm:$0xff]
      %v364 = vld [vmem:[%s1 + $0x588] sm:$0xff]
      %v365 = vld [vmem:[%s1 + $0x590] sm:$0xff]
      %v366 = vld [vmem:[%s1 + $0x598] sm:$0xff]
      %v367 = vld [vmem:[%s1 + $0x5a0] sm:$0xff]
      %v368 = vld [vmem:[%s1 + $0x5a8] sm:$0xff]
      %v369 = vld [vmem:[%s1 + $0x5b0] sm:$0xff]
      %v370 = vld [vmem:[%s1 + $0x5b8] sm:$0xff]
      %v371 = vld [vmem:[%s1 + $0x5c0] sm:$0xff]
      %v372 = vld [vmem:[%s1 + $0x5c8] sm:$0xff]
      %v373 = vld [vmem:[%s1 + $0x5d0] sm:$0xff]
      %v374 = vld [vmem:[%s1 + $0x5d8] sm:$0xff]
      %v375 = vld [vmem:[%s1 + $0x5e0] sm:$0xff]
      %v376 = vld [vmem:[%s1 + $0x5e8] sm:$0xff]
      %v377 = vld [vmem:[%s1 + $0x5f0] sm:$0xff]
      %v378 = vld [vmem:[%s1 + $0x5f8] sm:$0xff]
      %v379 = vld [vmem:[%s1 + $0x600] sm:$0xff]
      %v380 = vld [vmem:[%s1 + $0x608] sm:$0xff]
      %v381 = vld [vmem:[%s1 + $0x610] sm:$0xff]
      %v382 = vld [vmem:[%s1 + $0x618] sm:$0xff]
      %v383 = vld [vmem:[%s1 + $0x620] sm:$0xff]
      %v384 = vld [vmem:[%s1 + $0x628] sm:$0xff]
      %v385 = vld [vmem:[%s1 + $0x630] sm:$0xff]
      %v386 = vld [vmem:[%s1 + $0x638] sm:$0xff]
      %v387 = vld [vmem:[%s1 + $0x640] sm:$0xff]
      %v388 = vld [vmem:[%s1 + $0x648] sm:$0xff]
      %v389 = vld [vmem:[%s1 + $0x650] sm:$0xff]
      %v390 = vld [vmem:[%s1 + $0x658] sm:$0xff]
      %v391 = vld [vmem:[%s1 + $0x660] sm:$0xff]
      %v392 = vld [vmem:[%s1 + $0x668] sm:$0xff]
      %v393 = vld [vmem:[%s1 + $0x670] sm:$0xff]
      %v394 = vld [vmem:[%s1 + $0x678] sm:$0xff]
      %v395 = vld [vmem:[%s1 + $0x680] sm:$0xff]
      %v396 = vld [vmem:[%s1 + $0x688] sm:$0xff]
      %v397 = vld [vmem:[%s1 + $0x690] sm:$0xff]
      %v398 = vld [vmem:[%s1 + $0x698] sm:$0xff]
      %v399 = vld [vmem:[%s1 + $0x6a0] sm:$0xff]
      %v400 = vld [vmem:[%s1 + $0x6a8] sm:$0xff]
      %v401 = vld [vmem:[%s1 + $0x6b0] sm:$0xff]
      %v402 = vld [vmem:[%s1 + $0x6b8] sm:$0xff]
      %v403 = vld [vmem:[%s1 + $0x6c0] sm:$0xff]
      %v404 = vld [vmem:[%s1 + $0x6c8] sm:$0xff]
      %v405 = vld [vmem:[%s1 + $0x6d0] sm:$0xff]
      %v406 = vld [vmem:[%s1 + $0x6d8] sm:$0xff]
      %v407 = vld [vmem:[%s1 + $0x6e0] sm:$0xff]
      %v408 = vld [vmem:[%s1 + $0x6e8] sm:$0xff]
      %v409 = vld [vmem:[%s1 + $0x6f0] sm:$0xff]
      %v410 = vld [vmem:[%s1 + $0x6f8] sm:$0xff]
      %v411 = vld [vmem:[%s1 + $0x700] sm:$0xff]
      %v412 = vld [vmem:[%s1 + $0x708] sm:$0xff]
      %v413 = vld [vmem:[%s1 + $0x710] sm:$0xff]
      %v414 = vld [vmem:[%s1 + $0x718] sm:$0xff]
      %v415 = vld [vmem:[%s1 + $0x720] sm:$0xff]
      %v416 = vld [vmem:[%s1 + $0x728] sm:$0xff]
      %v417 = vld [vmem:[%s1 + $0x730] sm:$0xff]
      %v418 = vld [vmem:[%s1 + $0x738] sm:$0xff]
      %v419 = vld [vmem:[%s1 + $0x740] sm:$0xff]
      %v420 = vld [vmem:[%s1 + $0x748] sm:$0xff]
      %v421 = vld [vmem:[%s1 + $0x750] sm:$0xff]
      %v422 = vld [vmem:[%s1 + $0x758] sm:$0xff]
      %v423 = vld [vmem:[%s1 + $0x760] sm:$0xff]
      %v424 = vld [vmem:[%s1 + $0x768] sm:$0xff]
      %v425 = vld [vmem:[%s1 + $0x770] sm:$0xff]
      %v426 = vld [vmem:[%s1 + $0x778] sm:$0xff]
      %v427 = vld [vmem:[%s1 + $0x780] sm:$0xff]
      %v428 = vld [vmem:[%s1 + $0x788] sm:$0xff]
      %v429 = vld [vmem:[%s1 + $0x790] sm:$0xff]
      %v430 = vld [vmem:[%s1 + $0x798] sm:$0xff]
      %v431 = vld [vmem:[%s1 + $0x7a0] sm:$0xff]
      %v432 = vld [vmem:[%s1 + $0x7a8] sm:$0xff]
      %v433 = vld [vmem:[%s1 + $0x7b0] sm:$0xff]
      %v434 = vld [vmem:[%s1 + $0x7b8] sm:$0xff]
      %v435 = vld [vmem:[%s1 + $0x7c0] sm:$0xff]
      %v436 = vld [vmem:[%s1 + $0x7c8] sm:$0xff]
      %v437 = vld [vmem:[%s1 + $0x7d0] sm:$0xff]
      %v438 = vld [vmem:[%s1 + $0x7d8] sm:$0xff]
      %v439 = vld [vmem:[%s1 + $0x7e0] sm:$0xff]
      %v440 = vld [vmem:[%s1 + $0x7e8] sm:$0xff]
      %v441 = vld [vmem:[%s1 + $0x7f0] sm:$0xff]
      %v442 = vld [vmem:[%s1 + $0x7f8] sm:$0xff]
      %v443 = vld [vmem:[%s2] sm:$0xf]
      %v445 = vlaneseq
      %v446 = vshrl.u32 %v445, 7
      %v447 = vsub.s32 0, %v446
      %v448 = vrot.slane %v443, %v447
      %v449 = vlaneseq
      %v450 = vshrl.u32 %v449, 7
      %v451 = vsub.s32 1, %v450
      %v452 = vrot.slane %v443, %v451
      %v453 = vlaneseq
      %v454 = vshrl.u32 %v453, 7
      %v455 = vsub.s32 2, %v454
      %v456 = vrot.slane %v443, %v455
      %v457 = vlaneseq
      %v458 = vshrl.u32 %v457, 7
      %v459 = vsub.s32 3, %v458
      %v460 = vrot.slane %v443, %v459
      %v473 = vunpack.c.l.b16 %v179
      %v474 = vunpack.c.h.b16 %v179
      %v475 = vunpack.c.l.b16 %v180
      %v476 = vunpack.c.h.b16 %v180
      %v477 = vunpack.c.l.b16 %v181
      %v478 = vunpack.c.h.b16 %v181
      %v479 = vunpack.c.l.b16 %v182
      %v480 = vunpack.c.h.b16 %v182
      %v481 = vunpack.c.l.b16 %v183
      %v482 = vunpack.c.h.b16 %v183
      %v483 = vunpack.c.l.b16 %v184
      %v484 = vunpack.c.h.b16 %v184
      %v485 = vunpack.c.l.b16 %v185
      %v486 = vunpack.c.h.b16 %v185
      %v487 = vunpack.c.l.b16 %v186
      %v488 = vunpack.c.h.b16 %v186
      %v489 = vpack.c.b16 %v481, %v473
      %v490 = vpack.c.b16 %v482, %v474
      %v491 = vpack.c.b16 %v483, %v475
      %v492 = vpack.c.b16 %v484, %v476
      %v493 = vpack.c.b16 %v485, %v477
      %v494 = vpack.c.b16 %v486, %v478
      %v495 = vpack.c.b16 %v487, %v479
      %v496 = vpack.c.b16 %v488, %v480
      %v761 = vunpack.c.l.b16 %v187
      %v762 = vunpack.c.h.b16 %v187
      %v763 = vunpack.c.l.b16 %v188
      %v764 = vunpack.c.h.b16 %v188
      %v765 = vunpack.c.l.b16 %v189
      %v766 = vunpack.c.h.b16 %v189
      %v767 = vunpack.c.l.b16 %v190
      %v768 = vunpack.c.h.b16 %v190
      %v769 = vunpack.c.l.b16 %v191
      %v770 = vunpack.c.h.b16 %v191
      %v771 = vunpack.c.l.b16 %v192
      %v772 = vunpack.c.h.b16 %v192
      %v773 = vunpack.c.l.b16 %v193
      %v774 = vunpack.c.h.b16 %v193
      %v775 = vunpack.c.l.b16 %v194
      %v776 = vunpack.c.h.b16 %v194
      %v777 = vunpack.c.l.b16 %v195
      %v778 = vunpack.c.h.b16 %v195
      %v779 = vunpack.c.l.b16 %v196
      %v780 = vunpack.c.h.b16 %v196
      %v781 = vunpack.c.l.b16 %v197
      %v782 = vunpack.c.h.b16 %v197
      %v783 = vunpack.c.l.b16 %v198
      %v784 = vunpack.c.h.b16 %v198
      %v785 = vunpack.c.l.b16 %v199
      %v786 = vunpack.c.h.b16 %v199
      %v787 = vunpack.c.l.b16 %v200
      %v788 = vunpack.c.h.b16 %v200
      %v789 = vunpack.c.l.b16 %v201
      %v790 = vunpack.c.h.b16 %v201
      %v791 = vunpack.c.l.b16 %v202
      %v792 = vunpack.c.h.b16 %v202
      %v793 = vunpack.c.l.b16 %v203
      %v794 = vunpack.c.h.b16 %v203
      %v795 = vunpack.c.l.b16 %v204
      %v796 = vunpack.c.h.b16 %v204
      %v797 = vunpack.c.l.b16 %v205
      %v798 = vunpack.c.h.b16 %v205
      %v799 = vunpack.c.l.b16 %v206
      %v800 = vunpack.c.h.b16 %v206
      %v801 = vunpack.c.l.b16 %v207
      %v802 = vunpack.c.h.b16 %v207
      %v803 = vunpack.c.l.b16 %v208
      %v804 = vunpack.c.h.b16 %v208
      %v805 = vunpack.c.l.b16 %v209
      %v806 = vunpack.c.h.b16 %v209
      %v807 = vunpack.c.l.b16 %v210
      %v808 = vunpack.c.h.b16 %v210
      %v809 = vunpack.c.l.b16 %v211
      %v810 = vunpack.c.h.b16 %v211
      %v811 = vunpack.c.l.b16 %v212
      %v812 = vunpack.c.h.b16 %v212
      %v813 = vunpack.c.l.b16 %v213
      %v814 = vunpack.c.h.b16 %v213
      %v815 = vunpack.c.l.b16 %v214
      %v816 = vunpack.c.h.b16 %v214
      %v817 = vunpack.c.l.b16 %v215
      %v818 = vunpack.c.h.b16 %v215
      %v819 = vunpack.c.l.b16 %v216
      %v820 = vunpack.c.h.b16 %v216
      %v821 = vunpack.c.l.b16 %v217
      %v822 = vunpack.c.h.b16 %v217
      %v823 = vunpack.c.l.b16 %v218
      %v824 = vunpack.c.h.b16 %v218
      %v825 = vunpack.c.l.b16 %v219
      %v826 = vunpack.c.h.b16 %v219
      %v827 = vunpack.c.l.b16 %v220
      %v828 = vunpack.c.h.b16 %v220
      %v829 = vunpack.c.l.b16 %v221
      %v830 = vunpack.c.h.b16 %v221
      %v831 = vunpack.c.l.b16 %v222
      %v832 = vunpack.c.h.b16 %v222
      %v833 = vunpack.c.l.b16 %v223
      %v834 = vunpack.c.h.b16 %v223
      %v835 = vunpack.c.l.b16 %v224
      %v836 = vunpack.c.h.b16 %v224
      %v837 = vunpack.c.l.b16 %v225
      %v838 = vunpack.c.h.b16 %v225
      %v839 = vunpack.c.l.b16 %v226
      %v840 = vunpack.c.h.b16 %v226
      %v841 = vunpack.c.l.b16 %v227
      %v842 = vunpack.c.h.b16 %v227
      %v843 = vunpack.c.l.b16 %v228
      %v844 = vunpack.c.h.b16 %v228
      %v845 = vunpack.c.l.b16 %v229
      %v846 = vunpack.c.h.b16 %v229
      %v847 = vunpack.c.l.b16 %v230
      %v848 = vunpack.c.h.b16 %v230
      %v849 = vunpack.c.l.b16 %v231
      %v850 = vunpack.c.h.b16 %v231
      %v851 = vunpack.c.l.b16 %v232
      %v852 = vunpack.c.h.b16 %v232
      %v853 = vunpack.c.l.b16 %v233
      %v854 = vunpack.c.h.b16 %v233
      %v855 = vunpack.c.l.b16 %v234
      %v856 = vunpack.c.h.b16 %v234
      %v857 = vunpack.c.l.b16 %v235
      %v858 = vunpack.c.h.b16 %v235
      %v859 = vunpack.c.l.b16 %v236
      %v860 = vunpack.c.h.b16 %v236
      %v861 = vunpack.c.l.b16 %v237
      %v862 = vunpack.c.h.b16 %v237
      %v863 = vunpack.c.l.b16 %v238
      %v864 = vunpack.c.h.b16 %v238
      %v865 = vunpack.c.l.b16 %v239
      %v866 = vunpack.c.h.b16 %v239
      %v867 = vunpack.c.l.b16 %v240
      %v868 = vunpack.c.h.b16 %v240
      %v869 = vunpack.c.l.b16 %v241
      %v870 = vunpack.c.h.b16 %v241
      %v871 = vunpack.c.l.b16 %v242
      %v872 = vunpack.c.h.b16 %v242
      %v873 = vunpack.c.l.b16 %v243
      %v874 = vunpack.c.h.b16 %v243
      %v875 = vunpack.c.l.b16 %v244
      %v876 = vunpack.c.h.b16 %v244
      %v877 = vunpack.c.l.b16 %v245
      %v878 = vunpack.c.h.b16 %v245
      %v879 = vunpack.c.l.b16 %v246
      %v880 = vunpack.c.h.b16 %v246
      %v881 = vunpack.c.l.b16 %v247
      %v882 = vunpack.c.h.b16 %v247
      %v883 = vunpack.c.l.b16 %v248
      %v884 = vunpack.c.h.b16 %v248
      %v885 = vunpack.c.l.b16 %v249
      %v886 = vunpack.c.h.b16 %v249
      %v887 = vunpack.c.l.b16 %v250
      %v888 = vunpack.c.h.b16 %v250
      %v889 = vunpack.c.l.b16 %v251
      %v890 = vunpack.c.h.b16 %v251
      %v891 = vunpack.c.l.b16 %v252
      %v892 = vunpack.c.h.b16 %v252
      %v893 = vunpack.c.l.b16 %v253
      %v894 = vunpack.c.h.b16 %v253
      %v895 = vunpack.c.l.b16 %v254
      %v896 = vunpack.c.h.b16 %v254
      %v897 = vunpack.c.l.b16 %v255
      %v898 = vunpack.c.h.b16 %v255
      %v899 = vunpack.c.l.b16 %v256
      %v900 = vunpack.c.h.b16 %v256
      %v901 = vunpack.c.l.b16 %v257
      %v902 = vunpack.c.h.b16 %v257
      %v903 = vunpack.c.l.b16 %v258
      %v904 = vunpack.c.h.b16 %v258
      %v905 = vunpack.c.l.b16 %v259
      %v906 = vunpack.c.h.b16 %v259
      %v907 = vunpack.c.l.b16 %v260
      %v908 = vunpack.c.h.b16 %v260
      %v909 = vunpack.c.l.b16 %v261
      %v910 = vunpack.c.h.b16 %v261
      %v911 = vunpack.c.l.b16 %v262
      %v912 = vunpack.c.h.b16 %v262
      %v913 = vunpack.c.l.b16 %v263
      %v914 = vunpack.c.h.b16 %v263
      %v915 = vunpack.c.l.b16 %v264
      %v916 = vunpack.c.h.b16 %v264
      %v917 = vunpack.c.l.b16 %v265
      %v918 = vunpack.c.h.b16 %v265
      %v919 = vunpack.c.l.b16 %v266
      %v920 = vunpack.c.h.b16 %v266
      %v921 = vunpack.c.l.b16 %v267
      %v922 = vunpack.c.h.b16 %v267
      %v923 = vunpack.c.l.b16 %v268
      %v924 = vunpack.c.h.b16 %v268
      %v925 = vunpack.c.l.b16 %v269
      %v926 = vunpack.c.h.b16 %v269
      %v927 = vunpack.c.l.b16 %v270
      %v928 = vunpack.c.h.b16 %v270
      %v929 = vunpack.c.l.b16 %v271
      %v930 = vunpack.c.h.b16 %v271
      %v931 = vunpack.c.l.b16 %v272
      %v932 = vunpack.c.h.b16 %v272
      %v933 = vunpack.c.l.b16 %v273
      %v934 = vunpack.c.h.b16 %v273
      %v935 = vunpack.c.l.b16 %v274
      %v936 = vunpack.c.h.b16 %v274
      %v937 = vunpack.c.l.b16 %v275
      %v938 = vunpack.c.h.b16 %v275
      %v939 = vunpack.c.l.b16 %v276
      %v940 = vunpack.c.h.b16 %v276
      %v941 = vunpack.c.l.b16 %v277
      %v942 = vunpack.c.h.b16 %v277
      %v943 = vunpack.c.l.b16 %v278
      %v944 = vunpack.c.h.b16 %v278
      %v945 = vunpack.c.l.b16 %v279
      %v946 = vunpack.c.h.b16 %v279
      %v947 = vunpack.c.l.b16 %v280
      %v948 = vunpack.c.h.b16 %v280
      %v949 = vunpack.c.l.b16 %v281
      %v950 = vunpack.c.h.b16 %v281
      %v951 = vunpack.c.l.b16 %v282
      %v952 = vunpack.c.h.b16 %v282
      %v953 = vunpack.c.l.b16 %v283
      %v954 = vunpack.c.h.b16 %v283
      %v955 = vunpack.c.l.b16 %v284
      %v956 = vunpack.c.h.b16 %v284
      %v957 = vunpack.c.l.b16 %v285
      %v958 = vunpack.c.h.b16 %v285
      %v959 = vunpack.c.l.b16 %v286
      %v960 = vunpack.c.h.b16 %v286
      %v961 = vunpack.c.l.b16 %v287
      %v962 = vunpack.c.h.b16 %v287
      %v963 = vunpack.c.l.b16 %v288
      %v964 = vunpack.c.h.b16 %v288
      %v965 = vunpack.c.l.b16 %v289
      %v966 = vunpack.c.h.b16 %v289
      %v967 = vunpack.c.l.b16 %v290
      %v968 = vunpack.c.h.b16 %v290
      %v969 = vunpack.c.l.b16 %v291
      %v970 = vunpack.c.h.b16 %v291
      %v971 = vunpack.c.l.b16 %v292
      %v972 = vunpack.c.h.b16 %v292
      %v973 = vunpack.c.l.b16 %v293
      %v974 = vunpack.c.h.b16 %v293
      %v975 = vunpack.c.l.b16 %v294
      %v976 = vunpack.c.h.b16 %v294
      %v977 = vunpack.c.l.b16 %v295
      %v978 = vunpack.c.h.b16 %v295
      %v979 = vunpack.c.l.b16 %v296
      %v980 = vunpack.c.h.b16 %v296
      %v981 = vunpack.c.l.b16 %v297
      %v982 = vunpack.c.h.b16 %v297
      %v983 = vunpack.c.l.b16 %v298
      %v984 = vunpack.c.h.b16 %v298
      %v985 = vunpack.c.l.b16 %v299
      %v986 = vunpack.c.h.b16 %v299
      %v987 = vunpack.c.l.b16 %v300
      %v988 = vunpack.c.h.b16 %v300
      %v989 = vunpack.c.l.b16 %v301
      %v990 = vunpack.c.h.b16 %v301
      %v991 = vunpack.c.l.b16 %v302
      %v992 = vunpack.c.h.b16 %v302
      %v993 = vunpack.c.l.b16 %v303
      %v994 = vunpack.c.h.b16 %v303
      %v995 = vunpack.c.l.b16 %v304
      %v996 = vunpack.c.h.b16 %v304
      %v997 = vunpack.c.l.b16 %v305
      %v998 = vunpack.c.h.b16 %v305
      %v999 = vunpack.c.l.b16 %v306
      %v1000 = vunpack.c.h.b16 %v306
      %v1001 = vunpack.c.l.b16 %v307
      %v1002 = vunpack.c.h.b16 %v307
      %v1003 = vunpack.c.l.b16 %v308
      %v1004 = vunpack.c.h.b16 %v308
      %v1005 = vunpack.c.l.b16 %v309
      %v1006 = vunpack.c.h.b16 %v309
      %v1007 = vunpack.c.l.b16 %v310
      %v1008 = vunpack.c.h.b16 %v310
      %v1009 = vunpack.c.l.b16 %v311
      %v1010 = vunpack.c.h.b16 %v311
      %v1011 = vunpack.c.l.b16 %v312
      %v1012 = vunpack.c.h.b16 %v312
      %v1013 = vunpack.c.l.b16 %v313
      %v1014 = vunpack.c.h.b16 %v313
      %v1015 = vunpack.c.l.b16 %v314
      %v1016 = vunpack.c.h.b16 %v314
      %v1017 = vunpack.c.l.b16 %v315
      %v1018 = vunpack.c.h.b16 %v315
      %v1019 = vunpack.c.l.b16 %v316
      %v1020 = vunpack.c.h.b16 %v316
      %v1021 = vunpack.c.l.b16 %v317
      %v1022 = vunpack.c.h.b16 %v317
      %v1023 = vunpack.c.l.b16 %v318
      %v1024 = vunpack.c.h.b16 %v318
      %v1025 = vunpack.c.l.b16 %v319
      %v1026 = vunpack.c.h.b16 %v319
      %v1027 = vunpack.c.l.b16 %v320
      %v1028 = vunpack.c.h.b16 %v320
      %v1029 = vunpack.c.l.b16 %v321
      %v1030 = vunpack.c.h.b16 %v321
      %v1031 = vunpack.c.l.b16 %v322
      %v1032 = vunpack.c.h.b16 %v322
      %v1033 = vunpack.c.l.b16 %v323
      %v1034 = vunpack.c.h.b16 %v323
      %v1035 = vunpack.c.l.b16 %v324
      %v1036 = vunpack.c.h.b16 %v324
      %v1037 = vunpack.c.l.b16 %v325
      %v1038 = vunpack.c.h.b16 %v325
      %v1039 = vunpack.c.l.b16 %v326
      %v1040 = vunpack.c.h.b16 %v326
      %v1041 = vunpack.c.l.b16 %v327
      %v1042 = vunpack.c.h.b16 %v327
      %v1043 = vunpack.c.l.b16 %v328
      %v1044 = vunpack.c.h.b16 %v328
      %v1045 = vunpack.c.l.b16 %v329
      %v1046 = vunpack.c.h.b16 %v329
      %v1047 = vunpack.c.l.b16 %v330
      %v1048 = vunpack.c.h.b16 %v330
      %v1049 = vunpack.c.l.b16 %v331
      %v1050 = vunpack.c.h.b16 %v331
      %v1051 = vunpack.c.l.b16 %v332
      %v1052 = vunpack.c.h.b16 %v332
      %v1053 = vunpack.c.l.b16 %v333
      %v1054 = vunpack.c.h.b16 %v333
      %v1055 = vunpack.c.l.b16 %v334
      %v1056 = vunpack.c.h.b16 %v334
      %v1057 = vunpack.c.l.b16 %v335
      %v1058 = vunpack.c.h.b16 %v335
      %v1059 = vunpack.c.l.b16 %v336
      %v1060 = vunpack.c.h.b16 %v336
      %v1061 = vunpack.c.l.b16 %v337
      %v1062 = vunpack.c.h.b16 %v337
      %v1063 = vunpack.c.l.b16 %v338
      %v1064 = vunpack.c.h.b16 %v338
      %v1065 = vunpack.c.l.b16 %v339
      %v1066 = vunpack.c.h.b16 %v339
      %v1067 = vunpack.c.l.b16 %v340
      %v1068 = vunpack.c.h.b16 %v340
      %v1069 = vunpack.c.l.b16 %v341
      %v1070 = vunpack.c.h.b16 %v341
      %v1071 = vunpack.c.l.b16 %v342
      %v1072 = vunpack.c.h.b16 %v342
      %v1073 = vunpack.c.l.b16 %v343
      %v1074 = vunpack.c.h.b16 %v343
      %v1075 = vunpack.c.l.b16 %v344
      %v1076 = vunpack.c.h.b16 %v344
      %v1077 = vunpack.c.l.b16 %v345
      %v1078 = vunpack.c.h.b16 %v345
      %v1079 = vunpack.c.l.b16 %v346
      %v1080 = vunpack.c.h.b16 %v346
      %v1081 = vunpack.c.l.b16 %v347
      %v1082 = vunpack.c.h.b16 %v347
      %v1083 = vunpack.c.l.b16 %v348
      %v1084 = vunpack.c.h.b16 %v348
      %v1085 = vunpack.c.l.b16 %v349
      %v1086 = vunpack.c.h.b16 %v349
      %v1087 = vunpack.c.l.b16 %v350
      %v1088 = vunpack.c.h.b16 %v350
      %v1089 = vunpack.c.l.b16 %v351
      %v1090 = vunpack.c.h.b16 %v351
      %v1091 = vunpack.c.l.b16 %v352
      %v1092 = vunpack.c.h.b16 %v352
      %v1093 = vunpack.c.l.b16 %v353
      %v1094 = vunpack.c.h.b16 %v353
      %v1095 = vunpack.c.l.b16 %v354
      %v1096 = vunpack.c.h.b16 %v354
      %v1097 = vunpack.c.l.b16 %v355
      %v1098 = vunpack.c.h.b16 %v355
      %v1099 = vunpack.c.l.b16 %v356
      %v1100 = vunpack.c.h.b16 %v356
      %v1101 = vunpack.c.l.b16 %v357
      %v1102 = vunpack.c.h.b16 %v357
      %v1103 = vunpack.c.l.b16 %v358
      %v1104 = vunpack.c.h.b16 %v358
      %v1105 = vunpack.c.l.b16 %v359
      %v1106 = vunpack.c.h.b16 %v359
      %v1107 = vunpack.c.l.b16 %v360
      %v1108 = vunpack.c.h.b16 %v360
      %v1109 = vunpack.c.l.b16 %v361
      %v1110 = vunpack.c.h.b16 %v361
      %v1111 = vunpack.c.l.b16 %v362
      %v1112 = vunpack.c.h.b16 %v362
      %v1113 = vunpack.c.l.b16 %v363
      %v1114 = vunpack.c.h.b16 %v363
      %v1115 = vunpack.c.l.b16 %v364
      %v1116 = vunpack.c.h.b16 %v364
      %v1117 = vunpack.c.l.b16 %v365
      %v1118 = vunpack.c.h.b16 %v365
      %v1119 = vunpack.c.l.b16 %v366
      %v1120 = vunpack.c.h.b16 %v366
      %v1121 = vunpack.c.l.b16 %v367
      %v1122 = vunpack.c.h.b16 %v367
      %v1123 = vunpack.c.l.b16 %v368
      %v1124 = vunpack.c.h.b16 %v368
      %v1125 = vunpack.c.l.b16 %v369
      %v1126 = vunpack.c.h.b16 %v369
      %v1127 = vunpack.c.l.b16 %v370
      %v1128 = vunpack.c.h.b16 %v370
      %v1129 = vunpack.c.l.b16 %v371
      %v1130 = vunpack.c.h.b16 %v371
      %v1131 = vunpack.c.l.b16 %v372
      %v1132 = vunpack.c.h.b16 %v372
      %v1133 = vunpack.c.l.b16 %v373
      %v1134 = vunpack.c.h.b16 %v373
      %v1135 = vunpack.c.l.b16 %v374
      %v1136 = vunpack.c.h.b16 %v374
      %v1137 = vunpack.c.l.b16 %v375
      %v1138 = vunpack.c.h.b16 %v375
      %v1139 = vunpack.c.l.b16 %v376
      %v1140 = vunpack.c.h.b16 %v376
      %v1141 = vunpack.c.l.b16 %v377
      %v1142 = vunpack.c.h.b16 %v377
      %v1143 = vunpack.c.l.b16 %v378
      %v1144 = vunpack.c.h.b16 %v378
      %v1145 = vunpack.c.l.b16 %v379
      %v1146 = vunpack.c.h.b16 %v379
      %v1147 = vunpack.c.l.b16 %v380
      %v1148 = vunpack.c.h.b16 %v380
      %v1149 = vunpack.c.l.b16 %v381
      %v1150 = vunpack.c.h.b16 %v381
      %v1151 = vunpack.c.l.b16 %v382
      %v1152 = vunpack.c.h.b16 %v382
      %v1153 = vunpack.c.l.b16 %v383
      %v1154 = vunpack.c.h.b16 %v383
      %v1155 = vunpack.c.l.b16 %v384
      %v1156 = vunpack.c.h.b16 %v384
      %v1157 = vunpack.c.l.b16 %v385
      %v1158 = vunpack.c.h.b16 %v385
      %v1159 = vunpack.c.l.b16 %v386
      %v1160 = vunpack.c.h.b16 %v386
      %v1161 = vunpack.c.l.b16 %v387
      %v1162 = vunpack.c.h.b16 %v387
      %v1163 = vunpack.c.l.b16 %v388
      %v1164 = vunpack.c.h.b16 %v388
      %v1165 = vunpack.c.l.b16 %v389
      %v1166 = vunpack.c.h.b16 %v389
      %v1167 = vunpack.c.l.b16 %v390
      %v1168 = vunpack.c.h.b16 %v390
      %v1169 = vunpack.c.l.b16 %v391
      %v1170 = vunpack.c.h.b16 %v391
      %v1171 = vunpack.c.l.b16 %v392
      %v1172 = vunpack.c.h.b16 %v392
      %v1173 = vunpack.c.l.b16 %v393
      %v1174 = vunpack.c.h.b16 %v393
      %v1175 = vunpack.c.l.b16 %v394
      %v1176 = vunpack.c.h.b16 %v394
      %v1177 = vunpack.c.l.b16 %v395
      %v1178 = vunpack.c.h.b16 %v395
      %v1179 = vunpack.c.l.b16 %v396
      %v1180 = vunpack.c.h.b16 %v396
      %v1181 = vunpack.c.l.b16 %v397
      %v1182 = vunpack.c.h.b16 %v397
      %v1183 = vunpack.c.l.b16 %v398
      %v1184 = vunpack.c.h.b16 %v398
      %v1185 = vunpack.c.l.b16 %v399
      %v1186 = vunpack.c.h.b16 %v399
      %v1187 = vunpack.c.l.b16 %v400
      %v1188 = vunpack.c.h.b16 %v400
      %v1189 = vunpack.c.l.b16 %v401
      %v1190 = vunpack.c.h.b16 %v401
      %v1191 = vunpack.c.l.b16 %v402
      %v1192 = vunpack.c.h.b16 %v402
      %v1193 = vunpack.c.l.b16 %v403
      %v1194 = vunpack.c.h.b16 %v403
      %v1195 = vunpack.c.l.b16 %v404
      %v1196 = vunpack.c.h.b16 %v404
      %v1197 = vunpack.c.l.b16 %v405
      %v1198 = vunpack.c.h.b16 %v405
      %v1199 = vunpack.c.l.b16 %v406
      %v1200 = vunpack.c.h.b16 %v406
      %v1201 = vunpack.c.l.b16 %v407
      %v1202 = vunpack.c.h.b16 %v407
      %v1203 = vunpack.c.l.b16 %v408
      %v1204 = vunpack.c.h.b16 %v408
      %v1205 = vunpack.c.l.b16 %v409
      %v1206 = vunpack.c.h.b16 %v409
      %v1207 = vunpack.c.l.b16 %v410
      %v1208 = vunpack.c.h.b16 %v410
      %v1209 = vunpack.c.l.b16 %v411
      %v1210 = vunpack.c.h.b16 %v411
      %v1211 = vunpack.c.l.b16 %v412
      %v1212 = vunpack.c.h.b16 %v412
      %v1213 = vunpack.c.l.b16 %v413
      %v1214 = vunpack.c.h.b16 %v413
      %v1215 = vunpack.c.l.b16 %v414
      %v1216 = vunpack.c.h.b16 %v414
      %v1217 = vunpack.c.l.b16 %v415
      %v1218 = vunpack.c.h.b16 %v415
      %v1219 = vunpack.c.l.b16 %v416
      %v1220 = vunpack.c.h.b16 %v416
      %v1221 = vunpack.c.l.b16 %v417
      %v1222 = vunpack.c.h.b16 %v417
      %v1223 = vunpack.c.l.b16 %v418
      %v1224 = vunpack.c.h.b16 %v418
      %v1225 = vunpack.c.l.b16 %v419
      %v1226 = vunpack.c.h.b16 %v419
      %v1227 = vunpack.c.l.b16 %v420
      %v1228 = vunpack.c.h.b16 %v420
      %v1229 = vunpack.c.l.b16 %v421
      %v1230 = vunpack.c.h.b16 %v421
      %v1231 = vunpack.c.l.b16 %v422
      %v1232 = vunpack.c.h.b16 %v422
      %v1233 = vunpack.c.l.b16 %v423
      %v1234 = vunpack.c.h.b16 %v423
      %v1235 = vunpack.c.l.b16 %v424
      %v1236 = vunpack.c.h.b16 %v424
      %v1237 = vunpack.c.l.b16 %v425
      %v1238 = vunpack.c.h.b16 %v425
      %v1239 = vunpack.c.l.b16 %v426
      %v1240 = vunpack.c.h.b16 %v426
      %v1241 = vunpack.c.l.b16 %v427
      %v1242 = vunpack.c.h.b16 %v427
      %v1243 = vunpack.c.l.b16 %v428
      %v1244 = vunpack.c.h.b16 %v428
      %v1245 = vunpack.c.l.b16 %v429
      %v1246 = vunpack.c.h.b16 %v429
      %v1247 = vunpack.c.l.b16 %v430
      %v1248 = vunpack.c.h.b16 %v430
      %v1249 = vunpack.c.l.b16 %v431
      %v1250 = vunpack.c.h.b16 %v431
      %v1251 = vunpack.c.l.b16 %v432
      %v1252 = vunpack.c.h.b16 %v432
      %v1253 = vunpack.c.l.b16 %v433
      %v1254 = vunpack.c.h.b16 %v433
      %v1255 = vunpack.c.l.b16 %v434
      %v1256 = vunpack.c.h.b16 %v434
      %v1257 = vunpack.c.l.b16 %v435
      %v1258 = vunpack.c.h.b16 %v435
      %v1259 = vunpack.c.l.b16 %v436
      %v1260 = vunpack.c.h.b16 %v436
      %v1261 = vunpack.c.l.b16 %v437
      %v1262 = vunpack.c.h.b16 %v437
      %v1263 = vunpack.c.l.b16 %v438
      %v1264 = vunpack.c.h.b16 %v438
      %v1265 = vunpack.c.l.b16 %v439
      %v1266 = vunpack.c.h.b16 %v439
      %v1267 = vunpack.c.l.b16 %v440
      %v1268 = vunpack.c.h.b16 %v440
      %v1269 = vunpack.c.l.b16 %v441
      %v1270 = vunpack.c.h.b16 %v441
      %v1271 = vunpack.c.l.b16 %v442
      %v1272 = vunpack.c.h.b16 %v442
      %v1273 = vpack.c.b16 %v765, %v761
      %v1274 = vpack.c.b16 %v766, %v762
      %v1275 = vpack.c.b16 %v767, %v763
      %v1276 = vpack.c.b16 %v768, %v764
      %v1277 = vpack.c.b16 %v773, %v769
      %v1278 = vpack.c.b16 %v774, %v770
      %v1279 = vpack.c.b16 %v775, %v771
      %v1280 = vpack.c.b16 %v776, %v772
      %v1281 = vpack.c.b16 %v781, %v777
      %v1282 = vpack.c.b16 %v782, %v778
      %v1283 = vpack.c.b16 %v783, %v779
      %v1284 = vpack.c.b16 %v784, %v780
      %v1285 = vpack.c.b16 %v789, %v785
      %v1286 = vpack.c.b16 %v790, %v786
      %v1287 = vpack.c.b16 %v791, %v787
      %v1288 = vpack.c.b16 %v792, %v788
      %v1289 = vpack.c.b16 %v797, %v793
      %v1290 = vpack.c.b16 %v798, %v794
      %v1291 = vpack.c.b16 %v799, %v795
      %v1292 = vpack.c.b16 %v800, %v796
      %v1293 = vpack.c.b16 %v805, %v801
      %v1294 = vpack.c.b16 %v806, %v802
      %v1295 = vpack.c.b16 %v807, %v803
      %v1296 = vpack.c.b16 %v808, %v804
      %v1297 = vpack.c.b16 %v813, %v809
      %v1298 = vpack.c.b16 %v814, %v810
      %v1299 = vpack.c.b16 %v815, %v811
      %v1300 = vpack.c.b16 %v816, %v812
      %v1301 = vpack.c.b16 %v821, %v817
      %v1302 = vpack.c.b16 %v822, %v818
      %v1303 = vpack.c.b16 %v823, %v819
      %v1304 = vpack.c.b16 %v824, %v820
      %v1305 = vpack.c.b16 %v829, %v825
      %v1306 = vpack.c.b16 %v830, %v826
      %v1307 = vpack.c.b16 %v831, %v827
      %v1308 = vpack.c.b16 %v832, %v828
      %v1309 = vpack.c.b16 %v837, %v833
      %v1310 = vpack.c.b16 %v838, %v834
      %v1311 = vpack.c.b16 %v839, %v835
      %v1312 = vpack.c.b16 %v840, %v836
      %v1313 = vpack.c.b16 %v845, %v841
      %v1314 = vpack.c.b16 %v846, %v842
      %v1315 = vpack.c.b16 %v847, %v843
      %v1316 = vpack.c.b16 %v848, %v844
      %v1317 = vpack.c.b16 %v853, %v849
      %v1318 = vpack.c.b16 %v854, %v850
      %v1319 = vpack.c.b16 %v855, %v851
      %v1320 = vpack.c.b16 %v856, %v852
      %v1321 = vpack.c.b16 %v861, %v857
      %v1322 = vpack.c.b16 %v862, %v858
      %v1323 = vpack.c.b16 %v863, %v859
      %v1324 = vpack.c.b16 %v864, %v860
      %v1325 = vpack.c.b16 %v869, %v865
      %v1326 = vpack.c.b16 %v870, %v866
      %v1327 = vpack.c.b16 %v871, %v867
      %v1328 = vpack.c.b16 %v872, %v868
      %v1329 = vpack.c.b16 %v877, %v873
      %v1330 = vpack.c.b16 %v878, %v874
      %v1331 = vpack.c.b16 %v879, %v875
      %v1332 = vpack.c.b16 %v880, %v876
      %v1333 = vpack.c.b16 %v885, %v881
      %v1334 = vpack.c.b16 %v886, %v882
      %v1335 = vpack.c.b16 %v887, %v883
      %v1336 = vpack.c.b16 %v888, %v884
      %v1337 = vpack.c.b16 %v893, %v889
      %v1338 = vpack.c.b16 %v894, %v890
      %v1339 = vpack.c.b16 %v895, %v891
      %v1340 = vpack.c.b16 %v896, %v892
      %v1341 = vpack.c.b16 %v901, %v897
      %v1342 = vpack.c.b16 %v902, %v898
      %v1343 = vpack.c.b16 %v903, %v899
      %v1344 = vpack.c.b16 %v904, %v900
      %v1345 = vpack.c.b16 %v909, %v905
      %v1346 = vpack.c.b16 %v910, %v906
      %v1347 = vpack.c.b16 %v911, %v907
      %v1348 = vpack.c.b16 %v912, %v908
      %v1349 = vpack.c.b16 %v917, %v913
      %v1350 = vpack.c.b16 %v918, %v914
      %v1351 = vpack.c.b16 %v919, %v915
      %v1352 = vpack.c.b16 %v920, %v916
      %v1353 = vpack.c.b16 %v925, %v921
      %v1354 = vpack.c.b16 %v926, %v922
      %v1355 = vpack.c.b16 %v927, %v923
      %v1356 = vpack.c.b16 %v928, %v924
      %v1357 = vpack.c.b16 %v933, %v929
      %v1358 = vpack.c.b16 %v934, %v930
      %v1359 = vpack.c.b16 %v935, %v931
      %v1360 = vpack.c.b16 %v936, %v932
      %v1361 = vpack.c.b16 %v941, %v937
      %v1362 = vpack.c.b16 %v942, %v938
      %v1363 = vpack.c.b16 %v943, %v939
      %v1364 = vpack.c.b16 %v944, %v940
      %v1365 = vpack.c.b16 %v949, %v945
      %v1366 = vpack.c.b16 %v950, %v946
      %v1367 = vpack.c.b16 %v951, %v947
      %v1368 = vpack.c.b16 %v952, %v948
      %v1369 = vpack.c.b16 %v957, %v953
      %v1370 = vpack.c.b16 %v958, %v954
      %v1371 = vpack.c.b16 %v959, %v955
      %v1372 = vpack.c.b16 %v960, %v956
      %v1373 = vpack.c.b16 %v965, %v961
      %v1374 = vpack.c.b16 %v966, %v962
      %v1375 = vpack.c.b16 %v967, %v963
      %v1376 = vpack.c.b16 %v968, %v964
      %v1377 = vpack.c.b16 %v973, %v969
      %v1378 = vpack.c.b16 %v974, %v970
      %v1379 = vpack.c.b16 %v975, %v971
      %v1380 = vpack.c.b16 %v976, %v972
      %v1381 = vpack.c.b16 %v981, %v977
      %v1382 = vpack.c.b16 %v982, %v978
      %v1383 = vpack.c.b16 %v983, %v979
      %v1384 = vpack.c.b16 %v984, %v980
      %v1385 = vpack.c.b16 %v989, %v985
      %v1386 = vpack.c.b16 %v990, %v986
      %v1387 = vpack.c.b16 %v991, %v987
      %v1388 = vpack.c.b16 %v992, %v988
      %v1389 = vpack.c.b16 %v997, %v993
      %v1390 = vpack.c.b16 %v998, %v994
      %v1391 = vpack.c.b16 %v999, %v995
      %v1392 = vpack.c.b16 %v1000, %v996
      %v1393 = vpack.c.b16 %v1005, %v1001
      %v1394 = vpack.c.b16 %v1006, %v1002
      %v1395 = vpack.c.b16 %v1007, %v1003
      %v1396 = vpack.c.b16 %v1008, %v1004
      %v1397 = vpack.c.b16 %v1013, %v1009
      %v1398 = vpack.c.b16 %v1014, %v1010
      %v1399 = vpack.c.b16 %v1015, %v1011
      %v1400 = vpack.c.b16 %v1016, %v1012
      %v1401 = vpack.c.b16 %v1021, %v1017
      %v1402 = vpack.c.b16 %v1022, %v1018
      %v1403 = vpack.c.b16 %v1023, %v1019
      %v1404 = vpack.c.b16 %v1024, %v1020
      %v1405 = vpack.c.b16 %v1029, %v1025
      %v1406 = vpack.c.b16 %v1030, %v1026
      %v1407 = vpack.c.b16 %v1031, %v1027
      %v1408 = vpack.c.b16 %v1032, %v1028
      %v1409 = vpack.c.b16 %v1037, %v1033
      %v1410 = vpack.c.b16 %v1038, %v1034
      %v1411 = vpack.c.b16 %v1039, %v1035
      %v1412 = vpack.c.b16 %v1040, %v1036
      %v1413 = vpack.c.b16 %v1045, %v1041
      %v1414 = vpack.c.b16 %v1046, %v1042
      %v1415 = vpack.c.b16 %v1047, %v1043
      %v1416 = vpack.c.b16 %v1048, %v1044
      %v1417 = vpack.c.b16 %v1053, %v1049
      %v1418 = vpack.c.b16 %v1054, %v1050
      %v1419 = vpack.c.b16 %v1055, %v1051
      %v1420 = vpack.c.b16 %v1056, %v1052
      %v1421 = vpack.c.b16 %v1061, %v1057
      %v1422 = vpack.c.b16 %v1062, %v1058
      %v1423 = vpack.c.b16 %v1063, %v1059
      %v1424 = vpack.c.b16 %v1064, %v1060
      %v1425 = vpack.c.b16 %v1069, %v1065
      %v1426 = vpack.c.b16 %v1070, %v1066
      %v1427 = vpack.c.b16 %v1071, %v1067
      %v1428 = vpack.c.b16 %v1072, %v1068
      %v1429 = vpack.c.b16 %v1077, %v1073
      %v1430 = vpack.c.b16 %v1078, %v1074
      %v1431 = vpack.c.b16 %v1079, %v1075
      %v1432 = vpack.c.b16 %v1080, %v1076
      %v1433 = vpack.c.b16 %v1085, %v1081
      %v1434 = vpack.c.b16 %v1086, %v1082
      %v1435 = vpack.c.b16 %v1087, %v1083
      %v1436 = vpack.c.b16 %v1088, %v1084
      %v1437 = vpack.c.b16 %v1093, %v1089
      %v1438 = vpack.c.b16 %v1094, %v1090
      %v1439 = vpack.c.b16 %v1095, %v1091
      %v1440 = vpack.c.b16 %v1096, %v1092
      %v1441 = vpack.c.b16 %v1101, %v1097
      %v1442 = vpack.c.b16 %v1102, %v1098
      %v1443 = vpack.c.b16 %v1103, %v1099
      %v1444 = vpack.c.b16 %v1104, %v1100
      %v1445 = vpack.c.b16 %v1109, %v1105
      %v1446 = vpack.c.b16 %v1110, %v1106
      %v1447 = vpack.c.b16 %v1111, %v1107
      %v1448 = vpack.c.b16 %v1112, %v1108
      %v1449 = vpack.c.b16 %v1117, %v1113
      %v1450 = vpack.c.b16 %v1118, %v1114
      %v1451 = vpack.c.b16 %v1119, %v1115
      %v1452 = vpack.c.b16 %v1120, %v1116
      %v1453 = vpack.c.b16 %v1125, %v1121
      %v1454 = vpack.c.b16 %v1126, %v1122
      %v1455 = vpack.c.b16 %v1127, %v1123
      %v1456 = vpack.c.b16 %v1128, %v1124
      %v1457 = vpack.c.b16 %v1133, %v1129
      %v1458 = vpack.c.b16 %v1134, %v1130
      %v1459 = vpack.c.b16 %v1135, %v1131
      %v1460 = vpack.c.b16 %v1136, %v1132
      %v1461 = vpack.c.b16 %v1141, %v1137
      %v1462 = vpack.c.b16 %v1142, %v1138
      %v1463 = vpack.c.b16 %v1143, %v1139
      %v1464 = vpack.c.b16 %v1144, %v1140
      %v1465 = vpack.c.b16 %v1149, %v1145
      %v1466 = vpack.c.b16 %v1150, %v1146
      %v1467 = vpack.c.b16 %v1151, %v1147
      %v1468 = vpack.c.b16 %v1152, %v1148
      %v1469 = vpack.c.b16 %v1157, %v1153
      %v1470 = vpack.c.b16 %v1158, %v1154
      %v1471 = vpack.c.b16 %v1159, %v1155
      %v1472 = vpack.c.b16 %v1160, %v1156
      %v1473 = vpack.c.b16 %v1165, %v1161
      %v1474 = vpack.c.b16 %v1166, %v1162
      %v1475 = vpack.c.b16 %v1167, %v1163
      %v1476 = vpack.c.b16 %v1168, %v1164
      %v1477 = vpack.c.b16 %v1173, %v1169
      %v1478 = vpack.c.b16 %v1174, %v1170
      %v1479 = vpack.c.b16 %v1175, %v1171
      %v1480 = vpack.c.b16 %v1176, %v1172
      %v1481 = vpack.c.b16 %v1181, %v1177
      %v1482 = vpack.c.b16 %v1182, %v1178
      %v1483 = vpack.c.b16 %v1183, %v1179
      %v1484 = vpack.c.b16 %v1184, %v1180
      %v1485 = vpack.c.b16 %v1189, %v1185
      %v1486 = vpack.c.b16 %v1190, %v1186
      %v1487 = vpack.c.b16 %v1191, %v1187
      %v1488 = vpack.c.b16 %v1192, %v1188
      %v1489 = vpack.c.b16 %v1197, %v1193
      %v1490 = vpack.c.b16 %v1198, %v1194
      %v1491 = vpack.c.b16 %v1199, %v1195
      %v1492 = vpack.c.b16 %v1200, %v1196
      %v1493 = vpack.c.b16 %v1205, %v1201
      %v1494 = vpack.c.b16 %v1206, %v1202
      %v1495 = vpack.c.b16 %v1207, %v1203
      %v1496 = vpack.c.b16 %v1208, %v1204
      %v1497 = vpack.c.b16 %v1213, %v1209
      %v1498 = vpack.c.b16 %v1214, %v1210
      %v1499 = vpack.c.b16 %v1215, %v1211
      %v1500 = vpack.c.b16 %v1216, %v1212
      %v1501 = vpack.c.b16 %v1221, %v1217
      %v1502 = vpack.c.b16 %v1222, %v1218
      %v1503 = vpack.c.b16 %v1223, %v1219
      %v1504 = vpack.c.b16 %v1224, %v1220
      %v1505 = vpack.c.b16 %v1229, %v1225
      %v1506 = vpack.c.b16 %v1230, %v1226
      %v1507 = vpack.c.b16 %v1231, %v1227
      %v1508 = vpack.c.b16 %v1232, %v1228
      %v1509 = vpack.c.b16 %v1237, %v1233
      %v1510 = vpack.c.b16 %v1238, %v1234
      %v1511 = vpack.c.b16 %v1239, %v1235
      %v1512 = vpack.c.b16 %v1240, %v1236
      %v1513 = vpack.c.b16 %v1245, %v1241
      %v1514 = vpack.c.b16 %v1246, %v1242
      %v1515 = vpack.c.b16 %v1247, %v1243
      %v1516 = vpack.c.b16 %v1248, %v1244
      %v1517 = vpack.c.b16 %v1253, %v1249
      %v1518 = vpack.c.b16 %v1254, %v1250
      %v1519 = vpack.c.b16 %v1255, %v1251
      %v1520 = vpack.c.b16 %v1256, %v1252
      %v1521 = vpack.c.b16 %v1261, %v1257
      %v1522 = vpack.c.b16 %v1262, %v1258
      %v1523 = vpack.c.b16 %v1263, %v1259
      %v1524 = vpack.c.b16 %v1264, %v1260
      %v1525 = vpack.c.b16 %v1269, %v1265
      %v1526 = vpack.c.b16 %v1270, %v1266
      %v1527 = vpack.c.b16 %v1271, %v1267
      %v1528 = vpack.c.b16 %v1272, %v1268
      %1785 = vmatprep.subr.bf16.mxu0 %v1274
      %1786 = vmatpush1.bf16.msra.mxu0 %v1273
      %1787 = vmatprep.subr.bf16.mxu0 %v1278
      %1788 = vmatpush1.bf16.msra.mxu0 %v1277
      %1789 = vmatprep.subr.bf16.mxu0 %v1282
      %1790 = vmatpush1.bf16.msra.mxu0 %v1281
      %1791 = vmatprep.subr.bf16.mxu0 %v1286
      %1792 = vmatpush1.bf16.msra.mxu0 %v1285
      %1793 = vmatprep.subr.bf16.mxu0 %v1290
      %1794 = vmatpush1.bf16.msra.mxu0 %v1289
      %1795 = vmatprep.subr.bf16.mxu0 %v1294
      %1796 = vmatpush1.bf16.msra.mxu0 %v1293
      %1797 = vmatprep.subr.bf16.mxu0 %v1298
      %1798 = vmatpush1.bf16.msra.mxu0 %v1297
      %1799 = vmatprep.subr.bf16.mxu0 %v1302
      %1800 = vmatpush1.bf16.msra.mxu0 %v1301
      %1801 = vmatprep.subr.bf16.mxu0 %v1306
      %1802 = vmatpush1.bf16.msra.mxu0 %v1305
      %1803 = vmatprep.subr.bf16.mxu0 %v1310
      %1804 = vmatpush1.bf16.msra.mxu0 %v1309
      %1805 = vmatprep.subr.bf16.mxu0 %v1314
      %1806 = vmatpush1.bf16.msra.mxu0 %v1313
      %1807 = vmatprep.subr.bf16.mxu0 %v1318
      %1808 = vmatpush1.bf16.msra.mxu0 %v1317
      %1809 = vmatprep.subr.bf16.mxu0 %v1322
      %1810 = vmatpush1.bf16.msra.mxu0 %v1321
      %1811 = vmatprep.subr.bf16.mxu0 %v1326
      %1812 = vmatpush1.bf16.msra.mxu0 %v1325
      %1813 = vmatprep.subr.bf16.mxu0 %v1330
      %1814 = vmatpush1.bf16.msra.mxu0 %v1329
      %1815 = vmatprep.subr.bf16.mxu0 %v1334
      %1816 = vmatpush1.bf16.msra.mxu0 %v1333
      %1817 = vmatprep.mubr.bf16.mxu0 %v490
      %1818 = vmatmul.mubr.bf16.gmra.mrb[0].mxu0 %v489
      %v1819 = vpop.f32.mrb[0].mxu0
      %v1820 = vadd.f32 %v448, %v1819
      %v1821 = vpop.f32.mrb[0].mxu0
      %v1822 = vadd.f32 %v452, %v1821
      %v1823 = vpop.f32.mrb[0].mxu0
      %v1824 = vadd.f32 %v448, %v1823
      %v1825 = vpop.f32.mrb[0].mxu0
      %v1826 = vadd.f32 %v452, %v1825
      %1827 = vdwg.mxu0
      %1828 = vmatprep.subr.bf16.mxu0 %v1338
      %1829 = vmatpush1.bf16.msra.mxu0 %v1337
      %1830 = vmatprep.subr.bf16.mxu0 %v1342
      %1831 = vmatpush1.bf16.msra.mxu0 %v1341
      %1832 = vmatprep.subr.bf16.mxu0 %v1346
      %1833 = vmatpush1.bf16.msra.mxu0 %v1345
      %1834 = vmatprep.subr.bf16.mxu0 %v1350
      %1835 = vmatpush1.bf16.msra.mxu0 %v1349
      %1836 = vmatprep.subr.bf16.mxu0 %v1354
      %1837 = vmatpush1.bf16.msra.mxu0 %v1353
      %1838 = vmatprep.subr.bf16.mxu0 %v1358
      %1839 = vmatpush1.bf16.msra.mxu0 %v1357
      %1840 = vmatprep.subr.bf16.mxu0 %v1362
      %1841 = vmatpush1.bf16.msra.mxu0 %v1361
      %1842 = vmatprep.subr.bf16.mxu0 %v1366
      %1843 = vmatpush1.bf16.msra.mxu0 %v1365
      %1844 = vmatprep.subr.bf16.mxu0 %v1370
      %1845 = vmatpush1.bf16.msra.mxu0 %v1369
      %1846 = vmatprep.subr.bf16.mxu0 %v1374
      %1847 = vmatpush1.bf16.msra.mxu0 %v1373
      %1848 = vmatprep.subr.bf16.mxu0 %v1378
      %1849 = vmatpush1.bf16.msra.mxu0 %v1377
      %1850 = vmatprep.subr.bf16.mxu0 %v1382
      %1851 = vmatpush1.bf16.msra.mxu0 %v1381
      %1852 = vmatprep.subr.bf16.mxu0 %v1386
      %1853 = vmatpush1.bf16.msra.mxu0 %v1385
      %1854 = vmatprep.subr.bf16.mxu0 %v1390
      %1855 = vmatpush1.bf16.msra.mxu0 %v1389
      %1856 = vmatprep.subr.bf16.mxu0 %v1394
      %1857 = vmatpush1.bf16.msra.mxu0 %v1393
      %1858 = vmatprep.subr.bf16.mxu0 %v1398
      %1859 = vmatpush1.bf16.msra.mxu0 %v1397
      %1860 = vmatprep.mubr.bf16.mxu0 %v492
      %1861 = vmatmul.mubr.bf16.gmra.mrb[0].mxu0 %v491
      %v1862 = vpop.f32.mrb[0].mxu0
      %v1863 = vadd.f32 %v1820, %v1862
      %v1864 = vpop.f32.mrb[0].mxu0
      %v1865 = vadd.f32 %v1822, %v1864
      %v1866 = vpop.f32.mrb[0].mxu0
      %v1867 = vadd.f32 %v1824, %v1866
      %v1868 = vpop.f32.mrb[0].mxu0
      %v1869 = vadd.f32 %v1826, %v1868
      %1870 = vdwg.mxu0
      %1871 = vmatprep.subr.bf16.mxu0 %v1402
      %1872 = vmatpush1.bf16.msra.mxu0 %v1401
      %1873 = vmatprep.subr.bf16.mxu0 %v1406
      %1874 = vmatpush1.bf16.msra.mxu0 %v1405
      %1875 = vmatprep.subr.bf16.mxu0 %v1410
      %1876 = vmatpush1.bf16.msra.mxu0 %v1409
      %1877 = vmatprep.subr.bf16.mxu0 %v1414
      %1878 = vmatpush1.bf16.msra.mxu0 %v1413
      %1879 = vmatprep.subr.bf16.mxu0 %v1418
      %1880 = vmatpush1.bf16.msra.mxu0 %v1417
      %1881 = vmatprep.subr.bf16.mxu0 %v1422
      %1882 = vmatpush1.bf16.msra.mxu0 %v1421
      %1883 = vmatprep.subr.bf16.mxu0 %v1426
      %1884 = vmatpush1.bf16.msra.mxu0 %v1425
      %1885 = vmatprep.subr.bf16.mxu0 %v1430
      %1886 = vmatpush1.bf16.msra.mxu0 %v1429
      %1887 = vmatprep.subr.bf16.mxu0 %v1434
      %1888 = vmatpush1.bf16.msra.mxu0 %v1433
      %1889 = vmatprep.subr.bf16.mxu0 %v1438
      %1890 = vmatpush1.bf16.msra.mxu0 %v1437
      %1891 = vmatprep.subr.bf16.mxu0 %v1442
      %1892 = vmatpush1.bf16.msra.mxu0 %v1441
      %1893 = vmatprep.subr.bf16.mxu0 %v1446
      %1894 = vmatpush1.bf16.msra.mxu0 %v1445
      %1895 = vmatprep.subr.bf16.mxu0 %v1450
      %1896 = vmatpush1.bf16.msra.mxu0 %v1449
      %1897 = vmatprep.subr.bf16.mxu0 %v1454
      %1898 = vmatpush1.bf16.msra.mxu0 %v1453
      %1899 = vmatprep.subr.bf16.mxu0 %v1458
      %1900 = vmatpush1.bf16.msra.mxu0 %v1457
      %1901 = vmatprep.subr.bf16.mxu0 %v1462
      %1902 = vmatpush1.bf16.msra.mxu0 %v1461
      %1903 = vmatprep.mubr.bf16.mxu0 %v494
      %1904 = vmatmul.mubr.bf16.gmra.mrb[0].mxu0 %v493
      %v1905 = vpop.f32.mrb[0].mxu0
      %v1906 = vadd.f32 %v1863, %v1905
      %v1907 = vpop.f32.mrb[0].mxu0
      %v1908 = vadd.f32 %v1865, %v1907
      %v1909 = vpop.f32.mrb[0].mxu0
      %v1910 = vadd.f32 %v1867, %v1909
      %v1911 = vpop.f32.mrb[0].mxu0
      %v1912 = vadd.f32 %v1869, %v1911
      %1913 = vdwg.mxu0
      %1914 = vmatprep.subr.bf16.mxu0 %v1466
      %1915 = vmatpush1.bf16.msra.mxu0 %v1465
      %1916 = vmatprep.subr.bf16.mxu0 %v1470
      %1917 = vmatpush1.bf16.msra.mxu0 %v1469
      %1918 = vmatprep.subr.bf16.mxu0 %v1474
      %1919 = vmatpush1.bf16.msra.mxu0 %v1473
      %1920 = vmatprep.subr.bf16.mxu0 %v1478
      %1921 = vmatpush1.bf16.msra.mxu0 %v1477
      %1922 = vmatprep.subr.bf16.mxu0 %v1482
      %1923 = vmatpush1.bf16.msra.mxu0 %v1481
      %1924 = vmatprep.subr.bf16.mxu0 %v1486
      %1925 = vmatpush1.bf16.msra.mxu0 %v1485
      %1926 = vmatprep.subr.bf16.mxu0 %v1490
      %1927 = vmatpush1.bf16.msra.mxu0 %v1489
      %1928 = vmatprep.subr.bf16.mxu0 %v1494
      %1929 = vmatpush1.bf16.msra.mxu0 %v1493
      %1930 = vmatprep.subr.bf16.mxu0 %v1498
      %1931 = vmatpush1.bf16.msra.mxu0 %v1497
      %1932 = vmatprep.subr.bf16.mxu0 %v1502
      %1933 = vmatpush1.bf16.msra.mxu0 %v1501
      %1934 = vmatprep.subr.bf16.mxu0 %v1506
      %1935 = vmatpush1.bf16.msra.mxu0 %v1505
      %1936 = vmatprep.subr.bf16.mxu0 %v1510
      %1937 = vmatpush1.bf16.msra.mxu0 %v1509
      %1938 = vmatprep.subr.bf16.mxu0 %v1514
      %1939 = vmatpush1.bf16.msra.mxu0 %v1513
      %1940 = vmatprep.subr.bf16.mxu0 %v1518
      %1941 = vmatpush1.bf16.msra.mxu0 %v1517
      %1942 = vmatprep.subr.bf16.mxu0 %v1522
      %1943 = vmatpush1.bf16.msra.mxu0 %v1521
      %1944 = vmatprep.subr.bf16.mxu0 %v1526
      %1945 = vmatpush1.bf16.msra.mxu0 %v1525
      %1946 = vmatprep.mubr.bf16.mxu0 %v496
      %1947 = vmatmul.mubr.bf16.gmra.mrb[0].mxu0 %v495
      %v1948 = vpop.f32.mrb[0].mxu0
      %v1949 = vadd.f32 %v1906, %v1948
      %v1950 = vpop.f32.mrb[0].mxu0
      %v1951 = vadd.f32 %v1908, %v1950
      %v1952 = vpop.f32.mrb[0].mxu0
      %v1953 = vadd.f32 %v1910, %v1952
      %v1954 = vpop.f32.mrb[0].mxu0
      %v1955 = vadd.f32 %v1912, %v1954
      %1956 = vdwg.mxu0
      %1957 = vmatprep.subr.bf16.mxu0 %v1276
      %1958 = vmatpush1.bf16.msra.mxu0 %v1275
      %1959 = vmatprep.subr.bf16.mxu0 %v1280
      %1960 = vmatpush1.bf16.msra.mxu0 %v1279
      %1961 = vmatprep.subr.bf16.mxu0 %v1284
      %1962 = vmatpush1.bf16.msra.mxu0 %v1283
      %1963 = vmatprep.subr.bf16.mxu0 %v1288
      %1964 = vmatpush1.bf16.msra.mxu0 %v1287
      %1965 = vmatprep.subr.bf16.mxu0 %v1292
      %1966 = vmatpush1.bf16.msra.mxu0 %v1291
      %1967 = vmatprep.subr.bf16.mxu0 %v1296
      %1968 = vmatpush1.bf16.msra.mxu0 %v1295
      %1969 = vmatprep.subr.bf16.mxu0 %v1300
      %1970 = vmatpush1.bf16.msra.mxu0 %v1299
      %1971 = vmatprep.subr.bf16.mxu0 %v1304
      %1972 = vmatpush1.bf16.msra.mxu0 %v1303
      %1973 = vmatprep.subr.bf16.mxu0 %v1308
      %1974 = vmatpush1.bf16.msra.mxu0 %v1307
      %1975 = vmatprep.subr.bf16.mxu0 %v1312
      %1976 = vmatpush1.bf16.msra.mxu0 %v1311
      %1977 = vmatprep.subr.bf16.mxu0 %v1316
      %1978 = vmatpush1.bf16.msra.mxu0 %v1315
      %1979 = vmatprep.subr.bf16.mxu0 %v1320
      %1980 = vmatpush1.bf16.msra.mxu0 %v1319
      %1981 = vmatprep.subr.bf16.mxu0 %v1324
      %1982 = vmatpush1.bf16.msra.mxu0 %v1323
      %1983 = vmatprep.subr.bf16.mxu0 %v1328
      %1984 = vmatpush1.bf16.msra.mxu0 %v1327
      %1985 = vmatprep.subr.bf16.mxu0 %v1332
      %1986 = vmatpush1.bf16.msra.mxu0 %v1331
      %1987 = vmatprep.subr.bf16.mxu0 %v1336
      %1988 = vmatpush1.bf16.msra.mxu0 %v1335
      %1989 = vmatprep.mubr.bf16.mxu0 %v490
      %1990 = vmatmul.mubr.bf16.gmra.mrb[0].mxu0 %v489
      %v1991 = vpop.f32.mrb[0].mxu0
      %v1992 = vadd.f32 %v456, %v1991
      %v1993 = vpop.f32.mrb[0].mxu0
      %v1994 = vadd.f32 %v460, %v1993
      %v1995 = vpop.f32.mrb[0].mxu0
      %v1996 = vadd.f32 %v456, %v1995
      %v1997 = vpop.f32.mrb[0].mxu0
      %v1998 = vadd.f32 %v460, %v1997
      %1999 = vdwg.mxu0
      %2000 = vmatprep.subr.bf16.mxu0 %v1340
      %2001 = vmatpush1.bf16.msra.mxu0 %v1339
      %2002 = vmatprep.subr.bf16.mxu0 %v1344
      %2003 = vmatpush1.bf16.msra.mxu0 %v1343
      %2004 = vmatprep.subr.bf16.mxu0 %v1348
      %2005 = vmatpush1.bf16.msra.mxu0 %v1347
      %2006 = vmatprep.subr.bf16.mxu0 %v1352
      %2007 = vmatpush1.bf16.msra.mxu0 %v1351
      %2008 = vmatprep.subr.bf16.mxu0 %v1356
      %2009 = vmatpush1.bf16.msra.mxu0 %v1355
      %2010 = vmatprep.subr.bf16.mxu0 %v1360
      %2011 = vmatpush1.bf16.msra.mxu0 %v1359
      %2012 = vmatprep.subr.bf16.mxu0 %v1364
      %2013 = vmatpush1.bf16.msra.mxu0 %v1363
      %2014 = vmatprep.subr.bf16.mxu0 %v1368
      %2015 = vmatpush1.bf16.msra.mxu0 %v1367
      %2016 = vmatprep.subr.bf16.mxu0 %v1372
      %2017 = vmatpush1.bf16.msra.mxu0 %v1371
      %2018 = vmatprep.subr.bf16.mxu0 %v1376
      %2019 = vmatpush1.bf16.msra.mxu0 %v1375
      %2020 = vmatprep.subr.bf16.mxu0 %v1380
      %2021 = vmatpush1.bf16.msra.mxu0 %v1379
      %2022 = vmatprep.subr.bf16.mxu0 %v1384
      %2023 = vmatpush1.bf16.msra.mxu0 %v1383
      %2024 = vmatprep.subr.bf16.mxu0 %v1388
      %2025 = vmatpush1.bf16.msra.mxu0 %v1387
      %2026 = vmatprep.subr.bf16.mxu0 %v1392
      %2027 = vmatpush1.bf16.msra.mxu0 %v1391
      %2028 = vmatprep.subr.bf16.mxu0 %v1396
      %2029 = vmatpush1.bf16.msra.mxu0 %v1395
      %2030 = vmatprep.subr.bf16.mxu0 %v1400
      %2031 = vmatpush1.bf16.msra.mxu0 %v1399
      %2032 = vmatprep.mubr.bf16.mxu0 %v492
      %2033 = vmatmul.mubr.bf16.gmra.mrb[0].mxu0 %v491
      %v2034 = vpop.f32.mrb[0].mxu0
      %v2035 = vadd.f32 %v1992, %v2034
      %v2036 = vpop.f32.mrb[0].mxu0
      %v2037 = vadd.f32 %v1994, %v2036
      %v2038 = vpop.f32.mrb[0].mxu0
      %v2039 = vadd.f32 %v1996, %v2038
      %v2040 = vpop.f32.mrb[0].mxu0
      %v2041 = vadd.f32 %v1998, %v2040
      %2042 = vdwg.mxu0
      %2043 = vmatprep.subr.bf16.mxu0 %v1404
      %2044 = vmatpush1.bf16.msra.mxu0 %v1403
      %2045 = vmatprep.subr.bf16.mxu0 %v1408
      %2046 = vmatpush1.bf16.msra.mxu0 %v1407
      %2047 = vmatprep.subr.bf16.mxu0 %v1412
      %2048 = vmatpush1.bf16.msra.mxu0 %v1411
      %2049 = vmatprep.subr.bf16.mxu0 %v1416
      %2050 = vmatpush1.bf16.msra.mxu0 %v1415
      %2051 = vmatprep.subr.bf16.mxu0 %v1420
      %2052 = vmatpush1.bf16.msra.mxu0 %v1419
      %2053 = vmatprep.subr.bf16.mxu0 %v1424
      %2054 = vmatpush1.bf16.msra.mxu0 %v1423
      %2055 = vmatprep.subr.bf16.mxu0 %v1428
      %2056 = vmatpush1.bf16.msra.mxu0 %v1427
      %2057 = vmatprep.subr.bf16.mxu0 %v1432
      %2058 = vmatpush1.bf16.msra.mxu0 %v1431
      %2059 = vmatprep.subr.bf16.mxu0 %v1436
      %2060 = vmatpush1.bf16.msra.mxu0 %v1435
      %2061 = vmatprep.subr.bf16.mxu0 %v1440
      %2062 = vmatpush1.bf16.msra.mxu0 %v1439
      %2063 = vmatprep.subr.bf16.mxu0 %v1444
      %2064 = vmatpush1.bf16.msra.mxu0 %v1443
      %2065 = vmatprep.subr.bf16.mxu0 %v1448
      %2066 = vmatpush1.bf16.msra.mxu0 %v1447
      %2067 = vmatprep.subr.bf16.mxu0 %v1452
      %2068 = vmatpush1.bf16.msra.mxu0 %v1451
      %2069 = vmatprep.subr.bf16.mxu0 %v1456
      %2070 = vmatpush1.bf16.msra.mxu0 %v1455
      %2071 = vmatprep.subr.bf16.mxu0 %v1460
      %2072 = vmatpush1.bf16.msra.mxu0 %v1459
      %2073 = vmatprep.subr.bf16.mxu0 %v1464
      %2074 = vmatpush1.bf16.msra.mxu0 %v1463
      %2075 = vmatprep.mubr.bf16.mxu0 %v494
      %2076 = vmatmul.mubr.bf16.gmra.mrb[0].mxu0 %v493
      %v2077 = vpop.f32.mrb[0].mxu0
      %v2078 = vadd.f32 %v2035, %v2077
      %v2079 = vpop.f32.mrb[0].mxu0
      %v2080 = vadd.f32 %v2037, %v2079
      %v2081 = vpop.f32.mrb[0].mxu0
      %v2082 = vadd.f32 %v2039, %v2081
      %v2083 = vpop.f32.mrb[0].mxu0
      %v2084 = vadd.f32 %v2041, %v2083
      %2085 = vdwg.mxu0
      %2086 = vmatprep.subr.bf16.mxu0 %v1468
      %2087 = vmatpush1.bf16.msra.mxu0 %v1467
      %2088 = vmatprep.subr.bf16.mxu0 %v1472
      %2089 = vmatpush1.bf16.msra.mxu0 %v1471
      %2090 = vmatprep.subr.bf16.mxu0 %v1476
      %2091 = vmatpush1.bf16.msra.mxu0 %v1475
      %2092 = vmatprep.subr.bf16.mxu0 %v1480
      %2093 = vmatpush1.bf16.msra.mxu0 %v1479
      %2094 = vmatprep.subr.bf16.mxu0 %v1484
      %2095 = vmatpush1.bf16.msra.mxu0 %v1483
      %2096 = vmatprep.subr.bf16.mxu0 %v1488
      %2097 = vmatpush1.bf16.msra.mxu0 %v1487
      %2098 = vmatprep.subr.bf16.mxu0 %v1492
      %2099 = vmatpush1.bf16.msra.mxu0 %v1491
      %2100 = vmatprep.subr.bf16.mxu0 %v1496
      %2101 = vmatpush1.bf16.msra.mxu0 %v1495
      %2102 = vmatprep.subr.bf16.mxu0 %v1500
      %2103 = vmatpush1.bf16.msra.mxu0 %v1499
      %2104 = vmatprep.subr.bf16.mxu0 %v1504
      %2105 = vmatpush1.bf16.msra.mxu0 %v1503
      %2106 = vmatprep.subr.bf16.mxu0 %v1508
      %2107 = vmatpush1.bf16.msra.mxu0 %v1507
      %2108 = vmatprep.subr.bf16.mxu0 %v1512
      %2109 = vmatpush1.bf16.msra.mxu0 %v1511
      %2110 = vmatprep.subr.bf16.mxu0 %v1516
      %2111 = vmatpush1.bf16.msra.mxu0 %v1515
      %2112 = vmatprep.subr.bf16.mxu0 %v1520
      %2113 = vmatpush1.bf16.msra.mxu0 %v1519
      %2114 = vmatprep.subr.bf16.mxu0 %v1524
      %2115 = vmatpush1.bf16.msra.mxu0 %v1523
      %2116 = vmatprep.subr.bf16.mxu0 %v1528
      %2117 = vmatpush1.bf16.msra.mxu0 %v1527
      %2118 = vmatprep.mubr.bf16.mxu0 %v496
      %2119 = vmatmul.mubr.bf16.gmra.mrb[0].mxu0 %v495
      %v2120 = vpop.f32.mrb[0].mxu0
      %v2121 = vadd.f32 %v2078, %v2120
      %v2122 = vpop.f32.mrb[0].mxu0
      %v2123 = vadd.f32 %v2080, %v2122
      %v2124 = vpop.f32.mrb[0].mxu0
      %v2125 = vadd.f32 %v2082, %v2124
      %v2126 = vpop.f32.mrb[0].mxu0
      %v2127 = vadd.f32 %v2084, %v2126
      %2128 = vdwg.mxu0
      %v2129 = vmax.f32 %v1949, 0.0
      %v2130 = vmax.f32 %v1951, 0.0
      %v2131 = vmax.f32 %v2121, 0.0
      %v2132 = vmax.f32 %v2123, 0.0
      %v2133 = vmax.f32 %v1953, 0.0
      %v2134 = vmax.f32 %v1955, 0.0
      %v2135 = vmax.f32 %v2125, 0.0
      %v2136 = vmax.f32 %v2127, 0.0
      %v2137 = vlaneseq
      %v2138 = vshrl.u32 %v2137, 7
      %v2139 = vadd.s32 %v2138, 8
      %vm2140 = vcmp.ge.s32.totalorder %v2138, 3
      %vm2141 = vcmp.ge.s32.totalorder %v2139, 3
      %v2142 = vsel %vm2140, 1, 0
      %v2143 = vsel %vm2141, 1, 0
      %vm2144 = vcmp.ge.s32.totalorder %v2138, 6
      %vm2145 = vcmp.ge.s32.totalorder %v2139, 6
      %v2146 = vsel %vm2144, 1, 0
      %v2147 = vsel %vm2145, 1, 0
      %v2148 = vadd.s32 %v2142, %v2146
      %v2149 = vadd.s32 %v2143, %v2147
      %v2150 = vmul.u32 %v2148, 3
      %v2151 = vmul.u32 %v2149, 3
      %v2152 = vsub.s32 %v2138, %v2150
      %v2153 = vsub.s32 %v2139, %v2151
      %v2154 = vcvt.s32.f32 %v2148
      %v2155 = vcvt.s32.f32 %v2149
      %v2156 = vsub.f32 %v2154, 1.0
      %v2157 = vsub.f32 %v2155, 1.0
      %v2158 = vcvt.s32.f32 %v2152
      %v2159 = vcvt.s32.f32 %v2153
      %v2160 = vsub.f32 %v2158, 1.0
      %v2161 = vsub.f32 %v2159, 1.0
      %v2162 = vlaneseq
      %v2163 = vand.u32 %v2162, 127
      %v2164 = vadd.s32 %v2163, 128
      %v2165 = vadd.s32 %v2163, 256
      %v2166 = vadd.s32 %v2163, 384
      %vm2167 = vcmp.eq.s32.totalorder %v2163, 510
      %vm2168 = vcmp.eq.s32.totalorder %v2164, 510
      %vm2169 = vcmp.eq.s32.totalorder %v2165, 510
      %vm2170 = vcmp.eq.s32.totalorder %v2166, 510
      %v2171 = vsel %vm2167, %v2156, %v2129
      %v2172 = vsel %vm2168, %v2156, %v2130
      %v2173 = vsel %vm2169, %v2156, %v2131
      %v2174 = vsel %vm2170, %v2156, %v2132
      %v2175 = vsel %vm2167, %v2157, %v2133
      %v2176 = vsel %vm2168, %v2157, %v2134
      %v2177 = vsel %vm2169, %v2157, %v2135
      %v2178 = vsel %vm2170, %v2157, %v2136
      %vm2179 = vcmp.eq.s32.totalorder %v2163, 511
      %vm2180 = vcmp.eq.s32.totalorder %v2164, 511
      %vm2181 = vcmp.eq.s32.totalorder %v2165, 511
      %vm2182 = vcmp.eq.s32.totalorder %v2166, 511
      %v2183 = vsel %vm2179, %v2160, %v2171
      %v2184 = vsel %vm2180, %v2160, %v2172
      %v2185 = vsel %vm2181, %v2160, %v2173
      %v2186 = vsel %vm2182, %v2160, %v2174
      %v2187 = vsel %vm2179, %v2161, %v2175
      %v2188 = vsel %vm2180, %v2161, %v2176
      %v2189 = vsel %vm2181, %v2161, %v2177
      %v2190 = vsel %vm2182, %v2161, %v2178
      %vm2191 = vcmp.lt.s32.totalorder %v2138, 9
      %vm2192 = vcmp.lt.s32.totalorder %v2139, 9
      %v2193 = vsel %vm2191, 1, 0
      %v2194 = vsel %vm2192, 1, 0
      %vm2195 = vcmp.eq.s32.totalorder %v2193, 1
      %vm2196 = vcmp.eq.s32.totalorder %v2194, 1
      %v2197 = vsel %vm2195, %v2183, 0.0
      %v2198 = vsel %vm2195, %v2184, 0.0
      %v2199 = vsel %vm2195, %v2185, 0.0
      %v2200 = vsel %vm2195, %v2186, 0.0
      %v2201 = vsel %vm2196, %v2187, 0.0
      %v2202 = vsel %vm2196, %v2188, 0.0
      %v2203 = vsel %vm2196, %v2189, 0.0
      %v2204 = vsel %vm2196, %v2190, 0.0
      %v2205 = vpack.c.bf16 %v2201, %v2197
      %v2206 = vpack.c.bf16 %v2202, %v2198
      %v2207 = vpack.c.bf16 %v2203, %v2199
      %v2208 = vpack.c.bf16 %v2204, %v2200
      %v2213 = vunpack.c.l.b16 %v2205
      %v2214 = vunpack.c.l.b16 %v2206
      %v2215 = vunpack.c.l.b16 %v2207
      %v2216 = vunpack.c.l.b16 %v2208
      %v2217 = vunpack.c.h.b16 %v2205
      %v2218 = vunpack.c.h.b16 %v2206
      %v2219 = vunpack.c.h.b16 %v2207
      %v2220 = vunpack.c.h.b16 %v2208
      %v2221 = vpack.c.b16 %v2214, %v2213
      %v2222 = vpack.c.b16 %v2216, %v2215
      %v2223 = vpack.c.b16 %v2218, %v2217
      %v2224 = vpack.c.b16 %v2220, %v2219
      %2229 = vst [vmem:[%s177] sm:$0xff] %v2221
      %2230 = vst [vmem:[%s177 + $0x8] sm:$0xff] %v2222
      %2231 = vst [vmem:[%s177 + $0x10] sm:$0xff] %v2223
      %2232 = vst [vmem:[%s177 + $0x18] sm:$0xff] %v2224
      %s2233 = smul.u32 2, %s14
      %p2234 = scmp.lt.s32.totalorder %s2233, 3
      %s2235 = scalar_select %p2234, %s2233, 3
      %s2236 = smul.addr %s2235, 4
      %s2237 = smul.addr %s2236, 4
      %s2238 = scalar_lea.vmem %s3, %s2237
      // Predicated region
      $region33: #{gnn_base_forward.4} parent=31 // pred_check
        %p2239 = pneg %p100
      $region34: #{gnn_base_forward.4} parent=31 // pred_check_branch
        %2241 = sbr.rel (%p2239) target = $region36
      $region35: #{gnn_base_forward.4} parent=31 // pred_region
        %s2242 = smul.u32 2, %s14
      $region36: #{gnn_base_forward.4} parent=31 // pred_fallthru
        _
    $region32: #{gnn_base_forward.4} parent=5 // pred_fallthru
      _
    %p2243 = scmp.le.s32.totalorder 2, %s9
    // Predicated region
    $region37: #{gnn_base_forward.4} parent=5 // pred_check
      %p2244 = pneg %p2243
    $region38: #{gnn_base_forward.4} parent=5 // pred_check_branch
      %2246 = sbr.rel (%p2244) target = $region40
    $region39: #{gnn_base_forward.4} parent=5 // pred_region
      %s2247 = ssub.s32 %s9, 2
      // Predicated region
      $region41: #{gnn_base_forward.4} parent=39 // pred_check
        %p2248 = pneg %p106
      $region42: #{gnn_base_forward.4} parent=39 // pred_check_branch
        %2250 = sbr.rel (%p2248) target = $region44
      $region43: #{gnn_base_forward.4} parent=39 // pred_region
        %s2251 = smul.u32 2, %s15
        %p2252 = scmp.lt.s32.totalorder %s2251, 3
        %s2253 = scalar_select %p2252, %s2251, 3
        %s2254 = smul.addr %s2253, 4
        %s2255 = smul.addr %s2254, 4
        %s2256 = scalar_lea.vmem %s3, %s2255
      $region44: #{gnn_base_forward.4} parent=39 // pred_fallthru
        _
    $region40: #{gnn_base_forward.4} parent=5 // pred_fallthru
      _
  $region6: #{gnn_base_forward.4} parent=0 // loop_footer
    %s13 = sadd.s32 1, %s9
  $region7: #{gnn_base_forward.4} parent=0 // loop_footer_branch
    %8 = sbr.rel target = $region3
  $region8: #{gnn_base_forward.4} parent=0 // loop_exit
    _

// kernel: gnn_base_forward.5
$region0: #{gnn_base_forward.5}
  #allocation0 [shape = 'u32[]', space=smem, size = 0x4, offset = 0x4, fixed_abs, tag = 'smem constant byte address 0x4 - core index']
  #allocation1 [shape = 'u32[144,128]{1,0:T(1,128)}', space=vmem, size = 0x12000, scoped, tag = 'internal scratch']
  #allocation2 [shape = 'bf16[16,512]{1,0:T(16,128)(2,1)}', space=vmem, size = 0x4000, scoped, tag = 'scratch operand']
  #allocation3 [shape = 'f32[1,1]{1,0:T(1,128)S(1)}', space=vmem, size = 0x200, scoped, tag = 'scoped memory for gnn_base_forward.5']
  %s0 = inlined_call_operand.vmem [shape: bf16[32,512], index: 0, kind: input, shape index: {}]
  %s1 = inlined_call_operand.vmem [shape: bf16[512,1536], index: 1, kind: input, shape index: {}]
  %s2 = inlined_call_operand.vmem [shape: f32[1,1536], index: 2, kind: input, shape index: {}]
  %s3 = inlined_call_operand.vmem [shape: bf16[512,512], index: 3, kind: input, shape index: {}]
  %s4 = inlined_call_operand.vmem [shape: f32[1,512], index: 4, kind: input, shape index: {}]
  %s5 = inlined_call_operand.vmem [shape: bf16[512,1], index: 5, kind: input, shape index: {}]
  %s6 = inlined_call_operand.<no memory space> [shape: f32[1,1], index: 6, kind: input, shape index: {}]
  %s7 = inlined_call_operand.vmem [shape: f32[2,1,1], index: 7, kind: output, shape index: {}]
  %s8 = sld [smem:[#allocation0]]
  $region61: #{gnn_base_forward.5} parent=0
    _
  %s10 = ssub.s32 1, %s8
  %s11 = scalar_select 0, %s10, %s8
  %v12 = vstv %s6
  %13 = vst [vmem:[#allocation3] sm:$0x1] %v12
  loop: start=0, step=1, limit=4
  $region2: #{gnn_base_forward.5} parent=0 // loop_pre_header
    _
  $region3: #{gnn_base_forward.5} parent=0 // loop_header
    %s15 = sphi 0, %s19
    %p16 = scmp.ge.s32.totalorder %s15, 4
    %s25 = sphi 0, %s27
    %s28 = sphi 0, %s25
    %s29 = sphi 0, %s28
    %s45 = sphi 0, %s29
    %s49 = sphi 0, %s49
    %s51 = sphi 0, %s49
    %s52 = sphi 0, %s51
    %s66 = sphi 0, %s52
    %s70 = sphi 0, %s70
    %s72 = sphi 0, %s70
    %s73 = sphi 0, %s72
    %s87 = sphi 0, %s73
    %s91 = sphi 0, %s91
    %s93 = sphi 0, %s91
    %s94 = sphi 0, %s93
    %s108 = sphi 0, %s94
    %s112 = sphi 0, %s112
    %s114 = sphi 0, %s112
    %s115 = sphi 0, %s114
    %s129 = sphi 0, %s115
    %s133 = sphi 0, %s133
    %s135 = sphi 0, %s133
    %s136 = sphi 0, %s135
    %s150 = sphi 0, %s136
    %s154 = sphi 0, %s154
    %s156 = sphi 0, %s154
    %s157 = sphi 0, %s156
    %s171 = sphi 0, %s157
    %s177 = sphi 0, %s179
    %s180 = sphi 0, %s177
    %s181 = sphi 0, %s180
    %s197 = sphi 0, %s181
  $region4: #{gnn_base_forward.5} parent=0 // loop_header_branch
    %18 = sbr.rel (%p16) target = $region8
  $region5: #{gnn_base_forward.5} parent=0 // loop_body
    %s20 = ssub.s32 %s15, 1
    %s21 = ssub.s32 %s15, 2
    %s22 = sadd.s32 %s15, 1
    %s23 = ssub.s32 %s15, %s22
    %p24 = scmp.eq.s32.totalorder %s23, 0
    %s26 = sadd.s32 %s25, 1
    %s27 = scalar_select %p24, %s25, %s26
    %p30 = pneg %p24
    %p31 = scmp.eq.s32.totalorder %s15, 1
    %p32 = por %p30, %p31
    %p33 = scmp.ne.s32.totalorder %s25, %s28
    %p34 = scmp.eq.s32.totalorder %s15, 0
    %p35 = por %p33, %p34
    %p36 = scmp.ne.s32.totalorder %s25, %s28
    %p37 = scmp.eq.s32.totalorder %s20, 1
    %p38 = por %p36, %p37
    %p39 = scmp.ne.s32.totalorder %s28, %s29
    %p40 = scmp.eq.s32.totalorder %s20, 0
    %p41 = por %p39, %p40
    %p42 = scmp.ne.s32.totalorder %s28, %s29
    %p43 = scmp.eq.s32.totalorder %s21, 1
    %p44 = por %p42, %p43
    %p46 = scmp.ne.s32.totalorder %s29, %s45
    %p47 = scmp.eq.s32.totalorder %s21, 0
    %p48 = por %p46, %p47
    %s50 = sadd.s32 %s49, 1
    %p53 = scmp.eq.s32.totalorder %s15, 1
    %p54 = scmp.ne.s32.totalorder %s49, %s51
    %p55 = scmp.eq.s32.totalorder %s15, 0
    %p56 = por %p54, %p55
    %p57 = scmp.ne.s32.totalorder %s49, %s51
    %p58 = scmp.eq.s32.totalorder %s20, 1
    %p59 = por %p57, %p58
    %p60 = scmp.ne.s32.totalorder %s51, %s52
    %p61 = scmp.eq.s32.totalorder %s20, 0
    %p62 = por %p60, %p61
    %p63 = scmp.ne.s32.totalorder %s51, %s52
    %p64 = scmp.eq.s32.totalorder %s21, 1
    %p65 = por %p63, %p64
    %p67 = scmp.ne.s32.totalorder %s52, %s66
    %p68 = scmp.eq.s32.totalorder %s21, 0
    %p69 = por %p67, %p68
    %s71 = sadd.s32 %s70, 1
    %p74 = scmp.eq.s32.totalorder %s15, 1
    %p75 = scmp.ne.s32.totalorder %s70, %s72
    %p76 = scmp.eq.s32.totalorder %s15, 0
    %p77 = por %p75, %p76
    %p78 = scmp.ne.s32.totalorder %s70, %s72
    %p79 = scmp.eq.s32.totalorder %s20, 1
    %p80 = por %p78, %p79
    %p81 = scmp.ne.s32.totalorder %s72, %s73
    %p82 = scmp.eq.s32.totalorder %s20, 0
    %p83 = por %p81, %p82
    %p84 = scmp.ne.s32.totalorder %s72, %s73
    %p85 = scmp.eq.s32.totalorder %s21, 1
    %p86 = por %p84, %p85
    %p88 = scmp.ne.s32.totalorder %s73, %s87
    %p89 = scmp.eq.s32.totalorder %s21, 0
    %p90 = por %p88, %p89
    %s92 = sadd.s32 %s91, 1
    %p95 = scmp.eq.s32.totalorder %s15, 1
    %p96 = scmp.ne.s32.totalorder %s91, %s93
    %p97 = scmp.eq.s32.totalorder %s15, 0
    %p98 = por %p96, %p97
    %p99 = scmp.ne.s32.totalorder %s91, %s93
    %p100 = scmp.eq.s32.totalorder %s20, 1
    %p101 = por %p99, %p100
    %p102 = scmp.ne.s32.totalorder %s93, %s94
    %p103 = scmp.eq.s32.totalorder %s20, 0
    %p104 = por %p102, %p103
    %p105 = scmp.ne.s32.totalorder %s93, %s94
    %p106 = scmp.eq.s32.totalorder %s21, 1
    %p107 = por %p105, %p106
    %p109 = scmp.ne.s32.totalorder %s94, %s108
    %p110 = scmp.eq.s32.totalorder %s21, 0
    %p111 = por %p109, %p110
    %s113 = sadd.s32 %s112, 1
    %p116 = scmp.eq.s32.totalorder %s15, 1
    %p117 = scmp.ne.s32.totalorder %s112, %s114
    %p118 = scmp.eq.s32.totalorder %s15, 0
    %p119 = por %p117, %p118
    %p120 = scmp.ne.s32.totalorder %s112, %s114
    %p121 = scmp.eq.s32.totalorder %s20, 1
    %p122 = por %p120, %p121
    %p123 = scmp.ne.s32.totalorder %s114, %s115
    %p124 = scmp.eq.s32.totalorder %s20, 0
    %p125 = por %p123, %p124
    %p126 = scmp.ne.s32.totalorder %s114, %s115
    %p127 = scmp.eq.s32.totalorder %s21, 1
    %p128 = por %p126, %p127
    %p130 = scmp.ne.s32.totalorder %s115, %s129
    %p131 = scmp.eq.s32.totalorder %s21, 0
    %p132 = por %p130, %p131
    %s134 = sadd.s32 %s133, 1
    %p137 = scmp.eq.s32.totalorder %s15, 1
    %p138 = scmp.ne.s32.totalorder %s133, %s135
    %p139 = scmp.eq.s32.totalorder %s15, 0
    %p140 = por %p138, %p139
    %p141 = scmp.ne.s32.totalorder %s133, %s135
    %p142 = scmp.eq.s32.totalorder %s20, 1
    %p143 = por %p141, %p142
    %p144 = scmp.ne.s32.totalorder %s135, %s136
    %p145 = scmp.eq.s32.totalorder %s20, 0
    %p146 = por %p144, %p145
    %p147 = scmp.ne.s32.totalorder %s135, %s136
    %p148 = scmp.eq.s32.totalorder %s21, 1
    %p149 = por %p147, %p148
    %p151 = scmp.ne.s32.totalorder %s136, %s150
    %p152 = scmp.eq.s32.totalorder %s21, 0
    %p153 = por %p151, %p152
    %s155 = sadd.s32 %s154, 1
    %p158 = scmp.eq.s32.totalorder %s15, 1
    %p159 = scmp.ne.s32.totalorder %s154, %s156
    %p160 = scmp.eq.s32.totalorder %s15, 0
    %p161 = por %p159, %p160
    %p162 = scmp.ne.s32.totalorder %s154, %s156
    %p163 = scmp.eq.s32.totalorder %s20, 1
    %p164 = por %p162, %p163
    %p165 = scmp.ne.s32.totalorder %s156, %s157
    %p166 = scmp.eq.s32.totalorder %s20, 0
    %p167 = por %p165, %p166
    %p168 = scmp.ne.s32.totalorder %s156, %s157
    %p169 = scmp.eq.s32.totalorder %s21, 1
    %p170 = por %p168, %p169
    %p172 = scmp.ne.s32.totalorder %s157, %s171
    %p173 = scmp.eq.s32.totalorder %s21, 0
    %p174 = por %p172, %p173
    %s175 = ssub.s32 %s15, %s22
    %p176 = scmp.eq.s32.totalorder %s175, 0
    %s178 = sadd.s32 %s177, 1
    %s179 = scalar_select %p176, %s177, %s178
    %p182 = pneg %p176
    %p183 = scmp.eq.s32.totalorder %s15, 1
    %p184 = por %p182, %p183
    %p185 = scmp.ne.s32.totalorder %s177, %s180
    %p186 = scmp.eq.s32.totalorder %s15, 0
    %p187 = por %p185, %p186
    %p188 = scmp.ne.s32.totalorder %s177, %s180
    %p189 = scmp.eq.s32.totalorder %s20, 1
    %p190 = por %p188, %p189
    %p191 = scmp.ne.s32.totalorder %s180, %s181
    %p192 = scmp.eq.s32.totalorder %s20, 0
    %p193 = por %p191, %p192
    %p194 = scmp.ne.s32.totalorder %s180, %s181
    %p195 = scmp.eq.s32.totalorder %s21, 1
    %p196 = por %p194, %p195
    %p198 = scmp.ne.s32.totalorder %s181, %s197
    %p199 = scmp.eq.s32.totalorder %s21, 0
    %p200 = por %p198, %p199
    %p201 = scmp.le.s32.totalorder 1, %s15
    %p202 = scmp.lt.s32.totalorder %s15, 3
    %p203 = pnand %p201, %p202
    %p204 = pneg %p203
    // Predicated region
    $region9: #{gnn_base_forward.5} parent=5 // pred_check
      _
    $region10: #{gnn_base_forward.5} parent=5 // pred_check_branch
      %206 = sbr.rel (%p203) target = $region12
    $region11: #{gnn_base_forward.5} parent=5 // pred_region
      %s207 = ssub.s32 %s15, 1
      // Predicated region
      $region13: #{gnn_base_forward.5} parent=11 // pred_check
        %p208 = pneg %p62
      $region14: #{gnn_base_forward.5} parent=11 // pred_check_branch
        %210 = sbr.rel (%p208) target = $region16
      $region15: #{gnn_base_forward.5} parent=11 // pred_region
        _
      $region16: #{gnn_base_forward.5} parent=11 // pred_fallthru
        _
      // Predicated region
      $region17: #{gnn_base_forward.5} parent=11 // pred_check
        %p211 = pneg %p83
      $region18: #{gnn_base_forward.5} parent=11 // pred_check_branch
        %213 = sbr.rel (%p211) target = $region20
      $region19: #{gnn_base_forward.5} parent=11 // pred_region
        _
      $region20: #{gnn_base_forward.5} parent=11 // pred_fallthru
        _
      // Predicated region
      $region21: #{gnn_base_forward.5} parent=11 // pred_check
        %p214 = pneg %p104
      $region22: #{gnn_base_forward.5} parent=11 // pred_check_branch
        %216 = sbr.rel (%p214) target = $region24
      $region23: #{gnn_base_forward.5} parent=11 // pred_region
        _
      $region24: #{gnn_base_forward.5} parent=11 // pred_fallthru
        _
      // Predicated region
      $region25: #{gnn_base_forward.5} parent=11 // pred_check
        %p217 = pneg %p125
      $region26: #{gnn_base_forward.5} parent=11 // pred_check_branch
        %219 = sbr.rel (%p217) target = $region28
      $region27: #{gnn_base_forward.5} parent=11 // pred_region
        _
      $region28: #{gnn_base_forward.5} parent=11 // pred_fallthru
        _
      // Predicated region
      $region29: #{gnn_base_forward.5} parent=11 // pred_check
        %p220 = pneg %p146
      $region30: #{gnn_base_forward.5} parent=11 // pred_check_branch
        %222 = sbr.rel (%p220) target = $region32
      $region31: #{gnn_base_forward.5} parent=11 // pred_region
        _
      $region32: #{gnn_base_forward.5} parent=11 // pred_fallthru
        _
      // Predicated region
      $region33: #{gnn_base_forward.5} parent=11 // pred_check
        %p223 = pneg %p167
      $region34: #{gnn_base_forward.5} parent=11 // pred_check_branch
        %225 = sbr.rel (%p223) target = $region36
      $region35: #{gnn_base_forward.5} parent=11 // pred_region
        _
      $region36: #{gnn_base_forward.5} parent=11 // pred_fallthru
        _
    $region12: #{gnn_base_forward.5} parent=5 // pred_fallthru
      _
    %p226 = scmp.lt.s32.totalorder %s15, 2
    // Predicated region
    $region37: #{gnn_base_forward.5} parent=5 // pred_check
      %p227 = pneg %p226
    $region38: #{gnn_base_forward.5} parent=5 // pred_check_branch
      %229 = sbr.rel (%p227) target = $region40
    $region39: #{gnn_base_forward.5} parent=5 // pred_region
      // Predicated region
      $region41: #{gnn_base_forward.5} parent=39 // pred_check
        %p230 = pneg %p35
      $region42: #{gnn_base_forward.5} parent=39 // pred_check_branch
        %232 = sbr.rel (%p230) target = $region44
      $region43: #{gnn_base_forward.5} parent=39 // pred_region
        %s233 = smul.u32 2, %s15
        %p234 = scmp.lt.s32.totalorder %s233, 3
        %s235 = scalar_select %p234, %s233, 3
        %s236 = smul.addr %s235, 4
        %s237 = smul.addr %s236, 4
        %s238 = scalar_lea.vmem %s0, %s237
        %s239 = smul.u32 2, %s15
      $region44: #{gnn_base_forward.5} parent=39 // pred_fallthru
        _
    $region40: #{gnn_base_forward.5} parent=5 // pred_fallthru
      _
    %p240 = scmp.le.s32.totalorder 1, %s15
    %p241 = scmp.lt.s32.totalorder %s15, 3
    %p242 = pnand %p240, %p241
    %p243 = pneg %p242
    // Predicated region
    $region45: #{gnn_base_forward.5} parent=5 // pred_check
      _
    $region46: #{gnn_base_forward.5} parent=5 // pred_check_branch
      %245 = sbr.rel (%p242) target = $region48
    $region47: #{gnn_base_forward.5} parent=5 // pred_region
      %s246 = ssub.s32 %s15, 1
      %s247 = smul.u32 2, %s20
      %p248 = scmp.lt.s32.totalorder %s247, 3
      %s249 = scalar_select %p248, %s247, 3
      %s250 = smul.addr %s249, 4
      %s251 = smul.addr %s250, 4
      %s252 = scalar_lea.vmem %s0, %s251
      %p253 = pneg %p41
      %p254 = pneg %p38
      %p255 = pneg %p62
      %p256 = pneg %p59
      %p257 = pneg %p83
      %p258 = pneg %p80
      %p259 = pneg %p104
      %p260 = pneg %p101
      %p261 = pneg %p125
      %p262 = pneg %p122
      %p263 = pneg %p146
      %p264 = pneg %p143
      %p265 = pneg %p167
      %p266 = pneg %p164
      %p267 = pneg %p193
      %p268 = pneg %p190
      %p269 = scmp.lt.s32.totalorder %s20, 1
      %s270 = scalar_select %p269, %s20, 1
      %s271 = scalar_lea.vmem %s7, %s270
      %s272 = smul.u32 2, %s20
      %p273 = scmp.lt.s32.totalorder %s272, 3
      %s274 = scalar_select %p273, %s272, 3
      %s275 = smul.addr %s274, 4
      %s276 = smul.addr %s275, 4
      %s277 = scalar_lea.vmem %s0, %s276
      %s278 = smul.u32 2, %s20
      %p279 = scmp.lt.s32.totalorder %s20, 1
      %s280 = scalar_select %p279, %s20, 1
      %s281 = scalar_lea.vmem %s7, %s280
      %v283 = vld [vmem:[%s277] sm:$0xff]
      %v284 = vld [vmem:[%s277 + $0x8] sm:$0xff]
      %v285 = vld [vmem:[%s277 + $0x10] sm:$0xff]
      %v286 = vld [vmem:[%s277 + $0x18] sm:$0xff]
      %v287 = vld [vmem:[%s1] sm:$0xff]
      %v288 = vld [vmem:[%s1 + $0x8] sm:$0xff]
      %v289 = vld [vmem:[%s1 + $0x10] sm:$0xff]
      %v290 = vld [vmem:[%s1 + $0x18] sm:$0xff]
      %v291 = vld [vmem:[%s1 + $0x20] sm:$0xff]
      %v292 = vld [vmem:[%s1 + $0x28] sm:$0xff]
      %v293 = vld [vmem:[%s1 + $0x30] sm:$0xff]
      %v294 = vld [vmem:[%s1 + $0x38] sm:$0xff]
      %v295 = vld [vmem:[%s1 + $0x40] sm:$0xff]
      %v296 = vld [vmem:[%s1 + $0x48] sm:$0xff]
      %v297 = vld [vmem:[%s1 + $0x50] sm:$0xff]
      %v298 = vld [vmem:[%s1 + $0x58] sm:$0xff]
      %v299 = vld [vmem:[%s1 + $0x60] sm:$0xff]
      %v300 = vld [vmem:[%s1 + $0x68] sm:$0xff]
      %v301 = vld [vmem:[%s1 + $0x70] sm:$0xff]
      %v302 = vld [vmem:[%s1 + $0x78] sm:$0xff]
      %v303 = vld [vmem:[%s1 + $0x80] sm:$0xff]
      %v304 = vld [vmem:[%s1 + $0x88] sm:$0xff]
      %v305 = vld [vmem:[%s1 + $0x90] sm:$0xff]
      %v306 = vld [vmem:[%s1 + $0x98] sm:$0xff]
      %v307 = vld [vmem:[%s1 + $0xa0] sm:$0xff]
      %v308 = vld [vmem:[%s1 + $0xa8] sm:$0xff]
      %v309 = vld [vmem:[%s1 + $0xb0] sm:$0xff]
      %v310 = vld [vmem:[%s1 + $0xb8] sm:$0xff]
      %v311 = vld [vmem:[%s1 + $0xc0] sm:$0xff]
      %v312 = vld [vmem:[%s1 + $0xc8] sm:$0xff]
      %v313 = vld [vmem:[%s1 + $0xd0] sm:$0xff]
      %v314 = vld [vmem:[%s1 + $0xd8] sm:$0xff]
      %v315 = vld [vmem:[%s1 + $0xe0] sm:$0xff]
      %v316 = vld [vmem:[%s1 + $0xe8] sm:$0xff]
      %v317 = vld [vmem:[%s1 + $0xf0] sm:$0xff]
      %v318 = vld [vmem:[%s1 + $0xf8] sm:$0xff]
      %v319 = vld [vmem:[%s1 + $0x100] sm:$0xff]
      %v320 = vld [vmem:[%s1 + $0x108] sm:$0xff]
      %v321 = vld [vmem:[%s1 + $0x110] sm:$0xff]
      %v322 = vld [vmem:[%s1 + $0x118] sm:$0xff]
      %v323 = vld [vmem:[%s1 + $0x120] sm:$0xff]
      %v324 = vld [vmem:[%s1 + $0x128] sm:$0xff]
      %v325 = vld [vmem:[%s1 + $0x130] sm:$0xff]
      %v326 = vld [vmem:[%s1 + $0x138] sm:$0xff]
      %v327 = vld [vmem:[%s1 + $0x140] sm:$0xff]
      %v328 = vld [vmem:[%s1 + $0x148] sm:$0xff]
      %v329 = vld [vmem:[%s1 + $0x150] sm:$0xff]
      %v330 = vld [vmem:[%s1 + $0x158] sm:$0xff]
      %v331 = vld [vmem:[%s1 + $0x160] sm:$0xff]
      %v332 = vld [vmem:[%s1 + $0x168] sm:$0xff]
      %v333 = vld [vmem:[%s1 + $0x170] sm:$0xff]
      %v334 = vld [vmem:[%s1 + $0x178] sm:$0xff]
      %v335 = vld [vmem:[%s1 + $0x180] sm:$0xff]
      %v336 = vld [vmem:[%s1 + $0x188] sm:$0xff]
      %v337 = vld [vmem:[%s1 + $0x190] sm:$0xff]
      %v338 = vld [vmem:[%s1 + $0x198] sm:$0xff]
      %v339 = vld [vmem:[%s1 + $0x1a0] sm:$0xff]
      %v340 = vld [vmem:[%s1 + $0x1a8] sm:$0xff]
      %v341 = vld [vmem:[%s1 + $0x1b0] sm:$0xff]
      %v342 = vld [vmem:[%s1 + $0x1b8] sm:$0xff]
      %v343 = vld [vmem:[%s1 + $0x1c0] sm:$0xff]
      %v344 = vld [vmem:[%s1 + $0x1c8] sm:$0xff]
      %v345 = vld [vmem:[%s1 + $0x1d0] sm:$0xff]
      %v346 = vld [vmem:[%s1 + $0x1d8] sm:$0xff]
      %v347 = vld [vmem:[%s1 + $0x1e0] sm:$0xff]
      %v348 = vld [vmem:[%s1 + $0x1e8] sm:$0xff]
      %v349 = vld [vmem:[%s1 + $0x1f0] sm:$0xff]
      %v350 = vld [vmem:[%s1 + $0x1f8] sm:$0xff]
      %v351 = vld [vmem:[%s1 + $0x200] sm:$0xff]
      %v352 = vld [vmem:[%s1 + $0x208] sm:$0xff]
      %v353 = vld [vmem:[%s1 + $0x210] sm:$0xff]
      %v354 = vld [vmem:[%s1 + $0x218] sm:$0xff]
      %v355 = vld [vmem:[%s1 + $0x220] sm:$0xff]
      %v356 = vld [vmem:[%s1 + $0x228] sm:$0xff]
      %v357 = vld [vmem:[%s1 + $0x230] sm:$0xff]
      %v358 = vld [vmem:[%s1 + $0x238] sm:$0xff]
      %v359 = vld [vmem:[%s1 + $0x240] sm:$0xff]
      %v360 = vld [vmem:[%s1 + $0x248] sm:$0xff]
      %v361 = vld [vmem:[%s1 + $0x250] sm:$0xff]
      %v362 = vld [vmem:[%s1 + $0x258] sm:$0xff]
      %v363 = vld [vmem:[%s1 + $0x260] sm:$0xff]
      %v364 = vld [vmem:[%s1 + $0x268] sm:$0xff]
      %v365 = vld [vmem:[%s1 + $0x270] sm:$0xff]
      %v366 = vld [vmem:[%s1 + $0x278] sm:$0xff]
      %v367 = vld [vmem:[%s1 + $0x280] sm:$0xff]
      %v368 = vld [vmem:[%s1 + $0x288] sm:$0xff]
      %v369 = vld [vmem:[%s1 + $0x290] sm:$0xff]
      %v370 = vld [vmem:[%s1 + $0x298] sm:$0xff]
      %v371 = vld [vmem:[%s1 + $0x2a0] sm:$0xff]
      %v372 = vld [vmem:[%s1 + $0x2a8] sm:$0xff]
      %v373 = vld [vmem:[%s1 + $0x2b0] sm:$0xff]
      %v374 = vld [vmem:[%s1 + $0x2b8] sm:$0xff]
      %v375 = vld [vmem:[%s1 + $0x2c0] sm:$0xff]
      %v376 = vld [vmem:[%s1 + $0x2c8] sm:$0xff]
      %v377 = vld [vmem:[%s1 + $0x2d0] sm:$0xff]
      %v378 = vld [vmem:[%s1 + $0x2d8] sm:$0xff]
      %v379 = vld [vmem:[%s1 + $0x2e0] sm:$0xff]
      %v380 = vld [vmem:[%s1 + $0x2e8] sm:$0xff]
      %v381 = vld [vmem:[%s1 + $0x2f0] sm:$0xff]
      %v382 = vld [vmem:[%s1 + $0x2f8] sm:$0xff]
      %v383 = vld [vmem:[%s1 + $0x300] sm:$0xff]
      %v384 = vld [vmem:[%s1 + $0x308] sm:$0xff]
      %v385 = vld [vmem:[%s1 + $0x310] sm:$0xff]
      %v386 = vld [vmem:[%s1 + $0x318] sm:$0xff]
      %v387 = vld [vmem:[%s1 + $0x320] sm:$0xff]
      %v388 = vld [vmem:[%s1 + $0x328] sm:$0xff]
      %v389 = vld [vmem:[%s1 + $0x330] sm:$0xff]
      %v390 = vld [vmem:[%s1 + $0x338] sm:$0xff]
      %v391 = vld [vmem:[%s1 + $0x340] sm:$0xff]
      %v392 = vld [vmem:[%s1 + $0x348] sm:$0xff]
      %v393 = vld [vmem:[%s1 + $0x350] sm:$0xff]
      %v394 = vld [vmem:[%s1 + $0x358] sm:$0xff]
      %v395 = vld [vmem:[%s1 + $0x360] sm:$0xff]
      %v396 = vld [vmem:[%s1 + $0x368] sm:$0xff]
      %v397 = vld [vmem:[%s1 + $0x370] sm:$0xff]
      %v398 = vld [vmem:[%s1 + $0x378] sm:$0xff]
      %v399 = vld [vmem:[%s1 + $0x380] sm:$0xff]
      %v400 = vld [vmem:[%s1 + $0x388] sm:$0xff]
      %v401 = vld [vmem:[%s1 + $0x390] sm:$0xff]
      %v402 = vld [vmem:[%s1 + $0x398] sm:$0xff]
      %v403 = vld [vmem:[%s1 + $0x3a0] sm:$0xff]
      %v404 = vld [vmem:[%s1 + $0x3a8] sm:$0xff]
      %v405 = vld [vmem:[%s1 + $0x3b0] sm:$0xff]
      %v406 = vld [vmem:[%s1 + $0x3b8] sm:$0xff]
      %v407 = vld [vmem:[%s1 + $0x3c0] sm:$0xff]
      %v408 = vld [vmem:[%s1 + $0x3c8] sm:$0xff]
      %v409 = vld [vmem:[%s1 + $0x3d0] sm:$0xff]
      %v410 = vld [vmem:[%s1 + $0x3d8] sm:$0xff]
      %v411 = vld [vmem:[%s1 + $0x3e0] sm:$0xff]
      %v412 = vld [vmem:[%s1 + $0x3e8] sm:$0xff]
      %v413 = vld [vmem:[%s1 + $0x3f0] sm:$0xff]
      %v414 = vld [vmem:[%s1 + $0x3f8] sm:$0xff]
      %v415 = vld [vmem:[%s1 + $0x400] sm:$0xff]
      %v416 = vld [vmem:[%s1 + $0x408] sm:$0xff]
      %v417 = vld [vmem:[%s1 + $0x410] sm:$0xff]
      %v418 = vld [vmem:[%s1 + $0x418] sm:$0xff]
      %v419 = vld [vmem:[%s1 + $0x420] sm:$0xff]
      %v420 = vld [vmem:[%s1 + $0x428] sm:$0xff]
      %v421 = vld [vmem:[%s1 + $0x430] sm:$0xff]
      %v422 = vld [vmem:[%s1 + $0x438] sm:$0xff]
      %v423 = vld [vmem:[%s1 + $0x440] sm:$0xff]
      %v424 = vld [vmem:[%s1 + $0x448] sm:$0xff]
      %v425 = vld [vmem:[%s1 + $0x450] sm:$0xff]
      %v426 = vld [vmem:[%s1 + $0x458] sm:$0xff]
      %v427 = vld [vmem:[%s1 + $0x460] sm:$0xff]
      %v428 = vld [vmem:[%s1 + $0x468] sm:$0xff]
      %v429 = vld [vmem:[%s1 + $0x470] sm:$0xff]
      %v430 = vld [vmem:[%s1 + $0x478] sm:$0xff]
      %v431 = vld [vmem:[%s1 + $0x480] sm:$0xff]
      %v432 = vld [vmem:[%s1 + $0x488] sm:$0xff]
      %v433 = vld [vmem:[%s1 + $0x490] sm:$0xff]
      %v434 = vld [vmem:[%s1 + $0x498] sm:$0xff]
      %v435 = vld [vmem:[%s1 + $0x4a0] sm:$0xff]
      %v436 = vld [vmem:[%s1 + $0x4a8] sm:$0xff]
      %v437 = vld [vmem:[%s1 + $0x4b0] sm:$0xff]
      %v438 = vld [vmem:[%s1 + $0x4b8] sm:$0xff]
      %v439 = vld [vmem:[%s1 + $0x4c0] sm:$0xff]
      %v440 = vld [vmem:[%s1 + $0x4c8] sm:$0xff]
      %v441 = vld [vmem:[%s1 + $0x4d0] sm:$0xff]
      %v442 = vld [vmem:[%s1 + $0x4d8] sm:$0xff]
      %v443 = vld [vmem:[%s1 + $0x4e0] sm:$0xff]
      %v444 = vld [vmem:[%s1 + $0x4e8] sm:$0xff]
      %v445 = vld [vmem:[%s1 + $0x4f0] sm:$0xff]
      %v446 = vld [vmem:[%s1 + $0x4f8] sm:$0xff]
      %v447 = vld [vmem:[%s1 + $0x500] sm:$0xff]
      %v448 = vld [vmem:[%s1 + $0x508] sm:$0xff]
      %v449 = vld [vmem:[%s1 + $0x510] sm:$0xff]
      %v450 = vld [vmem:[%s1 + $0x518] sm:$0xff]
      %v451 = vld [vmem:[%s1 + $0x520] sm:$0xff]
      %v452 = vld [vmem:[%s1 + $0x528] sm:$0xff]
      %v453 = vld [vmem:[%s1 + $0x530] sm:$0xff]
      %v454 = vld [vmem:[%s1 + $0x538] sm:$0xff]
      %v455 = vld [vmem:[%s1 + $0x540] sm:$0xff]
      %v456 = vld [vmem:[%s1 + $0x548] sm:$0xff]
      %v457 = vld [vmem:[%s1 + $0x550] sm:$0xff]
      %v458 = vld [vmem:[%s1 + $0x558] sm:$0xff]
      %v459 = vld [vmem:[%s1 + $0x560] sm:$0xff]
      %v460 = vld [vmem:[%s1 + $0x568] sm:$0xff]
      %v461 = vld [vmem:[%s1 + $0x570] sm:$0xff]
      %v462 = vld [vmem:[%s1 + $0x578] sm:$0xff]
      %v463 = vld [vmem:[%s1 + $0x580] sm:$0xff]
      %v464 = vld [vmem:[%s1 + $0x588] sm:$0xff]
      %v465 = vld [vmem:[%s1 + $0x590] sm:$0xff]
      %v466 = vld [vmem:[%s1 + $0x598] sm:$0xff]
      %v467 = vld [vmem:[%s1 + $0x5a0] sm:$0xff]
      %v468 = vld [vmem:[%s1 + $0x5a8] sm:$0xff]
      %v469 = vld [vmem:[%s1 + $0x5b0] sm:$0xff]
      %v470 = vld [vmem:[%s1 + $0x5b8] sm:$0xff]
      %v471 = vld [vmem:[%s1 + $0x5c0] sm:$0xff]
      %v472 = vld [vmem:[%s1 + $0x5c8] sm:$0xff]
      %v473 = vld [vmem:[%s1 + $0x5d0] sm:$0xff]
      %v474 = vld [vmem:[%s1 + $0x5d8] sm:$0xff]
      %v475 = vld [vmem:[%s1 + $0x5e0] sm:$0xff]
      %v476 = vld [vmem:[%s1 + $0x5e8] sm:$0xff]
      %v477 = vld [vmem:[%s1 + $0x5f0] sm:$0xff]
      %v478 = vld [vmem:[%s1 + $0x5f8] sm:$0xff]
      %v479 = vld [vmem:[%s1 + $0x600] sm:$0xff]
      %v480 = vld [vmem:[%s1 + $0x608] sm:$0xff]
      %v481 = vld [vmem:[%s1 + $0x610] sm:$0xff]
      %v482 = vld [vmem:[%s1 + $0x618] sm:$0xff]
      %v483 = vld [vmem:[%s1 + $0x620] sm:$0xff]
      %v484 = vld [vmem:[%s1 + $0x628] sm:$0xff]
      %v485 = vld [vmem:[%s1 + $0x630] sm:$0xff]
      %v486 = vld [vmem:[%s1 + $0x638] sm:$0xff]
      %v487 = vld [vmem:[%s1 + $0x640] sm:$0xff]
      %v488 = vld [vmem:[%s1 + $0x648] sm:$0xff]
      %v489 = vld [vmem:[%s1 + $0x650] sm:$0xff]
      %v490 = vld [vmem:[%s1 + $0x658] sm:$0xff]
      %v491 = vld [vmem:[%s1 + $0x660] sm:$0xff]
      %v492 = vld [vmem:[%s1 + $0x668] sm:$0xff]
      %v493 = vld [vmem:[%s1 + $0x670] sm:$0xff]
      %v494 = vld [vmem:[%s1 + $0x678] sm:$0xff]
      %v495 = vld [vmem:[%s1 + $0x680] sm:$0xff]
      %v496 = vld [vmem:[%s1 + $0x688] sm:$0xff]
      %v497 = vld [vmem:[%s1 + $0x690] sm:$0xff]
      %v498 = vld [vmem:[%s1 + $0x698] sm:$0xff]
      %v499 = vld [vmem:[%s1 + $0x6a0] sm:$0xff]
      %v500 = vld [vmem:[%s1 + $0x6a8] sm:$0xff]
      %v501 = vld [vmem:[%s1 + $0x6b0] sm:$0xff]
      %v502 = vld [vmem:[%s1 + $0x6b8] sm:$0xff]
      %v503 = vld [vmem:[%s1 + $0x6c0] sm:$0xff]
      %v504 = vld [vmem:[%s1 + $0x6c8] sm:$0xff]
      %v505 = vld [vmem:[%s1 + $0x6d0] sm:$0xff]
      %v506 = vld [vmem:[%s1 + $0x6d8] sm:$0xff]
      %v507 = vld [vmem:[%s1 + $0x6e0] sm:$0xff]
      %v508 = vld [vmem:[%s1 + $0x6e8] sm:$0xff]
      %v509 = vld [vmem:[%s1 + $0x6f0] sm:$0xff]
      %v510 = vld [vmem:[%s1 + $0x6f8] sm:$0xff]
      %v511 = vld [vmem:[%s1 + $0x700] sm:$0xff]
      %v512 = vld [vmem:[%s1 + $0x708] sm:$0xff]
      %v513 = vld [vmem:[%s1 + $0x710] sm:$0xff]
      %v514 = vld [vmem:[%s1 + $0x718] sm:$0xff]
      %v515 = vld [vmem:[%s1 + $0x720] sm:$0xff]
      %v516 = vld [vmem:[%s1 + $0x728] sm:$0xff]
      %v517 = vld [vmem:[%s1 + $0x730] sm:$0xff]
      %v518 = vld [vmem:[%s1 + $0x738] sm:$0xff]
      %v519 = vld [vmem:[%s1 + $0x740] sm:$0xff]
      %v520 = vld [vmem:[%s1 + $0x748] sm:$0xff]
      %v521 = vld [vmem:[%s1 + $0x750] sm:$0xff]
      %v522 = vld [vmem:[%s1 + $0x758] sm:$0xff]
      %v523 = vld [vmem:[%s1 + $0x760] sm:$0xff]
      %v524 = vld [vmem:[%s1 + $0x768] sm:$0xff]
      %v525 = vld [vmem:[%s1 + $0x770] sm:$0xff]
      %v526 = vld [vmem:[%s1 + $0x778] sm:$0xff]
      %v527 = vld [vmem:[%s1 + $0x780] sm:$0xff]
      %v528 = vld [vmem:[%s1 + $0x788] sm:$0xff]
      %v529 = vld [vmem:[%s1 + $0x790] sm:$0xff]
      %v530 = vld [vmem:[%s1 + $0x798] sm:$0xff]
      %v531 = vld [vmem:[%s1 + $0x7a0] sm:$0xff]
      %v532 = vld [vmem:[%s1 + $0x7a8] sm:$0xff]
      %v533 = vld [vmem:[%s1 + $0x7b0] sm:$0xff]
      %v534 = vld [vmem:[%s1 + $0x7b8] sm:$0xff]
      %v535 = vld [vmem:[%s1 + $0x7c0] sm:$0xff]
      %v536 = vld [vmem:[%s1 + $0x7c8] sm:$0xff]
      %v537 = vld [vmem:[%s1 + $0x7d0] sm:$0xff]
      %v538 = vld [vmem:[%s1 + $0x7d8] sm:$0xff]
      %v539 = vld [vmem:[%s1 + $0x7e0] sm:$0xff]
      %v540 = vld [vmem:[%s1 + $0x7e8] sm:$0xff]
      %v541 = vld [vmem:[%s1 + $0x7f0] sm:$0xff]
      %v542 = vld [vmem:[%s1 + $0x7f8] sm:$0xff]
      %v543 = vld [vmem:[%s1 + $0x800] sm:$0xff]
      %v544 = vld [vmem:[%s1 + $0x808] sm:$0xff]
      %v545 = vld [vmem:[%s1 + $0x810] sm:$0xff]
      %v546 = vld [vmem:[%s1 + $0x818] sm:$0xff]
      %v547 = vld [vmem:[%s1 + $0x820] sm:$0xff]
      %v548 = vld [vmem:[%s1 + $0x828] sm:$0xff]
      %v549 = vld [vmem:[%s1 + $0x830] sm:$0xff]
      %v550 = vld [vmem:[%s1 + $0x838] sm:$0xff]
      %v551 = vld [vmem:[%s1 + $0x840] sm:$0xff]
      %v552 = vld [vmem:[%s1 + $0x848] sm:$0xff]
      %v553 = vld [vmem:[%s1 + $0x850] sm:$0xff]
      %v554 = vld [vmem:[%s1 + $0x858] sm:$0xff]
      %v555 = vld [vmem:[%s1 + $0x860] sm:$0xff]
      %v556 = vld [vmem:[%s1 + $0x868] sm:$0xff]
      %v557 = vld [vmem:[%s1 + $0x870] sm:$0xff]
      %v558 = vld [vmem:[%s1 + $0x878] sm:$0xff]
      %v559 = vld [vmem:[%s1 + $0x880] sm:$0xff]
      %v560 = vld [vmem:[%s1 + $0x888] sm:$0xff]
      %v561 = vld [vmem:[%s1 + $0x890] sm:$0xff]
      %v562 = vld [vmem:[%s1 + $0x898] sm:$0xff]
      %v563 = vld [vmem:[%s1 + $0x8a0] sm:$0xff]
      %v564 = vld [vmem:[%s1 + $0x8a8] sm:$0xff]
      %v565 = vld [vmem:[%s1 + $0x8b0] sm:$0xff]
      %v566 = vld [vmem:[%s1 + $0x8b8] sm:$0xff]
      %v567 = vld [vmem:[%s1 + $0x8c0] sm:$0xff]
      %v568 = vld [vmem:[%s1 + $0x8c8] sm:$0xff]
      %v569 = vld [vmem:[%s1 + $0x8d0] sm:$0xff]
      %v570 = vld [vmem:[%s1 + $0x8d8] sm:$0xff]
      %v571 = vld [vmem:[%s1 + $0x8e0] sm:$0xff]
      %v572 = vld [vmem:[%s1 + $0x8e8] sm:$0xff]
      %v573 = vld [vmem:[%s1 + $0x8f0] sm:$0xff]
      %v574 = vld [vmem:[%s1 + $0x8f8] sm:$0xff]
      %v575 = vld [vmem:[%s1 + $0x900] sm:$0xff]
      %v576 = vld [vmem:[%s1 + $0x908] sm:$0xff]
      %v577 = vld [vmem:[%s1 + $0x910] sm:$0xff]
      %v578 = vld [vmem:[%s1 + $0x918] sm:$0xff]
      %v579 = vld [vmem:[%s1 + $0x920] sm:$0xff]
      %v580 = vld [vmem:[%s1 + $0x928] sm:$0xff]
      %v581 = vld [vmem:[%s1 + $0x930] sm:$0xff]
      %v582 = vld [vmem:[%s1 + $0x938] sm:$0xff]
      %v583 = vld [vmem:[%s1 + $0x940] sm:$0xff]
      %v584 = vld [vmem:[%s1 + $0x948] sm:$0xff]
      %v585 = vld [vmem:[%s1 + $0x950] sm:$0xff]
      %v586 = vld [vmem:[%s1 + $0x958] sm:$0xff]
      %v587 = vld [vmem:[%s1 + $0x960] sm:$0xff]
      %v588 = vld [vmem:[%s1 + $0x968] sm:$0xff]
      %v589 = vld [vmem:[%s1 + $0x970] sm:$0xff]
      %v590 = vld [vmem:[%s1 + $0x978] sm:$0xff]
      %v591 = vld [vmem:[%s1 + $0x980] sm:$0xff]
      %v592 = vld [vmem:[%s1 + $0x988] sm:$0xff]
      %v593 = vld [vmem:[%s1 + $0x990] sm:$0xff]
      %v594 = vld [vmem:[%s1 + $0x998] sm:$0xff]
      %v595 = vld [vmem:[%s1 + $0x9a0] sm:$0xff]
      %v596 = vld [vmem:[%s1 + $0x9a8] sm:$0xff]
      %v597 = vld [vmem:[%s1 + $0x9b0] sm:$0xff]
      %v598 = vld [vmem:[%s1 + $0x9b8] sm:$0xff]
      %v599 = vld [vmem:[%s1 + $0x9c0] sm:$0xff]
      %v600 = vld [vmem:[%s1 + $0x9c8] sm:$0xff]
      %v601 = vld [vmem:[%s1 + $0x9d0] sm:$0xff]
      %v602 = vld [vmem:[%s1 + $0x9d8] sm:$0xff]
      %v603 = vld [vmem:[%s1 + $0x9e0] sm:$0xff]
      %v604 = vld [vmem:[%s1 + $0x9e8] sm:$0xff]
      %v605 = vld [vmem:[%s1 + $0x9f0] sm:$0xff]
      %v606 = vld [vmem:[%s1 + $0x9f8] sm:$0xff]
      %v607 = vld [vmem:[%s1 + $0xa00] sm:$0xff]
      %v608 = vld [vmem:[%s1 + $0xa08] sm:$0xff]
      %v609 = vld [vmem:[%s1 + $0xa10] sm:$0xff]
      %v610 = vld [vmem:[%s1 + $0xa18] sm:$0xff]
      %v611 = vld [vmem:[%s1 + $0xa20] sm:$0xff]
      %v612 = vld [vmem:[%s1 + $0xa28] sm:$0xff]
      %v613 = vld [vmem:[%s1 + $0xa30] sm:$0xff]
      %v614 = vld [vmem:[%s1 + $0xa38] sm:$0xff]
      %v615 = vld [vmem:[%s1 + $0xa40] sm:$0xff]
      %v616 = vld [vmem:[%s1 + $0xa48] sm:$0xff]
      %v617 = vld [vmem:[%s1 + $0xa50] sm:$0xff]
      %v618 = vld [vmem:[%s1 + $0xa58] sm:$0xff]
      %v619 = vld [vmem:[%s1 + $0xa60] sm:$0xff]
      %v620 = vld [vmem:[%s1 + $0xa68] sm:$0xff]
      %v621 = vld [vmem:[%s1 + $0xa70] sm:$0xff]
      %v622 = vld [vmem:[%s1 + $0xa78] sm:$0xff]
      %v623 = vld [vmem:[%s1 + $0xa80] sm:$0xff]
      %v624 = vld [vmem:[%s1 + $0xa88] sm:$0xff]
      %v625 = vld [vmem:[%s1 + $0xa90] sm:$0xff]
      %v626 = vld [vmem:[%s1 + $0xa98] sm:$0xff]
      %v627 = vld [vmem:[%s1 + $0xaa0] sm:$0xff]
      %v628 = vld [vmem:[%s1 + $0xaa8] sm:$0xff]
      %v629 = vld [vmem:[%s1 + $0xab0] sm:$0xff]
      %v630 = vld [vmem:[%s1 + $0xab8] sm:$0xff]
      %v631 = vld [vmem:[%s1 + $0xac0] sm:$0xff]
      %v632 = vld [vmem:[%s1 + $0xac8] sm:$0xff]
      %v633 = vld [vmem:[%s1 + $0xad0] sm:$0xff]
      %v634 = vld [vmem:[%s1 + $0xad8] sm:$0xff]
      %v635 = vld [vmem:[%s1 + $0xae0] sm:$0xff]
      %v636 = vld [vmem:[%s1 + $0xae8] sm:$0xff]
      %v637 = vld [vmem:[%s1 + $0xaf0] sm:$0xff]
      %v638 = vld [vmem:[%s1 + $0xaf8] sm:$0xff]
      %v639 = vld [vmem:[%s1 + $0xb00] sm:$0xff]
      %v640 = vld [vmem:[%s1 + $0xb08] sm:$0xff]
      %v641 = vld [vmem:[%s1 + $0xb10] sm:$0xff]
      %v642 = vld [vmem:[%s1 + $0xb18] sm:$0xff]
      %v643 = vld [vmem:[%s1 + $0xb20] sm:$0xff]
      %v644 = vld [vmem:[%s1 + $0xb28] sm:$0xff]
      %v645 = vld [vmem:[%s1 + $0xb30] sm:$0xff]
      %v646 = vld [vmem:[%s1 + $0xb38] sm:$0xff]
      %v647 = vld [vmem:[%s1 + $0xb40] sm:$0xff]
      %v648 = vld [vmem:[%s1 + $0xb48] sm:$0xff]
      %v649 = vld [vmem:[%s1 + $0xb50] sm:$0xff]
      %v650 = vld [vmem:[%s1 + $0xb58] sm:$0xff]
      %v651 = vld [vmem:[%s1 + $0xb60] sm:$0xff]
      %v652 = vld [vmem:[%s1 + $0xb68] sm:$0xff]
      %v653 = vld [vmem:[%s1 + $0xb70] sm:$0xff]
      %v654 = vld [vmem:[%s1 + $0xb78] sm:$0xff]
      %v655 = vld [vmem:[%s1 + $0xb80] sm:$0xff]
      %v656 = vld [vmem:[%s1 + $0xb88] sm:$0xff]
      %v657 = vld [vmem:[%s1 + $0xb90] sm:$0xff]
      %v658 = vld [vmem:[%s1 + $0xb98] sm:$0xff]
      %v659 = vld [vmem:[%s1 + $0xba0] sm:$0xff]
      %v660 = vld [vmem:[%s1 + $0xba8] sm:$0xff]
      %v661 = vld [vmem:[%s1 + $0xbb0] sm:$0xff]
      %v662 = vld [vmem:[%s1 + $0xbb8] sm:$0xff]
      %v663 = vld [vmem:[%s1 + $0xbc0] sm:$0xff]
      %v664 = vld [vmem:[%s1 + $0xbc8] sm:$0xff]
      %v665 = vld [vmem:[%s1 + $0xbd0] sm:$0xff]
      %v666 = vld [vmem:[%s1 + $0xbd8] sm:$0xff]
      %v667 = vld [vmem:[%s1 + $0xbe0] sm:$0xff]
      %v668 = vld [vmem:[%s1 + $0xbe8] sm:$0xff]
      %v669 = vld [vmem:[%s1 + $0xbf0] sm:$0xff]
      %v670 = vld [vmem:[%s1 + $0xbf8] sm:$0xff]
      %v671 = vld [vmem:[%s2] sm:$0xff]
      %v672 = vld [vmem:[%s2 + $0x8] sm:$0xf]
      %v675 = vlaneseq
      %v676 = vshrl.u32 %v675, 7
      %v677 = vsub.s32 0, %v676
      %v678 = vrot.slane %v671, %v677
      %v679 = vlaneseq
      %v680 = vshrl.u32 %v679, 7
      %v681 = vsub.s32 1, %v680
      %v682 = vrot.slane %v671, %v681
      %v683 = vlaneseq
      %v684 = vshrl.u32 %v683, 7
      %v685 = vsub.s32 2, %v684
      %v686 = vrot.slane %v671, %v685
      %v687 = vlaneseq
      %v688 = vshrl.u32 %v687, 7
      %v689 = vsub.s32 3, %v688
      %v690 = vrot.slane %v671, %v689
      %v691 = vlaneseq
      %v692 = vshrl.u32 %v691, 7
      %v693 = vsub.s32 4, %v692
      %v694 = vrot.slane %v671, %v693
      %v695 = vlaneseq
      %v696 = vshrl.u32 %v695, 7
      %v697 = vsub.s32 5, %v696
      %v698 = vrot.slane %v671, %v697
      %v699 = vlaneseq
      %v700 = vshrl.u32 %v699, 7
      %v701 = vsub.s32 6, %v700
      %v702 = vrot.slane %v671, %v701
      %v703 = vlaneseq
      %v704 = vshrl.u32 %v703, 7
      %v705 = vsub.s32 7, %v704
      %v706 = vrot.slane %v671, %v705
      %v707 = vlaneseq
      %v708 = vshrl.u32 %v707, 7
      %v709 = vsub.s32 0, %v708
      %v710 = vrot.slane %v672, %v709
      %v711 = vlaneseq
      %v712 = vshrl.u32 %v711, 7
      %v713 = vsub.s32 1, %v712
      %v714 = vrot.slane %v672, %v713
      %v715 = vlaneseq
      %v716 = vshrl.u32 %v715, 7
      %v717 = vsub.s32 2, %v716
      %v718 = vrot.slane %v672, %v717
      %v719 = vlaneseq
      %v720 = vshrl.u32 %v719, 7
      %v721 = vsub.s32 3, %v720
      %v722 = vrot.slane %v672, %v721
      %v739 = vunpack.c.l.b16 %v283
      %v740 = vunpack.c.h.b16 %v283
      %v741 = vunpack.c.l.b16 %v284
      %v742 = vunpack.c.h.b16 %v284
      %v743 = vunpack.c.l.b16 %v285
      %v744 = vunpack.c.h.b16 %v285
      %v745 = vunpack.c.l.b16 %v286
      %v746 = vunpack.c.h.b16 %v286
      %v747 = vpack.c.b16 %v743, %v739
      %v748 = vpack.c.b16 %v744, %v740
      %v749 = vpack.c.b16 %v745, %v741
      %v750 = vpack.c.b16 %v746, %v742
      %v1139 = vunpack.c.l.b16 %v287
      %v1140 = vunpack.c.h.b16 %v287
      %v1141 = vunpack.c.l.b16 %v288
      %v1142 = vunpack.c.h.b16 %v288
      %v1143 = vunpack.c.l.b16 %v289
      %v1144 = vunpack.c.h.b16 %v289
      %v1145 = vunpack.c.l.b16 %v290
      %v1146 = vunpack.c.h.b16 %v290
      %v1147 = vunpack.c.l.b16 %v291
      %v1148 = vunpack.c.h.b16 %v291
      %v1149 = vunpack.c.l.b16 %v292
      %v1150 = vunpack.c.h.b16 %v292
      %v1151 = vunpack.c.l.b16 %v293
      %v1152 = vunpack.c.h.b16 %v293
      %v1153 = vunpack.c.l.b16 %v294
      %v1154 = vunpack.c.h.b16 %v294
      %v1155 = vunpack.c.l.b16 %v295
      %v1156 = vunpack.c.h.b16 %v295
      %v1157 = vunpack.c.l.b16 %v296
      %v1158 = vunpack.c.h.b16 %v296
      %v1159 = vunpack.c.l.b16 %v297
      %v1160 = vunpack.c.h.b16 %v297
      %v1161 = vunpack.c.l.b16 %v298
      %v1162 = vunpack.c.h.b16 %v298
      %v1163 = vunpack.c.l.b16 %v299
      %v1164 = vunpack.c.h.b16 %v299
      %v1165 = vunpack.c.l.b16 %v300
      %v1166 = vunpack.c.h.b16 %v300
      %v1167 = vunpack.c.l.b16 %v301
      %v1168 = vunpack.c.h.b16 %v301
      %v1169 = vunpack.c.l.b16 %v302
      %v1170 = vunpack.c.h.b16 %v302
      %v1171 = vunpack.c.l.b16 %v303
      %v1172 = vunpack.c.h.b16 %v303
      %v1173 = vunpack.c.l.b16 %v304
      %v1174 = vunpack.c.h.b16 %v304
      %v1175 = vunpack.c.l.b16 %v305
      %v1176 = vunpack.c.h.b16 %v305
      %v1177 = vunpack.c.l.b16 %v306
      %v1178 = vunpack.c.h.b16 %v306
      %v1179 = vunpack.c.l.b16 %v307
      %v1180 = vunpack.c.h.b16 %v307
      %v1181 = vunpack.c.l.b16 %v308
      %v1182 = vunpack.c.h.b16 %v308
      %v1183 = vunpack.c.l.b16 %v309
      %v1184 = vunpack.c.h.b16 %v309
      %v1185 = vunpack.c.l.b16 %v310
      %v1186 = vunpack.c.h.b16 %v310
      %v1187 = vunpack.c.l.b16 %v311
      %v1188 = vunpack.c.h.b16 %v311
      %v1189 = vunpack.c.l.b16 %v312
      %v1190 = vunpack.c.h.b16 %v312
      %v1191 = vunpack.c.l.b16 %v313
      %v1192 = vunpack.c.h.b16 %v313
      %v1193 = vunpack.c.l.b16 %v314
      %v1194 = vunpack.c.h.b16 %v314
      %v1195 = vunpack.c.l.b16 %v315
      %v1196 = vunpack.c.h.b16 %v315
      %v1197 = vunpack.c.l.b16 %v316
      %v1198 = vunpack.c.h.b16 %v316
      %v1199 = vunpack.c.l.b16 %v317
      %v1200 = vunpack.c.h.b16 %v317
      %v1201 = vunpack.c.l.b16 %v318
      %v1202 = vunpack.c.h.b16 %v318
      %v1203 = vunpack.c.l.b16 %v319
      %v1204 = vunpack.c.h.b16 %v319
      %v1205 = vunpack.c.l.b16 %v320
      %v1206 = vunpack.c.h.b16 %v320
      %v1207 = vunpack.c.l.b16 %v321
      %v1208 = vunpack.c.h.b16 %v321
      %v1209 = vunpack.c.l.b16 %v322
      %v1210 = vunpack.c.h.b16 %v322
      %v1211 = vunpack.c.l.b16 %v323
      %v1212 = vunpack.c.h.b16 %v323
      %v1213 = vunpack.c.l.b16 %v324
      %v1214 = vunpack.c.h.b16 %v324
      %v1215 = vunpack.c.l.b16 %v325
      %v1216 = vunpack.c.h.b16 %v325
      %v1217 = vunpack.c.l.b16 %v326
      %v1218 = vunpack.c.h.b16 %v326
      %v1219 = vunpack.c.l.b16 %v327
      %v1220 = vunpack.c.h.b16 %v327
      %v1221 = vunpack.c.l.b16 %v328
      %v1222 = vunpack.c.h.b16 %v328
      %v1223 = vunpack.c.l.b16 %v329
      %v1224 = vunpack.c.h.b16 %v329
      %v1225 = vunpack.c.l.b16 %v330
      %v1226 = vunpack.c.h.b16 %v330
      %v1227 = vunpack.c.l.b16 %v331
      %v1228 = vunpack.c.h.b16 %v331
      %v1229 = vunpack.c.l.b16 %v332
      %v1230 = vunpack.c.h.b16 %v332
      %v1231 = vunpack.c.l.b16 %v333
      %v1232 = vunpack.c.h.b16 %v333
      %v1233 = vunpack.c.l.b16 %v334
      %v1234 = vunpack.c.h.b16 %v334
      %v1235 = vunpack.c.l.b16 %v335
      %v1236 = vunpack.c.h.b16 %v335
      %v1237 = vunpack.c.l.b16 %v336
      %v1238 = vunpack.c.h.b16 %v336
      %v1239 = vunpack.c.l.b16 %v337
      %v1240 = vunpack.c.h.b16 %v337
      %v1241 = vunpack.c.l.b16 %v338
      %v1242 = vunpack.c.h.b16 %v338
      %v1243 = vunpack.c.l.b16 %v339
      %v1244 = vunpack.c.h.b16 %v339
      %v1245 = vunpack.c.l.b16 %v340
      %v1246 = vunpack.c.h.b16 %v340
      %v1247 = vunpack.c.l.b16 %v341
      %v1248 = vunpack.c.h.b16 %v341
      %v1249 = vunpack.c.l.b16 %v342
      %v1250 = vunpack.c.h.b16 %v342
      %v1251 = vunpack.c.l.b16 %v343
      %v1252 = vunpack.c.h.b16 %v343
      %v1253 = vunpack.c.l.b16 %v344
      %v1254 = vunpack.c.h.b16 %v344
      %v1255 = vunpack.c.l.b16 %v345
      %v1256 = vunpack.c.h.b16 %v345
      %v1257 = vunpack.c.l.b16 %v346
      %v1258 = vunpack.c.h.b16 %v346
      %v1259 = vunpack.c.l.b16 %v347
      %v1260 = vunpack.c.h.b16 %v347
      %v1261 = vunpack.c.l.b16 %v348
      %v1262 = vunpack.c.h.b16 %v348
      %v1263 = vunpack.c.l.b16 %v349
      %v1264 = vunpack.c.h.b16 %v349
      %v1265 = vunpack.c.l.b16 %v350
      %v1266 = vunpack.c.h.b16 %v350
      %v1267 = vunpack.c.l.b16 %v351
      %v1268 = vunpack.c.h.b16 %v351
      %v1269 = vunpack.c.l.b16 %v352
      %v1270 = vunpack.c.h.b16 %v352
      %v1271 = vunpack.c.l.b16 %v353
      %v1272 = vunpack.c.h.b16 %v353
      %v1273 = vunpack.c.l.b16 %v354
      %v1274 = vunpack.c.h.b16 %v354
      %v1275 = vunpack.c.l.b16 %v355
      %v1276 = vunpack.c.h.b16 %v355
      %v1277 = vunpack.c.l.b16 %v356
      %v1278 = vunpack.c.h.b16 %v356
      %v1279 = vunpack.c.l.b16 %v357
      %v1280 = vunpack.c.h.b16 %v357
      %v1281 = vunpack.c.l.b16 %v358
      %v1282 = vunpack.c.h.b16 %v358
      %v1283 = vunpack.c.l.b16 %v359
      %v1284 = vunpack.c.h.b16 %v359
      %v1285 = vunpack.c.l.b16 %v360
      %v1286 = vunpack.c.h.b16 %v360
      %v1287 = vunpack.c.l.b16 %v361
      %v1288 = vunpack.c.h.b16 %v361
      %v1289 = vunpack.c.l.b16 %v362
      %v1290 = vunpack.c.h.b16 %v362
      %v1291 = vunpack.c.l.b16 %v363
      %v1292 = vunpack.c.h.b16 %v363
      %v1293 = vunpack.c.l.b16 %v364
      %v1294 = vunpack.c.h.b16 %v364
      %v1295 = vunpack.c.l.b16 %v365
      %v1296 = vunpack.c.h.b16 %v365
      %v1297 = vunpack.c.l.b16 %v366
      %v1298 = vunpack.c.h.b16 %v366
      %v1299 = vunpack.c.l.b16 %v367
      %v1300 = vunpack.c.h.b16 %v367
      %v1301 = vunpack.c.l.b16 %v368
      %v1302 = vunpack.c.h.b16 %v368
      %v1303 = vunpack.c.l.b16 %v369
      %v1304 = vunpack.c.h.b16 %v369
      %v1305 = vunpack.c.l.b16 %v370
      %v1306 = vunpack.c.h.b16 %v370
      %v1307 = vunpack.c.l.b16 %v371
      %v1308 = vunpack.c.h.b16 %v371
      %v1309 = vunpack.c.l.b16 %v372
      %v1310 = vunpack.c.h.b16 %v372
      %v1311 = vunpack.c.l.b16 %v373
      %v1312 = vunpack.c.h.b16 %v373
      %v1313 = vunpack.c.l.b16 %v374
      %v1314 = vunpack.c.h.b16 %v374
      %v1315 = vunpack.c.l.b16 %v375
      %v1316 = vunpack.c.h.b16 %v375
      %v1317 = vunpack.c.l.b16 %v376
      %v1318 = vunpack.c.h.b16 %v376
      %v1319 = vunpack.c.l.b16 %v377
      %v1320 = vunpack.c.h.b16 %v377
      %v1321 = vunpack.c.l.b16 %v378
      %v1322 = vunpack.c.h.b16 %v378
      %v1323 = vunpack.c.l.b16 %v379
      %v1324 = vunpack.c.h.b16 %v379
      %v1325 = vunpack.c.l.b16 %v380
      %v1326 = vunpack.c.h.b16 %v380
      %v1327 = vunpack.c.l.b16 %v381
      %v1328 = vunpack.c.h.b16 %v381
      %v1329 = vunpack.c.l.b16 %v382
      %v1330 = vunpack.c.h.b16 %v382
      %v1331 = vunpack.c.l.b16 %v383
      %v1332 = vunpack.c.h.b16 %v383
      %v1333 = vunpack.c.l.b16 %v384
      %v1334 = vunpack.c.h.b16 %v384
      %v1335 = vunpack.c.l.b16 %v385
      %v1336 = vunpack.c.h.b16 %v385
      %v1337 = vunpack.c.l.b16 %v386
      %v1338 = vunpack.c.h.b16 %v386
      %v1339 = vunpack.c.l.b16 %v387
      %v1340 = vunpack.c.h.b16 %v387
      %v1341 = vunpack.c.l.b16 %v388
      %v1342 = vunpack.c.h.b16 %v388
      %v1343 = vunpack.c.l.b16 %v389
      %v1344 = vunpack.c.h.b16 %v389
      %v1345 = vunpack.c.l.b16 %v390
      %v1346 = vunpack.c.h.b16 %v390
      %v1347 = vunpack.c.l.b16 %v391
      %v1348 = vunpack.c.h.b16 %v391
      %v1349 = vunpack.c.l.b16 %v392
      %v1350 = vunpack.c.h.b16 %v392
      %v1351 = vunpack.c.l.b16 %v393
      %v1352 = vunpack.c.h.b16 %v393
      %v1353 = vunpack.c.l.b16 %v394
      %v1354 = vunpack.c.h.b16 %v394
      %v1355 = vunpack.c.l.b16 %v395
      %v1356 = vunpack.c.h.b16 %v395
      %v1357 = vunpack.c.l.b16 %v396
      %v1358 = vunpack.c.h.b16 %v396
      %v1359 = vunpack.c.l.b16 %v397
      %v1360 = vunpack.c.h.b16 %v397
      %v1361 = vunpack.c.l.b16 %v398
      %v1362 = vunpack.c.h.b16 %v398
      %v1363 = vunpack.c.l.b16 %v399
      %v1364 = vunpack.c.h.b16 %v399
      %v1365 = vunpack.c.l.b16 %v400
      %v1366 = vunpack.c.h.b16 %v400
      %v1367 = vunpack.c.l.b16 %v401
      %v1368 = vunpack.c.h.b16 %v401
      %v1369 = vunpack.c.l.b16 %v402
      %v1370 = vunpack.c.h.b16 %v402
      %v1371 = vunpack.c.l.b16 %v403
      %v1372 = vunpack.c.h.b16 %v403
      %v1373 = vunpack.c.l.b16 %v404
      %v1374 = vunpack.c.h.b16 %v404
      %v1375 = vunpack.c.l.b16 %v405
      %v1376 = vunpack.c.h.b16 %v405
      %v1377 = vunpack.c.l.b16 %v406
      %v1378 = vunpack.c.h.b16 %v406
      %v1379 = vunpack.c.l.b16 %v407
      %v1380 = vunpack.c.h.b16 %v407
      %v1381 = vunpack.c.l.b16 %v408
      %v1382 = vunpack.c.h.b16 %v408
      %v1383 = vunpack.c.l.b16 %v409
      %v1384 = vunpack.c.h.b16 %v409
      %v1385 = vunpack.c.l.b16 %v410
      %v1386 = vunpack.c.h.b16 %v410
      %v1387 = vunpack.c.l.b16 %v411
      %v1388 = vunpack.c.h.b16 %v411
      %v1389 = vunpack.c.l.b16 %v412
      %v1390 = vunpack.c.h.b16 %v412
      %v1391 = vunpack.c.l.b16 %v413
      %v1392 = vunpack.c.h.b16 %v413
      %v1393 = vunpack.c.l.b16 %v414
      %v1394 = vunpack.c.h.b16 %v414
      %v1395 = vunpack.c.l.b16 %v415
      %v1396 = vunpack.c.h.b16 %v415
      %v1397 = vunpack.c.l.b16 %v416
      %v1398 = vunpack.c.h.b16 %v416
      %v1399 = vunpack.c.l.b16 %v417
      %v1400 = vunpack.c.h.b16 %v417
      %v1401 = vunpack.c.l.b16 %v418
      %v1402 = vunpack.c.h.b16 %v418
      %v1403 = vunpack.c.l.b16 %v419
      %v1404 = vunpack.c.h.b16 %v419
      %v1405 = vunpack.c.l.b16 %v420
      %v1406 = vunpack.c.h.b16 %v420
      %v1407 = vunpack.c.l.b16 %v421
      %v1408 = vunpack.c.h.b16 %v421
      %v1409 = vunpack.c.l.b16 %v422
      %v1410 = vunpack.c.h.b16 %v422
      %v1411 = vunpack.c.l.b16 %v423
      %v1412 = vunpack.c.h.b16 %v423
      %v1413 = vunpack.c.l.b16 %v424
      %v1414 = vunpack.c.h.b16 %v424
      %v1415 = vunpack.c.l.b16 %v425
      %v1416 = vunpack.c.h.b16 %v425
      %v1417 = vunpack.c.l.b16 %v426
      %v1418 = vunpack.c.h.b16 %v426
      %v1419 = vunpack.c.l.b16 %v427
      %v1420 = vunpack.c.h.b16 %v427
      %v1421 = vunpack.c.l.b16 %v428
      %v1422 = vunpack.c.h.b16 %v428
      %v1423 = vunpack.c.l.b16 %v429
      %v1424 = vunpack.c.h.b16 %v429
      %v1425 = vunpack.c.l.b16 %v430
      %v1426 = vunpack.c.h.b16 %v430
      %v1427 = vunpack.c.l.b16 %v431
      %v1428 = vunpack.c.h.b16 %v431
      %v1429 = vunpack.c.l.b16 %v432
      %v1430 = vunpack.c.h.b16 %v432
      %v1431 = vunpack.c.l.b16 %v433
      %v1432 = vunpack.c.h.b16 %v433
      %v1433 = vunpack.c.l.b16 %v434
      %v1434 = vunpack.c.h.b16 %v434
      %v1435 = vunpack.c.l.b16 %v435
      %v1436 = vunpack.c.h.b16 %v435
      %v1437 = vunpack.c.l.b16 %v436
      %v1438 = vunpack.c.h.b16 %v436
      %v1439 = vunpack.c.l.b16 %v437
      %v1440 = vunpack.c.h.b16 %v437
      %v1441 = vunpack.c.l.b16 %v438
      %v1442 = vunpack.c.h.b16 %v438
      %v1443 = vunpack.c.l.b16 %v439
      %v1444 = vunpack.c.h.b16 %v439
      %v1445 = vunpack.c.l.b16 %v440
      %v1446 = vunpack.c.h.b16 %v440
      %v1447 = vunpack.c.l.b16 %v441
      %v1448 = vunpack.c.h.b16 %v441
      %v1449 = vunpack.c.l.b16 %v442
      %v1450 = vunpack.c.h.b16 %v442
      %v1451 = vunpack.c.l.b16 %v443
      %v1452 = vunpack.c.h.b16 %v443
      %v1453 = vunpack.c.l.b16 %v444
      %v1454 = vunpack.c.h.b16 %v444
      %v1455 = vunpack.c.l.b16 %v445
      %v1456 = vunpack.c.h.b16 %v445
      %v1457 = vunpack.c.l.b16 %v446
      %v1458 = vunpack.c.h.b16 %v446
      %v1459 = vunpack.c.l.b16 %v447
      %v1460 = vunpack.c.h.b16 %v447
      %v1461 = vunpack.c.l.b16 %v448
      %v1462 = vunpack.c.h.b16 %v448
      %v1463 = vunpack.c.l.b16 %v449
      %v1464 = vunpack.c.h.b16 %v449
      %v1465 = vunpack.c.l.b16 %v450
      %v1466 = vunpack.c.h.b16 %v450
      %v1467 = vunpack.c.l.b16 %v451
      %v1468 = vunpack.c.h.b16 %v451
      %v1469 = vunpack.c.l.b16 %v452
      %v1470 = vunpack.c.h.b16 %v452
      %v1471 = vunpack.c.l.b16 %v453
      %v1472 = vunpack.c.h.b16 %v453
      %v1473 = vunpack.c.l.b16 %v454
      %v1474 = vunpack.c.h.b16 %v454
      %v1475 = vunpack.c.l.b16 %v455
      %v1476 = vunpack.c.h.b16 %v455
      %v1477 = vunpack.c.l.b16 %v456
      %v1478 = vunpack.c.h.b16 %v456
      %v1479 = vunpack.c.l.b16 %v457
      %v1480 = vunpack.c.h.b16 %v457
      %v1481 = vunpack.c.l.b16 %v458
      %v1482 = vunpack.c.h.b16 %v458
      %v1483 = vunpack.c.l.b16 %v459
      %v1484 = vunpack.c.h.b16 %v459
      %v1485 = vunpack.c.l.b16 %v460
      %v1486 = vunpack.c.h.b16 %v460
      %v1487 = vunpack.c.l.b16 %v461
      %v1488 = vunpack.c.h.b16 %v461
      %v1489 = vunpack.c.l.b16 %v462
      %v1490 = vunpack.c.h.b16 %v462
      %v1491 = vunpack.c.l.b16 %v463
      %v1492 = vunpack.c.h.b16 %v463
      %v1493 = vunpack.c.l.b16 %v464
      %v1494 = vunpack.c.h.b16 %v464
      %v1495 = vunpack.c.l.b16 %v465
      %v1496 = vunpack.c.h.b16 %v465
      %v1497 = vunpack.c.l.b16 %v466
      %v1498 = vunpack.c.h.b16 %v466
      %v1499 = vunpack.c.l.b16 %v467
      %v1500 = vunpack.c.h.b16 %v467
      %v1501 = vunpack.c.l.b16 %v468
      %v1502 = vunpack.c.h.b16 %v468
      %v1503 = vunpack.c.l.b16 %v469
      %v1504 = vunpack.c.h.b16 %v469
      %v1505 = vunpack.c.l.b16 %v470
      %v1506 = vunpack.c.h.b16 %v470
      %v1507 = vunpack.c.l.b16 %v471
      %v1508 = vunpack.c.h.b16 %v471
      %v1509 = vunpack.c.l.b16 %v472
      %v1510 = vunpack.c.h.b16 %v472
      %v1511 = vunpack.c.l.b16 %v473
      %v1512 = vunpack.c.h.b16 %v473
      %v1513 = vunpack.c.l.b16 %v474
      %v1514 = vunpack.c.h.b16 %v474
      %v1515 = vunpack.c.l.b16 %v475
      %v1516 = vunpack.c.h.b16 %v475
      %v1517 = vunpack.c.l.b16 %v476
      %v1518 = vunpack.c.h.b16 %v476
      %v1519 = vunpack.c.l.b16 %v477
      %v1520 = vunpack.c.h.b16 %v477
      %v1521 = vunpack.c.l.b16 %v478
      %v1522 = vunpack.c.h.b16 %v478
      %v1523 = vunpack.c.l.b16 %v479
      %v1524 = vunpack.c.h.b16 %v479
      %v1525 = vunpack.c.l.b16 %v480
      %v1526 = vunpack.c.h.b16 %v480
      %v1527 = vunpack.c.l.b16 %v481
      %v1528 = vunpack.c.h.b16 %v481
      %v1529 = vunpack.c.l.b16 %v482
      %v1530 = vunpack.c.h.b16 %v482
      %v1531 = vunpack.c.l.b16 %v483
      %v1532 = vunpack.c.h.b16 %v483
      %v1533 = vunpack.c.l.b16 %v484
      %v1534 = vunpack.c.h.b16 %v484
      %v1535 = vunpack.c.l.b16 %v485
      %v1536 = vunpack.c.h.b16 %v485
      %v1537 = vunpack.c.l.b16 %v486
      %v1538 = vunpack.c.h.b16 %v486
      %v1539 = vunpack.c.l.b16 %v487
      %v1540 = vunpack.c.h.b16 %v487
      %v1541 = vunpack.c.l.b16 %v488
      %v1542 = vunpack.c.h.b16 %v488
      %v1543 = vunpack.c.l.b16 %v489
      %v1544 = vunpack.c.h.b16 %v489
      %v1545 = vunpack.c.l.b16 %v490
      %v1546 = vunpack.c.h.b16 %v490
      %v1547 = vunpack.c.l.b16 %v491
      %v1548 = vunpack.c.h.b16 %v491
      %v1549 = vunpack.c.l.b16 %v492
      %v1550 = vunpack.c.h.b16 %v492
      %v1551 = vunpack.c.l.b16 %v493
      %v1552 = vunpack.c.h.b16 %v493
      %v1553 = vunpack.c.l.b16 %v494
      %v1554 = vunpack.c.h.b16 %v494
      %v1555 = vunpack.c.l.b16 %v495
      %v1556 = vunpack.c.h.b16 %v495
      %v1557 = vunpack.c.l.b16 %v496
      %v1558 = vunpack.c.h.b16 %v496
      %v1559 = vunpack.c.l.b16 %v497
      %v1560 = vunpack.c.h.b16 %v497
      %v1561 = vunpack.c.l.b16 %v498
      %v1562 = vunpack.c.h.b16 %v498
      %v1563 = vunpack.c.l.b16 %v499
      %v1564 = vunpack.c.h.b16 %v499
      %v1565 = vunpack.c.l.b16 %v500
      %v1566 = vunpack.c.h.b16 %v500
      %v1567 = vunpack.c.l.b16 %v501
      %v1568 = vunpack.c.h.b16 %v501
      %v1569 = vunpack.c.l.b16 %v502
      %v1570 = vunpack.c.h.b16 %v502
      %v1571 = vunpack.c.l.b16 %v503
      %v1572 = vunpack.c.h.b16 %v503
      %v1573 = vunpack.c.l.b16 %v504
      %v1574 = vunpack.c.h.b16 %v504
      %v1575 = vunpack.c.l.b16 %v505
      %v1576 = vunpack.c.h.b16 %v505
      %v1577 = vunpack.c.l.b16 %v506
      %v1578 = vunpack.c.h.b16 %v506
      %v1579 = vunpack.c.l.b16 %v507
      %v1580 = vunpack.c.h.b16 %v507
      %v1581 = vunpack.c.l.b16 %v508
      %v1582 = vunpack.c.h.b16 %v508
      %v1583 = vunpack.c.l.b16 %v509
      %v1584 = vunpack.c.h.b16 %v509
      %v1585 = vunpack.c.l.b16 %v510
      %v1586 = vunpack.c.h.b16 %v510
      %v1587 = vunpack.c.l.b16 %v511
      %v1588 = vunpack.c.h.b16 %v511
      %v1589 = vunpack.c.l.b16 %v512
      %v1590 = vunpack.c.h.b16 %v512
      %v1591 = vunpack.c.l.b16 %v513
      %v1592 = vunpack.c.h.b16 %v513
      %v1593 = vunpack.c.l.b16 %v514
      %v1594 = vunpack.c.h.b16 %v514
      %v1595 = vunpack.c.l.b16 %v515
      %v1596 = vunpack.c.h.b16 %v515
      %v1597 = vunpack.c.l.b16 %v516
      %v1598 = vunpack.c.h.b16 %v516
      %v1599 = vunpack.c.l.b16 %v517
      %v1600 = vunpack.c.h.b16 %v517
      %v1601 = vunpack.c.l.b16 %v518
      %v1602 = vunpack.c.h.b16 %v518
      %v1603 = vunpack.c.l.b16 %v519
      %v1604 = vunpack.c.h.b16 %v519
      %v1605 = vunpack.c.l.b16 %v520
      %v1606 = vunpack.c.h.b16 %v520
      %v1607 = vunpack.c.l.b16 %v521
      %v1608 = vunpack.c.h.b16 %v521
      %v1609 = vunpack.c.l.b16 %v522
      %v1610 = vunpack.c.h.b16 %v522
      %v1611 = vunpack.c.l.b16 %v523
      %v1612 = vunpack.c.h.b16 %v523
      %v1613 = vunpack.c.l.b16 %v524
      %v1614 = vunpack.c.h.b16 %v524
      %v1615 = vunpack.c.l.b16 %v525
      %v1616 = vunpack.c.h.b16 %v525
      %v1617 = vunpack.c.l.b16 %v526
      %v1618 = vunpack.c.h.b16 %v526
      %v1619 = vunpack.c.l.b16 %v527
      %v1620 = vunpack.c.h.b16 %v527
      %v1621 = vunpack.c.l.b16 %v528
      %v1622 = vunpack.c.h.b16 %v528
      %v1623 = vunpack.c.l.b16 %v529
      %v1624 = vunpack.c.h.b16 %v529
      %v1625 = vunpack.c.l.b16 %v530
      %v1626 = vunpack.c.h.b16 %v530
      %v1627 = vunpack.c.l.b16 %v531
      %v1628 = vunpack.c.h.b16 %v531
      %v1629 = vunpack.c.l.b16 %v532
      %v1630 = vunpack.c.h.b16 %v532
      %v1631 = vunpack.c.l.b16 %v533
      %v1632 = vunpack.c.h.b16 %v533
      %v1633 = vunpack.c.l.b16 %v534
      %v1634 = vunpack.c.h.b16 %v534
      %v1635 = vunpack.c.l.b16 %v535
      %v1636 = vunpack.c.h.b16 %v535
      %v1637 = vunpack.c.l.b16 %v536
      %v1638 = vunpack.c.h.b16 %v536
      %v1639 = vunpack.c.l.b16 %v537
      %v1640 = vunpack.c.h.b16 %v537
      %v1641 = vunpack.c.l.b16 %v538
      %v1642 = vunpack.c.h.b16 %v538
      %v1643 = vunpack.c.l.b16 %v539
      %v1644 = vunpack.c.h.b16 %v539
      %v1645 = vunpack.c.l.b16 %v540
      %v1646 = vunpack.c.h.b16 %v540
      %v1647 = vunpack.c.l.b16 %v541
      %v1648 = vunpack.c.h.b16 %v541
      %v1649 = vunpack.c.l.b16 %v542
      %v1650 = vunpack.c.h.b16 %v542
      %v1651 = vunpack.c.l.b16 %v543
      %v1652 = vunpack.c.h.b16 %v543
      %v1653 = vunpack.c.l.b16 %v544
      %v1654 = vunpack.c.h.b16 %v544
      %v1655 = vunpack.c.l.b16 %v545
      %v1656 = vunpack.c.h.b16 %v545
      %v1657 = vunpack.c.l.b16 %v546
      %v1658 = vunpack.c.h.b16 %v546
      %v1659 = vunpack.c.l.b16 %v547
      %v1660 = vunpack.c.h.b16 %v547
      %v1661 = vunpack.c.l.b16 %v548
      %v1662 = vunpack.c.h.b16 %v548
      %v1663 = vunpack.c.l.b16 %v549
      %v1664 = vunpack.c.h.b16 %v549
      %v1665 = vunpack.c.l.b16 %v550
      %v1666 = vunpack.c.h.b16 %v550
      %v1667 = vunpack.c.l.b16 %v551
      %v1668 = vunpack.c.h.b16 %v551
      %v1669 = vunpack.c.l.b16 %v552
      %v1670 = vunpack.c.h.b16 %v552
      %v1671 = vunpack.c.l.b16 %v553
      %v1672 = vunpack.c.h.b16 %v553
      %v1673 = vunpack.c.l.b16 %v554
      %v1674 = vunpack.c.h.b16 %v554
      %v1675 = vunpack.c.l.b16 %v555
      %v1676 = vunpack.c.h.b16 %v555
      %v1677 = vunpack.c.l.b16 %v556
      %v1678 = vunpack.c.h.b16 %v556
      %v1679 = vunpack.c.l.b16 %v557
      %v1680 = vunpack.c.h.b16 %v557
      %v1681 = vunpack.c.l.b16 %v558
      %v1682 = vunpack.c.h.b16 %v558
      %v1683 = vunpack.c.l.b16 %v559
      %v1684 = vunpack.c.h.b16 %v559
      %v1685 = vunpack.c.l.b16 %v560
      %v1686 = vunpack.c.h.b16 %v560
      %v1687 = vunpack.c.l.b16 %v561
      %v1688 = vunpack.c.h.b16 %v561
      %v1689 = vunpack.c.l.b16 %v562
      %v1690 = vunpack.c.h.b16 %v562
      %v1691 = vunpack.c.l.b16 %v563
      %v1692 = vunpack.c.h.b16 %v563
      %v1693 = vunpack.c.l.b16 %v564
      %v1694 = vunpack.c.h.b16 %v564
      %v1695 = vunpack.c.l.b16 %v565
      %v1696 = vunpack.c.h.b16 %v565
      %v1697 = vunpack.c.l.b16 %v566
      %v1698 = vunpack.c.h.b16 %v566
      %v1699 = vunpack.c.l.b16 %v567
      %v1700 = vunpack.c.h.b16 %v567
      %v1701 = vunpack.c.l.b16 %v568
      %v1702 = vunpack.c.h.b16 %v568
      %v1703 = vunpack.c.l.b16 %v569
      %v1704 = vunpack.c.h.b16 %v569
      %v1705 = vunpack.c.l.b16 %v570
      %v1706 = vunpack.c.h.b16 %v570
      %v1707 = vunpack.c.l.b16 %v571
      %v1708 = vunpack.c.h.b16 %v571
      %v1709 = vunpack.c.l.b16 %v572
      %v1710 = vunpack.c.h.b16 %v572
      %v1711 = vunpack.c.l.b16 %v573
      %v1712 = vunpack.c.h.b16 %v573
      %v1713 = vunpack.c.l.b16 %v574
      %v1714 = vunpack.c.h.b16 %v574
      %v1715 = vunpack.c.l.b16 %v575
      %v1716 = vunpack.c.h.b16 %v575
      %v1717 = vunpack.c.l.b16 %v576
      %v1718 = vunpack.c.h.b16 %v576
      %v1719 = vunpack.c.l.b16 %v577
      %v1720 = vunpack.c.h.b16 %v577
      %v1721 = vunpack.c.l.b16 %v578
      %v1722 = vunpack.c.h.b16 %v578
      %v1723 = vunpack.c.l.b16 %v579
      %v1724 = vunpack.c.h.b16 %v579
      %v1725 = vunpack.c.l.b16 %v580
      %v1726 = vunpack.c.h.b16 %v580
      %v1727 = vunpack.c.l.b16 %v581
      %v1728 = vunpack.c.h.b16 %v581
      %v1729 = vunpack.c.l.b16 %v582
      %v1730 = vunpack.c.h.b16 %v582
      %v1731 = vunpack.c.l.b16 %v583
      %v1732 = vunpack.c.h.b16 %v583
      %v1733 = vunpack.c.l.b16 %v584
      %v1734 = vunpack.c.h.b16 %v584
      %v1735 = vunpack.c.l.b16 %v585
      %v1736 = vunpack.c.h.b16 %v585
      %v1737 = vunpack.c.l.b16 %v586
      %v1738 = vunpack.c.h.b16 %v586
      %v1739 = vunpack.c.l.b16 %v587
      %v1740 = vunpack.c.h.b16 %v587
      %v1741 = vunpack.c.l.b16 %v588
      %v1742 = vunpack.c.h.b16 %v588
      %v1743 = vunpack.c.l.b16 %v589
      %v1744 = vunpack.c.h.b16 %v589
      %v1745 = vunpack.c.l.b16 %v590
      %v1746 = vunpack.c.h.b16 %v590
      %v1747 = vunpack.c.l.b16 %v591
      %v1748 = vunpack.c.h.b16 %v591
      %v1749 = vunpack.c.l.b16 %v592
      %v1750 = vunpack.c.h.b16 %v592
      %v1751 = vunpack.c.l.b16 %v593
      %v1752 = vunpack.c.h.b16 %v593
      %v1753 = vunpack.c.l.b16 %v594
      %v1754 = vunpack.c.h.b16 %v594
      %v1755 = vunpack.c.l.b16 %v595
      %v1756 = vunpack.c.h.b16 %v595
      %v1757 = vunpack.c.l.b16 %v596
      %v1758 = vunpack.c.h.b16 %v596
      %v1759 = vunpack.c.l.b16 %v597
      %v1760 = vunpack.c.h.b16 %v597
      %v1761 = vunpack.c.l.b16 %v598
      %v1762 = vunpack.c.h.b16 %v598
      %v1763 = vunpack.c.l.b16 %v599
      %v1764 = vunpack.c.h.b16 %v599
      %v1765 = vunpack.c.l.b16 %v600
      %v1766 = vunpack.c.h.b16 %v600
      %v1767 = vunpack.c.l.b16 %v601
      %v1768 = vunpack.c.h.b16 %v601
      %v1769 = vunpack.c.l.b16 %v602
      %v1770 = vunpack.c.h.b16 %v602
      %v1771 = vunpack.c.l.b16 %v603
      %v1772 = vunpack.c.h.b16 %v603
      %v1773 = vunpack.c.l.b16 %v604
      %v1774 = vunpack.c.h.b16 %v604
      %v1775 = vunpack.c.l.b16 %v605
      %v1776 = vunpack.c.h.b16 %v605
      %v1777 = vunpack.c.l.b16 %v606
      %v1778 = vunpack.c.h.b16 %v606
      %v1779 = vunpack.c.l.b16 %v607
      %v1780 = vunpack.c.h.b16 %v607
      %v1781 = vunpack.c.l.b16 %v608
      %v1782 = vunpack.c.h.b16 %v608
      %v1783 = vunpack.c.l.b16 %v609
      %v1784 = vunpack.c.h.b16 %v609
      %v1785 = vunpack.c.l.b16 %v610
      %v1786 = vunpack.c.h.b16 %v610
      %v1787 = vunpack.c.l.b16 %v611
      %v1788 = vunpack.c.h.b16 %v611
      %v1789 = vunpack.c.l.b16 %v612
      %v1790 = vunpack.c.h.b16 %v612
      %v1791 = vunpack.c.l.b16 %v613
      %v1792 = vunpack.c.h.b16 %v613
      %v1793 = vunpack.c.l.b16 %v614
      %v1794 = vunpack.c.h.b16 %v614
      %v1795 = vunpack.c.l.b16 %v615
      %v1796 = vunpack.c.h.b16 %v615
      %v1797 = vunpack.c.l.b16 %v616
      %v1798 = vunpack.c.h.b16 %v616
      %v1799 = vunpack.c.l.b16 %v617
      %v1800 = vunpack.c.h.b16 %v617
      %v1801 = vunpack.c.l.b16 %v618
      %v1802 = vunpack.c.h.b16 %v618
      %v1803 = vunpack.c.l.b16 %v619
      %v1804 = vunpack.c.h.b16 %v619
      %v1805 = vunpack.c.l.b16 %v620
      %v1806 = vunpack.c.h.b16 %v620
      %v1807 = vunpack.c.l.b16 %v621
      %v1808 = vunpack.c.h.b16 %v621
      %v1809 = vunpack.c.l.b16 %v622
      %v1810 = vunpack.c.h.b16 %v622
      %v1811 = vunpack.c.l.b16 %v623
      %v1812 = vunpack.c.h.b16 %v623
      %v1813 = vunpack.c.l.b16 %v624
      %v1814 = vunpack.c.h.b16 %v624
      %v1815 = vunpack.c.l.b16 %v625
      %v1816 = vunpack.c.h.b16 %v625
      %v1817 = vunpack.c.l.b16 %v626
      %v1818 = vunpack.c.h.b16 %v626
      %v1819 = vunpack.c.l.b16 %v627
      %v1820 = vunpack.c.h.b16 %v627
      %v1821 = vunpack.c.l.b16 %v628
      %v1822 = vunpack.c.h.b16 %v628
      %v1823 = vunpack.c.l.b16 %v629
      %v1824 = vunpack.c.h.b16 %v629
      %v1825 = vunpack.c.l.b16 %v630
      %v1826 = vunpack.c.h.b16 %v630
      %v1827 = vunpack.c.l.b16 %v631
      %v1828 = vunpack.c.h.b16 %v631
      %v1829 = vunpack.c.l.b16 %v632
      %v1830 = vunpack.c.h.b16 %v632
      %v1831 = vunpack.c.l.b16 %v633
      %v1832 = vunpack.c.h.b16 %v633
      %v1833 = vunpack.c.l.b16 %v634
      %v1834 = vunpack.c.h.b16 %v634
      %v1835 = vunpack.c.l.b16 %v635
      %v1836 = vunpack.c.h.b16 %v635
      %v1837 = vunpack.c.l.b16 %v636
      %v1838 = vunpack.c.h.b16 %v636
      %v1839 = vunpack.c.l.b16 %v637
      %v1840 = vunpack.c.h.b16 %v637
      %v1841 = vunpack.c.l.b16 %v638
      %v1842 = vunpack.c.h.b16 %v638
      %v1843 = vunpack.c.l.b16 %v639
      %v1844 = vunpack.c.h.b16 %v639
      %v1845 = vunpack.c.l.b16 %v640
      %v1846 = vunpack.c.h.b16 %v640
      %v1847 = vunpack.c.l.b16 %v641
      %v1848 = vunpack.c.h.b16 %v641
      %v1849 = vunpack.c.l.b16 %v642
      %v1850 = vunpack.c.h.b16 %v642
      %v1851 = vunpack.c.l.b16 %v643
      %v1852 = vunpack.c.h.b16 %v643
      %v1853 = vunpack.c.l.b16 %v644
      %v1854 = vunpack.c.h.b16 %v644
      %v1855 = vunpack.c.l.b16 %v645
      %v1856 = vunpack.c.h.b16 %v645
      %v1857 = vunpack.c.l.b16 %v646
      %v1858 = vunpack.c.h.b16 %v646
      %v1859 = vunpack.c.l.b16 %v647
      %v1860 = vunpack.c.h.b16 %v647
      %v1861 = vunpack.c.l.b16 %v648
      %v1862 = vunpack.c.h.b16 %v648
      %v1863 = vunpack.c.l.b16 %v649
      %v1864 = vunpack.c.h.b16 %v649
      %v1865 = vunpack.c.l.b16 %v650
      %v1866 = vunpack.c.h.b16 %v650
      %v1867 = vunpack.c.l.b16 %v651
      %v1868 = vunpack.c.h.b16 %v651
      %v1869 = vunpack.c.l.b16 %v652
      %v1870 = vunpack.c.h.b16 %v652
      %v1871 = vunpack.c.l.b16 %v653
      %v1872 = vunpack.c.h.b16 %v653
      %v1873 = vunpack.c.l.b16 %v654
      %v1874 = vunpack.c.h.b16 %v654
      %v1875 = vunpack.c.l.b16 %v655
      %v1876 = vunpack.c.h.b16 %v655
      %v1877 = vunpack.c.l.b16 %v656
      %v1878 = vunpack.c.h.b16 %v656
      %v1879 = vunpack.c.l.b16 %v657
      %v1880 = vunpack.c.h.b16 %v657
      %v1881 = vunpack.c.l.b16 %v658
      %v1882 = vunpack.c.h.b16 %v658
      %v1883 = vunpack.c.l.b16 %v659
      %v1884 = vunpack.c.h.b16 %v659
      %v1885 = vunpack.c.l.b16 %v660
      %v1886 = vunpack.c.h.b16 %v660
      %v1887 = vunpack.c.l.b16 %v661
      %v1888 = vunpack.c.h.b16 %v661
      %v1889 = vunpack.c.l.b16 %v662
      %v1890 = vunpack.c.h.b16 %v662
      %v1891 = vunpack.c.l.b16 %v663
      %v1892 = vunpack.c.h.b16 %v663
      %v1893 = vunpack.c.l.b16 %v664
      %v1894 = vunpack.c.h.b16 %v664
      %v1895 = vunpack.c.l.b16 %v665
      %v1896 = vunpack.c.h.b16 %v665
      %v1897 = vunpack.c.l.b16 %v666
      %v1898 = vunpack.c.h.b16 %v666
      %v1899 = vunpack.c.l.b16 %v667
      %v1900 = vunpack.c.h.b16 %v667
      %v1901 = vunpack.c.l.b16 %v668
      %v1902 = vunpack.c.h.b16 %v668
      %v1903 = vunpack.c.l.b16 %v669
      %v1904 = vunpack.c.h.b16 %v669
      %v1905 = vunpack.c.l.b16 %v670
      %v1906 = vunpack.c.h.b16 %v670
      %v1907 = vpack.c.b16 %v1151, %v1139
      %v1908 = vpack.c.b16 %v1152, %v1140
      %v1909 = vpack.c.b16 %v1153, %v1141
      %v1910 = vpack.c.b16 %v1154, %v1142
      %v1911 = vpack.c.b16 %v1155, %v1143
      %v1912 = vpack.c.b16 %v1156, %v1144
      %v1913 = vpack.c.b16 %v1157, %v1145
      %v1914 = vpack.c.b16 %v1158, %v1146
      %v1915 = vpack.c.b16 %v1159, %v1147
      %v1916 = vpack.c.b16 %v1160, %v1148
      %v1917 = vpack.c.b16 %v1161, %v1149
      %v1918 = vpack.c.b16 %v1162, %v1150
      %v1919 = vpack.c.b16 %v1175, %v1163
      %v1920 = vpack.c.b16 %v1176, %v1164
      %v1921 = vpack.c.b16 %v1177, %v1165
      %v1922 = vpack.c.b16 %v1178, %v1166
      %v1923 = vpack.c.b16 %v1179, %v1167
      %v1924 = vpack.c.b16 %v1180, %v1168
      %v1925 = vpack.c.b16 %v1181, %v1169
      %v1926 = vpack.c.b16 %v1182, %v1170
      %v1927 = vpack.c.b16 %v1183, %v1171
      %v1928 = vpack.c.b16 %v1184, %v1172
      %v1929 = vpack.c.b16 %v1185, %v1173
      %v1930 = vpack.c.b16 %v1186, %v1174
      %v1931 = vpack.c.b16 %v1199, %v1187
      %v1932 = vpack.c.b16 %v1200, %v1188
      %v1933 = vpack.c.b16 %v1201, %v1189
      %v1934 = vpack.c.b16 %v1202, %v1190
      %v1935 = vpack.c.b16 %v1203, %v1191
      %v1936 = vpack.c.b16 %v1204, %v1192
      %v1937 = vpack.c.b16 %v1205, %v1193
      %v1938 = vpack.c.b16 %v1206, %v1194
      %v1939 = vpack.c.b16 %v1207, %v1195
      %v1940 = vpack.c.b16 %v1208, %v1196
      %v1941 = vpack.c.b16 %v1209, %v1197
      %v1942 = vpack.c.b16 %v1210, %v1198
      %v1943 = vpack.c.b16 %v1223, %v1211
      %v1944 = vpack.c.b16 %v1224, %v1212
      %v1945 = vpack.c.b16 %v1225, %v1213
      %v1946 = vpack.c.b16 %v1226, %v1214
      %v1947 = vpack.c.b16 %v1227, %v1215
      %v1948 = vpack.c.b16 %v1228, %v1216
      %v1949 = vpack.c.b16 %v1229, %v1217
      %v1950 = vpack.c.b16 %v1230, %v1218
      %v1951 = vpack.c.b16 %v1231, %v1219
      %v1952 = vpack.c.b16 %v1232, %v1220
      %v1953 = vpack.c.b16 %v1233, %v1221
      %v1954 = vpack.c.b16 %v1234, %v1222
      %v1955 = vpack.c.b16 %v1247, %v1235
      %v1956 = vpack.c.b16 %v1248, %v1236
      %v1957 = vpack.c.b16 %v1249, %v1237
      %v1958 = vpack.c.b16 %v1250, %v1238
      %v1959 = vpack.c.b16 %v1251, %v1239
      %v1960 = vpack.c.b16 %v1252, %v1240
      %v1961 = vpack.c.b16 %v1253, %v1241
      %v1962 = vpack.c.b16 %v1254, %v1242
      %v1963 = vpack.c.b16 %v1255, %v1243
      %v1964 = vpack.c.b16 %v1256, %v1244
      %v1965 = vpack.c.b16 %v1257, %v1245
      %v1966 = vpack.c.b16 %v1258, %v1246
      %v1967 = vpack.c.b16 %v1271, %v1259
      %v1968 = vpack.c.b16 %v1272, %v1260
      %v1969 = vpack.c.b16 %v1273, %v1261
      %v1970 = vpack.c.b16 %v1274, %v1262
      %v1971 = vpack.c.b16 %v1275, %v1263
      %v1972 = vpack.c.b16 %v1276, %v1264
      %v1973 = vpack.c.b16 %v1277, %v1265
      %v1974 = vpack.c.b16 %v1278, %v1266
      %v1975 = vpack.c.b16 %v1279, %v1267
      %v1976 = vpack.c.b16 %v1280, %v1268
      %v1977 = vpack.c.b16 %v1281, %v1269
      %v1978 = vpack.c.b16 %v1282, %v1270
      %v1979 = vpack.c.b16 %v1295, %v1283
      %v1980 = vpack.c.b16 %v1296, %v1284
      %v1981 = vpack.c.b16 %v1297, %v1285
      %v1982 = vpack.c.b16 %v1298, %v1286
      %v1983 = vpack.c.b16 %v1299, %v1287
      %v1984 = vpack.c.b16 %v1300, %v1288
      %v1985 = vpack.c.b16 %v1301, %v1289
      %v1986 = vpack.c.b16 %v1302, %v1290
      %v1987 = vpack.c.b16 %v1303, %v1291
      %v1988 = vpack.c.b16 %v1304, %v1292
      %v1989 = vpack.c.b16 %v1305, %v1293
      %v1990 = vpack.c.b16 %v1306, %v1294
      %v1991 = vpack.c.b16 %v1319, %v1307
      %v1992 = vpack.c.b16 %v1320, %v1308
      %v1993 = vpack.c.b16 %v1321, %v1309
      %v1994 = vpack.c.b16 %v1322, %v1310
      %v1995 = vpack.c.b16 %v1323, %v1311
      %v1996 = vpack.c.b16 %v1324, %v1312
      %v1997 = vpack.c.b16 %v1325, %v1313
      %v1998 = vpack.c.b16 %v1326, %v1314
      %v1999 = vpack.c.b16 %v1327, %v1315
      %v2000 = vpack.c.b16 %v1328, %v1316
      %v2001 = vpack.c.b16 %v1329, %v1317
      %v2002 = vpack.c.b16 %v1330, %v1318
      %v2003 = vpack.c.b16 %v1343, %v1331
      %v2004 = vpack.c.b16 %v1344, %v1332
      %v2005 = vpack.c.b16 %v1345, %v1333
      %v2006 = vpack.c.b16 %v1346, %v1334
      %v2007 = vpack.c.b16 %v1347, %v1335
      %v2008 = vpack.c.b16 %v1348, %v1336
      %v2009 = vpack.c.b16 %v1349, %v1337
      %v2010 = vpack.c.b16 %v1350, %v1338
      %v2011 = vpack.c.b16 %v1351, %v1339
      %v2012 = vpack.c.b16 %v1352, %v1340
      %v2013 = vpack.c.b16 %v1353, %v1341
      %v2014 = vpack.c.b16 %v1354, %v1342
      %v2015 = vpack.c.b16 %v1367, %v1355
      %v2016 = vpack.c.b16 %v1368, %v1356
      %v2017 = vpack.c.b16 %v1369, %v1357
      %v2018 = vpack.c.b16 %v1370, %v1358
      %v2019 = vpack.c.b16 %v1371, %v1359
      %v2020 = vpack.c.b16 %v1372, %v1360
      %v2021 = vpack.c.b16 %v1373, %v1361
      %v2022 = vpack.c.b16 %v1374, %v1362
      %v2023 = vpack.c.b16 %v1375, %v1363
      %v2024 = vpack.c.b16 %v1376, %v1364
      %v2025 = vpack.c.b16 %v1377, %v1365
      %v2026 = vpack.c.b16 %v1378, %v1366
      %v2027 = vpack.c.b16 %v1391, %v1379
      %v2028 = vpack.c.b16 %v1392, %v1380
      %v2029 = vpack.c.b16 %v1393, %v1381
      %v2030 = vpack.c.b16 %v1394, %v1382
      %v2031 = vpack.c.b16 %v1395, %v1383
      %v2032 = vpack.c.b16 %v1396, %v1384
      %v2033 = vpack.c.b16 %v1397, %v1385
      %v2034 = vpack.c.b16 %v1398, %v1386
      %v2035 = vpack.c.b16 %v1399, %v1387
      %v2036 = vpack.c.b16 %v1400, %v1388
      %v2037 = vpack.c.b16 %v1401, %v1389
      %v2038 = vpack.c.b16 %v1402, %v1390
      %v2039 = vpack.c.b16 %v1415, %v1403
      %v2040 = vpack.c.b16 %v1416, %v1404
      %v2041 = vpack.c.b16 %v1417, %v1405
      %v2042 = vpack.c.b16 %v1418, %v1406
      %v2043 = vpack.c.b16 %v1419, %v1407
      %v2044 = vpack.c.b16 %v1420, %v1408
      %v2045 = vpack.c.b16 %v1421, %v1409
      %v2046 = vpack.c.b16 %v1422, %v1410
      %v2047 = vpack.c.b16 %v1423, %v1411
      %v2048 = vpack.c.b16 %v1424, %v1412
      %v2049 = vpack.c.b16 %v1425, %v1413
      %v2050 = vpack.c.b16 %v1426, %v1414
      %v2051 = vpack.c.b16 %v1439, %v1427
      %v2052 = vpack.c.b16 %v1440, %v1428
      %v2053 = vpack.c.b16 %v1441, %v1429
      %v2054 = vpack.c.b16 %v1442, %v1430
      %v2055 = vpack.c.b16 %v1443, %v1431
      %v2056 = vpack.c.b16 %v1444, %v1432
      %v2057 = vpack.c.b16 %v1445, %v1433
      %v2058 = vpack.c.b16 %v1446, %v1434
      %v2059 = vpack.c.b16 %v1447, %v1435
      %v2060 = vpack.c.b16 %v1448, %v1436
      %v2061 = vpack.c.b16 %v1449, %v1437
      %v2062 = vpack.c.b16 %v1450, %v1438
      %v2063 = vpack.c.b16 %v1463, %v1451
      %v2064 = vpack.c.b16 %v1464, %v1452
      %v2065 = vpack.c.b16 %v1465, %v1453
      %v2066 = vpack.c.b16 %v1466, %v1454
      %v2067 = vpack.c.b16 %v1467, %v1455
      %v2068 = vpack.c.b16 %v1468, %v1456
      %v2069 = vpack.c.b16 %v1469, %v1457
      %v2070 = vpack.c.b16 %v1470, %v1458
      %v2071 = vpack.c.b16 %v1471, %v1459
      %v2072 = vpack.c.b16 %v1472, %v1460
      %v2073 = vpack.c.b16 %v1473, %v1461
      %v2074 = vpack.c.b16 %v1474, %v1462
      %v2075 = vpack.c.b16 %v1487, %v1475
      %v2076 = vpack.c.b16 %v1488, %v1476
      %v2077 = vpack.c.b16 %v1489, %v1477
      %v2078 = vpack.c.b16 %v1490, %v1478
      %v2079 = vpack.c.b16 %v1491, %v1479
      %v2080 = vpack.c.b16 %v1492, %v1480
      %v2081 = vpack.c.b16 %v1493, %v1481
      %v2082 = vpack.c.b16 %v1494, %v1482
      %v2083 = vpack.c.b16 %v1495, %v1483
      %v2084 = vpack.c.b16 %v1496, %v1484
      %v2085 = vpack.c.b16 %v1497, %v1485
      %v2086 = vpack.c.b16 %v1498, %v1486
      %v2087 = vpack.c.b16 %v1511, %v1499
      %v2088 = vpack.c.b16 %v1512, %v1500
      %v2089 = vpack.c.b16 %v1513, %v1501
      %v2090 = vpack.c.b16 %v1514, %v1502
      %v2091 = vpack.c.b16 %v1515, %v1503
      %v2092 = vpack.c.b16 %v1516, %v1504
      %v2093 = vpack.c.b16 %v1517, %v1505
      %v2094 = vpack.c.b16 %v1518, %v1506
      %v2095 = vpack.c.b16 %v1519, %v1507
      %v2096 = vpack.c.b16 %v1520, %v1508
      %v2097 = vpack.c.b16 %v1521, %v1509
      %v2098 = vpack.c.b16 %v1522, %v1510
      %v2099 = vpack.c.b16 %v1535, %v1523
      %v2100 = vpack.c.b16 %v1536, %v1524
      %v2101 = vpack.c.b16 %v1537, %v1525
      %v2102 = vpack.c.b16 %v1538, %v1526
      %v2103 = vpack.c.b16 %v1539, %v1527
      %v2104 = vpack.c.b16 %v1540, %v1528
      %v2105 = vpack.c.b16 %v1541, %v1529
      %v2106 = vpack.c.b16 %v1542, %v1530
      %v2107 = vpack.c.b16 %v1543, %v1531
      %v2108 = vpack.c.b16 %v1544, %v1532
      %v2109 = vpack.c.b16 %v1545, %v1533
      %v2110 = vpack.c.b16 %v1546, %v1534
      %v2111 = vpack.c.b16 %v1559, %v1547
      %v2112 = vpack.c.b16 %v1560, %v1548
      %v2113 = vpack.c.b16 %v1561, %v1549
      %v2114 = vpack.c.b16 %v1562, %v1550
      %v2115 = vpack.c.b16 %v1563, %v1551
      %v2116 = vpack.c.b16 %v1564, %v1552
      %v2117 = vpack.c.b16 %v1565, %v1553
      %v2118 = vpack.c.b16 %v1566, %v1554
      %v2119 = vpack.c.b16 %v1567, %v1555
      %v2120 = vpack.c.b16 %v1568, %v1556
      %v2121 = vpack.c.b16 %v1569, %v1557
      %v2122 = vpack.c.b16 %v1570, %v1558
      %v2123 = vpack.c.b16 %v1583, %v1571
      %v2124 = vpack.c.b16 %v1584, %v1572
      %v2125 = vpack.c.b16 %v1585, %v1573
      %v2126 = vpack.c.b16 %v1586, %v1574
      %v2127 = vpack.c.b16 %v1587, %v1575
      %v2128 = vpack.c.b16 %v1588, %v1576
      %v2129 = vpack.c.b16 %v1589, %v1577
      %v2130 = vpack.c.b16 %v1590, %v1578
      %v2131 = vpack.c.b16 %v1591, %v1579
      %v2132 = vpack.c.b16 %v1592, %v1580
      %v2133 = vpack.c.b16 %v1593, %v1581
      %v2134 = vpack.c.b16 %v1594, %v1582
      %v2135 = vpack.c.b16 %v1607, %v1595
      %v2136 = vpack.c.b16 %v1608, %v1596
      %v2137 = vpack.c.b16 %v1609, %v1597
      %v2138 = vpack.c.b16 %v1610, %v1598
      %v2139 = vpack.c.b16 %v1611, %v1599
      %v2140 = vpack.c.b16 %v1612, %v1600
      %v2141 = vpack.c.b16 %v1613, %v1601
      %v2142 = vpack.c.b16 %v1614, %v1602
      %v2143 = vpack.c.b16 %v1615, %v1603
      %v2144 = vpack.c.b16 %v1616, %v1604
      %v2145 = vpack.c.b16 %v1617, %v1605
      %v2146 = vpack.c.b16 %v1618, %v1606
      %v2147 = vpack.c.b16 %v1631, %v1619
      %v2148 = vpack.c.b16 %v1632, %v1620
      %v2149 = vpack.c.b16 %v1633, %v1621
      %v2150 = vpack.c.b16 %v1634, %v1622
      %v2151 = vpack.c.b16 %v1635, %v1623
      %v2152 = vpack.c.b16 %v1636, %v1624
      %v2153 = vpack.c.b16 %v1637, %v1625
      %v2154 = vpack.c.b16 %v1638, %v1626
      %v2155 = vpack.c.b16 %v1639, %v1627
      %v2156 = vpack.c.b16 %v1640, %v1628
      %v2157 = vpack.c.b16 %v1641, %v1629
      %v2158 = vpack.c.b16 %v1642, %v1630
      %v2159 = vpack.c.b16 %v1655, %v1643
      %v2160 = vpack.c.b16 %v1656, %v1644
      %v2161 = vpack.c.b16 %v1657, %v1645
      %v2162 = vpack.c.b16 %v1658, %v1646
      %v2163 = vpack.c.b16 %v1659, %v1647
      %v2164 = vpack.c.b16 %v1660, %v1648
      %v2165 = vpack.c.b16 %v1661, %v1649
      %v2166 = vpack.c.b16 %v1662, %v1650
      %v2167 = vpack.c.b16 %v1663, %v1651
      %v2168 = vpack.c.b16 %v1664, %v1652
      %v2169 = vpack.c.b16 %v1665, %v1653
      %v2170 = vpack.c.b16 %v1666, %v1654
      %v2171 = vpack.c.b16 %v1679, %v1667
      %v2172 = vpack.c.b16 %v1680, %v1668
      %v2173 = vpack.c.b16 %v1681, %v1669
      %v2174 = vpack.c.b16 %v1682, %v1670
      %v2175 = vpack.c.b16 %v1683, %v1671
      %v2176 = vpack.c.b16 %v1684, %v1672
      %v2177 = vpack.c.b16 %v1685, %v1673
      %v2178 = vpack.c.b16 %v1686, %v1674
      %v2179 = vpack.c.b16 %v1687, %v1675
      %v2180 = vpack.c.b16 %v1688, %v1676
      %v2181 = vpack.c.b16 %v1689, %v1677
      %v2182 = vpack.c.b16 %v1690, %v1678
      %v2183 = vpack.c.b16 %v1703, %v1691
      %v2184 = vpack.c.b16 %v1704, %v1692
      %v2185 = vpack.c.b16 %v1705, %v1693
      %v2186 = vpack.c.b16 %v1706, %v1694
      %v2187 = vpack.c.b16 %v1707, %v1695
      %v2188 = vpack.c.b16 %v1708, %v1696
      %v2189 = vpack.c.b16 %v1709, %v1697
      %v2190 = vpack.c.b16 %v1710, %v1698
      %v2191 = vpack.c.b16 %v1711, %v1699
      %v2192 = vpack.c.b16 %v1712, %v1700
      %v2193 = vpack.c.b16 %v1713, %v1701
      %v2194 = vpack.c.b16 %v1714, %v1702
      %v2195 = vpack.c.b16 %v1727, %v1715
      %v2196 = vpack.c.b16 %v1728, %v1716
      %v2197 = vpack.c.b16 %v1729, %v1717
      %v2198 = vpack.c.b16 %v1730, %v1718
      %v2199 = vpack.c.b16 %v1731, %v1719
      %v2200 = vpack.c.b16 %v1732, %v1720
      %v2201 = vpack.c.b16 %v1733, %v1721
      %v2202 = vpack.c.b16 %v1734, %v1722
      %v2203 = vpack.c.b16 %v1735, %v1723
      %v2204 = vpack.c.b16 %v1736, %v1724
      %v2205 = vpack.c.b16 %v1737, %v1725
      %v2206 = vpack.c.b16 %v1738, %v1726
      %v2207 = vpack.c.b16 %v1751, %v1739
      %v2208 = vpack.c.b16 %v1752, %v1740
      %v2209 = vpack.c.b16 %v1753, %v1741
      %v2210 = vpack.c.b16 %v1754, %v1742
      %v2211 = vpack.c.b16 %v1755, %v1743
      %v2212 = vpack.c.b16 %v1756, %v1744
      %v2213 = vpack.c.b16 %v1757, %v1745
      %v2214 = vpack.c.b16 %v1758, %v1746
      %v2215 = vpack.c.b16 %v1759, %v1747
      %v2216 = vpack.c.b16 %v1760, %v1748
      %v2217 = vpack.c.b16 %v1761, %v1749
      %v2218 = vpack.c.b16 %v1762, %v1750
      %v2219 = vpack.c.b16 %v1775, %v1763
      %v2220 = vpack.c.b16 %v1776, %v1764
      %v2221 = vpack.c.b16 %v1777, %v1765
      %v2222 = vpack.c.b16 %v1778, %v1766
      %v2223 = vpack.c.b16 %v1779, %v1767
      %v2224 = vpack.c.b16 %v1780, %v1768
      %v2225 = vpack.c.b16 %v1781, %v1769
      %v2226 = vpack.c.b16 %v1782, %v1770
      %v2227 = vpack.c.b16 %v1783, %v1771
      %v2228 = vpack.c.b16 %v1784, %v1772
      %v2229 = vpack.c.b16 %v1785, %v1773
      %v2230 = vpack.c.b16 %v1786, %v1774
      %v2231 = vpack.c.b16 %v1799, %v1787
      %v2232 = vpack.c.b16 %v1800, %v1788
      %v2233 = vpack.c.b16 %v1801, %v1789
      %v2234 = vpack.c.b16 %v1802, %v1790
      %v2235 = vpack.c.b16 %v1803, %v1791
      %v2236 = vpack.c.b16 %v1804, %v1792
      %v2237 = vpack.c.b16 %v1805, %v1793
      %v2238 = vpack.c.b16 %v1806, %v1794
      %v2239 = vpack.c.b16 %v1807, %v1795
      %v2240 = vpack.c.b16 %v1808, %v1796
      %v2241 = vpack.c.b16 %v1809, %v1797
      %v2242 = vpack.c.b16 %v1810, %v1798
      %v2243 = vpack.c.b16 %v1823, %v1811
      %v2244 = vpack.c.b16 %v1824, %v1812
      %v2245 = vpack.c.b16 %v1825, %v1813
      %v2246 = vpack.c.b16 %v1826, %v1814
      %v2247 = vpack.c.b16 %v1827, %v1815
      %v2248 = vpack.c.b16 %v1828, %v1816
      %v2249 = vpack.c.b16 %v1829, %v1817
      %v2250 = vpack.c.b16 %v1830, %v1818
      %v2251 = vpack.c.b16 %v1831, %v1819
      %v2252 = vpack.c.b16 %v1832, %v1820
      %v2253 = vpack.c.b16 %v1833, %v1821
      %v2254 = vpack.c.b16 %v1834, %v1822
      %v2255 = vpack.c.b16 %v1847, %v1835
      %v2256 = vpack.c.b16 %v1848, %v1836
      %v2257 = vpack.c.b16 %v1849, %v1837
      %v2258 = vpack.c.b16 %v1850, %v1838
      %v2259 = vpack.c.b16 %v1851, %v1839
      %v2260 = vpack.c.b16 %v1852, %v1840
      %v2261 = vpack.c.b16 %v1853, %v1841
      %v2262 = vpack.c.b16 %v1854, %v1842
      %v2263 = vpack.c.b16 %v1855, %v1843
      %v2264 = vpack.c.b16 %v1856, %v1844
      %v2265 = vpack.c.b16 %v1857, %v1845
      %v2266 = vpack.c.b16 %v1858, %v1846
      %v2267 = vpack.c.b16 %v1871, %v1859
      %v2268 = vpack.c.b16 %v1872, %v1860
      %v2269 = vpack.c.b16 %v1873, %v1861
      %v2270 = vpack.c.b16 %v1874, %v1862
      %v2271 = vpack.c.b16 %v1875, %v1863
      %v2272 = vpack.c.b16 %v1876, %v1864
      %v2273 = vpack.c.b16 %v1877, %v1865
      %v2274 = vpack.c.b16 %v1878, %v1866
      %v2275 = vpack.c.b16 %v1879, %v1867
      %v2276 = vpack.c.b16 %v1880, %v1868
      %v2277 = vpack.c.b16 %v1881, %v1869
      %v2278 = vpack.c.b16 %v1882, %v1870
      %v2279 = vpack.c.b16 %v1895, %v1883
      %v2280 = vpack.c.b16 %v1896, %v1884
      %v2281 = vpack.c.b16 %v1897, %v1885
      %v2282 = vpack.c.b16 %v1898, %v1886
      %v2283 = vpack.c.b16 %v1899, %v1887
      %v2284 = vpack.c.b16 %v1900, %v1888
      %v2285 = vpack.c.b16 %v1901, %v1889
      %v2286 = vpack.c.b16 %v1902, %v1890
      %v2287 = vpack.c.b16 %v1903, %v1891
      %v2288 = vpack.c.b16 %v1904, %v1892
      %v2289 = vpack.c.b16 %v1905, %v1893
      %v2290 = vpack.c.b16 %v1906, %v1894
      %2675 = vmatprep.subr.bf16.mxu0 %v1908
      %2676 = vmatpush1.bf16.msra.mxu0 %v1907
      %2677 = vmatprep.subr.bf16.mxu0 %v1920
      %2678 = vmatpush1.bf16.msra.mxu0 %v1919
      %2679 = vmatprep.subr.bf16.mxu0 %v1932
      %2680 = vmatpush1.bf16.msra.mxu0 %v1931
      %2681 = vmatprep.subr.bf16.mxu0 %v1944
      %2682 = vmatpush1.bf16.msra.mxu0 %v1943
      %2683 = vmatprep.subr.bf16.mxu0 %v1956
      %2684 = vmatpush1.bf16.msra.mxu0 %v1955
      %2685 = vmatprep.subr.bf16.mxu0 %v1968
      %2686 = vmatpush1.bf16.msra.mxu0 %v1967
      %2687 = vmatprep.subr.bf16.mxu0 %v1980
      %2688 = vmatpush1.bf16.msra.mxu0 %v1979
      %2689 = vmatprep.subr.bf16.mxu0 %v1992
      %2690 = vmatpush1.bf16.msra.mxu0 %v1991
      %2691 = vmatprep.subr.bf16.mxu0 %v2004
      %2692 = vmatpush1.bf16.msra.mxu0 %v2003
      %2693 = vmatprep.subr.bf16.mxu0 %v2016
      %2694 = vmatpush1.bf16.msra.mxu0 %v2015
      %2695 = vmatprep.subr.bf16.mxu0 %v2028
      %2696 = vmatpush1.bf16.msra.mxu0 %v2027
      %2697 = vmatprep.subr.bf16.mxu0 %v2040
      %2698 = vmatpush1.bf16.msra.mxu0 %v2039
      %2699 = vmatprep.subr.bf16.mxu0 %v2052
      %2700 = vmatpush1.bf16.msra.mxu0 %v2051
      %2701 = vmatprep.subr.bf16.mxu0 %v2064
      %2702 = vmatpush1.bf16.msra.mxu0 %v2063
      %2703 = vmatprep.subr.bf16.mxu0 %v2076
      %2704 = vmatpush1.bf16.msra.mxu0 %v2075
      %2705 = vmatprep.subr.bf16.mxu0 %v2088
      %2706 = vmatpush1.bf16.msra.mxu0 %v2087
      %2707 = vmatprep.mubr.bf16.mxu0 %v748
      %2708 = vmatmul.mubr.bf16.gmra.mrb[0].mxu0 %v747
      %v2709 = vpop.f32.mrb[0].mxu0
      %v2710 = vadd.f32 %v678, %v2709
      %v2711 = vpop.f32.mrb[0].mxu0
      %v2712 = vadd.f32 %v682, %v2711
      %v2713 = vpop.f32.mrb[0].mxu0
      %v2714 = vadd.f32 %v678, %v2713
      %v2715 = vpop.f32.mrb[0].mxu0
      %v2716 = vadd.f32 %v682, %v2715
      %2717 = vdwg.mxu0
      %2718 = vmatprep.subr.bf16.mxu0 %v2100
      %2719 = vmatpush1.bf16.msra.mxu0 %v2099
      %2720 = vmatprep.subr.bf16.mxu0 %v2112
      %2721 = vmatpush1.bf16.msra.mxu0 %v2111
      %2722 = vmatprep.subr.bf16.mxu0 %v2124
      %2723 = vmatpush1.bf16.msra.mxu0 %v2123
      %2724 = vmatprep.subr.bf16.mxu0 %v2136
      %2725 = vmatpush1.bf16.msra.mxu0 %v2135
      %2726 = vmatprep.subr.bf16.mxu0 %v2148
      %2727 = vmatpush1.bf16.msra.mxu0 %v2147
      %2728 = vmatprep.subr.bf16.mxu0 %v2160
      %2729 = vmatpush1.bf16.msra.mxu0 %v2159
      %2730 = vmatprep.subr.bf16.mxu0 %v2172
      %2731 = vmatpush1.bf16.msra.mxu0 %v2171
      %2732 = vmatprep.subr.bf16.mxu0 %v2184
      %2733 = vmatpush1.bf16.msra.mxu0 %v2183
      %2734 = vmatprep.subr.bf16.mxu0 %v2196
      %2735 = vmatpush1.bf16.msra.mxu0 %v2195
      %2736 = vmatprep.subr.bf16.mxu0 %v2208
      %2737 = vmatpush1.bf16.msra.mxu0 %v2207
      %2738 = vmatprep.subr.bf16.mxu0 %v2220
      %2739 = vmatpush1.bf16.msra.mxu0 %v2219
      %2740 = vmatprep.subr.bf16.mxu0 %v2232
      %2741 = vmatpush1.bf16.msra.mxu0 %v2231
      %2742 = vmatprep.subr.bf16.mxu0 %v2244
      %2743 = vmatpush1.bf16.msra.mxu0 %v2243
      %2744 = vmatprep.subr.bf16.mxu0 %v2256
      %2745 = vmatpush1.bf16.msra.mxu0 %v2255
      %2746 = vmatprep.subr.bf16.mxu0 %v2268
      %2747 = vmatpush1.bf16.msra.mxu0 %v2267
      %2748 = vmatprep.subr.bf16.mxu0 %v2280
      %2749 = vmatpush1.bf16.msra.mxu0 %v2279
      %2750 = vmatprep.mubr.bf16.mxu0 %v750
      %2751 = vmatmul.mubr.bf16.gmra.mrb[0].mxu0 %v749
      %v2752 = vpop.f32.mrb[0].mxu0
      %v2753 = vadd.f32 %v2710, %v2752
      %v2754 = vpop.f32.mrb[0].mxu0
      %v2755 = vadd.f32 %v2712, %v2754
      %v2756 = vpop.f32.mrb[0].mxu0
      %v2757 = vadd.f32 %v2714, %v2756
      %v2758 = vpop.f32.mrb[0].mxu0
      %v2759 = vadd.f32 %v2716, %v2758
      %2760 = vdwg.mxu0
      %2761 = vmatprep.subr.bf16.mxu0 %v1910
      %2762 = vmatpush1.bf16.msra.mxu0 %v1909
      %2763 = vmatprep.subr.bf16.mxu0 %v1922
      %2764 = vmatpush1.bf16.msra.mxu0 %v1921
      %2765 = vmatprep.subr.bf16.mxu0 %v1934
      %2766 = vmatpush1.bf16.msra.mxu0 %v1933
      %2767 = vmatprep.subr.bf16.mxu0 %v1946
      %2768 = vmatpush1.bf16.msra.mxu0 %v1945
      %2769 = vmatprep.subr.bf16.mxu0 %v1958
      %2770 = vmatpush1.bf16.msra.mxu0 %v1957
      %2771 = vmatprep.subr.bf16.mxu0 %v1970
      %2772 = vmatpush1.bf16.msra.mxu0 %v1969
      %2773 = vmatprep.subr.bf16.mxu0 %v1982
      %2774 = vmatpush1.bf16.msra.mxu0 %v1981
      %2775 = vmatprep.subr.bf16.mxu0 %v1994
      %2776 = vmatpush1.bf16.msra.mxu0 %v1993
      %2777 = vmatprep.subr.bf16.mxu0 %v2006
      %2778 = vmatpush1.bf16.msra.mxu0 %v2005
      %2779 = vmatprep.subr.bf16.mxu0 %v2018
      %2780 = vmatpush1.bf16.msra.mxu0 %v2017
      %2781 = vmatprep.subr.bf16.mxu0 %v2030
      %2782 = vmatpush1.bf16.msra.mxu0 %v2029
      %2783 = vmatprep.subr.bf16.mxu0 %v2042
      %2784 = vmatpush1.bf16.msra.mxu0 %v2041
      %2785 = vmatprep.subr.bf16.mxu0 %v2054
      %2786 = vmatpush1.bf16.msra.mxu0 %v2053
      %2787 = vmatprep.subr.bf16.mxu0 %v2066
      %2788 = vmatpush1.bf16.msra.mxu0 %v2065
      %2789 = vmatprep.subr.bf16.mxu0 %v2078
      %2790 = vmatpush1.bf16.msra.mxu0 %v2077
      %2791 = vmatprep.subr.bf16.mxu0 %v2090
      %2792 = vmatpush1.bf16.msra.mxu0 %v2089
      %2793 = vmatprep.mubr.bf16.mxu0 %v748
      %2794 = vmatmul.mubr.bf16.gmra.mrb[0].mxu0 %v747
      %v2795 = vpop.f32.mrb[0].mxu0
      %v2796 = vadd.f32 %v686, %v2795
      %v2797 = vpop.f32.mrb[0].mxu0
      %v2798 = vadd.f32 %v690, %v2797
      %v2799 = vpop.f32.mrb[0].mxu0
      %v2800 = vadd.f32 %v686, %v2799
      %v2801 = vpop.f32.mrb[0].mxu0
      %v2802 = vadd.f32 %v690, %v2801
      %2803 = vdwg.mxu0
      %2804 = vmatprep.subr.bf16.mxu0 %v2102
      %2805 = vmatpush1.bf16.msra.mxu0 %v2101
      %2806 = vmatprep.subr.bf16.mxu0 %v2114
      %2807 = vmatpush1.bf16.msra.mxu0 %v2113
      %2808 = vmatprep.subr.bf16.mxu0 %v2126
      %2809 = vmatpush1.bf16.msra.mxu0 %v2125
      %2810 = vmatprep.subr.bf16.mxu0 %v2138
      %2811 = vmatpush1.bf16.msra.mxu0 %v2137
      %2812 = vmatprep.subr.bf16.mxu0 %v2150
      %2813 = vmatpush1.bf16.msra.mxu0 %v2149
      %2814 = vmatprep.subr.bf16.mxu0 %v2162
      %2815 = vmatpush1.bf16.msra.mxu0 %v2161
      %2816 = vmatprep.subr.bf16.mxu0 %v2174
      %2817 = vmatpush1.bf16.msra.mxu0 %v2173
      %2818 = vmatprep.subr.bf16.mxu0 %v2186
      %2819 = vmatpush1.bf16.msra.mxu0 %v2185
      %2820 = vmatprep.subr.bf16.mxu0 %v2198
      %2821 = vmatpush1.bf16.msra.mxu0 %v2197
      %2822 = vmatprep.subr.bf16.mxu0 %v2210
      %2823 = vmatpush1.bf16.msra.mxu0 %v2209
      %2824 = vmatprep.subr.bf16.mxu0 %v2222
      %2825 = vmatpush1.bf16.msra.mxu0 %v2221
      %2826 = vmatprep.subr.bf16.mxu0 %v2234
      %2827 = vmatpush1.bf16.msra.mxu0 %v2233
      %2828 = vmatprep.subr.bf16.mxu0 %v2246
      %2829 = vmatpush1.bf16.msra.mxu0 %v2245
      %2830 = vmatprep.subr.bf16.mxu0 %v2258
      %2831 = vmatpush1.bf16.msra.mxu0 %v2257
      %2832 = vmatprep.subr.bf16.mxu0 %v2270
      %2833 = vmatpush1.bf16.msra.mxu0 %v2269
      %2834 = vmatprep.subr.bf16.mxu0 %v2282
      %2835 = vmatpush1.bf16.msra.mxu0 %v2281
      %2836 = vmatprep.mubr.bf16.mxu0 %v750
      %2837 = vmatmul.mubr.bf16.gmra.mrb[0].mxu0 %v749
      %v2838 = vpop.f32.mrb[0].mxu0
      %v2839 = vadd.f32 %v2796, %v2838
      %v2840 = vpop.f32.mrb[0].mxu0
      %v2841 = vadd.f32 %v2798, %v2840
      %v2842 = vpop.f32.mrb[0].mxu0
      %v2843 = vadd.f32 %v2800, %v2842
      %v2844 = vpop.f32.mrb[0].mxu0
      %v2845 = vadd.f32 %v2802, %v2844
      %2846 = vdwg.mxu0
      %2847 = vmatprep.subr.bf16.mxu0 %v1912
      %2848 = vmatpush1.bf16.msra.mxu0 %v1911
      %2849 = vmatprep.subr.bf16.mxu0 %v1924
      %2850 = vmatpush1.bf16.msra.mxu0 %v1923
      %2851 = vmatprep.subr.bf16.mxu0 %v1936
      %2852 = vmatpush1.bf16.msra.mxu0 %v1935
      %2853 = vmatprep.subr.bf16.mxu0 %v1948
      %2854 = vmatpush1.bf16.msra.mxu0 %v1947
      %2855 = vmatprep.subr.bf16.mxu0 %v1960
      %2856 = vmatpush1.bf16.msra.mxu0 %v1959
      %2857 = vmatprep.subr.bf16.mxu0 %v1972
      %2858 = vmatpush1.bf16.msra.mxu0 %v1971
      %2859 = vmatprep.subr.bf16.mxu0 %v1984
      %2860 = vmatpush1.bf16.msra.mxu0 %v1983
      %2861 = vmatprep.subr.bf16.mxu0 %v1996
      %2862 = vmatpush1.bf16.msra.mxu0 %v1995
      %2863 = vmatprep.subr.bf16.mxu0 %v2008
      %2864 = vmatpush1.bf16.msra.mxu0 %v2007
      %2865 = vmatprep.subr.bf16.mxu0 %v2020
      %2866 = vmatpush1.bf16.msra.mxu0 %v2019
      %2867 = vmatprep.subr.bf16.mxu0 %v2032
      %2868 = vmatpush1.bf16.msra.mxu0 %v2031
      %2869 = vmatprep.subr.bf16.mxu0 %v2044
      %2870 = vmatpush1.bf16.msra.mxu0 %v2043
      %2871 = vmatprep.subr.bf16.mxu0 %v2056
      %2872 = vmatpush1.bf16.msra.mxu0 %v2055
      %2873 = vmatprep.subr.bf16.mxu0 %v2068
      %2874 = vmatpush1.bf16.msra.mxu0 %v2067
      %2875 = vmatprep.subr.bf16.mxu0 %v2080
      %2876 = vmatpush1.bf16.msra.mxu0 %v2079
      %2877 = vmatprep.subr.bf16.mxu0 %v2092
      %2878 = vmatpush1.bf16.msra.mxu0 %v2091
      %2879 = vmatprep.mubr.bf16.mxu0 %v748
      %2880 = vmatmul.mubr.bf16.gmra.mrb[0].mxu0 %v747
      %v2881 = vpop.f32.mrb[0].mxu0
      %v2882 = vadd.f32 %v694, %v2881
      %v2883 = vpop.f32.mrb[0].mxu0
      %v2884 = vadd.f32 %v698, %v2883
      %v2885 = vpop.f32.mrb[0].mxu0
      %v2886 = vadd.f32 %v694, %v2885
      %v2887 = vpop.f32.mrb[0].mxu0
      %v2888 = vadd.f32 %v698, %v2887
      %2889 = vdwg.mxu0
      %2890 = vmatprep.subr.bf16.mxu0 %v2104
      %2891 = vmatpush1.bf16.msra.mxu0 %v2103
      %2892 = vmatprep.subr.bf16.mxu0 %v2116
      %2893 = vmatpush1.bf16.msra.mxu0 %v2115
      %2894 = vmatprep.subr.bf16.mxu0 %v2128
      %2895 = vmatpush1.bf16.msra.mxu0 %v2127
      %2896 = vmatprep.subr.bf16.mxu0 %v2140
      %2897 = vmatpush1.bf16.msra.mxu0 %v2139
      %2898 = vmatprep.subr.bf16.mxu0 %v2152
      %2899 = vmatpush1.bf16.msra.mxu0 %v2151
      %2900 = vmatprep.subr.bf16.mxu0 %v2164
      %2901 = vmatpush1.bf16.msra.mxu0 %v2163
      %2902 = vmatprep.subr.bf16.mxu0 %v2176
      %2903 = vmatpush1.bf16.msra.mxu0 %v2175
      %2904 = vmatprep.subr.bf16.mxu0 %v2188
      %2905 = vmatpush1.bf16.msra.mxu0 %v2187
      %2906 = vmatprep.subr.bf16.mxu0 %v2200
      %2907 = vmatpush1.bf16.msra.mxu0 %v2199
      %2908 = vmatprep.subr.bf16.mxu0 %v2212
      %2909 = vmatpush1.bf16.msra.mxu0 %v2211
      %2910 = vmatprep.subr.bf16.mxu0 %v2224
      %2911 = vmatpush1.bf16.msra.mxu0 %v2223
      %2912 = vmatprep.subr.bf16.mxu0 %v2236
      %2913 = vmatpush1.bf16.msra.mxu0 %v2235
      %2914 = vmatprep.subr.bf16.mxu0 %v2248
      %2915 = vmatpush1.bf16.msra.mxu0 %v2247
      %2916 = vmatprep.subr.bf16.mxu0 %v2260
      %2917 = vmatpush1.bf16.msra.mxu0 %v2259
      %2918 = vmatprep.subr.bf16.mxu0 %v2272
      %2919 = vmatpush1.bf16.msra.mxu0 %v2271
      %2920 = vmatprep.subr.bf16.mxu0 %v2284
      %2921 = vmatpush1.bf16.msra.mxu0 %v2283
      %2922 = vmatprep.mubr.bf16.mxu0 %v750
      %2923 = vmatmul.mubr.bf16.gmra.mrb[0].mxu0 %v749
      %v2924 = vpop.f32.mrb[0].mxu0
      %v2925 = vadd.f32 %v2882, %v2924
      %v2926 = vpop.f32.mrb[0].mxu0
      %v2927 = vadd.f32 %v2884, %v2926
      %v2928 = vpop.f32.mrb[0].mxu0
      %v2929 = vadd.f32 %v2886, %v2928
      %v2930 = vpop.f32.mrb[0].mxu0
      %v2931 = vadd.f32 %v2888, %v2930
      %2932 = vdwg.mxu0
      %2933 = vmatprep.subr.bf16.mxu0 %v1914
      %2934 = vmatpush1.bf16.msra.mxu0 %v1913
      %2935 = vmatprep.subr.bf16.mxu0 %v1926
      %2936 = vmatpush1.bf16.msra.mxu0 %v1925
      %2937 = vmatprep.subr.bf16.mxu0 %v1938
      %2938 = vmatpush1.bf16.msra.mxu0 %v1937
      %2939 = vmatprep.subr.bf16.mxu0 %v1950
      %2940 = vmatpush1.bf16.msra.mxu0 %v1949
      %2941 = vmatprep.subr.bf16.mxu0 %v1962
      %2942 = vmatpush1.bf16.msra.mxu0 %v1961
      %2943 = vmatprep.subr.bf16.mxu0 %v1974
      %2944 = vmatpush1.bf16.msra.mxu0 %v1973
      %2945 = vmatprep.subr.bf16.mxu0 %v1986
      %2946 = vmatpush1.bf16.msra.mxu0 %v1985
      %2947 = vmatprep.subr.bf16.mxu0 %v1998
      %2948 = vmatpush1.bf16.msra.mxu0 %v1997
      %2949 = vmatprep.subr.bf16.mxu0 %v2010
      %2950 = vmatpush1.bf16.msra.mxu0 %v2009
      %2951 = vmatprep.subr.bf16.mxu0 %v2022
      %2952 = vmatpush1.bf16.msra.mxu0 %v2021
      %2953 = vmatprep.subr.bf16.mxu0 %v2034
      %2954 = vmatpush1.bf16.msra.mxu0 %v2033
      %2955 = vmatprep.subr.bf16.mxu0 %v2046
      %2956 = vmatpush1.bf16.msra.mxu0 %v2045
      %2957 = vmatprep.subr.bf16.mxu0 %v2058
      %2958 = vmatpush1.bf16.msra.mxu0 %v2057
      %2959 = vmatprep.subr.bf16.mxu0 %v2070
      %2960 = vmatpush1.bf16.msra.mxu0 %v2069
      %2961 = vmatprep.subr.bf16.mxu0 %v2082
      %2962 = vmatpush1.bf16.msra.mxu0 %v2081
      %2963 = vmatprep.subr.bf16.mxu0 %v2094
      %2964 = vmatpush1.bf16.msra.mxu0 %v2093
      %2965 = vmatprep.mubr.bf16.mxu0 %v748
      %2966 = vmatmul.mubr.bf16.gmra.mrb[0].mxu0 %v747
      %v2967 = vpop.f32.mrb[0].mxu0
      %v2968 = vadd.f32 %v702, %v2967
      %v2969 = vpop.f32.mrb[0].mxu0
      %v2970 = vadd.f32 %v706, %v2969
      %v2971 = vpop.f32.mrb[0].mxu0
      %v2972 = vadd.f32 %v702, %v2971
      %v2973 = vpop.f32.mrb[0].mxu0
      %v2974 = vadd.f32 %v706, %v2973
      %2975 = vdwg.mxu0
      %2976 = vmatprep.subr.bf16.mxu0 %v2106
      %2977 = vmatpush1.bf16.msra.mxu0 %v2105
      %2978 = vmatprep.subr.bf16.mxu0 %v2118
      %2979 = vmatpush1.bf16.msra.mxu0 %v2117
      %2980 = vmatprep.subr.bf16.mxu0 %v2130
      %2981 = vmatpush1.bf16.msra.mxu0 %v2129
      %2982 = vmatprep.subr.bf16.mxu0 %v2142
      %2983 = vmatpush1.bf16.msra.mxu0 %v2141
      %2984 = vmatprep.subr.bf16.mxu0 %v2154
      %2985 = vmatpush1.bf16.msra.mxu0 %v2153
      %2986 = vmatprep.subr.bf16.mxu0 %v2166
      %2987 = vmatpush1.bf16.msra.mxu0 %v2165
      %2988 = vmatprep.subr.bf16.mxu0 %v2178
      %2989 = vmatpush1.bf16.msra.mxu0 %v2177
      %2990 = vmatprep.subr.bf16.mxu0 %v2190
      %2991 = vmatpush1.bf16.msra.mxu0 %v2189
      %2992 = vmatprep.subr.bf16.mxu0 %v2202
      %2993 = vmatpush1.bf16.msra.mxu0 %v2201
      %2994 = vmatprep.subr.bf16.mxu0 %v2214
      %2995 = vmatpush1.bf16.msra.mxu0 %v2213
      %2996 = vmatprep.subr.bf16.mxu0 %v2226
      %2997 = vmatpush1.bf16.msra.mxu0 %v2225
      %2998 = vmatprep.subr.bf16.mxu0 %v2238
      %2999 = vmatpush1.bf16.msra.mxu0 %v2237
      %3000 = vmatprep.subr.bf16.mxu0 %v2250
      %3001 = vmatpush1.bf16.msra.mxu0 %v2249
      %3002 = vmatprep.subr.bf16.mxu0 %v2262
      %3003 = vmatpush1.bf16.msra.mxu0 %v2261
      %3004 = vmatprep.subr.bf16.mxu0 %v2274
      %3005 = vmatpush1.bf16.msra.mxu0 %v2273
      %3006 = vmatprep.subr.bf16.mxu0 %v2286
      %3007 = vmatpush1.bf16.msra.mxu0 %v2285
      %3008 = vmatprep.mubr.bf16.mxu0 %v750
      %3009 = vmatmul.mubr.bf16.gmra.mrb[0].mxu0 %v749
      %v3010 = vpop.f32.mrb[0].mxu0
      %v3011 = vadd.f32 %v2968, %v3010
      %v3012 = vpop.f32.mrb[0].mxu0
      %v3013 = vadd.f32 %v2970, %v3012
      %v3014 = vpop.f32.mrb[0].mxu0
      %v3015 = vadd.f32 %v2972, %v3014
      %v3016 = vpop.f32.mrb[0].mxu0
      %v3017 = vadd.f32 %v2974, %v3016
      %3018 = vdwg.mxu0
      %3019 = vmatprep.subr.bf16.mxu0 %v1916
      %3020 = vmatpush1.bf16.msra.mxu0 %v1915
      %3021 = vmatprep.subr.bf16.mxu0 %v1928
      %3022 = vmatpush1.bf16.msra.mxu0 %v1927
      %3023 = vmatprep.subr.bf16.mxu0 %v1940
      %3024 = vmatpush1.bf16.msra.mxu0 %v1939
      %3025 = vmatprep.subr.bf16.mxu0 %v1952
      %3026 = vmatpush1.bf16.msra.mxu0 %v1951
      %3027 = vmatprep.subr.bf16.mxu0 %v1964
      %3028 = vmatpush1.bf16.msra.mxu0 %v1963
      %3029 = vmatprep.subr.bf16.mxu0 %v1976
      %3030 = vmatpush1.bf16.msra.mxu0 %v1975
      %3031 = vmatprep.subr.bf16.mxu0 %v1988
      %3032 = vmatpush1.bf16.msra.mxu0 %v1987
      %3033 = vmatprep.subr.bf16.mxu0 %v2000
      %3034 = vmatpush1.bf16.msra.mxu0 %v1999
      %3035 = vmatprep.subr.bf16.mxu0 %v2012
      %3036 = vmatpush1.bf16.msra.mxu0 %v2011
      %3037 = vmatprep.subr.bf16.mxu0 %v2024
      %3038 = vmatpush1.bf16.msra.mxu0 %v2023
      %3039 = vmatprep.subr.bf16.mxu0 %v2036
      %3040 = vmatpush1.bf16.msra.mxu0 %v2035
      %3041 = vmatprep.subr.bf16.mxu0 %v2048
      %3042 = vmatpush1.bf16.msra.mxu0 %v2047
      %3043 = vmatprep.subr.bf16.mxu0 %v2060
      %3044 = vmatpush1.bf16.msra.mxu0 %v2059
      %3045 = vmatprep.subr.bf16.mxu0 %v2072
      %3046 = vmatpush1.bf16.msra.mxu0 %v2071
      %3047 = vmatprep.subr.bf16.mxu0 %v2084
      %3048 = vmatpush1.bf16.msra.mxu0 %v2083
      %3049 = vmatprep.subr.bf16.mxu0 %v2096
      %3050 = vmatpush1.bf16.msra.mxu0 %v2095
      %3051 = vmatprep.mubr.bf16.mxu0 %v748
      %3052 = vmatmul.mubr.bf16.gmra.mrb[0].mxu0 %v747
      %v3053 = vpop.f32.mrb[0].mxu0
      %v3054 = vadd.f32 %v710, %v3053
      %v3055 = vpop.f32.mrb[0].mxu0
      %v3056 = vadd.f32 %v714, %v3055
      %v3057 = vpop.f32.mrb[0].mxu0
      %v3058 = vadd.f32 %v710, %v3057
      %v3059 = vpop.f32.mrb[0].mxu0
      %v3060 = vadd.f32 %v714, %v3059
      %3061 = vdwg.mxu0
      %3062 = vmatprep.subr.bf16.mxu0 %v2108
      %3063 = vmatpush1.bf16.msra.mxu0 %v2107
      %3064 = vmatprep.subr.bf16.mxu0 %v2120
      %3065 = vmatpush1.bf16.msra.mxu0 %v2119
      %3066 = vmatprep.subr.bf16.mxu0 %v2132
      %3067 = vmatpush1.bf16.msra.mxu0 %v2131
      %3068 = vmatprep.subr.bf16.mxu0 %v2144
      %3069 = vmatpush1.bf16.msra.mxu0 %v2143
      %3070 = vmatprep.subr.bf16.mxu0 %v2156
      %3071 = vmatpush1.bf16.msra.mxu0 %v2155
      %3072 = vmatprep.subr.bf16.mxu0 %v2168
      %3073 = vmatpush1.bf16.msra.mxu0 %v2167
      %3074 = vmatprep.subr.bf16.mxu0 %v2180
      %3075 = vmatpush1.bf16.msra.mxu0 %v2179
      %3076 = vmatprep.subr.bf16.mxu0 %v2192
      %3077 = vmatpush1.bf16.msra.mxu0 %v2191
      %3078 = vmatprep.subr.bf16.mxu0 %v2204
      %3079 = vmatpush1.bf16.msra.mxu0 %v2203
      %3080 = vmatprep.subr.bf16.mxu0 %v2216
      %3081 = vmatpush1.bf16.msra.mxu0 %v2215
      %3082 = vmatprep.subr.bf16.mxu0 %v2228
      %3083 = vmatpush1.bf16.msra.mxu0 %v2227
      %3084 = vmatprep.subr.bf16.mxu0 %v2240
      %3085 = vmatpush1.bf16.msra.mxu0 %v2239
      %3086 = vmatprep.subr.bf16.mxu0 %v2252
      %3087 = vmatpush1.bf16.msra.mxu0 %v2251
      %3088 = vmatprep.subr.bf16.mxu0 %v2264
      %3089 = vmatpush1.bf16.msra.mxu0 %v2263
      %3090 = vmatprep.subr.bf16.mxu0 %v2276
      %3091 = vmatpush1.bf16.msra.mxu0 %v2275
      %3092 = vmatprep.subr.bf16.mxu0 %v2288
      %3093 = vmatpush1.bf16.msra.mxu0 %v2287
      %3094 = vmatprep.mubr.bf16.mxu0 %v750
      %3095 = vmatmul.mubr.bf16.gmra.mrb[0].mxu0 %v749
      %v3096 = vpop.f32.mrb[0].mxu0
      %v3097 = vadd.f32 %v3054, %v3096
      %v3098 = vpop.f32.mrb[0].mxu0
      %v3099 = vadd.f32 %v3056, %v3098
      %v3100 = vpop.f32.mrb[0].mxu0
      %v3101 = vadd.f32 %v3058, %v3100
      %v3102 = vpop.f32.mrb[0].mxu0
      %v3103 = vadd.f32 %v3060, %v3102
      %3104 = vdwg.mxu0
      %3105 = vmatprep.subr.bf16.mxu0 %v1918
      %3106 = vmatpush1.bf16.msra.mxu0 %v1917
      %3107 = vmatprep.subr.bf16.mxu0 %v1930
      %3108 = vmatpush1.bf16.msra.mxu0 %v1929
      %3109 = vmatprep.subr.bf16.mxu0 %v1942
      %3110 = vmatpush1.bf16.msra.mxu0 %v1941
      %3111 = vmatprep.subr.bf16.mxu0 %v1954
      %3112 = vmatpush1.bf16.msra.mxu0 %v1953
      %3113 = vmatprep.subr.bf16.mxu0 %v1966
      %3114 = vmatpush1.bf16.msra.mxu0 %v1965
      %3115 = vmatprep.subr.bf16.mxu0 %v1978
      %3116 = vmatpush1.bf16.msra.mxu0 %v1977
      %3117 = vmatprep.subr.bf16.mxu0 %v1990
      %3118 = vmatpush1.bf16.msra.mxu0 %v1989
      %3119 = vmatprep.subr.bf16.mxu0 %v2002
      %3120 = vmatpush1.bf16.msra.mxu0 %v2001
      %3121 = vmatprep.subr.bf16.mxu0 %v2014
      %3122 = vmatpush1.bf16.msra.mxu0 %v2013
      %3123 = vmatprep.subr.bf16.mxu0 %v2026
      %3124 = vmatpush1.bf16.msra.mxu0 %v2025
      %3125 = vmatprep.subr.bf16.mxu0 %v2038
      %3126 = vmatpush1.bf16.msra.mxu0 %v2037
      %3127 = vmatprep.subr.bf16.mxu0 %v2050
      %3128 = vmatpush1.bf16.msra.mxu0 %v2049
      %3129 = vmatprep.subr.bf16.mxu0 %v2062
      %3130 = vmatpush1.bf16.msra.mxu0 %v2061
      %3131 = vmatprep.subr.bf16.mxu0 %v2074
      %3132 = vmatpush1.bf16.msra.mxu0 %v2073
      %3133 = vmatprep.subr.bf16.mxu0 %v2086
      %3134 = vmatpush1.bf16.msra.mxu0 %v2085
      %3135 = vmatprep.subr.bf16.mxu0 %v2098
      %3136 = vmatpush1.bf16.msra.mxu0 %v2097
      %3137 = vmatprep.mubr.bf16.mxu0 %v748
      %3138 = vmatmul.mubr.bf16.gmra.mrb[0].mxu0 %v747
      %v3139 = vpop.f32.mrb[0].mxu0
      %v3140 = vadd.f32 %v718, %v3139
      %v3141 = vpop.f32.mrb[0].mxu0
      %v3142 = vadd.f32 %v722, %v3141
      %v3143 = vpop.f32.mrb[0].mxu0
      %v3144 = vadd.f32 %v718, %v3143
      %v3145 = vpop.f32.mrb[0].mxu0
      %v3146 = vadd.f32 %v722, %v3145
      %3147 = vdwg.mxu0
      %3148 = vmatprep.subr.bf16.mxu0 %v2110
      %3149 = vmatpush1.bf16.msra.mxu0 %v2109
      %3150 = vmatprep.subr.bf16.mxu0 %v2122
      %3151 = vmatpush1.bf16.msra.mxu0 %v2121
      %3152 = vmatprep.subr.bf16.mxu0 %v2134
      %3153 = vmatpush1.bf16.msra.mxu0 %v2133
      %3154 = vmatprep.subr.bf16.mxu0 %v2146
      %3155 = vmatpush1.bf16.msra.mxu0 %v2145
      %3156 = vmatprep.subr.bf16.mxu0 %v2158
      %3157 = vmatpush1.bf16.msra.mxu0 %v2157
      %3158 = vmatprep.subr.bf16.mxu0 %v2170
      %3159 = vmatpush1.bf16.msra.mxu0 %v2169
      %3160 = vmatprep.subr.bf16.mxu0 %v2182
      %3161 = vmatpush1.bf16.msra.mxu0 %v2181
      %3162 = vmatprep.subr.bf16.mxu0 %v2194
      %3163 = vmatpush1.bf16.msra.mxu0 %v2193
      %3164 = vmatprep.subr.bf16.mxu0 %v2206
      %3165 = vmatpush1.bf16.msra.mxu0 %v2205
      %3166 = vmatprep.subr.bf16.mxu0 %v2218
      %3167 = vmatpush1.bf16.msra.mxu0 %v2217
      %3168 = vmatprep.subr.bf16.mxu0 %v2230
      %3169 = vmatpush1.bf16.msra.mxu0 %v2229
      %3170 = vmatprep.subr.bf16.mxu0 %v2242
      %3171 = vmatpush1.bf16.msra.mxu0 %v2241
      %3172 = vmatprep.subr.bf16.mxu0 %v2254
      %3173 = vmatpush1.bf16.msra.mxu0 %v2253
      %3174 = vmatprep.subr.bf16.mxu0 %v2266
      %3175 = vmatpush1.bf16.msra.mxu0 %v2265
      %3176 = vmatprep.subr.bf16.mxu0 %v2278
      %3177 = vmatpush1.bf16.msra.mxu0 %v2277
      %3178 = vmatprep.subr.bf16.mxu0 %v2290
      %3179 = vmatpush1.bf16.msra.mxu0 %v2289
      %3180 = vmatprep.mubr.bf16.mxu0 %v750
      %3181 = vmatmul.mubr.bf16.gmra.mrb[0].mxu0 %v749
      %v3182 = vpop.f32.mrb[0].mxu0
      %v3183 = vadd.f32 %v3140, %v3182
      %v3184 = vpop.f32.mrb[0].mxu0
      %v3185 = vadd.f32 %v3142, %v3184
      %v3186 = vpop.f32.mrb[0].mxu0
      %v3187 = vadd.f32 %v3144, %v3186
      %v3188 = vpop.f32.mrb[0].mxu0
      %v3189 = vadd.f32 %v3146, %v3188
      %3190 = vdwg.mxu0
      %v3191 = vlaneseq
      %v3192 = vand.u32 %v3191, 127
      %vm3193 = vcmp.lt.s32.totalorder %v3192, 9
      %v3194 = vpack.c.bf16 %v2757, %v2753
      %v3195 = vpack.c.bf16 %v2929, %v2925
      %v3196 = vpack.c.bf16 %v3101, %v3097
      %3197 = vmatprep.subr.bf16.mxu0 0
      %3198 = vmatpush1.bf16.xpose.msra.mxu0 %v3195
      %3199 = vmatprep.subr.bf16.mxu0 0
      %3200 = vmatpush1.bf16.xpose.msra.mxu0 0
      %3201 = vmatprep.subr.bf16.mxu0 0
      %3202 = vmatpush1.bf16.xpose.msra.mxu0 0
      %3203 = vmatprep.subr.bf16.mxu0 0
      %3204 = vmatpush1.bf16.xpose.msra.mxu0 0
      %3205 = vmatprep.subr.bf16.mxu0 0
      %3206 = vmatpush1.bf16.xpose.msra.mxu0 0
      %3207 = vmatprep.subr.bf16.mxu0 0
      %3208 = vmatpush1.bf16.xpose.msra.mxu0 0
      %3209 = vmatprep.subr.bf16.mxu0 0
      %3210 = vmatpush1.bf16.xpose.msra.mxu0 0
      %3211 = vmatprep.subr.bf16.mxu0 0
      %3212 = vmatpush1.bf16.xpose.msra.mxu0 0
      %3213 = vmatprep.subr.bf16.mxu0 0
      %3214 = vmatpush1.bf16.xpose.msra.mxu0 0
      %3215 = vmatprep.subr.bf16.mxu0 0
      %3216 = vmatpush1.bf16.xpose.msra.mxu0 0
      %3217 = vmatprep.subr.bf16.mxu0 0
      %3218 = vmatpush1.bf16.xpose.msra.mxu0 0
      %3219 = vmatprep.subr.bf16.mxu0 0
      %3220 = vmatpush1.bf16.xpose.msra.mxu0 0
      %3221 = vmatprep.subr.bf16.mxu0 0
      %3222 = vmatpush1.bf16.xpose.msra.mxu0 0
      %3223 = vmatprep.subr.bf16.mxu0 0
      %3224 = vmatpush1.bf16.xpose.msra.mxu0 0
      %3225 = vmatprep.subr.bf16.mxu0 0
      %3226 = vmatpush1.bf16.xpose.msra.mxu0 0
      %3227 = vmatprep.subr.bf16.mxu0 0
      %3228 = vmatpush1.bf16.xpose.msra.mxu0 0
      %3229 = vmatprep.mubr.bf16.mxu0 0
      %3230 = vmatmul.mubr.bf16.gmra.mrb[0].mxu0 %v3194
      %v3231 = vpop.f32.mrb[0].mxu0
      %v3232 = vadd.f32 0.0, %v3231
      %v3233 = vpop.f32.mrb[0].mxu0
      %v3234 = vpop.f32.mrb[0].mxu0
      %v3235 = vadd.f32 0.0, %v3234
      %v3236 = vpop.f32.mrb[0].mxu0
      %3237 = vdwg.mxu0
      %v3238 = vmul.f32 %v3232, 0.125
      %v3239 = vmul.f32 %v3235, 0.125
      %v3240 = vsel %vm3193, %v3238, -1e+30
      %v3241 = vsel %vm3193, %v3239, -1e+30
      %vm3242 = vcmask 130048
      %v3243 = vsel %vm3242, %v3240, -inf
      %3244 = vmax.xlane.f32.xlu0 %v3243
      %v3245 = vpop.xlane.xlu0 %3244
      %v3246 = vsel %vm3242, %v3241, -inf
      %3247 = vmax.xlane.f32.xlu0 %v3246
      %v3248 = vpop.xlane.xlu0 %3247
      %v3249 = vsub.f32 %v3240, %v3245
      %v3250 = vsub.f32 %v3241, %v3248
      %v3251 = vmul.f32 %v3249, 1.442695
      %v3252 = vpow.pop %v3251
      %v3253 = vmul.f32 %v3250, 1.442695
      %v3254 = vpow.pop %v3253
      %v3255 = vsel %vm3242, %v3252, 0.0
      %3256 = vadd.xlane.f32.xlu0 %v3255
      %v3257 = vpop.xlane.xlu0 %3256
      %v3258 = vsel %vm3242, %v3254, 0.0
      %3259 = vadd.xlane.f32.xlu0 %v3258
      %v3260 = vpop.xlane.xlu0 %3259
      %v3261 = vrcp.pop %v3257
      %v3262 = vmul.f32 %v3252, %v3261
      %v3263 = vrcp.pop %v3260
      %v3264 = vmul.f32 %v3254, %v3263
      %v3265 = vpack.c.bf16 %v3264, %v3262
      %v3267 = vsel %vm3242, %v3265, 0
      %3269 = vmatprep.subr.bf16.mxu0 0
      %3270 = vmatpush1.bf16.msra.mxu0 %v3196
      %3271 = vmatprep.subr.bf16.mxu0 0
      %3272 = vmatpush1.bf16.msra.mxu0 0
      %3273 = vmatprep.subr.bf16.mxu0 0
      %3274 = vmatpush1.bf16.msra.mxu0 0
      %3275 = vmatprep.subr.bf16.mxu0 0
      %3276 = vmatpush1.bf16.msra.mxu0 0
      %3277 = vmatprep.subr.bf16.mxu0 0
      %3278 = vmatpush1.bf16.msra.mxu0 0
      %3279 = vmatprep.subr.bf16.mxu0 0
      %3280 = vmatpush1.bf16.msra.mxu0 0
      %3281 = vmatprep.subr.bf16.mxu0 0
      %3282 = vmatpush1.bf16.msra.mxu0 0
      %3283 = vmatprep.subr.bf16.mxu0 0
      %3284 = vmatpush1.bf16.msra.mxu0 0
      %3285 = vmatprep.subr.bf16.mxu0 0
      %3286 = vmatpush1.bf16.msra.mxu0 0
      %3287 = vmatprep.subr.bf16.mxu0 0
      %3288 = vmatpush1.bf16.msra.mxu0 0
      %3289 = vmatprep.subr.bf16.mxu0 0
      %3290 = vmatpush1.bf16.msra.mxu0 0
      %3291 = vmatprep.subr.bf16.mxu0 0
      %3292 = vmatpush1.bf16.msra.mxu0 0
      %3293 = vmatprep.subr.bf16.mxu0 0
      %3294 = vmatpush1.bf16.msra.mxu0 0
      %3295 = vmatprep.subr.bf16.mxu0 0
      %3296 = vmatpush1.bf16.msra.mxu0 0
      %3297 = vmatprep.subr.bf16.mxu0 0
      %3298 = vmatpush1.bf16.msra.mxu0 0
      %3299 = vmatprep.subr.bf16.mxu0 0
      %3300 = vmatpush1.bf16.msra.mxu0 0
      %3301 = vmatprep.mubr.bf16.mxu0 0
      %3302 = vmatmul.mubr.bf16.gmra.mrb[0].mxu0 %v3267
      %v3303 = vpop.f32.mrb[0].mxu0
      %v3304 = vadd.f32 0.0, %v3303
      %v3305 = vpop.f32.mrb[0].mxu0
      %v3306 = vpop.f32.mrb[0].mxu0
      %v3307 = vadd.f32 0.0, %v3306
      %v3308 = vpop.f32.mrb[0].mxu0
      %3309 = vdwg.mxu0
      %v3310 = vpack.c.bf16 %v3307, %v3304
      %3311 = vst [vmem:[#allocation2] sm:$0xff] %v3310
      %v3312 = vpack.c.bf16 %v2759, %v2755
      %v3313 = vpack.c.bf16 %v2931, %v2927
      %v3314 = vpack.c.bf16 %v3103, %v3099
      %3315 = vmatprep.subr.bf16.mxu0 0
      %3316 = vmatpush1.bf16.xpose.msra.mxu0 %v3313
      %3317 = vmatprep.subr.bf16.mxu0 0
      %3318 = vmatpush1.bf16.xpose.msra.mxu0 0
      %3319 = vmatprep.subr.bf16.mxu0 0
      %3320 = vmatpush1.bf16.xpose.msra.mxu0 0
      %3321 = vmatprep.subr.bf16.mxu0 0
      %3322 = vmatpush1.bf16.xpose.msra.mxu0 0
      %3323 = vmatprep.subr.bf16.mxu0 0
      %3324 = vmatpush1.bf16.xpose.msra.mxu0 0
      %3325 = vmatprep.subr.bf16.mxu0 0
      %3326 = vmatpush1.bf16.xpose.msra.mxu0 0
      %3327 = vmatprep.subr.bf16.mxu0 0
      %3328 = vmatpush1.bf16.xpose.msra.mxu0 0
      %3329 = vmatprep.subr.bf16.mxu0 0
      %3330 = vmatpush1.bf16.xpose.msra.mxu0 0
      %3331 = vmatprep.subr.bf16.mxu0 0
      %3332 = vmatpush1.bf16.xpose.msra.mxu0 0
      %3333 = vmatprep.subr.bf16.mxu0 0
      %3334 = vmatpush1.bf16.xpose.msra.mxu0 0
      %3335 = vmatprep.subr.bf16.mxu0 0
      %3336 = vmatpush1.bf16.xpose.msra.mxu0 0
      %3337 = vmatprep.subr.bf16.mxu0 0
      %3338 = vmatpush1.bf16.xpose.msra.mxu0 0
      %3339 = vmatprep.subr.bf16.mxu0 0
      %3340 = vmatpush1.bf16.xpose.msra.mxu0 0
      %3341 = vmatprep.subr.bf16.mxu0 0
      %3342 = vmatpush1.bf16.xpose.msra.mxu0 0
      %3343 = vmatprep.subr.bf16.mxu0 0
      %3344 = vmatpush1.bf16.xpose.msra.mxu0 0
      %3345 = vmatprep.subr.bf16.mxu0 0
      %3346 = vmatpush1.bf16.xpose.msra.mxu0 0
      %3347 = vmatprep.mubr.bf16.mxu0 0
      %3348 = vmatmul.mubr.bf16.gmra.mrb[0].mxu0 %v3312
      %v3349 = vpop.f32.mrb[0].mxu0
      %v3350 = vadd.f32 0.0, %v3349
      %v3351 = vpop.f32.mrb[0].mxu0
      %v3352 = vpop.f32.mrb[0].mxu0
      %v3353 = vadd.f32 0.0, %v3352
      %v3354 = vpop.f32.mrb[0].mxu0
      %3355 = vdwg.mxu0
      %v3356 = vmul.f32 %v3350, 0.125
      %v3357 = vmul.f32 %v3353, 0.125
      %v3358 = vsel %vm3193, %v3356, -1e+30
      %v3359 = vsel %vm3193, %v3357, -1e+30
      %v3360 = vsel %vm3242, %v3358, -inf
      %3361 = vmax.xlane.f32.xlu0 %v3360
      %v3362 = vpop.xlane.xlu0 %3361
      %v3363 = vsel %vm3242, %v3359, -inf
      %3364 = vmax.xlane.f32.xlu0 %v3363
      %v3365 = vpop.xlane.xlu0 %3364
      %v3366 = vsub.f32 %v3358, %v3362
      %v3367 = vsub.f32 %v3359, %v3365
      %v3368 = vmul.f32 %v3366, 1.442695
      %v3369 = vpow.pop %v3368
      %v3370 = vmul.f32 %v3367, 1.442695
      %v3371 = vpow.pop %v3370
      %v3372 = vsel %vm3242, %v3369, 0.0
      %3373 = vadd.xlane.f32.xlu0 %v3372
      %v3374 = vpop.xlane.xlu0 %3373
      %v3375 = vsel %vm3242, %v3371, 0.0
      %3376 = vadd.xlane.f32.xlu0 %v3375
      %v3377 = vpop.xlane.xlu0 %3376
      %v3378 = vrcp.pop %v3374
      %v3379 = vmul.f32 %v3369, %v3378
      %v3380 = vrcp.pop %v3377
      %v3381 = vmul.f32 %v3371, %v3380
      %v3382 = vpack.c.bf16 %v3381, %v3379
      %v3384 = vsel %vm3242, %v3382, 0
      %3386 = vmatprep.subr.bf16.mxu0 0
      %3387 = vmatpush1.bf16.msra.mxu0 %v3314
      %3388 = vmatprep.subr.bf16.mxu0 0
      %3389 = vmatpush1.bf16.msra.mxu0 0
      %3390 = vmatprep.subr.bf16.mxu0 0
      %3391 = vmatpush1.bf16.msra.mxu0 0
      %3392 = vmatprep.subr.bf16.mxu0 0
      %3393 = vmatpush1.bf16.msra.mxu0 0
      %3394 = vmatprep.subr.bf16.mxu0 0
      %3395 = vmatpush1.bf16.msra.mxu0 0
      %3396 = vmatprep.subr.bf16.mxu0 0
      %3397 = vmatpush1.bf16.msra.mxu0 0
      %3398 = vmatprep.subr.bf16.mxu0 0
      %3399 = vmatpush1.bf16.msra.mxu0 0
      %3400 = vmatprep.subr.bf16.mxu0 0
      %3401 = vmatpush1.bf16.msra.mxu0 0
      %3402 = vmatprep.subr.bf16.mxu0 0
      %3403 = vmatpush1.bf16.msra.mxu0 0
      %3404 = vmatprep.subr.bf16.mxu0 0
      %3405 = vmatpush1.bf16.msra.mxu0 0
      %3406 = vmatprep.subr.bf16.mxu0 0
      %3407 = vmatpush1.bf16.msra.mxu0 0
      %3408 = vmatprep.subr.bf16.mxu0 0
      %3409 = vmatpush1.bf16.msra.mxu0 0
      %3410 = vmatprep.subr.bf16.mxu0 0
      %3411 = vmatpush1.bf16.msra.mxu0 0
      %3412 = vmatprep.subr.bf16.mxu0 0
      %3413 = vmatpush1.bf16.msra.mxu0 0
      %3414 = vmatprep.subr.bf16.mxu0 0
      %3415 = vmatpush1.bf16.msra.mxu0 0
      %3416 = vmatprep.subr.bf16.mxu0 0
      %3417 = vmatpush1.bf16.msra.mxu0 0
      %3418 = vmatprep.mubr.bf16.mxu0 0
      %3419 = vmatmul.mubr.bf16.gmra.mrb[0].mxu0 %v3384
      %v3420 = vpop.f32.mrb[0].mxu0
      %v3421 = vadd.f32 0.0, %v3420
      %v3422 = vpop.f32.mrb[0].mxu0
      %v3423 = vpop.f32.mrb[0].mxu0
      %v3424 = vadd.f32 0.0, %v3423
      %v3425 = vpop.f32.mrb[0].mxu0
      %3426 = vdwg.mxu0
      %v3427 = vpack.c.bf16 %v3424, %v3421
      %3428 = vst [vmem:[#allocation2 + $0x8] sm:$0xff] %v3427
      %v3429 = vpack.c.bf16 %v2843, %v2839
      %v3430 = vpack.c.bf16 %v3015, %v3011
      %v3431 = vpack.c.bf16 %v3187, %v3183
      %3432 = vmatprep.subr.bf16.mxu0 0
      %3433 = vmatpush1.bf16.xpose.msra.mxu0 %v3430
      %3434 = vmatprep.subr.bf16.mxu0 0
      %3435 = vmatpush1.bf16.xpose.msra.mxu0 0
      %3436 = vmatprep.subr.bf16.mxu0 0
      %3437 = vmatpush1.bf16.xpose.msra.mxu0 0
      %3438 = vmatprep.subr.bf16.mxu0 0
      %3439 = vmatpush1.bf16.xpose.msra.mxu0 0
      %3440 = vmatprep.subr.bf16.mxu0 0
      %3441 = vmatpush1.bf16.xpose.msra.mxu0 0
      %3442 = vmatprep.subr.bf16.mxu0 0
      %3443 = vmatpush1.bf16.xpose.msra.mxu0 0
      %3444 = vmatprep.subr.bf16.mxu0 0
      %3445 = vmatpush1.bf16.xpose.msra.mxu0 0
      %3446 = vmatprep.subr.bf16.mxu0 0
      %3447 = vmatpush1.bf16.xpose.msra.mxu0 0
      %3448 = vmatprep.subr.bf16.mxu0 0
      %3449 = vmatpush1.bf16.xpose.msra.mxu0 0
      %3450 = vmatprep.subr.bf16.mxu0 0
      %3451 = vmatpush1.bf16.xpose.msra.mxu0 0
      %3452 = vmatprep.subr.bf16.mxu0 0
      %3453 = vmatpush1.bf16.xpose.msra.mxu0 0
      %3454 = vmatprep.subr.bf16.mxu0 0
      %3455 = vmatpush1.bf16.xpose.msra.mxu0 0
      %3456 = vmatprep.subr.bf16.mxu0 0
      %3457 = vmatpush1.bf16.xpose.msra.mxu0 0
      %3458 = vmatprep.subr.bf16.mxu0 0
      %3459 = vmatpush1.bf16.xpose.msra.mxu0 0
      %3460 = vmatprep.subr.bf16.mxu0 0
      %3461 = vmatpush1.bf16.xpose.msra.mxu0 0
      %3462 = vmatprep.subr.bf16.mxu0 0
      %3463 = vmatpush1.bf16.xpose.msra.mxu0 0
      %3464 = vmatprep.mubr.bf16.mxu0 0
      %3465 = vmatmul.mubr.bf16.gmra.mrb[0].mxu0 %v3429
      %v3466 = vpop.f32.mrb[0].mxu0
      %v3467 = vadd.f32 0.0, %v3466
      %v3468 = vpop.f32.mrb[0].mxu0
      %v3469 = vpop.f32.mrb[0].mxu0
      %v3470 = vadd.f32 0.0, %v3469
      %v3471 = vpop.f32.mrb[0].mxu0
      %3472 = vdwg.mxu0
      %v3473 = vmul.f32 %v3467, 0.125
      %v3474 = vmul.f32 %v3470, 0.125
      %v3475 = vsel %vm3193, %v3473, -1e+30
      %v3476 = vsel %vm3193, %v3474, -1e+30
      %v3477 = vsel %vm3242, %v3475, -inf
      %3478 = vmax.xlane.f32.xlu0 %v3477
      %v3479 = vpop.xlane.xlu0 %3478
      %v3480 = vsel %vm3242, %v3476, -inf
      %3481 = vmax.xlane.f32.xlu0 %v3480
      %v3482 = vpop.xlane.xlu0 %3481
      %v3483 = vsub.f32 %v3475, %v3479
      %v3484 = vsub.f32 %v3476, %v3482
      %v3485 = vmul.f32 %v3483, 1.442695
      %v3486 = vpow.pop %v3485
      %v3487 = vmul.f32 %v3484, 1.442695
      %v3488 = vpow.pop %v3487
      %v3489 = vsel %vm3242, %v3486, 0.0
      %3490 = vadd.xlane.f32.xlu0 %v3489
      %v3491 = vpop.xlane.xlu0 %3490
      %v3492 = vsel %vm3242, %v3488, 0.0
      %3493 = vadd.xlane.f32.xlu0 %v3492
      %v3494 = vpop.xlane.xlu0 %3493
      %v3495 = vrcp.pop %v3491
      %v3496 = vmul.f32 %v3486, %v3495
      %v3497 = vrcp.pop %v3494
      %v3498 = vmul.f32 %v3488, %v3497
      %v3499 = vpack.c.bf16 %v3498, %v3496
      %v3501 = vsel %vm3242, %v3499, 0
      %3503 = vmatprep.subr.bf16.mxu0 0
      %3504 = vmatpush1.bf16.msra.mxu0 %v3431
      %3505 = vmatprep.subr.bf16.mxu0 0
      %3506 = vmatpush1.bf16.msra.mxu0 0
      %3507 = vmatprep.subr.bf16.mxu0 0
      %3508 = vmatpush1.bf16.msra.mxu0 0
      %3509 = vmatprep.subr.bf16.mxu0 0
      %3510 = vmatpush1.bf16.msra.mxu0 0
      %3511 = vmatprep.subr.bf16.mxu0 0
      %3512 = vmatpush1.bf16.msra.mxu0 0
      %3513 = vmatprep.subr.bf16.mxu0 0
      %3514 = vmatpush1.bf16.msra.mxu0 0
      %3515 = vmatprep.subr.bf16.mxu0 0
      %3516 = vmatpush1.bf16.msra.mxu0 0
      %3517 = vmatprep.subr.bf16.mxu0 0
      %3518 = vmatpush1.bf16.msra.mxu0 0
      %3519 = vmatprep.subr.bf16.mxu0 0
      %3520 = vmatpush1.bf16.msra.mxu0 0
      %3521 = vmatprep.subr.bf16.mxu0 0
      %3522 = vmatpush1.bf16.msra.mxu0 0
      %3523 = vmatprep.subr.bf16.mxu0 0
      %3524 = vmatpush1.bf16.msra.mxu0 0
      %3525 = vmatprep.subr.bf16.mxu0 0
      %3526 = vmatpush1.bf16.msra.mxu0 0
      %3527 = vmatprep.subr.bf16.mxu0 0
      %3528 = vmatpush1.bf16.msra.mxu0 0
      %3529 = vmatprep.subr.bf16.mxu0 0
      %3530 = vmatpush1.bf16.msra.mxu0 0
      %3531 = vmatprep.subr.bf16.mxu0 0
      %3532 = vmatpush1.bf16.msra.mxu0 0
      %3533 = vmatprep.subr.bf16.mxu0 0
      %3534 = vmatpush1.bf16.msra.mxu0 0
      %3535 = vmatprep.mubr.bf16.mxu0 0
      %3536 = vmatmul.mubr.bf16.gmra.mrb[0].mxu0 %v3501
      %v3537 = vpop.f32.mrb[0].mxu0
      %v3538 = vadd.f32 0.0, %v3537
      %v3539 = vpop.f32.mrb[0].mxu0
      %v3540 = vpop.f32.mrb[0].mxu0
      %v3541 = vadd.f32 0.0, %v3540
      %v3542 = vpop.f32.mrb[0].mxu0
      %3543 = vdwg.mxu0
      %v3544 = vpack.c.bf16 %v3541, %v3538
      %3545 = vst [vmem:[#allocation2 + $0x10] sm:$0xff] %v3544
      %v3546 = vpack.c.bf16 %v2845, %v2841
      %v3547 = vpack.c.bf16 %v3017, %v3013
      %v3548 = vpack.c.bf16 %v3189, %v3185
      %3549 = vmatprep.subr.bf16.mxu0 0
      %3550 = vmatpush1.bf16.xpose.msra.mxu0 %v3547
      %3551 = vmatprep.subr.bf16.mxu0 0
      %3552 = vmatpush1.bf16.xpose.msra.mxu0 0
      %3553 = vmatprep.subr.bf16.mxu0 0
      %3554 = vmatpush1.bf16.xpose.msra.mxu0 0
      %3555 = vmatprep.subr.bf16.mxu0 0
      %3556 = vmatpush1.bf16.xpose.msra.mxu0 0
      %3557 = vmatprep.subr.bf16.mxu0 0
      %3558 = vmatpush1.bf16.xpose.msra.mxu0 0
      %3559 = vmatprep.subr.bf16.mxu0 0
      %3560 = vmatpush1.bf16.xpose.msra.mxu0 0
      %3561 = vmatprep.subr.bf16.mxu0 0
      %3562 = vmatpush1.bf16.xpose.msra.mxu0 0
      %3563 = vmatprep.subr.bf16.mxu0 0
      %3564 = vmatpush1.bf16.xpose.msra.mxu0 0
      %3565 = vmatprep.subr.bf16.mxu0 0
      %3566 = vmatpush1.bf16.xpose.msra.mxu0 0
      %3567 = vmatprep.subr.bf16.mxu0 0
      %3568 = vmatpush1.bf16.xpose.msra.mxu0 0
      %3569 = vmatprep.subr.bf16.mxu0 0
      %3570 = vmatpush1.bf16.xpose.msra.mxu0 0
      %3571 = vmatprep.subr.bf16.mxu0 0
      %3572 = vmatpush1.bf16.xpose.msra.mxu0 0
      %3573 = vmatprep.subr.bf16.mxu0 0
      %3574 = vmatpush1.bf16.xpose.msra.mxu0 0
      %3575 = vmatprep.subr.bf16.mxu0 0
      %3576 = vmatpush1.bf16.xpose.msra.mxu0 0
      %3577 = vmatprep.subr.bf16.mxu0 0
      %3578 = vmatpush1.bf16.xpose.msra.mxu0 0
      %3579 = vmatprep.subr.bf16.mxu0 0
      %3580 = vmatpush1.bf16.xpose.msra.mxu0 0
      %3581 = vmatprep.mubr.bf16.mxu0 0
      %3582 = vmatmul.mubr.bf16.gmra.mrb[0].mxu0 %v3546
      %v3583 = vpop.f32.mrb[0].mxu0
      %v3584 = vadd.f32 0.0, %v3583
      %v3585 = vpop.f32.mrb[0].mxu0
      %v3586 = vpop.f32.mrb[0].mxu0
      %v3587 = vadd.f32 0.0, %v3586
      %v3588 = vpop.f32.mrb[0].mxu0
      %3589 = vdwg.mxu0
      %v3590 = vmul.f32 %v3584, 0.125
      %v3591 = vmul.f32 %v3587, 0.125
      %v3592 = vsel %vm3193, %v3590, -1e+30
      %v3593 = vsel %vm3193, %v3591, -1e+30
      %v3594 = vsel %vm3242, %v3592, -inf
      %3595 = vmax.xlane.f32.xlu0 %v3594
      %v3596 = vpop.xlane.xlu0 %3595
      %v3597 = vsel %vm3242, %v3593, -inf
      %3598 = vmax.xlane.f32.xlu0 %v3597
      %v3599 = vpop.xlane.xlu0 %3598
      %v3600 = vsub.f32 %v3592, %v3596
      %v3601 = vsub.f32 %v3593, %v3599
      %v3602 = vmul.f32 %v3600, 1.442695
      %v3603 = vpow.pop %v3602
      %v3604 = vmul.f32 %v3601, 1.442695
      %v3605 = vpow.pop %v3604
      %v3606 = vsel %vm3242, %v3603, 0.0
      %3607 = vadd.xlane.f32.xlu0 %v3606
      %v3608 = vpop.xlane.xlu0 %3607
      %v3609 = vsel %vm3242, %v3605, 0.0
      %3610 = vadd.xlane.f32.xlu0 %v3609
      %v3611 = vpop.xlane.xlu0 %3610
      %v3612 = vrcp.pop %v3608
      %v3613 = vmul.f32 %v3603, %v3612
      %v3614 = vrcp.pop %v3611
      %v3615 = vmul.f32 %v3605, %v3614
      %v3616 = vpack.c.bf16 %v3615, %v3613
      %v3618 = vsel %vm3242, %v3616, 0
      %3620 = vmatprep.subr.bf16.mxu0 0
      %3621 = vmatpush1.bf16.msra.mxu0 %v3548
      %3622 = vmatprep.subr.bf16.mxu0 0
      %3623 = vmatpush1.bf16.msra.mxu0 0
      %3624 = vmatprep.subr.bf16.mxu0 0
      %3625 = vmatpush1.bf16.msra.mxu0 0
      %3626 = vmatprep.subr.bf16.mxu0 0
      %3627 = vmatpush1.bf16.msra.mxu0 0
      %3628 = vmatprep.subr.bf16.mxu0 0
      %3629 = vmatpush1.bf16.msra.mxu0 0
      %3630 = vmatprep.subr.bf16.mxu0 0
      %3631 = vmatpush1.bf16.msra.mxu0 0
      %3632 = vmatprep.subr.bf16.mxu0 0
      %3633 = vmatpush1.bf16.msra.mxu0 0
      %3634 = vmatprep.subr.bf16.mxu0 0
      %3635 = vmatpush1.bf16.msra.mxu0 0
      %3636 = vmatprep.subr.bf16.mxu0 0
      %3637 = vmatpush1.bf16.msra.mxu0 0
      %3638 = vmatprep.subr.bf16.mxu0 0
      %3639 = vmatpush1.bf16.msra.mxu0 0
      %3640 = vmatprep.subr.bf16.mxu0 0
      %3641 = vmatpush1.bf16.msra.mxu0 0
      %3642 = vmatprep.subr.bf16.mxu0 0
      %3643 = vmatpush1.bf16.msra.mxu0 0
      %3644 = vmatprep.subr.bf16.mxu0 0
      %3645 = vmatpush1.bf16.msra.mxu0 0
      %3646 = vmatprep.subr.bf16.mxu0 0
      %3647 = vmatpush1.bf16.msra.mxu0 0
      %3648 = vmatprep.subr.bf16.mxu0 0
      %3649 = vmatpush1.bf16.msra.mxu0 0
      %3650 = vmatprep.subr.bf16.mxu0 0
      %3651 = vmatpush1.bf16.msra.mxu0 0
      %3652 = vmatprep.mubr.bf16.mxu0 0
      %3653 = vmatmul.mubr.bf16.gmra.mrb[0].mxu0 %v3618
      %v3654 = vpop.f32.mrb[0].mxu0
      %v3655 = vadd.f32 0.0, %v3654
      %v3656 = vpop.f32.mrb[0].mxu0
      %v3657 = vpop.f32.mrb[0].mxu0
      %v3658 = vadd.f32 0.0, %v3657
      %v3659 = vpop.f32.mrb[0].mxu0
      %3660 = vdwg.mxu0
      %v3661 = vpack.c.bf16 %v3658, %v3655
      %3662 = vst [vmem:[#allocation2 + $0x18] sm:$0xff] %v3661
      %v3663 = vld [vmem:[#allocation2] sm:$0xff]
      %v3664 = vld [vmem:[#allocation2 + $0x8] sm:$0xff]
      %v3665 = vld [vmem:[#allocation2 + $0x10] sm:$0xff]
      %v3666 = vld [vmem:[#allocation2 + $0x18] sm:$0xff]
      %v3667 = vld [vmem:[%s3] sm:$0xff]
      %v3668 = vld [vmem:[%s3 + $0x8] sm:$0xff]
      %v3669 = vld [vmem:[%s3 + $0x10] sm:$0xff]
      %v3670 = vld [vmem:[%s3 + $0x18] sm:$0xff]
      %v3671 = vld [vmem:[%s3 + $0x20] sm:$0xff]
      %v3672 = vld [vmem:[%s3 + $0x28] sm:$0xff]
      %v3673 = vld [vmem:[%s3 + $0x30] sm:$0xff]
      %v3674 = vld [vmem:[%s3 + $0x38] sm:$0xff]
      %v3675 = vld [vmem:[%s3 + $0x40] sm:$0xff]
      %v3676 = vld [vmem:[%s3 + $0x48] sm:$0xff]
      %v3677 = vld [vmem:[%s3 + $0x50] sm:$0xff]
      %v3678 = vld [vmem:[%s3 + $0x58] sm:$0xff]
      %v3679 = vld [vmem:[%s3 + $0x60] sm:$0xff]
      %v3680 = vld [vmem:[%s3 + $0x68] sm:$0xff]
      %v3681 = vld [vmem:[%s3 + $0x70] sm:$0xff]
      %v3682 = vld [vmem:[%s3 + $0x78] sm:$0xff]
      %v3683 = vld [vmem:[%s3 + $0x80] sm:$0xff]
      %v3684 = vld [vmem:[%s3 + $0x88] sm:$0xff]
      %v3685 = vld [vmem:[%s3 + $0x90] sm:$0xff]
      %v3686 = vld [vmem:[%s3 + $0x98] sm:$0xff]
      %v3687 = vld [vmem:[%s3 + $0xa0] sm:$0xff]
      %v3688 = vld [vmem:[%s3 + $0xa8] sm:$0xff]
      %v3689 = vld [vmem:[%s3 + $0xb0] sm:$0xff]
      %v3690 = vld [vmem:[%s3 + $0xb8] sm:$0xff]
      %v3691 = vld [vmem:[%s3 + $0xc0] sm:$0xff]
      %v3692 = vld [vmem:[%s3 + $0xc8] sm:$0xff]
      %v3693 = vld [vmem:[%s3 + $0xd0] sm:$0xff]
      %v3694 = vld [vmem:[%s3 + $0xd8] sm:$0xff]
      %v3695 = vld [vmem:[%s3 + $0xe0] sm:$0xff]
      %v3696 = vld [vmem:[%s3 + $0xe8] sm:$0xff]
      %v3697 = vld [vmem:[%s3 + $0xf0] sm:$0xff]
      %v3698 = vld [vmem:[%s3 + $0xf8] sm:$0xff]
      %v3699 = vld [vmem:[%s3 + $0x100] sm:$0xff]
      %v3700 = vld [vmem:[%s3 + $0x108] sm:$0xff]
      %v3701 = vld [vmem:[%s3 + $0x110] sm:$0xff]
      %v3702 = vld [vmem:[%s3 + $0x118] sm:$0xff]
      %v3703 = vld [vmem:[%s3 + $0x120] sm:$0xff]
      %v3704 = vld [vmem:[%s3 + $0x128] sm:$0xff]
      %v3705 = vld [vmem:[%s3 + $0x130] sm:$0xff]
      %v3706 = vld [vmem:[%s3 + $0x138] sm:$0xff]
      %v3707 = vld [vmem:[%s3 + $0x140] sm:$0xff]
      %v3708 = vld [vmem:[%s3 + $0x148] sm:$0xff]
      %v3709 = vld [vmem:[%s3 + $0x150] sm:$0xff]
      %v3710 = vld [vmem:[%s3 + $0x158] sm:$0xff]
      %v3711 = vld [vmem:[%s3 + $0x160] sm:$0xff]
      %v3712 = vld [vmem:[%s3 + $0x168] sm:$0xff]
      %v3713 = vld [vmem:[%s3 + $0x170] sm:$0xff]
      %v3714 = vld [vmem:[%s3 + $0x178] sm:$0xff]
      %v3715 = vld [vmem:[%s3 + $0x180] sm:$0xff]
      %v3716 = vld [vmem:[%s3 + $0x188] sm:$0xff]
      %v3717 = vld [vmem:[%s3 + $0x190] sm:$0xff]
      %v3718 = vld [vmem:[%s3 + $0x198] sm:$0xff]
      %v3719 = vld [vmem:[%s3 + $0x1a0] sm:$0xff]
      %v3720 = vld [vmem:[%s3 + $0x1a8] sm:$0xff]
      %v3721 = vld [vmem:[%s3 + $0x1b0] sm:$0xff]
      %v3722 = vld [vmem:[%s3 + $0x1b8] sm:$0xff]
      %v3723 = vld [vmem:[%s3 + $0x1c0] sm:$0xff]
      %v3724 = vld [vmem:[%s3 + $0x1c8] sm:$0xff]
      %v3725 = vld [vmem:[%s3 + $0x1d0] sm:$0xff]
      %v3726 = vld [vmem:[%s3 + $0x1d8] sm:$0xff]
      %v3727 = vld [vmem:[%s3 + $0x1e0] sm:$0xff]
      %v3728 = vld [vmem:[%s3 + $0x1e8] sm:$0xff]
      %v3729 = vld [vmem:[%s3 + $0x1f0] sm:$0xff]
      %v3730 = vld [vmem:[%s3 + $0x1f8] sm:$0xff]
      %v3731 = vld [vmem:[%s3 + $0x200] sm:$0xff]
      %v3732 = vld [vmem:[%s3 + $0x208] sm:$0xff]
      %v3733 = vld [vmem:[%s3 + $0x210] sm:$0xff]
      %v3734 = vld [vmem:[%s3 + $0x218] sm:$0xff]
      %v3735 = vld [vmem:[%s3 + $0x220] sm:$0xff]
      %v3736 = vld [vmem:[%s3 + $0x228] sm:$0xff]
      %v3737 = vld [vmem:[%s3 + $0x230] sm:$0xff]
      %v3738 = vld [vmem:[%s3 + $0x238] sm:$0xff]
      %v3739 = vld [vmem:[%s3 + $0x240] sm:$0xff]
      %v3740 = vld [vmem:[%s3 + $0x248] sm:$0xff]
      %v3741 = vld [vmem:[%s3 + $0x250] sm:$0xff]
      %v3742 = vld [vmem:[%s3 + $0x258] sm:$0xff]
      %v3743 = vld [vmem:[%s3 + $0x260] sm:$0xff]
      %v3744 = vld [vmem:[%s3 + $0x268] sm:$0xff]
      %v3745 = vld [vmem:[%s3 + $0x270] sm:$0xff]
      %v3746 = vld [vmem:[%s3 + $0x278] sm:$0xff]
      %v3747 = vld [vmem:[%s3 + $0x280] sm:$0xff]
      %v3748 = vld [vmem:[%s3 + $0x288] sm:$0xff]
      %v3749 = vld [vmem:[%s3 + $0x290] sm:$0xff]
      %v3750 = vld [vmem:[%s3 + $0x298] sm:$0xff]
      %v3751 = vld [vmem:[%s3 + $0x2a0] sm:$0xff]
      %v3752 = vld [vmem:[%s3 + $0x2a8] sm:$0xff]
      %v3753 = vld [vmem:[%s3 + $0x2b0] sm:$0xff]
      %v3754 = vld [vmem:[%s3 + $0x2b8] sm:$0xff]
      %v3755 = vld [vmem:[%s3 + $0x2c0] sm:$0xff]
      %v3756 = vld [vmem:[%s3 + $0x2c8] sm:$0xff]
      %v3757 = vld [vmem:[%s3 + $0x2d0] sm:$0xff]
      %v3758 = vld [vmem:[%s3 + $0x2d8] sm:$0xff]
      %v3759 = vld [vmem:[%s3 + $0x2e0] sm:$0xff]
      %v3760 = vld [vmem:[%s3 + $0x2e8] sm:$0xff]
      %v3761 = vld [vmem:[%s3 + $0x2f0] sm:$0xff]
      %v3762 = vld [vmem:[%s3 + $0x2f8] sm:$0xff]
      %v3763 = vld [vmem:[%s3 + $0x300] sm:$0xff]
      %v3764 = vld [vmem:[%s3 + $0x308] sm:$0xff]
      %v3765 = vld [vmem:[%s3 + $0x310] sm:$0xff]
      %v3766 = vld [vmem:[%s3 + $0x318] sm:$0xff]
      %v3767 = vld [vmem:[%s3 + $0x320] sm:$0xff]
      %v3768 = vld [vmem:[%s3 + $0x328] sm:$0xff]
      %v3769 = vld [vmem:[%s3 + $0x330] sm:$0xff]
      %v3770 = vld [vmem:[%s3 + $0x338] sm:$0xff]
      %v3771 = vld [vmem:[%s3 + $0x340] sm:$0xff]
      %v3772 = vld [vmem:[%s3 + $0x348] sm:$0xff]
      %v3773 = vld [vmem:[%s3 + $0x350] sm:$0xff]
      %v3774 = vld [vmem:[%s3 + $0x358] sm:$0xff]
      %v3775 = vld [vmem:[%s3 + $0x360] sm:$0xff]
      %v3776 = vld [vmem:[%s3 + $0x368] sm:$0xff]
      %v3777 = vld [vmem:[%s3 + $0x370] sm:$0xff]
      %v3778 = vld [vmem:[%s3 + $0x378] sm:$0xff]
      %v3779 = vld [vmem:[%s3 + $0x380] sm:$0xff]
      %v3780 = vld [vmem:[%s3 + $0x388] sm:$0xff]
      %v3781 = vld [vmem:[%s3 + $0x390] sm:$0xff]
      %v3782 = vld [vmem:[%s3 + $0x398] sm:$0xff]
      %v3783 = vld [vmem:[%s3 + $0x3a0] sm:$0xff]
      %v3784 = vld [vmem:[%s3 + $0x3a8] sm:$0xff]
      %v3785 = vld [vmem:[%s3 + $0x3b0] sm:$0xff]
      %v3786 = vld [vmem:[%s3 + $0x3b8] sm:$0xff]
      %v3787 = vld [vmem:[%s3 + $0x3c0] sm:$0xff]
      %v3788 = vld [vmem:[%s3 + $0x3c8] sm:$0xff]
      %v3789 = vld [vmem:[%s3 + $0x3d0] sm:$0xff]
      %v3790 = vld [vmem:[%s3 + $0x3d8] sm:$0xff]
      %v3791 = vld [vmem:[%s3 + $0x3e0] sm:$0xff]
      %v3792 = vld [vmem:[%s3 + $0x3e8] sm:$0xff]
      %v3793 = vld [vmem:[%s3 + $0x3f0] sm:$0xff]
      %v3794 = vld [vmem:[%s3 + $0x3f8] sm:$0xff]
      %v3795 = vld [vmem:[%s4] sm:$0xf]
      %v3797 = vlaneseq
      %v3798 = vshrl.u32 %v3797, 7
      %v3799 = vsub.s32 0, %v3798
      %v3800 = vrot.slane %v3795, %v3799
      %v3801 = vlaneseq
      %v3802 = vshrl.u32 %v3801, 7
      %v3803 = vsub.s32 1, %v3802
      %v3804 = vrot.slane %v3795, %v3803
      %v3805 = vlaneseq
      %v3806 = vshrl.u32 %v3805, 7
      %v3807 = vsub.s32 2, %v3806
      %v3808 = vrot.slane %v3795, %v3807
      %v3809 = vlaneseq
      %v3810 = vshrl.u32 %v3809, 7
      %v3811 = vsub.s32 3, %v3810
      %v3812 = vrot.slane %v3795, %v3811
      %v3945 = vunpack.c.l.b16 %v3667
      %v3946 = vunpack.c.h.b16 %v3667
      %v3947 = vunpack.c.l.b16 %v3668
      %v3948 = vunpack.c.h.b16 %v3668
      %v3949 = vunpack.c.l.b16 %v3669
      %v3950 = vunpack.c.h.b16 %v3669
      %v3951 = vunpack.c.l.b16 %v3670
      %v3952 = vunpack.c.h.b16 %v3670
      %v3953 = vunpack.c.l.b16 %v3671
      %v3954 = vunpack.c.h.b16 %v3671
      %v3955 = vunpack.c.l.b16 %v3672
      %v3956 = vunpack.c.h.b16 %v3672
      %v3957 = vunpack.c.l.b16 %v3673
      %v3958 = vunpack.c.h.b16 %v3673
      %v3959 = vunpack.c.l.b16 %v3674
      %v3960 = vunpack.c.h.b16 %v3674
      %v3961 = vunpack.c.l.b16 %v3675
      %v3962 = vunpack.c.h.b16 %v3675
      %v3963 = vunpack.c.l.b16 %v3676
      %v3964 = vunpack.c.h.b16 %v3676
      %v3965 = vunpack.c.l.b16 %v3677
      %v3966 = vunpack.c.h.b16 %v3677
      %v3967 = vunpack.c.l.b16 %v3678
      %v3968 = vunpack.c.h.b16 %v3678
      %v3969 = vunpack.c.l.b16 %v3679
      %v3970 = vunpack.c.h.b16 %v3679
      %v3971 = vunpack.c.l.b16 %v3680
      %v3972 = vunpack.c.h.b16 %v3680
      %v3973 = vunpack.c.l.b16 %v3681
      %v3974 = vunpack.c.h.b16 %v3681
      %v3975 = vunpack.c.l.b16 %v3682
      %v3976 = vunpack.c.h.b16 %v3682
      %v3977 = vunpack.c.l.b16 %v3683
      %v3978 = vunpack.c.h.b16 %v3683
      %v3979 = vunpack.c.l.b16 %v3684
      %v3980 = vunpack.c.h.b16 %v3684
      %v3981 = vunpack.c.l.b16 %v3685
      %v3982 = vunpack.c.h.b16 %v3685
      %v3983 = vunpack.c.l.b16 %v3686
      %v3984 = vunpack.c.h.b16 %v3686
      %v3985 = vunpack.c.l.b16 %v3687
      %v3986 = vunpack.c.h.b16 %v3687
      %v3987 = vunpack.c.l.b16 %v3688
      %v3988 = vunpack.c.h.b16 %v3688
      %v3989 = vunpack.c.l.b16 %v3689
      %v3990 = vunpack.c.h.b16 %v3689
      %v3991 = vunpack.c.l.b16 %v3690
      %v3992 = vunpack.c.h.b16 %v3690
      %v3993 = vunpack.c.l.b16 %v3691
      %v3994 = vunpack.c.h.b16 %v3691
      %v3995 = vunpack.c.l.b16 %v3692
      %v3996 = vunpack.c.h.b16 %v3692
      %v3997 = vunpack.c.l.b16 %v3693
      %v3998 = vunpack.c.h.b16 %v3693
      %v3999 = vunpack.c.l.b16 %v3694
      %v4000 = vunpack.c.h.b16 %v3694
      %v4001 = vunpack.c.l.b16 %v3695
      %v4002 = vunpack.c.h.b16 %v3695
      %v4003 = vunpack.c.l.b16 %v3696
      %v4004 = vunpack.c.h.b16 %v3696
      %v4005 = vunpack.c.l.b16 %v3697
      %v4006 = vunpack.c.h.b16 %v3697
      %v4007 = vunpack.c.l.b16 %v3698
      %v4008 = vunpack.c.h.b16 %v3698
      %v4009 = vunpack.c.l.b16 %v3699
      %v4010 = vunpack.c.h.b16 %v3699
      %v4011 = vunpack.c.l.b16 %v3700
      %v4012 = vunpack.c.h.b16 %v3700
      %v4013 = vunpack.c.l.b16 %v3701
      %v4014 = vunpack.c.h.b16 %v3701
      %v4015 = vunpack.c.l.b16 %v3702
      %v4016 = vunpack.c.h.b16 %v3702
      %v4017 = vunpack.c.l.b16 %v3703
      %v4018 = vunpack.c.h.b16 %v3703
      %v4019 = vunpack.c.l.b16 %v3704
      %v4020 = vunpack.c.h.b16 %v3704
      %v4021 = vunpack.c.l.b16 %v3705
      %v4022 = vunpack.c.h.b16 %v3705
      %v4023 = vunpack.c.l.b16 %v3706
      %v4024 = vunpack.c.h.b16 %v3706
      %v4025 = vunpack.c.l.b16 %v3707
      %v4026 = vunpack.c.h.b16 %v3707
      %v4027 = vunpack.c.l.b16 %v3708
      %v4028 = vunpack.c.h.b16 %v3708
      %v4029 = vunpack.c.l.b16 %v3709
      %v4030 = vunpack.c.h.b16 %v3709
      %v4031 = vunpack.c.l.b16 %v3710
      %v4032 = vunpack.c.h.b16 %v3710
      %v4033 = vunpack.c.l.b16 %v3711
      %v4034 = vunpack.c.h.b16 %v3711
      %v4035 = vunpack.c.l.b16 %v3712
      %v4036 = vunpack.c.h.b16 %v3712
      %v4037 = vunpack.c.l.b16 %v3713
      %v4038 = vunpack.c.h.b16 %v3713
      %v4039 = vunpack.c.l.b16 %v3714
      %v4040 = vunpack.c.h.b16 %v3714
      %v4041 = vunpack.c.l.b16 %v3715
      %v4042 = vunpack.c.h.b16 %v3715
      %v4043 = vunpack.c.l.b16 %v3716
      %v4044 = vunpack.c.h.b16 %v3716
      %v4045 = vunpack.c.l.b16 %v3717
      %v4046 = vunpack.c.h.b16 %v3717
      %v4047 = vunpack.c.l.b16 %v3718
      %v4048 = vunpack.c.h.b16 %v3718
      %v4049 = vunpack.c.l.b16 %v3719
      %v4050 = vunpack.c.h.b16 %v3719
      %v4051 = vunpack.c.l.b16 %v3720
      %v4052 = vunpack.c.h.b16 %v3720
      %v4053 = vunpack.c.l.b16 %v3721
      %v4054 = vunpack.c.h.b16 %v3721
      %v4055 = vunpack.c.l.b16 %v3722
      %v4056 = vunpack.c.h.b16 %v3722
      %v4057 = vunpack.c.l.b16 %v3723
      %v4058 = vunpack.c.h.b16 %v3723
      %v4059 = vunpack.c.l.b16 %v3724
      %v4060 = vunpack.c.h.b16 %v3724
      %v4061 = vunpack.c.l.b16 %v3725
      %v4062 = vunpack.c.h.b16 %v3725
      %v4063 = vunpack.c.l.b16 %v3726
      %v4064 = vunpack.c.h.b16 %v3726
      %v4065 = vunpack.c.l.b16 %v3727
      %v4066 = vunpack.c.h.b16 %v3727
      %v4067 = vunpack.c.l.b16 %v3728
      %v4068 = vunpack.c.h.b16 %v3728
      %v4069 = vunpack.c.l.b16 %v3729
      %v4070 = vunpack.c.h.b16 %v3729
      %v4071 = vunpack.c.l.b16 %v3730
      %v4072 = vunpack.c.h.b16 %v3730
      %v4073 = vunpack.c.l.b16 %v3731
      %v4074 = vunpack.c.h.b16 %v3731
      %v4075 = vunpack.c.l.b16 %v3732
      %v4076 = vunpack.c.h.b16 %v3732
      %v4077 = vunpack.c.l.b16 %v3733
      %v4078 = vunpack.c.h.b16 %v3733
      %v4079 = vunpack.c.l.b16 %v3734
      %v4080 = vunpack.c.h.b16 %v3734
      %v4081 = vunpack.c.l.b16 %v3735
      %v4082 = vunpack.c.h.b16 %v3735
      %v4083 = vunpack.c.l.b16 %v3736
      %v4084 = vunpack.c.h.b16 %v3736
      %v4085 = vunpack.c.l.b16 %v3737
      %v4086 = vunpack.c.h.b16 %v3737
      %v4087 = vunpack.c.l.b16 %v3738
      %v4088 = vunpack.c.h.b16 %v3738
      %v4089 = vunpack.c.l.b16 %v3739
      %v4090 = vunpack.c.h.b16 %v3739
      %v4091 = vunpack.c.l.b16 %v3740
      %v4092 = vunpack.c.h.b16 %v3740
      %v4093 = vunpack.c.l.b16 %v3741
      %v4094 = vunpack.c.h.b16 %v3741
      %v4095 = vunpack.c.l.b16 %v3742
      %v4096 = vunpack.c.h.b16 %v3742
      %v4097 = vunpack.c.l.b16 %v3743
      %v4098 = vunpack.c.h.b16 %v3743
      %v4099 = vunpack.c.l.b16 %v3744
      %v4100 = vunpack.c.h.b16 %v3744
      %v4101 = vunpack.c.l.b16 %v3745
      %v4102 = vunpack.c.h.b16 %v3745
      %v4103 = vunpack.c.l.b16 %v3746
      %v4104 = vunpack.c.h.b16 %v3746
      %v4105 = vunpack.c.l.b16 %v3747
      %v4106 = vunpack.c.h.b16 %v3747
      %v4107 = vunpack.c.l.b16 %v3748
      %v4108 = vunpack.c.h.b16 %v3748
      %v4109 = vunpack.c.l.b16 %v3749
      %v4110 = vunpack.c.h.b16 %v3749
      %v4111 = vunpack.c.l.b16 %v3750
      %v4112 = vunpack.c.h.b16 %v3750
      %v4113 = vunpack.c.l.b16 %v3751
      %v4114 = vunpack.c.h.b16 %v3751
      %v4115 = vunpack.c.l.b16 %v3752
      %v4116 = vunpack.c.h.b16 %v3752
      %v4117 = vunpack.c.l.b16 %v3753
      %v4118 = vunpack.c.h.b16 %v3753
      %v4119 = vunpack.c.l.b16 %v3754
      %v4120 = vunpack.c.h.b16 %v3754
      %v4121 = vunpack.c.l.b16 %v3755
      %v4122 = vunpack.c.h.b16 %v3755
      %v4123 = vunpack.c.l.b16 %v3756
      %v4124 = vunpack.c.h.b16 %v3756
      %v4125 = vunpack.c.l.b16 %v3757
      %v4126 = vunpack.c.h.b16 %v3757
      %v4127 = vunpack.c.l.b16 %v3758
      %v4128 = vunpack.c.h.b16 %v3758
      %v4129 = vunpack.c.l.b16 %v3759
      %v4130 = vunpack.c.h.b16 %v3759
      %v4131 = vunpack.c.l.b16 %v3760
      %v4132 = vunpack.c.h.b16 %v3760
      %v4133 = vunpack.c.l.b16 %v3761
      %v4134 = vunpack.c.h.b16 %v3761
      %v4135 = vunpack.c.l.b16 %v3762
      %v4136 = vunpack.c.h.b16 %v3762
      %v4137 = vunpack.c.l.b16 %v3763
      %v4138 = vunpack.c.h.b16 %v3763
      %v4139 = vunpack.c.l.b16 %v3764
      %v4140 = vunpack.c.h.b16 %v3764
      %v4141 = vunpack.c.l.b16 %v3765
      %v4142 = vunpack.c.h.b16 %v3765
      %v4143 = vunpack.c.l.b16 %v3766
      %v4144 = vunpack.c.h.b16 %v3766
      %v4145 = vunpack.c.l.b16 %v3767
      %v4146 = vunpack.c.h.b16 %v3767
      %v4147 = vunpack.c.l.b16 %v3768
      %v4148 = vunpack.c.h.b16 %v3768
      %v4149 = vunpack.c.l.b16 %v3769
      %v4150 = vunpack.c.h.b16 %v3769
      %v4151 = vunpack.c.l.b16 %v3770
      %v4152 = vunpack.c.h.b16 %v3770
      %v4153 = vunpack.c.l.b16 %v3771
      %v4154 = vunpack.c.h.b16 %v3771
      %v4155 = vunpack.c.l.b16 %v3772
      %v4156 = vunpack.c.h.b16 %v3772
      %v4157 = vunpack.c.l.b16 %v3773
      %v4158 = vunpack.c.h.b16 %v3773
      %v4159 = vunpack.c.l.b16 %v3774
      %v4160 = vunpack.c.h.b16 %v3774
      %v4161 = vunpack.c.l.b16 %v3775
      %v4162 = vunpack.c.h.b16 %v3775
      %v4163 = vunpack.c.l.b16 %v3776
      %v4164 = vunpack.c.h.b16 %v3776
      %v4165 = vunpack.c.l.b16 %v3777
      %v4166 = vunpack.c.h.b16 %v3777
      %v4167 = vunpack.c.l.b16 %v3778
      %v4168 = vunpack.c.h.b16 %v3778
      %v4169 = vunpack.c.l.b16 %v3779
      %v4170 = vunpack.c.h.b16 %v3779
      %v4171 = vunpack.c.l.b16 %v3780
      %v4172 = vunpack.c.h.b16 %v3780
      %v4173 = vunpack.c.l.b16 %v3781
      %v4174 = vunpack.c.h.b16 %v3781
      %v4175 = vunpack.c.l.b16 %v3782
      %v4176 = vunpack.c.h.b16 %v3782
      %v4177 = vunpack.c.l.b16 %v3783
      %v4178 = vunpack.c.h.b16 %v3783
      %v4179 = vunpack.c.l.b16 %v3784
      %v4180 = vunpack.c.h.b16 %v3784
      %v4181 = vunpack.c.l.b16 %v3785
      %v4182 = vunpack.c.h.b16 %v3785
      %v4183 = vunpack.c.l.b16 %v3786
      %v4184 = vunpack.c.h.b16 %v3786
      %v4185 = vunpack.c.l.b16 %v3787
      %v4186 = vunpack.c.h.b16 %v3787
      %v4187 = vunpack.c.l.b16 %v3788
      %v4188 = vunpack.c.h.b16 %v3788
      %v4189 = vunpack.c.l.b16 %v3789
      %v4190 = vunpack.c.h.b16 %v3789
      %v4191 = vunpack.c.l.b16 %v3790
      %v4192 = vunpack.c.h.b16 %v3790
      %v4193 = vunpack.c.l.b16 %v3791
      %v4194 = vunpack.c.h.b16 %v3791
      %v4195 = vunpack.c.l.b16 %v3792
      %v4196 = vunpack.c.h.b16 %v3792
      %v4197 = vunpack.c.l.b16 %v3793
      %v4198 = vunpack.c.h.b16 %v3793
      %v4199 = vunpack.c.l.b16 %v3794
      %v4200 = vunpack.c.h.b16 %v3794
      %v4201 = vpack.c.b16 %v3949, %v3945
      %v4202 = vpack.c.b16 %v3950, %v3946
      %v4203 = vpack.c.b16 %v3951, %v3947
      %v4204 = vpack.c.b16 %v3952, %v3948
      %v4205 = vpack.c.b16 %v3957, %v3953
      %v4206 = vpack.c.b16 %v3958, %v3954
      %v4207 = vpack.c.b16 %v3959, %v3955
      %v4208 = vpack.c.b16 %v3960, %v3956
      %v4209 = vpack.c.b16 %v3965, %v3961
      %v4210 = vpack.c.b16 %v3966, %v3962
      %v4211 = vpack.c.b16 %v3967, %v3963
      %v4212 = vpack.c.b16 %v3968, %v3964
      %v4213 = vpack.c.b16 %v3973, %v3969
      %v4214 = vpack.c.b16 %v3974, %v3970
      %v4215 = vpack.c.b16 %v3975, %v3971
      %v4216 = vpack.c.b16 %v3976, %v3972
      %v4217 = vpack.c.b16 %v3981, %v3977
      %v4218 = vpack.c.b16 %v3982, %v3978
      %v4219 = vpack.c.b16 %v3983, %v3979
      %v4220 = vpack.c.b16 %v3984, %v3980
      %v4221 = vpack.c.b16 %v3989, %v3985
      %v4222 = vpack.c.b16 %v3990, %v3986
      %v4223 = vpack.c.b16 %v3991, %v3987
      %v4224 = vpack.c.b16 %v3992, %v3988
      %v4225 = vpack.c.b16 %v3997, %v3993
      %v4226 = vpack.c.b16 %v3998, %v3994
      %v4227 = vpack.c.b16 %v3999, %v3995
      %v4228 = vpack.c.b16 %v4000, %v3996
      %v4229 = vpack.c.b16 %v4005, %v4001
      %v4230 = vpack.c.b16 %v4006, %v4002
      %v4231 = vpack.c.b16 %v4007, %v4003
      %v4232 = vpack.c.b16 %v4008, %v4004
      %v4233 = vpack.c.b16 %v4013, %v4009
      %v4234 = vpack.c.b16 %v4014, %v4010
      %v4235 = vpack.c.b16 %v4015, %v4011
      %v4236 = vpack.c.b16 %v4016, %v4012
      %v4237 = vpack.c.b16 %v4021, %v4017
      %v4238 = vpack.c.b16 %v4022, %v4018
      %v4239 = vpack.c.b16 %v4023, %v4019
      %v4240 = vpack.c.b16 %v4024, %v4020
      %v4241 = vpack.c.b16 %v4029, %v4025
      %v4242 = vpack.c.b16 %v4030, %v4026
      %v4243 = vpack.c.b16 %v4031, %v4027
      %v4244 = vpack.c.b16 %v4032, %v4028
      %v4245 = vpack.c.b16 %v4037, %v4033
      %v4246 = vpack.c.b16 %v4038, %v4034
      %v4247 = vpack.c.b16 %v4039, %v4035
      %v4248 = vpack.c.b16 %v4040, %v4036
      %v4249 = vpack.c.b16 %v4045, %v4041
      %v4250 = vpack.c.b16 %v4046, %v4042
      %v4251 = vpack.c.b16 %v4047, %v4043
      %v4252 = vpack.c.b16 %v4048, %v4044
      %v4253 = vpack.c.b16 %v4053, %v4049
      %v4254 = vpack.c.b16 %v4054, %v4050
      %v4255 = vpack.c.b16 %v4055, %v4051
      %v4256 = vpack.c.b16 %v4056, %v4052
      %v4257 = vpack.c.b16 %v4061, %v4057
      %v4258 = vpack.c.b16 %v4062, %v4058
      %v4259 = vpack.c.b16 %v4063, %v4059
      %v4260 = vpack.c.b16 %v4064, %v4060
      %v4261 = vpack.c.b16 %v4069, %v4065
      %v4262 = vpack.c.b16 %v4070, %v4066
      %v4263 = vpack.c.b16 %v4071, %v4067
      %v4264 = vpack.c.b16 %v4072, %v4068
      %v4265 = vpack.c.b16 %v4077, %v4073
      %v4266 = vpack.c.b16 %v4078, %v4074
      %v4267 = vpack.c.b16 %v4079, %v4075
      %v4268 = vpack.c.b16 %v4080, %v4076
      %v4269 = vpack.c.b16 %v4085, %v4081
      %v4270 = vpack.c.b16 %v4086, %v4082
      %v4271 = vpack.c.b16 %v4087, %v4083
      %v4272 = vpack.c.b16 %v4088, %v4084
      %v4273 = vpack.c.b16 %v4093, %v4089
      %v4274 = vpack.c.b16 %v4094, %v4090
      %v4275 = vpack.c.b16 %v4095, %v4091
      %v4276 = vpack.c.b16 %v4096, %v4092
      %v4277 = vpack.c.b16 %v4101, %v4097
      %v4278 = vpack.c.b16 %v4102, %v4098
      %v4279 = vpack.c.b16 %v4103, %v4099
      %v4280 = vpack.c.b16 %v4104, %v4100
      %v4281 = vpack.c.b16 %v4109, %v4105
      %v4282 = vpack.c.b16 %v4110, %v4106
      %v4283 = vpack.c.b16 %v4111, %v4107
      %v4284 = vpack.c.b16 %v4112, %v4108
      %v4285 = vpack.c.b16 %v4117, %v4113
      %v4286 = vpack.c.b16 %v4118, %v4114
      %v4287 = vpack.c.b16 %v4119, %v4115
      %v4288 = vpack.c.b16 %v4120, %v4116
      %v4289 = vpack.c.b16 %v4125, %v4121
      %v4290 = vpack.c.b16 %v4126, %v4122
      %v4291 = vpack.c.b16 %v4127, %v4123
      %v4292 = vpack.c.b16 %v4128, %v4124
      %v4293 = vpack.c.b16 %v4133, %v4129
      %v4294 = vpack.c.b16 %v4134, %v4130
      %v4295 = vpack.c.b16 %v4135, %v4131
      %v4296 = vpack.c.b16 %v4136, %v4132
      %v4297 = vpack.c.b16 %v4141, %v4137
      %v4298 = vpack.c.b16 %v4142, %v4138
      %v4299 = vpack.c.b16 %v4143, %v4139
      %v4300 = vpack.c.b16 %v4144, %v4140
      %v4301 = vpack.c.b16 %v4149, %v4145
      %v4302 = vpack.c.b16 %v4150, %v4146
      %v4303 = vpack.c.b16 %v4151, %v4147
      %v4304 = vpack.c.b16 %v4152, %v4148
      %v4305 = vpack.c.b16 %v4157, %v4153
      %v4306 = vpack.c.b16 %v4158, %v4154
      %v4307 = vpack.c.b16 %v4159, %v4155
      %v4308 = vpack.c.b16 %v4160, %v4156
      %v4309 = vpack.c.b16 %v4165, %v4161
      %v4310 = vpack.c.b16 %v4166, %v4162
      %v4311 = vpack.c.b16 %v4167, %v4163
      %v4312 = vpack.c.b16 %v4168, %v4164
      %v4313 = vpack.c.b16 %v4173, %v4169
      %v4314 = vpack.c.b16 %v4174, %v4170
      %v4315 = vpack.c.b16 %v4175, %v4171
      %v4316 = vpack.c.b16 %v4176, %v4172
      %v4317 = vpack.c.b16 %v4181, %v4177
      %v4318 = vpack.c.b16 %v4182, %v4178
      %v4319 = vpack.c.b16 %v4183, %v4179
      %v4320 = vpack.c.b16 %v4184, %v4180
      %v4321 = vpack.c.b16 %v4189, %v4185
      %v4322 = vpack.c.b16 %v4190, %v4186
      %v4323 = vpack.c.b16 %v4191, %v4187
      %v4324 = vpack.c.b16 %v4192, %v4188
      %v4325 = vpack.c.b16 %v4197, %v4193
      %v4326 = vpack.c.b16 %v4198, %v4194
      %v4327 = vpack.c.b16 %v4199, %v4195
      %v4328 = vpack.c.b16 %v4200, %v4196
      %4457 = vmatprep.subr.bf16.mxu0 %v4202
      %4458 = vmatpush1.bf16.msra.mxu0 %v4201
      %4459 = vmatprep.subr.bf16.mxu0 %v4206
      %4460 = vmatpush1.bf16.msra.mxu0 %v4205
      %4461 = vmatprep.subr.bf16.mxu0 %v4210
      %4462 = vmatpush1.bf16.msra.mxu0 %v4209
      %4463 = vmatprep.subr.bf16.mxu0 %v4214
      %4464 = vmatpush1.bf16.msra.mxu0 %v4213
      %4465 = vmatprep.subr.bf16.mxu0 %v4218
      %4466 = vmatpush1.bf16.msra.mxu0 %v4217
      %4467 = vmatprep.subr.bf16.mxu0 %v4222
      %4468 = vmatpush1.bf16.msra.mxu0 %v4221
      %4469 = vmatprep.subr.bf16.mxu0 %v4226
      %4470 = vmatpush1.bf16.msra.mxu0 %v4225
      %4471 = vmatprep.subr.bf16.mxu0 %v4230
      %4472 = vmatpush1.bf16.msra.mxu0 %v4229
      %4473 = vmatprep.subr.bf16.mxu0 %v4234
      %4474 = vmatpush1.bf16.msra.mxu0 %v4233
      %4475 = vmatprep.subr.bf16.mxu0 %v4238
      %4476 = vmatpush1.bf16.msra.mxu0 %v4237
      %4477 = vmatprep.subr.bf16.mxu0 %v4242
      %4478 = vmatpush1.bf16.msra.mxu0 %v4241
      %4479 = vmatprep.subr.bf16.mxu0 %v4246
      %4480 = vmatpush1.bf16.msra.mxu0 %v4245
      %4481 = vmatprep.subr.bf16.mxu0 %v4250
      %4482 = vmatpush1.bf16.msra.mxu0 %v4249
      %4483 = vmatprep.subr.bf16.mxu0 %v4254
      %4484 = vmatpush1.bf16.msra.mxu0 %v4253
      %4485 = vmatprep.subr.bf16.mxu0 %v4258
      %4486 = vmatpush1.bf16.msra.mxu0 %v4257
      %4487 = vmatprep.subr.bf16.mxu0 %v4262
      %4488 = vmatpush1.bf16.msra.mxu0 %v4261
      %4489 = vmatprep.mubr.bf16.mxu0 %v3664
      %4490 = vmatmul.mubr.bf16.gmra.mrb[0].mxu0 %v3663
      %v4491 = vpop.f32.mrb[0].mxu0
      %v4492 = vadd.f32 %v3800, %v4491
      %v4493 = vpop.f32.mrb[0].mxu0
      %v4494 = vadd.f32 %v3804, %v4493
      %v4495 = vpop.f32.mrb[0].mxu0
      %v4496 = vadd.f32 %v3800, %v4495
      %v4497 = vpop.f32.mrb[0].mxu0
      %v4498 = vadd.f32 %v3804, %v4497
      %4499 = vdwg.mxu0
      %4500 = vmatprep.subr.bf16.mxu0 %v4266
      %4501 = vmatpush1.bf16.msra.mxu0 %v4265
      %4502 = vmatprep.subr.bf16.mxu0 %v4270
      %4503 = vmatpush1.bf16.msra.mxu0 %v4269
      %4504 = vmatprep.subr.bf16.mxu0 %v4274
      %4505 = vmatpush1.bf16.msra.mxu0 %v4273
      %4506 = vmatprep.subr.bf16.mxu0 %v4278
      %4507 = vmatpush1.bf16.msra.mxu0 %v4277
      %4508 = vmatprep.subr.bf16.mxu0 %v4282
      %4509 = vmatpush1.bf16.msra.mxu0 %v4281
      %4510 = vmatprep.subr.bf16.mxu0 %v4286
      %4511 = vmatpush1.bf16.msra.mxu0 %v4285
      %4512 = vmatprep.subr.bf16.mxu0 %v4290
      %4513 = vmatpush1.bf16.msra.mxu0 %v4289
      %4514 = vmatprep.subr.bf16.mxu0 %v4294
      %4515 = vmatpush1.bf16.msra.mxu0 %v4293
      %4516 = vmatprep.subr.bf16.mxu0 %v4298
      %4517 = vmatpush1.bf16.msra.mxu0 %v4297
      %4518 = vmatprep.subr.bf16.mxu0 %v4302
      %4519 = vmatpush1.bf16.msra.mxu0 %v4301
      %4520 = vmatprep.subr.bf16.mxu0 %v4306
      %4521 = vmatpush1.bf16.msra.mxu0 %v4305
      %4522 = vmatprep.subr.bf16.mxu0 %v4310
      %4523 = vmatpush1.bf16.msra.mxu0 %v4309
      %4524 = vmatprep.subr.bf16.mxu0 %v4314
      %4525 = vmatpush1.bf16.msra.mxu0 %v4313
      %4526 = vmatprep.subr.bf16.mxu0 %v4318
      %4527 = vmatpush1.bf16.msra.mxu0 %v4317
      %4528 = vmatprep.subr.bf16.mxu0 %v4322
      %4529 = vmatpush1.bf16.msra.mxu0 %v4321
      %4530 = vmatprep.subr.bf16.mxu0 %v4326
      %4531 = vmatpush1.bf16.msra.mxu0 %v4325
      %4532 = vmatprep.mubr.bf16.mxu0 %v3666
      %4533 = vmatmul.mubr.bf16.gmra.mrb[0].mxu0 %v3665
      %v4534 = vpop.f32.mrb[0].mxu0
      %v4535 = vadd.f32 %v4492, %v4534
      %v4536 = vpop.f32.mrb[0].mxu0
      %v4537 = vadd.f32 %v4494, %v4536
      %v4538 = vpop.f32.mrb[0].mxu0
      %v4539 = vadd.f32 %v4496, %v4538
      %v4540 = vpop.f32.mrb[0].mxu0
      %v4541 = vadd.f32 %v4498, %v4540
      %4542 = vdwg.mxu0
      %4543 = vmatprep.subr.bf16.mxu0 %v4204
      %4544 = vmatpush1.bf16.msra.mxu0 %v4203
      %4545 = vmatprep.subr.bf16.mxu0 %v4208
      %4546 = vmatpush1.bf16.msra.mxu0 %v4207
      %4547 = vmatprep.subr.bf16.mxu0 %v4212
      %4548 = vmatpush1.bf16.msra.mxu0 %v4211
      %4549 = vmatprep.subr.bf16.mxu0 %v4216
      %4550 = vmatpush1.bf16.msra.mxu0 %v4215
      %4551 = vmatprep.subr.bf16.mxu0 %v4220
      %4552 = vmatpush1.bf16.msra.mxu0 %v4219
      %4553 = vmatprep.subr.bf16.mxu0 %v4224
      %4554 = vmatpush1.bf16.msra.mxu0 %v4223
      %4555 = vmatprep.subr.bf16.mxu0 %v4228
      %4556 = vmatpush1.bf16.msra.mxu0 %v4227
      %4557 = vmatprep.subr.bf16.mxu0 %v4232
      %4558 = vmatpush1.bf16.msra.mxu0 %v4231
      %4559 = vmatprep.subr.bf16.mxu0 %v4236
      %4560 = vmatpush1.bf16.msra.mxu0 %v4235
      %4561 = vmatprep.subr.bf16.mxu0 %v4240
      %4562 = vmatpush1.bf16.msra.mxu0 %v4239
      %4563 = vmatprep.subr.bf16.mxu0 %v4244
      %4564 = vmatpush1.bf16.msra.mxu0 %v4243
      %4565 = vmatprep.subr.bf16.mxu0 %v4248
      %4566 = vmatpush1.bf16.msra.mxu0 %v4247
      %4567 = vmatprep.subr.bf16.mxu0 %v4252
      %4568 = vmatpush1.bf16.msra.mxu0 %v4251
      %4569 = vmatprep.subr.bf16.mxu0 %v4256
      %4570 = vmatpush1.bf16.msra.mxu0 %v4255
      %4571 = vmatprep.subr.bf16.mxu0 %v4260
      %4572 = vmatpush1.bf16.msra.mxu0 %v4259
      %4573 = vmatprep.subr.bf16.mxu0 %v4264
      %4574 = vmatpush1.bf16.msra.mxu0 %v4263
      %4575 = vmatprep.mubr.bf16.mxu0 %v3664
      %4576 = vmatmul.mubr.bf16.gmra.mrb[0].mxu0 %v3663
      %v4577 = vpop.f32.mrb[0].mxu0
      %v4578 = vadd.f32 %v3808, %v4577
      %v4579 = vpop.f32.mrb[0].mxu0
      %v4580 = vadd.f32 %v3812, %v4579
      %v4581 = vpop.f32.mrb[0].mxu0
      %v4582 = vadd.f32 %v3808, %v4581
      %v4583 = vpop.f32.mrb[0].mxu0
      %v4584 = vadd.f32 %v3812, %v4583
      %4585 = vdwg.mxu0
      %4586 = vmatprep.subr.bf16.mxu0 %v4268
      %4587 = vmatpush1.bf16.msra.mxu0 %v4267
      %4588 = vmatprep.subr.bf16.mxu0 %v4272
      %4589 = vmatpush1.bf16.msra.mxu0 %v4271
      %4590 = vmatprep.subr.bf16.mxu0 %v4276
      %4591 = vmatpush1.bf16.msra.mxu0 %v4275
      %4592 = vmatprep.subr.bf16.mxu0 %v4280
      %4593 = vmatpush1.bf16.msra.mxu0 %v4279
      %4594 = vmatprep.subr.bf16.mxu0 %v4284
      %4595 = vmatpush1.bf16.msra.mxu0 %v4283
      %4596 = vmatprep.subr.bf16.mxu0 %v4288
      %4597 = vmatpush1.bf16.msra.mxu0 %v4287
      %4598 = vmatprep.subr.bf16.mxu0 %v4292
      %4599 = vmatpush1.bf16.msra.mxu0 %v4291
      %4600 = vmatprep.subr.bf16.mxu0 %v4296
      %4601 = vmatpush1.bf16.msra.mxu0 %v4295
      %4602 = vmatprep.subr.bf16.mxu0 %v4300
      %4603 = vmatpush1.bf16.msra.mxu0 %v4299
      %4604 = vmatprep.subr.bf16.mxu0 %v4304
      %4605 = vmatpush1.bf16.msra.mxu0 %v4303
      %4606 = vmatprep.subr.bf16.mxu0 %v4308
      %4607 = vmatpush1.bf16.msra.mxu0 %v4307
      %4608 = vmatprep.subr.bf16.mxu0 %v4312
      %4609 = vmatpush1.bf16.msra.mxu0 %v4311
      %4610 = vmatprep.subr.bf16.mxu0 %v4316
      %4611 = vmatpush1.bf16.msra.mxu0 %v4315
      %4612 = vmatprep.subr.bf16.mxu0 %v4320
      %4613 = vmatpush1.bf16.msra.mxu0 %v4319
      %4614 = vmatprep.subr.bf16.mxu0 %v4324
      %4615 = vmatpush1.bf16.msra.mxu0 %v4323
      %4616 = vmatprep.subr.bf16.mxu0 %v4328
      %4617 = vmatpush1.bf16.msra.mxu0 %v4327
      %4618 = vmatprep.mubr.bf16.mxu0 %v3666
      %4619 = vmatmul.mubr.bf16.gmra.mrb[0].mxu0 %v3665
      %v4620 = vpop.f32.mrb[0].mxu0
      %v4621 = vadd.f32 %v4578, %v4620
      %v4622 = vpop.f32.mrb[0].mxu0
      %v4623 = vadd.f32 %v4580, %v4622
      %v4624 = vpop.f32.mrb[0].mxu0
      %v4625 = vadd.f32 %v4582, %v4624
      %v4626 = vpop.f32.mrb[0].mxu0
      %v4627 = vadd.f32 %v4584, %v4626
      %4628 = vdwg.mxu0
      %v4629 = vlaneseq
      %v4630 = vshrl.u32 %v4629, 7
      %v4631 = vadd.s32 %v4630, 8
      %vm4632 = vcmp.lt.s32.totalorder %v4630, 9
      %vm4633 = vcmp.lt.s32.totalorder %v4631, 9
      %v4634 = vsel %vm4632, %v4535, -1e+30
      %v4635 = vsel %vm4632, %v4537, -1e+30
      %v4636 = vsel %vm4632, %v4621, -1e+30
      %v4637 = vsel %vm4632, %v4623, -1e+30
      %v4638 = vsel %vm4633, %v4539, -1e+30
      %v4639 = vsel %vm4633, %v4541, -1e+30
      %v4640 = vsel %vm4633, %v4625, -1e+30
      %v4641 = vsel %vm4633, %v4627, -1e+30
      %v4642 = vmax.f32 %v4634, %v4638
      %v4643 = vrot.slane %v4642, 4
      %v4644 = vmax.f32 %v4642, %v4643
      %v4645 = vrot.slane %v4644, 2
      %v4646 = vmax.f32 %v4644, %v4645
      %v4647 = vrot.slane %v4646, 1
      %v4648 = vmax.f32 %v4646, %v4647
      %v4649 = vmax.f32 %v4635, %v4639
      %v4650 = vrot.slane %v4649, 4
      %v4651 = vmax.f32 %v4649, %v4650
      %v4652 = vrot.slane %v4651, 2
      %v4653 = vmax.f32 %v4651, %v4652
      %v4654 = vrot.slane %v4653, 1
      %v4655 = vmax.f32 %v4653, %v4654
      %v4656 = vmax.f32 %v4636, %v4640
      %v4657 = vrot.slane %v4656, 4
      %v4658 = vmax.f32 %v4656, %v4657
      %v4659 = vrot.slane %v4658, 2
      %v4660 = vmax.f32 %v4658, %v4659
      %v4661 = vrot.slane %v4660, 1
      %v4662 = vmax.f32 %v4660, %v4661
      %v4663 = vmax.f32 %v4637, %v4641
      %v4664 = vrot.slane %v4663, 4
      %v4665 = vmax.f32 %v4663, %v4664
      %v4666 = vrot.slane %v4665, 2
      %v4667 = vmax.f32 %v4665, %v4666
      %v4668 = vrot.slane %v4667, 1
      %v4669 = vmax.f32 %v4667, %v4668
      %v4670 = vpack.c.bf16 %v4648, %v4648
      %v4671 = vpack.c.bf16 %v4655, %v4655
      %v4672 = vpack.c.bf16 %v4662, %v4662
      %v4673 = vpack.c.bf16 %v4669, %v4669
      %v4674 = vld [vmem:[%s5] sm:$0xf]
      %v4675 = vld [vmem:[%s5 + $0x4] sm:$0xf]
      %v4676 = vld [vmem:[%s5 + $0x8] sm:$0xf]
      %v4677 = vld [vmem:[%s5 + $0xc] sm:$0xf]
      %v4678 = vld [vmem:[%s5 + $0x10] sm:$0xf]
      %v4679 = vld [vmem:[%s5 + $0x14] sm:$0xf]
      %v4680 = vld [vmem:[%s5 + $0x18] sm:$0xf]
      %v4681 = vld [vmem:[%s5 + $0x1c] sm:$0xf]
      %v4682 = vld [vmem:[%s5 + $0x20] sm:$0xf]
      %v4683 = vld [vmem:[%s5 + $0x24] sm:$0xf]
      %v4684 = vld [vmem:[%s5 + $0x28] sm:$0xf]
      %v4685 = vld [vmem:[%s5 + $0x2c] sm:$0xf]
      %v4686 = vld [vmem:[%s5 + $0x30] sm:$0xf]
      %v4687 = vld [vmem:[%s5 + $0x34] sm:$0xf]
      %v4688 = vld [vmem:[%s5 + $0x38] sm:$0xf]
      %v4689 = vld [vmem:[%s5 + $0x3c] sm:$0xf]
      %v4690 = vld [vmem:[%s5 + $0x40] sm:$0xf]
      %v4691 = vld [vmem:[%s5 + $0x44] sm:$0xf]
      %v4692 = vld [vmem:[%s5 + $0x48] sm:$0xf]
      %v4693 = vld [vmem:[%s5 + $0x4c] sm:$0xf]
      %v4694 = vld [vmem:[%s5 + $0x50] sm:$0xf]
      %v4695 = vld [vmem:[%s5 + $0x54] sm:$0xf]
      %v4696 = vld [vmem:[%s5 + $0x58] sm:$0xf]
      %v4697 = vld [vmem:[%s5 + $0x5c] sm:$0xf]
      %v4698 = vld [vmem:[%s5 + $0x60] sm:$0xf]
      %v4699 = vld [vmem:[%s5 + $0x64] sm:$0xf]
      %v4700 = vld [vmem:[%s5 + $0x68] sm:$0xf]
      %v4701 = vld [vmem:[%s5 + $0x6c] sm:$0xf]
      %v4702 = vld [vmem:[%s5 + $0x70] sm:$0xf]
      %v4703 = vld [vmem:[%s5 + $0x74] sm:$0xf]
      %v4704 = vld [vmem:[%s5 + $0x78] sm:$0xf]
      %v4705 = vld [vmem:[%s5 + $0x7c] sm:$0xf]
      %v4706 = vld [vmem:[%s5 + $0x80] sm:$0xf]
      %v4707 = vld [vmem:[%s5 + $0x84] sm:$0xf]
      %v4708 = vld [vmem:[%s5 + $0x88] sm:$0xf]
      %v4709 = vld [vmem:[%s5 + $0x8c] sm:$0xf]
      %v4710 = vld [vmem:[%s5 + $0x90] sm:$0xf]
      %v4711 = vld [vmem:[%s5 + $0x94] sm:$0xf]
      %v4712 = vld [vmem:[%s5 + $0x98] sm:$0xf]
      %v4713 = vld [vmem:[%s5 + $0x9c] sm:$0xf]
      %v4714 = vld [vmem:[%s5 + $0xa0] sm:$0xf]
      %v4715 = vld [vmem:[%s5 + $0xa4] sm:$0xf]
      %v4716 = vld [vmem:[%s5 + $0xa8] sm:$0xf]
      %v4717 = vld [vmem:[%s5 + $0xac] sm:$0xf]
      %v4718 = vld [vmem:[%s5 + $0xb0] sm:$0xf]
      %v4719 = vld [vmem:[%s5 + $0xb4] sm:$0xf]
      %v4720 = vld [vmem:[%s5 + $0xb8] sm:$0xf]
      %v4721 = vld [vmem:[%s5 + $0xbc] sm:$0xf]
      %v4722 = vld [vmem:[%s5 + $0xc0] sm:$0xf]
      %v4723 = vld [vmem:[%s5 + $0xc4] sm:$0xf]
      %v4724 = vld [vmem:[%s5 + $0xc8] sm:$0xf]
      %v4725 = vld [vmem:[%s5 + $0xcc] sm:$0xf]
      %v4726 = vld [vmem:[%s5 + $0xd0] sm:$0xf]
      %v4727 = vld [vmem:[%s5 + $0xd4] sm:$0xf]
      %v4728 = vld [vmem:[%s5 + $0xd8] sm:$0xf]
      %v4729 = vld [vmem:[%s5 + $0xdc] sm:$0xf]
      %v4730 = vld [vmem:[%s5 + $0xe0] sm:$0xf]
      %v4731 = vld [vmem:[%s5 + $0xe4] sm:$0xf]
      %v4732 = vld [vmem:[%s5 + $0xe8] sm:$0xf]
      %v4733 = vld [vmem:[%s5 + $0xec] sm:$0xf]
      %v4734 = vld [vmem:[%s5 + $0xf0] sm:$0xf]
      %v4735 = vld [vmem:[%s5 + $0xf4] sm:$0xf]
      %v4736 = vld [vmem:[%s5 + $0xf8] sm:$0xf]
      %v4737 = vld [vmem:[%s5 + $0xfc] sm:$0xf]
      %v4738 = vld [vmem:[#allocation3] sm:$0x1]
      %v4803 = vunpack.c.l.b16 %v4674
      %v4804 = vunpack.c.l.b16 %v4675
      %v4805 = vunpack.c.l.b16 %v4676
      %v4806 = vunpack.c.l.b16 %v4677
      %v4807 = vunpack.c.l.b16 %v4678
      %v4808 = vunpack.c.l.b16 %v4679
      %v4809 = vunpack.c.l.b16 %v4680
      %v4810 = vunpack.c.l.b16 %v4681
      %v4811 = vunpack.c.l.b16 %v4682
      %v4812 = vunpack.c.l.b16 %v4683
      %v4813 = vunpack.c.l.b16 %v4684
      %v4814 = vunpack.c.l.b16 %v4685
      %v4815 = vunpack.c.l.b16 %v4686
      %v4816 = vunpack.c.l.b16 %v4687
      %v4817 = vunpack.c.l.b16 %v4688
      %v4818 = vunpack.c.l.b16 %v4689
      %v4819 = vunpack.c.l.b16 %v4690
      %v4820 = vunpack.c.l.b16 %v4691
      %v4821 = vunpack.c.l.b16 %v4692
      %v4822 = vunpack.c.l.b16 %v4693
      %v4823 = vunpack.c.l.b16 %v4694
      %v4824 = vunpack.c.l.b16 %v4695
      %v4825 = vunpack.c.l.b16 %v4696
      %v4826 = vunpack.c.l.b16 %v4697
      %v4827 = vunpack.c.l.b16 %v4698
      %v4828 = vunpack.c.l.b16 %v4699
      %v4829 = vunpack.c.l.b16 %v4700
      %v4830 = vunpack.c.l.b16 %v4701
      %v4831 = vunpack.c.l.b16 %v4702
      %v4832 = vunpack.c.l.b16 %v4703
      %v4833 = vunpack.c.l.b16 %v4704
      %v4834 = vunpack.c.l.b16 %v4705
      %v4835 = vunpack.c.l.b16 %v4706
      %v4836 = vunpack.c.l.b16 %v4707
      %v4837 = vunpack.c.l.b16 %v4708
      %v4838 = vunpack.c.l.b16 %v4709
      %v4839 = vunpack.c.l.b16 %v4710
      %v4840 = vunpack.c.l.b16 %v4711
      %v4841 = vunpack.c.l.b16 %v4712
      %v4842 = vunpack.c.l.b16 %v4713
      %v4843 = vunpack.c.l.b16 %v4714
      %v4844 = vunpack.c.l.b16 %v4715
      %v4845 = vunpack.c.l.b16 %v4716
      %v4846 = vunpack.c.l.b16 %v4717
      %v4847 = vunpack.c.l.b16 %v4718
      %v4848 = vunpack.c.l.b16 %v4719
      %v4849 = vunpack.c.l.b16 %v4720
      %v4850 = vunpack.c.l.b16 %v4721
      %v4851 = vunpack.c.l.b16 %v4722
      %v4852 = vunpack.c.l.b16 %v4723
      %v4853 = vunpack.c.l.b16 %v4724
      %v4854 = vunpack.c.l.b16 %v4725
      %v4855 = vunpack.c.l.b16 %v4726
      %v4856 = vunpack.c.l.b16 %v4727
      %v4857 = vunpack.c.l.b16 %v4728
      %v4858 = vunpack.c.l.b16 %v4729
      %v4859 = vunpack.c.l.b16 %v4730
      %v4860 = vunpack.c.l.b16 %v4731
      %v4861 = vunpack.c.l.b16 %v4732
      %v4862 = vunpack.c.l.b16 %v4733
      %v4863 = vunpack.c.l.b16 %v4734
      %v4864 = vunpack.c.l.b16 %v4735
      %v4865 = vunpack.c.l.b16 %v4736
      %v4866 = vunpack.c.l.b16 %v4737
      %v4867 = vpack.c.b16 %v4804, %v4803
      %v4868 = vpack.c.b16 %v4806, %v4805
      %v4869 = vpack.c.b16 %v4808, %v4807
      %v4870 = vpack.c.b16 %v4810, %v4809
      %v4871 = vpack.c.b16 %v4812, %v4811
      %v4872 = vpack.c.b16 %v4814, %v4813
      %v4873 = vpack.c.b16 %v4816, %v4815
      %v4874 = vpack.c.b16 %v4818, %v4817
      %v4875 = vpack.c.b16 %v4820, %v4819
      %v4876 = vpack.c.b16 %v4822, %v4821
      %v4877 = vpack.c.b16 %v4824, %v4823
      %v4878 = vpack.c.b16 %v4826, %v4825
      %v4879 = vpack.c.b16 %v4828, %v4827
      %v4880 = vpack.c.b16 %v4830, %v4829
      %v4881 = vpack.c.b16 %v4832, %v4831
      %v4882 = vpack.c.b16 %v4834, %v4833
      %v4883 = vpack.c.b16 %v4836, %v4835
      %v4884 = vpack.c.b16 %v4838, %v4837
      %v4885 = vpack.c.b16 %v4840, %v4839
      %v4886 = vpack.c.b16 %v4842, %v4841
      %v4887 = vpack.c.b16 %v4844, %v4843
      %v4888 = vpack.c.b16 %v4846, %v4845
      %v4889 = vpack.c.b16 %v4848, %v4847
      %v4890 = vpack.c.b16 %v4850, %v4849
      %v4891 = vpack.c.b16 %v4852, %v4851
      %v4892 = vpack.c.b16 %v4854, %v4853
      %v4893 = vpack.c.b16 %v4856, %v4855
      %v4894 = vpack.c.b16 %v4858, %v4857
      %v4895 = vpack.c.b16 %v4860, %v4859
      %v4896 = vpack.c.b16 %v4862, %v4861
      %v4897 = vpack.c.b16 %v4864, %v4863
      %v4898 = vpack.c.b16 %v4866, %v4865
      %4931 = vmatprep.subr.bf16.mxu0 0
      %4932 = vmatpush1.bf16.msra.mxu0 %v4867
      %4933 = vmatprep.subr.bf16.mxu0 0
      %4934 = vmatpush1.bf16.msra.mxu0 %v4868
      %4935 = vmatprep.subr.bf16.mxu0 0
      %4936 = vmatpush1.bf16.msra.mxu0 %v4869
      %4937 = vmatprep.subr.bf16.mxu0 0
      %4938 = vmatpush1.bf16.msra.mxu0 %v4870
      %4939 = vmatprep.subr.bf16.mxu0 0
      %4940 = vmatpush1.bf16.msra.mxu0 %v4871
      %4941 = vmatprep.subr.bf16.mxu0 0
      %4942 = vmatpush1.bf16.msra.mxu0 %v4872
      %4943 = vmatprep.subr.bf16.mxu0 0
      %4944 = vmatpush1.bf16.msra.mxu0 %v4873
      %4945 = vmatprep.subr.bf16.mxu0 0
      %4946 = vmatpush1.bf16.msra.mxu0 %v4874
      %4947 = vmatprep.subr.bf16.mxu0 0
      %4948 = vmatpush1.bf16.msra.mxu0 %v4875
      %4949 = vmatprep.subr.bf16.mxu0 0
      %4950 = vmatpush1.bf16.msra.mxu0 %v4876
      %4951 = vmatprep.subr.bf16.mxu0 0
      %4952 = vmatpush1.bf16.msra.mxu0 %v4877
      %4953 = vmatprep.subr.bf16.mxu0 0
      %4954 = vmatpush1.bf16.msra.mxu0 %v4878
      %4955 = vmatprep.subr.bf16.mxu0 0
      %4956 = vmatpush1.bf16.msra.mxu0 %v4879
      %4957 = vmatprep.subr.bf16.mxu0 0
      %4958 = vmatpush1.bf16.msra.mxu0 %v4880
      %4959 = vmatprep.subr.bf16.mxu0 0
      %4960 = vmatpush1.bf16.msra.mxu0 %v4881
      %4961 = vmatprep.subr.bf16.mxu0 0
      %4962 = vmatpush1.bf16.msra.mxu0 %v4882
      %4963 = vmatprep.mubr.bf16.mxu0 %v4671
      %4964 = vmatmul.mubr.bf16.gmra.mrb[0].mxu0 %v4670
      %v4965 = vpop.f32.mrb[0].mxu0
      %v4966 = vadd.f32 %v4738, %v4965
      %v4967 = vpop.f32.mrb[0].mxu0
      %v4968 = vpop.f32.mrb[0].mxu0
      %v4969 = vpop.f32.mrb[0].mxu0
      %4970 = vdwg.mxu0
      %4971 = vmatprep.subr.bf16.mxu0 0
      %4972 = vmatpush1.bf16.msra.mxu0 %v4883
      %4973 = vmatprep.subr.bf16.mxu0 0
      %4974 = vmatpush1.bf16.msra.mxu0 %v4884
      %4975 = vmatprep.subr.bf16.mxu0 0
      %4976 = vmatpush1.bf16.msra.mxu0 %v4885
      %4977 = vmatprep.subr.bf16.mxu0 0
      %4978 = vmatpush1.bf16.msra.mxu0 %v4886
      %4979 = vmatprep.subr.bf16.mxu0 0
      %4980 = vmatpush1.bf16.msra.mxu0 %v4887
      %4981 = vmatprep.subr.bf16.mxu0 0
      %4982 = vmatpush1.bf16.msra.mxu0 %v4888
      %4983 = vmatprep.subr.bf16.mxu0 0
      %4984 = vmatpush1.bf16.msra.mxu0 %v4889
      %4985 = vmatprep.subr.bf16.mxu0 0
      %4986 = vmatpush1.bf16.msra.mxu0 %v4890
      %4987 = vmatprep.subr.bf16.mxu0 0
      %4988 = vmatpush1.bf16.msra.mxu0 %v4891
      %4989 = vmatprep.subr.bf16.mxu0 0
      %4990 = vmatpush1.bf16.msra.mxu0 %v4892
      %4991 = vmatprep.subr.bf16.mxu0 0
      %4992 = vmatpush1.bf16.msra.mxu0 %v4893
      %4993 = vmatprep.subr.bf16.mxu0 0
      %4994 = vmatpush1.bf16.msra.mxu0 %v4894
      %4995 = vmatprep.subr.bf16.mxu0 0
      %4996 = vmatpush1.bf16.msra.mxu0 %v4895
      %4997 = vmatprep.subr.bf16.mxu0 0
      %4998 = vmatpush1.bf16.msra.mxu0 %v4896
      %4999 = vmatprep.subr.bf16.mxu0 0
      %5000 = vmatpush1.bf16.msra.mxu0 %v4897
      %5001 = vmatprep.subr.bf16.mxu0 0
      %5002 = vmatpush1.bf16.msra.mxu0 %v4898
      %5003 = vmatprep.mubr.bf16.mxu0 %v4673
      %5004 = vmatmul.mubr.bf16.gmra.mrb[0].mxu0 %v4672
      %v5005 = vpop.f32.mrb[0].mxu0
      %v5006 = vadd.f32 %v4966, %v5005
      %v5007 = vpop.f32.mrb[0].mxu0
      %v5008 = vpop.f32.mrb[0].mxu0
      %v5009 = vpop.f32.mrb[0].mxu0
      %5010 = vdwg.mxu0
      %vm5011 = vcmask 0
      %5012 = vst.msk [vmem:[%s281] sm:$0x1] %vm5011, %v5006
      %p5013 = scmp.lt.s32.totalorder %s20, 1
      %s5014 = scalar_select %p5013, %s20, 1
      %s5015 = scalar_lea.vmem %s7, %s5014
      // Predicated region
      $region49: #{gnn_base_forward.5} parent=47 // pred_check
        %p5016 = pneg %p190
      $region50: #{gnn_base_forward.5} parent=47 // pred_check_branch
        %5018 = sbr.rel (%p5016) target = $region52
      $region51: #{gnn_base_forward.5} parent=47 // pred_region
        _
      $region52: #{gnn_base_forward.5} parent=47 // pred_fallthru
        _
    $region48: #{gnn_base_forward.5} parent=5 // pred_fallthru
      _
    %p5019 = scmp.le.s32.totalorder 2, %s15
    // Predicated region
    $region53: #{gnn_base_forward.5} parent=5 // pred_check
      %p5020 = pneg %p5019
    $region54: #{gnn_base_forward.5} parent=5 // pred_check_branch
      %5022 = sbr.rel (%p5020) target = $region56
    $region55: #{gnn_base_forward.5} parent=5 // pred_region
      %s5023 = ssub.s32 %s15, 2
      // Predicated region
      $region57: #{gnn_base_forward.5} parent=55 // pred_check
        %p5024 = pneg %p196
      $region58: #{gnn_base_forward.5} parent=55 // pred_check_branch
        %5026 = sbr.rel (%p5024) target = $region60
      $region59: #{gnn_base_forward.5} parent=55 // pred_region
        %p5027 = scmp.lt.s32.totalorder %s21, 1
        %s5028 = scalar_select %p5027, %s21, 1
        %s5029 = scalar_lea.vmem %s7, %s5028
      $region60: #{gnn_base_forward.5} parent=55 // pred_fallthru
        _
    $region56: #{gnn_base_forward.5} parent=5 // pred_fallthru
      _
  $region6: #{gnn_base_forward.5} parent=0 // loop_footer
    %s19 = sadd.s32 1, %s15
  $region7: #{gnn_base_forward.5} parent=0 // loop_footer_branch
    %14 = sbr.rel target = $region3
  $region8: #{gnn_base_forward.5} parent=0 // loop_exit
    _

</llo_original>
